<compile_context>
chip_gen: v6e
topology: v6e:2x2x1
jax: 0.10.0
libtpu: 0.0.40
codegen_flags: <defaults>
</compile_context>

<pallas_src>
import functools

import jax
import jax.numpy as jnp
from jax.experimental import pallas as pl
from jax.experimental.pallas import tpu as pltpu


_SQRT_2_OVER_PI = 0.7978845608028654


def _gelu_tanh(x):
    # TODO(synk): torch.nn.GELU() defaults to exact erf; tanh approximation is
    # used here (EUP tanh slot), max deviation ~1e-3.
    return 0.5 * x * (1.0 + jnp.tanh(_SQRT_2_OVER_PI * (x + 0.044715 * x * x * x)))


# -----------------------------------------------------------------------------
# One fused kernel (per batch element x query tile):
#   [qt==0] in-kernel transpose + fused QKV proj into persistent VMEM scratch
#   attention (per-head, online scale post-PV) -> out-proj -> residual
#   -> LayerNorm -> FF1 (+GELU epilogue) -> FF2 -> residual -> transposed store
# -----------------------------------------------------------------------------
def _attention_block_kernel(x_ref, wqkv_ref, bqkv_ref, wo_ref, bo_ref,
                            g_ref, beta_ref, w1_ref, b1_ref, w2_ref, b2_ref,
                            o_ref, xt_scr, q_scr, k_scr, v_scr,
                            *, num_heads, eps, tq):
    # x_ref : (C, S)  f32  channels-major activation, resident across qt axis
    # o_ref : (C, TQ) f32  channels-major output tile
    # xt_scr: (S, C)  f32  token-major x (written once per batch element)
    # q/k/v_scr: (S, C) bf16 fused QKV projection (written once per batch elem)
    C = x_ref.shape[0]
    S = x_ref.shape[1]
    dh = C // num_heads
    qt = pl.program_id(1)

    # ---- once per batch element: transpose (XLU) + fused QKV (one MXU matmul)
    @pl.when(qt == 0)
    def _():
        xt = jnp.transpose(x_ref[...])                               # (S, C) f32
        xt_scr[...] = xt
        qkv = jnp.dot(xt.astype(jnp.bfloat16), wqkv_ref[...],
                      preferred_element_type=jnp.float32) + bqkv_ref[...]
        # 1/sqrt(dh) already folded into the Q columns of wqkv/bqkv at init.
        q_scr[...] = qkv[:, :C].astype(jnp.bfloat16)
        k_scr[...] = qkv[:, C:2 * C].astype(jnp.bfloat16)
        v_scr[...] = qkv[:, 2 * C:].astype(jnp.bfloat16)

    # ---- every grid step: one query tile
    row0 = pl.multiple_of(qt * tq, tq)
    x_tile = xt_scr[pl.ds(row0, tq), :]                              # (TQ, C) f32
    q_tile = q_scr[pl.ds(row0, tq), :]                               # (TQ, C) bf16
    kb = k_scr[...]
    vb = v_scr[...]

    # Per-head attention.  Head outputs are kept in registers and concatenated
    # ONCE (lane-dense bf16) directly into the out-proj matmul -- no 16-lane
    # masked scratch stores, no (S,C) f32 reload.
    # TODO(synk): dh = C/num_heads = 16 under-feeds the MXU (contraction depth
    # 16 of a 128/256-deep pass); fewer, wider heads is the real fix and is a
    # model-owner decision.
    head_outs = []
    for h in range(num_heads):
        lo = h * dh
        s = jax.lax.dot_general(q_tile[:, lo:lo + dh], kb[:, lo:lo + dh],
                                (((1,), (1,)), ((), ())),
                                preferred_element_type=jnp.float32)  # (TQ, S)
        m = jnp.max(s, axis=-1, keepdims=True)
        p = jnp.exp(s - m)                                           # f32 (EUP)
        l = jnp.sum(p, axis=-1, keepdims=True)                       # f32 denom
        # Unnormalized PV matmul (bf16 operands, f32 acc); the softmax divide
        # becomes an EUP reciprocal applied to the 16x smaller (TQ,dh) result.
        o_h = jnp.dot(p.astype(jnp.bfloat16), vb[:, lo:lo + dh],
                      preferred_element_type=jnp.float32)
        o_h = o_h * pl.reciprocal(l, approx=True)
        head_outs.append(o_h.astype(jnp.bfloat16))
    attn = jnp.concatenate(head_outs, axis=-1)                       # (TQ, C) bf16

    # ---- output projection + residual 1
    x1 = x_tile + (jnp.dot(attn, wo_ref[...],
                           preferred_element_type=jnp.float32) + bo_ref[...])

    # ---- ff_self: LayerNorm -> Linear -> GELU(tanh) -> Linear, residual 2
    mu = jnp.mean(x1, axis=-1, keepdims=True)
    var = jnp.mean(jnp.square(x1 - mu), axis=-1, keepdims=True)
    hn = (x1 - mu) * jax.lax.rsqrt(var + eps) * g_ref[...] + beta_ref[...]
    f = jnp.dot(hn.astype(jnp.bfloat16), w1_ref[...],
                preferred_element_type=jnp.float32) + b1_ref[...]
    f = _gelu_tanh(f)                                                # fused epilogue
    f = jnp.dot(f.astype(jnp.bfloat16), w2_ref[...],
                preferred_element_type=jnp.float32) + b2_ref[...]

    # ---- write back channels-major (in-kernel transpose; lane-dense (C,TQ))
    o_ref[...] = jnp.transpose(x1 + f).astype(o_ref.dtype)


@functools.partial(jax.jit, static_argnames=("num_heads",))
def attention_block(x, params, *, num_heads=8):
    B, C, H, W = x.shape
    S = H * W
    TQ = min(128, S)
    assert C % num_heads == 0 and C % 128 == 0 and S % TQ == 0, (B, C, S)
    nq = S // TQ

    # flatten(2) is a free reshape; the (C,S)<->(S,C) transposes are done
    # inside the kernel (XLU) instead of as XLA-side HBM round trips.
    xs = x.reshape(B, C, S)

    def wspec(shape):
        # Weights/biases are grid-invariant: single-buffer them to save VMEM.
        return pl.BlockSpec(shape, lambda b, q: (0,) * len(shape),
                            pipeline_mode=pl.Buffered(1))

    out = pl.pallas_call(
        functools.partial(_attention_block_kernel,
                          num_heads=num_heads, eps=1e-5, tq=TQ),
        out_shape=jax.ShapeDtypeStruct((B, C, S), jnp.float32),
        grid=(B, nq),
        in_specs=[
            # full-sequence activation, resident across the query-tile axis
            pl.BlockSpec((pl.Squeezed(), C, S), lambda b, q: (b, 0, 0)),
            wspec((C, 3 * C)), wspec((1, 3 * C)),     # fused QKV weight / bias
            wspec((C, C)), wspec((1, C)),             # out-proj
            wspec((1, C)), wspec((1, C)),             # ff LayerNorm gamma / beta
            wspec((C, C)), wspec((1, C)),             # ff linear 1
            wspec((C, C)), wspec((1, C)),             # ff linear 2
        ],
        out_specs=pl.BlockSpec((pl.Squeezed(), C, TQ), lambda b, q: (b, 0, q)),
        scratch_shapes=[
            pltpu.VMEM((S, C), jnp.float32),     # x transposed (token-major)
            pltpu.VMEM((S, C), jnp.bfloat16),    # Q (scale pre-folded)
            pltpu.VMEM((S, C), jnp.bfloat16),    # K
            pltpu.VMEM((S, C), jnp.bfloat16),    # V
        ],
        compiler_params=pltpu.CompilerParams(
            dimension_semantics=("parallel", "arbitrary"),
            vmem_limit_bytes=32 * 1024 * 1024),
    )(xs,
      params["wqkv"], params["bqkv"],
      params["wo"], params["bo"],
      params["ln_g"], params["ln_b"],
      params["w1"], params["b1"],
      params["w2"], params["b2"])

    return out.reshape(B, C, H, W)


# -----------------------------------------------------------------------------
# Parameters (weights pre-cast to bf16 once; biases / LN affine stay f32).
# The 1/sqrt(dh) attention scale is folded into the Q projection here
# (mathematically identical to PyTorch's q-scaling inside MHA).
# -----------------------------------------------------------------------------
def init_attention_block_params(key, channels, *, num_heads=8):
    dh = channels // num_heads
    scale = dh ** -0.5

    def nrm(i, shape):
        return 0.02 * jax.random.normal(jax.random.fold_in(key, i), shape,
                                        dtype=jnp.float32)

    wqkv = nrm(1, (channels, 3 * channels))
    bqkv = nrm(2, (1, 3 * channels))
    wqkv = wqkv.at[:, :channels].multiply(scale)   # fold attention scale (f32)
    bqkv = bqkv.at[:, :channels].multiply(scale)

    return {
        "wqkv": wqkv.astype(jnp.bfloat16), "bqkv": bqkv,
        "wo":   nrm(3, (channels, channels)).astype(jnp.bfloat16),
        "bo":   nrm(4, (1, channels)),
        "ln_g": jnp.ones((1, channels), jnp.float32),
        "ln_b": jnp.zeros((1, channels), jnp.float32),
        "w1":   nrm(5, (channels, channels)).astype(jnp.bfloat16),
        "b1":   nrm(6, (1, channels)),
        "w2":   nrm(7, (channels, channels)).astype(jnp.bfloat16),
        "b2":   nrm(8, (1, channels)),
    }


# -----------------------------------------------------------------------------
# Pure-JAX f32 reference (same math, no Pallas) for a tolerance check.
# -----------------------------------------------------------------------------
def attention_block_ref(x, params, *, num_heads=8):
    B, C, H, W = x.shape
    S = H * W
    dh = C // num_heads
    xs = x.reshape(B, C, S).transpose(0, 2, 1)

    qkv = xs @ params["wqkv"].astype(jnp.float32) + params["bqkv"]
    q, k, v = jnp.split(qkv, 3, axis=-1)   # q already carries the 1/sqrt(dh) scale

    def heads(t):
        return t.reshape(B, S, num_heads, dh).transpose(0, 2, 1, 3)

    qh, kh, vh = heads(q), heads(k), heads(v)
    s = jnp.einsum("bhqd,bhkd->bhqk", qh, kh)
    p = jax.nn.softmax(s, axis=-1)
    o = jnp.einsum("bhqk,bhkd->bhqd", p, vh)
    o = o.transpose(0, 2, 1, 3).reshape(B, S, C)
    o = o @ params["wo"].astype(jnp.float32) + params["bo"]
    x1 = xs + o

    mu = jnp.mean(x1, -1, keepdims=True)
    var = jnp.mean((x1 - mu) ** 2, -1, keepdims=True)
    hn = (x1 - mu) * jax.lax.rsqrt(var + 1e-5) * params["ln_g"] + params["ln_b"]
    f = _gelu_tanh(hn @ params["w1"].astype(jnp.float32) + params["b1"])
    f = f @ params["w2"].astype(jnp.float32) + params["b2"]
    y = x1 + f
    return y.transpose(0, 2, 1).reshape(B, C, H, W)


# -----------------------------------------------------------------------------
if __name__ == "__main__":
    B, C, H, W = 2, 128, 16, 16          # C divisible by num_heads=8, lane-dense
    num_heads = 8

    root = jax.random.PRNGKey(0)
    kp, kx = jax.random.split(root)
    params = init_attention_block_params(kp, C, num_heads=num_heads)
    x = jax.random.normal(kx, (B, C, H, W), dtype=jnp.float32)

    y = jax.block_until_ready(attention_block(x, params, num_heads=num_heads))

    assert y.shape == (B, C, H, W), y.shape
    assert bool(jnp.all(jnp.isfinite(y)))

    y_ref = attention_block_ref(x, params, num_heads=num_heads)
    err = float(jnp.max(jnp.abs(y - y_ref)))
    assert err < 5e-2, f"max abs diff vs reference: {err}"

    print("KERNEL_OK")
</pallas_src>

<mosaic_0001>
module attributes {stable_mosaic.version = 11 : i64} {
  func.func @_attention_block_kernel(%arg0: i32, %arg1: i32, %arg2: memref<1x128x256xf32, #tpu.memory_space<vmem>>, %arg3: memref<128x384xbf16, #tpu.memory_space<vmem>>, %arg4: memref<1x384xf32, #tpu.memory_space<vmem>>, %arg5: memref<128x128xbf16, #tpu.memory_space<vmem>>, %arg6: memref<1x128xf32, #tpu.memory_space<vmem>>, %arg7: memref<1x128xf32, #tpu.memory_space<vmem>>, %arg8: memref<1x128xf32, #tpu.memory_space<vmem>>, %arg9: memref<128x128xbf16, #tpu.memory_space<vmem>>, %arg10: memref<1x128xf32, #tpu.memory_space<vmem>>, %arg11: memref<128x128xbf16, #tpu.memory_space<vmem>>, %arg12: memref<1x128xf32, #tpu.memory_space<vmem>>, %arg13: memref<1x128x128xf32, #tpu.memory_space<vmem>>, %arg14: memref<256x128xf32, #tpu.memory_space<vmem>>, %arg15: memref<256x128xbf16, #tpu.memory_space<vmem>>, %arg16: memref<256x128xbf16, #tpu.memory_space<vmem>>, %arg17: memref<256x128xbf16, #tpu.memory_space<vmem>>) attributes {dimension_semantics = [#tpu.dimension_semantics<parallel>, #tpu.dimension_semantics<arbitrary>], iteration_bounds = array<i64: 2, 2>, scalar_prefetch = 0 : i64, scratch_operands = 4 : i64, tpu.core_type = #tpu.core_type<tc>, window_params = [{transform_indices = @transform_0, window_bounds = array<i64: 1, 128, 256>}, {pipeline_mode = #tpu.pipeline_mode<synchronous>, transform_indices = @transform_1, window_bounds = array<i64: 128, 384>}, {pipeline_mode = #tpu.pipeline_mode<synchronous>, transform_indices = @transform_2, window_bounds = array<i64: 1, 384>}, {pipeline_mode = #tpu.pipeline_mode<synchronous>, transform_indices = @transform_3, window_bounds = array<i64: 128, 128>}, {pipeline_mode = #tpu.pipeline_mode<synchronous>, transform_indices = @transform_4, window_bounds = array<i64: 1, 128>}, {pipeline_mode = #tpu.pipeline_mode<synchronous>, transform_indices = @transform_5, window_bounds = array<i64: 1, 128>}, {pipeline_mode = #tpu.pipeline_mode<synchronous>, transform_indices = @transform_6, window_bounds = array<i64: 1, 128>}, {pipeline_mode = #tpu.pipeline_mode<synchronous>, transform_indices = @transform_7, window_bounds = array<i64: 128, 128>}, {pipeline_mode = #tpu.pipeline_mode<synchronous>, transform_indices = @transform_8, window_bounds = array<i64: 1, 128>}, {pipeline_mode = #tpu.pipeline_mode<synchronous>, transform_indices = @transform_9, window_bounds = array<i64: 128, 128>}, {pipeline_mode = #tpu.pipeline_mode<synchronous>, transform_indices = @transform_10, window_bounds = array<i64: 1, 128>}, {transform_indices = @transform_11, window_bounds = array<i64: 1, 128, 128>}]} {
    %c0_i32 = arith.constant 0 : i32
    %0 = arith.cmpi eq, %arg1, %c0_i32 : i32
    %1 = arith.extui %0 : i1 to i32
    %c0_i32_0 = arith.constant 0 : i32
    %2 = arith.cmpi ne, %1, %c0_i32_0 : i32
    scf.if %2 {
      %c0_68 = arith.constant 0 : index
      %c0_69 = arith.constant 0 : index
      %c0_70 = arith.constant 0 : index
      %208 = vector.load %arg2[%c0_68, %c0_69, %c0_70] : memref<1x128x256xf32, #tpu.memory_space<vmem>>, vector<1x128x256xf32>
      %209 = vector.shape_cast %208 : vector<1x128x256xf32> to vector<128x256xf32>
      %210 = tpu.transpose %209, [1, 0] : vector<128x256xf32> -> vector<256x128xf32>
      %c0_71 = arith.constant 0 : index
      %c0_72 = arith.constant 0 : index
      %211 = vector.load %arg14[%c0_71, %c0_72] : memref<256x128xf32, #tpu.memory_space<vmem>>, vector<256x128xf32>
      tpu.vector_store %arg14[%c0_71, %c0_72], %210 {strides = array<i32>} : memref<256x128xf32, #tpu.memory_space<vmem>>, vector<256x128xf32>,
      %212 = arith.truncf %210 : vector<256x128xf32> to vector<256x128xbf16>
      %c0_73 = arith.constant 0 : index
      %c0_74 = arith.constant 0 : index
      %213 = vector.load %arg3[%c0_73, %c0_74] : memref<128x384xbf16, #tpu.memory_space<vmem>>, vector<128x384xbf16>
      %cst_75 = arith.constant dense<0.000000e+00> : vector<256x384xf32>
      %214 = tpu.matmul %212, %213, %cst_75 {dimension_numbers = #tpu.dot_dimension_numbers<[1], [0], [0], [1], [0, 0, 1, 1], [], []>} : vector<256x128xbf16>, vector<128x384xbf16>, vector<256x384xf32> -> vector<256x384xf32>
      %c0_76 = arith.constant 0 : index
      %c0_77 = arith.constant 0 : index
      %215 = vector.load %arg4[%c0_76, %c0_77] : memref<1x384xf32, #tpu.memory_space<vmem>>, vector<1x384xf32>
      %216 = vector.broadcast %215 : vector<1x384xf32> to vector<256x384xf32>
      %217 = arith.addf %214, %216 : vector<256x384xf32>
      %218 = vector.extract_strided_slice %217 {offsets = [0, 0], sizes = [256, 128], strides = [1, 1]} : vector<256x384xf32> to vector<256x128xf32>
      %219 = arith.truncf %218 : vector<256x128xf32> to vector<256x128xbf16>
      %c0_78 = arith.constant 0 : index
      %c0_79 = arith.constant 0 : index
      %220 = vector.load %arg15[%c0_78, %c0_79] : memref<256x128xbf16, #tpu.memory_space<vmem>>, vector<256x128xbf16>
      tpu.vector_store %arg15[%c0_78, %c0_79], %219 {strides = array<i32>} : memref<256x128xbf16, #tpu.memory_space<vmem>>, vector<256x128xbf16>,
      %221 = vector.extract_strided_slice %217 {offsets = [0, 128], sizes = [256, 128], strides = [1, 1]} : vector<256x384xf32> to vector<256x128xf32>
      %222 = arith.truncf %221 : vector<256x128xf32> to vector<256x128xbf16>
      %c0_80 = arith.constant 0 : index
      %c0_81 = arith.constant 0 : index
      %223 = vector.load %arg16[%c0_80, %c0_81] : memref<256x128xbf16, #tpu.memory_space<vmem>>, vector<256x128xbf16>
      tpu.vector_store %arg16[%c0_80, %c0_81], %222 {strides = array<i32>} : memref<256x128xbf16, #tpu.memory_space<vmem>>, vector<256x128xbf16>,
      %224 = vector.extract_strided_slice %217 {offsets = [0, 256], sizes = [256, 128], strides = [1, 1]} : vector<256x384xf32> to vector<256x128xf32>
      %225 = arith.truncf %224 : vector<256x128xf32> to vector<256x128xbf16>
      %c0_82 = arith.constant 0 : index
      %c0_83 = arith.constant 0 : index
      %226 = vector.load %arg17[%c0_82, %c0_83] : memref<256x128xbf16, #tpu.memory_space<vmem>>, vector<256x128xbf16>
      tpu.vector_store %arg17[%c0_82, %c0_83], %225 {strides = array<i32>} : memref<256x128xbf16, #tpu.memory_space<vmem>>, vector<256x128xbf16>,
    } else {
    }
    %c128_i32 = arith.constant 128 : i32
    %3 = arith.muli %arg1, %c128_i32 : i32
    %4 = tpu.assume_multiple %3, 128 : i32
    %5 = arith.index_cast %4 : i32 to index
    %c0 = arith.constant 0 : index
    %6 = vector.load %arg14[%5, %c0] : memref<256x128xf32, #tpu.memory_space<vmem>>, vector<128x128xf32>
    %7 = arith.index_cast %4 : i32 to index
    %c0_1 = arith.constant 0 : index
    %8 = vector.load %arg15[%7, %c0_1] : memref<256x128xbf16, #tpu.memory_space<vmem>>, vector<128x128xbf16>
    %c0_2 = arith.constant 0 : index
    %c0_3 = arith.constant 0 : index
    %9 = vector.load %arg16[%c0_2, %c0_3] : memref<256x128xbf16, #tpu.memory_space<vmem>>, vector<256x128xbf16>
    %c0_4 = arith.constant 0 : index
    %c0_5 = arith.constant 0 : index
    %10 = vector.load %arg17[%c0_4, %c0_5] : memref<256x128xbf16, #tpu.memory_space<vmem>>, vector<256x128xbf16>
    %11 = vector.extract_strided_slice %8 {offsets = [0, 0], sizes = [128, 16], strides = [1, 1]} : vector<128x128xbf16> to vector<128x16xbf16>
    %12 = vector.extract_strided_slice %9 {offsets = [0, 0], sizes = [256, 16], strides = [1, 1]} : vector<256x128xbf16> to vector<256x16xbf16>
    %cst = arith.constant dense<0.000000e+00> : vector<128x256xf32>
    %13 = tpu.matmul %11, %12, %cst {dimension_numbers = #tpu.dot_dimension_numbers<[1], [1], [0], [0], [0, 0, 1, 0], [], []>} : vector<128x16xbf16>, vector<256x16xbf16>, vector<128x256xf32> -> vector<128x256xf32>
    %cst_6 = arith.constant dense<0xFF800000> : vector<128xf32>
    %14 = vector.multi_reduction <maximumf>, %13, %cst_6 [1] : vector<128x256xf32> to vector<128xf32>
    %15 = vector.shape_cast %14 : vector<128xf32> to vector<128x1xf32>
    %16 = vector.broadcast %15 : vector<128x1xf32> to vector<128x256xf32>
    %17 = arith.subf %13, %16 : vector<128x256xf32>
    %18 = math.exp %17 : vector<128x256xf32>
    %cst_7 = arith.constant dense<0.000000e+00> : vector<128xf32>
    %19 = vector.multi_reduction <add>, %18, %cst_7 [1] : vector<128x256xf32> to vector<128xf32>
    %20 = vector.shape_cast %19 : vector<128xf32> to vector<128x1xf32>
    %21 = arith.truncf %18 : vector<128x256xf32> to vector<128x256xbf16>
    %22 = vector.extract_strided_slice %10 {offsets = [0, 0], sizes = [256, 16], strides = [1, 1]} : vector<256x128xbf16> to vector<256x16xbf16>
    %cst_8 = arith.constant dense<0.000000e+00> : vector<128x16xf32>
    %23 = tpu.matmul %21, %22, %cst_8 {dimension_numbers = #tpu.dot_dimension_numbers<[1], [0], [0], [1], [0, 0, 1, 1], [], []>} : vector<128x256xbf16>, vector<256x16xbf16>, vector<128x16xf32> -> vector<128x16xf32>
    %24 = tpu.reciprocal %20 {approx = true} : vector<128x1xf32> -> vector<128x1xf32>
    %25 = vector.broadcast %24 : vector<128x1xf32> to vector<128x16xf32>
    %26 = arith.mulf %23, %25 : vector<128x16xf32>
    %27 = arith.truncf %26 : vector<128x16xf32> to vector<128x16xbf16>
    %28 = vector.extract_strided_slice %8 {offsets = [0, 16], sizes = [128, 16], strides = [1, 1]} : vector<128x128xbf16> to vector<128x16xbf16>
    %29 = vector.extract_strided_slice %9 {offsets = [0, 16], sizes = [256, 16], strides = [1, 1]} : vector<256x128xbf16> to vector<256x16xbf16>
    %cst_9 = arith.constant dense<0.000000e+00> : vector<128x256xf32>
    %30 = tpu.matmul %28, %29, %cst_9 {dimension_numbers = #tpu.dot_dimension_numbers<[1], [1], [0], [0], [0, 0, 1, 0], [], []>} : vector<128x16xbf16>, vector<256x16xbf16>, vector<128x256xf32> -> vector<128x256xf32>
    %cst_10 = arith.constant dense<0xFF800000> : vector<128xf32>
    %31 = vector.multi_reduction <maximumf>, %30, %cst_10 [1] : vector<128x256xf32> to vector<128xf32>
    %32 = vector.shape_cast %31 : vector<128xf32> to vector<128x1xf32>
    %33 = vector.broadcast %32 : vector<128x1xf32> to vector<128x256xf32>
    %34 = arith.subf %30, %33 : vector<128x256xf32>
    %35 = math.exp %34 : vector<128x256xf32>
    %cst_11 = arith.constant dense<0.000000e+00> : vector<128xf32>
    %36 = vector.multi_reduction <add>, %35, %cst_11 [1] : vector<128x256xf32> to vector<128xf32>
    %37 = vector.shape_cast %36 : vector<128xf32> to vector<128x1xf32>
    %38 = arith.truncf %35 : vector<128x256xf32> to vector<128x256xbf16>
    %39 = vector.extract_strided_slice %10 {offsets = [0, 16], sizes = [256, 16], strides = [1, 1]} : vector<256x128xbf16> to vector<256x16xbf16>
    %cst_12 = arith.constant dense<0.000000e+00> : vector<128x16xf32>
    %40 = tpu.matmul %38, %39, %cst_12 {dimension_numbers = #tpu.dot_dimension_numbers<[1], [0], [0], [1], [0, 0, 1, 1], [], []>} : vector<128x256xbf16>, vector<256x16xbf16>, vector<128x16xf32> -> vector<128x16xf32>
    %41 = tpu.reciprocal %37 {approx = true} : vector<128x1xf32> -> vector<128x1xf32>
    %42 = vector.broadcast %41 : vector<128x1xf32> to vector<128x16xf32>
    %43 = arith.mulf %40, %42 : vector<128x16xf32>
    %44 = arith.truncf %43 : vector<128x16xf32> to vector<128x16xbf16>
    %45 = vector.extract_strided_slice %8 {offsets = [0, 32], sizes = [128, 16], strides = [1, 1]} : vector<128x128xbf16> to vector<128x16xbf16>
    %46 = vector.extract_strided_slice %9 {offsets = [0, 32], sizes = [256, 16], strides = [1, 1]} : vector<256x128xbf16> to vector<256x16xbf16>
    %cst_13 = arith.constant dense<0.000000e+00> : vector<128x256xf32>
    %47 = tpu.matmul %45, %46, %cst_13 {dimension_numbers = #tpu.dot_dimension_numbers<[1], [1], [0], [0], [0, 0, 1, 0], [], []>} : vector<128x16xbf16>, vector<256x16xbf16>, vector<128x256xf32> -> vector<128x256xf32>
    %cst_14 = arith.constant dense<0xFF800000> : vector<128xf32>
    %48 = vector.multi_reduction <maximumf>, %47, %cst_14 [1] : vector<128x256xf32> to vector<128xf32>
    %49 = vector.shape_cast %48 : vector<128xf32> to vector<128x1xf32>
    %50 = vector.broadcast %49 : vector<128x1xf32> to vector<128x256xf32>
    %51 = arith.subf %47, %50 : vector<128x256xf32>
    %52 = math.exp %51 : vector<128x256xf32>
    %cst_15 = arith.constant dense<0.000000e+00> : vector<128xf32>
    %53 = vector.multi_reduction <add>, %52, %cst_15 [1] : vector<128x256xf32> to vector<128xf32>
    %54 = vector.shape_cast %53 : vector<128xf32> to vector<128x1xf32>
    %55 = arith.truncf %52 : vector<128x256xf32> to vector<128x256xbf16>
    %56 = vector.extract_strided_slice %10 {offsets = [0, 32], sizes = [256, 16], strides = [1, 1]} : vector<256x128xbf16> to vector<256x16xbf16>
    %cst_16 = arith.constant dense<0.000000e+00> : vector<128x16xf32>
    %57 = tpu.matmul %55, %56, %cst_16 {dimension_numbers = #tpu.dot_dimension_numbers<[1], [0], [0], [1], [0, 0, 1, 1], [], []>} : vector<128x256xbf16>, vector<256x16xbf16>, vector<128x16xf32> -> vector<128x16xf32>
    %58 = tpu.reciprocal %54 {approx = true} : vector<128x1xf32> -> vector<128x1xf32>
    %59 = vector.broadcast %58 : vector<128x1xf32> to vector<128x16xf32>
    %60 = arith.mulf %57, %59 : vector<128x16xf32>
    %61 = arith.truncf %60 : vector<128x16xf32> to vector<128x16xbf16>
    %62 = vector.extract_strided_slice %8 {offsets = [0, 48], sizes = [128, 16], strides = [1, 1]} : vector<128x128xbf16> to vector<128x16xbf16>
    %63 = vector.extract_strided_slice %9 {offsets = [0, 48], sizes = [256, 16], strides = [1, 1]} : vector<256x128xbf16> to vector<256x16xbf16>
    %cst_17 = arith.constant dense<0.000000e+00> : vector<128x256xf32>
    %64 = tpu.matmul %62, %63, %cst_17 {dimension_numbers = #tpu.dot_dimension_numbers<[1], [1], [0], [0], [0, 0, 1, 0], [], []>} : vector<128x16xbf16>, vector<256x16xbf16>, vector<128x256xf32> -> vector<128x256xf32>
    %cst_18 = arith.constant dense<0xFF800000> : vector<128xf32>
    %65 = vector.multi_reduction <maximumf>, %64, %cst_18 [1] : vector<128x256xf32> to vector<128xf32>
    %66 = vector.shape_cast %65 : vector<128xf32> to vector<128x1xf32>
    %67 = vector.broadcast %66 : vector<128x1xf32> to vector<128x256xf32>
    %68 = arith.subf %64, %67 : vector<128x256xf32>
    %69 = math.exp %68 : vector<128x256xf32>
    %cst_19 = arith.constant dense<0.000000e+00> : vector<128xf32>
    %70 = vector.multi_reduction <add>, %69, %cst_19 [1] : vector<128x256xf32> to vector<128xf32>
    %71 = vector.shape_cast %70 : vector<128xf32> to vector<128x1xf32>
    %72 = arith.truncf %69 : vector<128x256xf32> to vector<128x256xbf16>
    %73 = vector.extract_strided_slice %10 {offsets = [0, 48], sizes = [256, 16], strides = [1, 1]} : vector<256x128xbf16> to vector<256x16xbf16>
    %cst_20 = arith.constant dense<0.000000e+00> : vector<128x16xf32>
    %74 = tpu.matmul %72, %73, %cst_20 {dimension_numbers = #tpu.dot_dimension_numbers<[1], [0], [0], [1], [0, 0, 1, 1], [], []>} : vector<128x256xbf16>, vector<256x16xbf16>, vector<128x16xf32> -> vector<128x16xf32>
    %75 = tpu.reciprocal %71 {approx = true} : vector<128x1xf32> -> vector<128x1xf32>
    %76 = vector.broadcast %75 : vector<128x1xf32> to vector<128x16xf32>
    %77 = arith.mulf %74, %76 : vector<128x16xf32>
    %78 = arith.truncf %77 : vector<128x16xf32> to vector<128x16xbf16>
    %79 = vector.extract_strided_slice %8 {offsets = [0, 64], sizes = [128, 16], strides = [1, 1]} : vector<128x128xbf16> to vector<128x16xbf16>
    %80 = vector.extract_strided_slice %9 {offsets = [0, 64], sizes = [256, 16], strides = [1, 1]} : vector<256x128xbf16> to vector<256x16xbf16>
    %cst_21 = arith.constant dense<0.000000e+00> : vector<128x256xf32>
    %81 = tpu.matmul %79, %80, %cst_21 {dimension_numbers = #tpu.dot_dimension_numbers<[1], [1], [0], [0], [0, 0, 1, 0], [], []>} : vector<128x16xbf16>, vector<256x16xbf16>, vector<128x256xf32> -> vector<128x256xf32>
    %cst_22 = arith.constant dense<0xFF800000> : vector<128xf32>
    %82 = vector.multi_reduction <maximumf>, %81, %cst_22 [1] : vector<128x256xf32> to vector<128xf32>
    %83 = vector.shape_cast %82 : vector<128xf32> to vector<128x1xf32>
    %84 = vector.broadcast %83 : vector<128x1xf32> to vector<128x256xf32>
    %85 = arith.subf %81, %84 : vector<128x256xf32>
    %86 = math.exp %85 : vector<128x256xf32>
    %cst_23 = arith.constant dense<0.000000e+00> : vector<128xf32>
    %87 = vector.multi_reduction <add>, %86, %cst_23 [1] : vector<128x256xf32> to vector<128xf32>
    %88 = vector.shape_cast %87 : vector<128xf32> to vector<128x1xf32>
    %89 = arith.truncf %86 : vector<128x256xf32> to vector<128x256xbf16>
    %90 = vector.extract_strided_slice %10 {offsets = [0, 64], sizes = [256, 16], strides = [1, 1]} : vector<256x128xbf16> to vector<256x16xbf16>
    %cst_24 = arith.constant dense<0.000000e+00> : vector<128x16xf32>
    %91 = tpu.matmul %89, %90, %cst_24 {dimension_numbers = #tpu.dot_dimension_numbers<[1], [0], [0], [1], [0, 0, 1, 1], [], []>} : vector<128x256xbf16>, vector<256x16xbf16>, vector<128x16xf32> -> vector<128x16xf32>
    %92 = tpu.reciprocal %88 {approx = true} : vector<128x1xf32> -> vector<128x1xf32>
    %93 = vector.broadcast %92 : vector<128x1xf32> to vector<128x16xf32>
    %94 = arith.mulf %91, %93 : vector<128x16xf32>
    %95 = arith.truncf %94 : vector<128x16xf32> to vector<128x16xbf16>
    %96 = vector.extract_strided_slice %8 {offsets = [0, 80], sizes = [128, 16], strides = [1, 1]} : vector<128x128xbf16> to vector<128x16xbf16>
    %97 = vector.extract_strided_slice %9 {offsets = [0, 80], sizes = [256, 16], strides = [1, 1]} : vector<256x128xbf16> to vector<256x16xbf16>
    %cst_25 = arith.constant dense<0.000000e+00> : vector<128x256xf32>
    %98 = tpu.matmul %96, %97, %cst_25 {dimension_numbers = #tpu.dot_dimension_numbers<[1], [1], [0], [0], [0, 0, 1, 0], [], []>} : vector<128x16xbf16>, vector<256x16xbf16>, vector<128x256xf32> -> vector<128x256xf32>
    %cst_26 = arith.constant dense<0xFF800000> : vector<128xf32>
    %99 = vector.multi_reduction <maximumf>, %98, %cst_26 [1] : vector<128x256xf32> to vector<128xf32>
    %100 = vector.shape_cast %99 : vector<128xf32> to vector<128x1xf32>
    %101 = vector.broadcast %100 : vector<128x1xf32> to vector<128x256xf32>
    %102 = arith.subf %98, %101 : vector<128x256xf32>
    %103 = math.exp %102 : vector<128x256xf32>
    %cst_27 = arith.constant dense<0.000000e+00> : vector<128xf32>
    %104 = vector.multi_reduction <add>, %103, %cst_27 [1] : vector<128x256xf32> to vector<128xf32>
    %105 = vector.shape_cast %104 : vector<128xf32> to vector<128x1xf32>
    %106 = arith.truncf %103 : vector<128x256xf32> to vector<128x256xbf16>
    %107 = vector.extract_strided_slice %10 {offsets = [0, 80], sizes = [256, 16], strides = [1, 1]} : vector<256x128xbf16> to vector<256x16xbf16>
    %cst_28 = arith.constant dense<0.000000e+00> : vector<128x16xf32>
    %108 = tpu.matmul %106, %107, %cst_28 {dimension_numbers = #tpu.dot_dimension_numbers<[1], [0], [0], [1], [0, 0, 1, 1], [], []>} : vector<128x256xbf16>, vector<256x16xbf16>, vector<128x16xf32> -> vector<128x16xf32>
    %109 = tpu.reciprocal %105 {approx = true} : vector<128x1xf32> -> vector<128x1xf32>
    %110 = vector.broadcast %109 : vector<128x1xf32> to vector<128x16xf32>
    %111 = arith.mulf %108, %110 : vector<128x16xf32>
    %112 = arith.truncf %111 : vector<128x16xf32> to vector<128x16xbf16>
    %113 = vector.extract_strided_slice %8 {offsets = [0, 96], sizes = [128, 16], strides = [1, 1]} : vector<128x128xbf16> to vector<128x16xbf16>
    %114 = vector.extract_strided_slice %9 {offsets = [0, 96], sizes = [256, 16], strides = [1, 1]} : vector<256x128xbf16> to vector<256x16xbf16>
    %cst_29 = arith.constant dense<0.000000e+00> : vector<128x256xf32>
    %115 = tpu.matmul %113, %114, %cst_29 {dimension_numbers = #tpu.dot_dimension_numbers<[1], [1], [0], [0], [0, 0, 1, 0], [], []>} : vector<128x16xbf16>, vector<256x16xbf16>, vector<128x256xf32> -> vector<128x256xf32>
    %cst_30 = arith.constant dense<0xFF800000> : vector<128xf32>
    %116 = vector.multi_reduction <maximumf>, %115, %cst_30 [1] : vector<128x256xf32> to vector<128xf32>
    %117 = vector.shape_cast %116 : vector<128xf32> to vector<128x1xf32>
    %118 = vector.broadcast %117 : vector<128x1xf32> to vector<128x256xf32>
    %119 = arith.subf %115, %118 : vector<128x256xf32>
    %120 = math.exp %119 : vector<128x256xf32>
    %cst_31 = arith.constant dense<0.000000e+00> : vector<128xf32>
    %121 = vector.multi_reduction <add>, %120, %cst_31 [1] : vector<128x256xf32> to vector<128xf32>
    %122 = vector.shape_cast %121 : vector<128xf32> to vector<128x1xf32>
    %123 = arith.truncf %120 : vector<128x256xf32> to vector<128x256xbf16>
    %124 = vector.extract_strided_slice %10 {offsets = [0, 96], sizes = [256, 16], strides = [1, 1]} : vector<256x128xbf16> to vector<256x16xbf16>
    %cst_32 = arith.constant dense<0.000000e+00> : vector<128x16xf32>
    %125 = tpu.matmul %123, %124, %cst_32 {dimension_numbers = #tpu.dot_dimension_numbers<[1], [0], [0], [1], [0, 0, 1, 1], [], []>} : vector<128x256xbf16>, vector<256x16xbf16>, vector<128x16xf32> -> vector<128x16xf32>
    %126 = tpu.reciprocal %122 {approx = true} : vector<128x1xf32> -> vector<128x1xf32>
    %127 = vector.broadcast %126 : vector<128x1xf32> to vector<128x16xf32>
    %128 = arith.mulf %125, %127 : vector<128x16xf32>
    %129 = arith.truncf %128 : vector<128x16xf32> to vector<128x16xbf16>
    %130 = vector.extract_strided_slice %8 {offsets = [0, 112], sizes = [128, 16], strides = [1, 1]} : vector<128x128xbf16> to vector<128x16xbf16>
    %131 = vector.extract_strided_slice %9 {offsets = [0, 112], sizes = [256, 16], strides = [1, 1]} : vector<256x128xbf16> to vector<256x16xbf16>
    %cst_33 = arith.constant dense<0.000000e+00> : vector<128x256xf32>
    %132 = tpu.matmul %130, %131, %cst_33 {dimension_numbers = #tpu.dot_dimension_numbers<[1], [1], [0], [0], [0, 0, 1, 0], [], []>} : vector<128x16xbf16>, vector<256x16xbf16>, vector<128x256xf32> -> vector<128x256xf32>
    %cst_34 = arith.constant dense<0xFF800000> : vector<128xf32>
    %133 = vector.multi_reduction <maximumf>, %132, %cst_34 [1] : vector<128x256xf32> to vector<128xf32>
    %134 = vector.shape_cast %133 : vector<128xf32> to vector<128x1xf32>
    %135 = vector.broadcast %134 : vector<128x1xf32> to vector<128x256xf32>
    %136 = arith.subf %132, %135 : vector<128x256xf32>
    %137 = math.exp %136 : vector<128x256xf32>
    %cst_35 = arith.constant dense<0.000000e+00> : vector<128xf32>
    %138 = vector.multi_reduction <add>, %137, %cst_35 [1] : vector<128x256xf32> to vector<128xf32>
    %139 = vector.shape_cast %138 : vector<128xf32> to vector<128x1xf32>
    %140 = arith.truncf %137 : vector<128x256xf32> to vector<128x256xbf16>
    %141 = vector.extract_strided_slice %10 {offsets = [0, 112], sizes = [256, 16], strides = [1, 1]} : vector<256x128xbf16> to vector<256x16xbf16>
    %cst_36 = arith.constant dense<0.000000e+00> : vector<128x16xf32>
    %142 = tpu.matmul %140, %141, %cst_36 {dimension_numbers = #tpu.dot_dimension_numbers<[1], [0], [0], [1], [0, 0, 1, 1], [], []>} : vector<128x256xbf16>, vector<256x16xbf16>, vector<128x16xf32> -> vector<128x16xf32>
    %143 = tpu.reciprocal %139 {approx = true} : vector<128x1xf32> -> vector<128x1xf32>
    %144 = vector.broadcast %143 : vector<128x1xf32> to vector<128x16xf32>
    %145 = arith.mulf %142, %144 : vector<128x16xf32>
    %146 = arith.truncf %145 : vector<128x16xf32> to vector<128x16xbf16>
    %147 = tpu.concatenate %27, %44, %61, %78, %95, %112, %129, %146 in 1 : vector<128x16xbf16>, vector<128x16xbf16>, vector<128x16xbf16>, vector<128x16xbf16>, vector<128x16xbf16>, vector<128x16xbf16>, vector<128x16xbf16>, vector<128x16xbf16> -> vector<128x128xbf16>
    %c0_37 = arith.constant 0 : index
    %c0_38 = arith.constant 0 : index
    %148 = vector.load %arg5[%c0_37, %c0_38] : memref<128x128xbf16, #tpu.memory_space<vmem>>, vector<128x128xbf16>
    %cst_39 = arith.constant dense<0.000000e+00> : vector<128x128xf32>
    %149 = tpu.matmul %147, %148, %cst_39 {dimension_numbers = #tpu.dot_dimension_numbers<[1], [0], [0], [1], [0, 0, 1, 1], [], []>} : vector<128x128xbf16>, vector<128x128xbf16>, vector<128x128xf32> -> vector<128x128xf32>
    %c0_40 = arith.constant 0 : index
    %c0_41 = arith.constant 0 : index
    %150 = vector.load %arg6[%c0_40, %c0_41] : memref<1x128xf32, #tpu.memory_space<vmem>>, vector<1x128xf32>
    %151 = vector.broadcast %150 : vector<1x128xf32> to vector<128x128xf32>
    %152 = arith.addf %149, %151 : vector<128x128xf32>
    %153 = arith.addf %6, %152 : vector<128x128xf32>
    %cst_42 = arith.constant dense<0.000000e+00> : vector<128xf32>
    %154 = vector.multi_reduction <add>, %153, %cst_42 [1] : vector<128x128xf32> to vector<128xf32>
    %155 = vector.shape_cast %154 : vector<128xf32> to vector<128x1xf32>
    %cst_43 = arith.constant 1.280000e+02 : f32
    %156 = vector.broadcast %cst_43 : f32 to vector<128x1xf32>
    %157 = arith.divf %155, %156 : vector<128x1xf32>
    %158 = vector.broadcast %157 : vector<128x1xf32> to vector<128x128xf32>
    %159 = arith.subf %153, %158 : vector<128x128xf32>
    %160 = arith.mulf %159, %159 : vector<128x128xf32>
    %cst_44 = arith.constant dense<0.000000e+00> : vector<128xf32>
    %161 = vector.multi_reduction <add>, %160, %cst_44 [1] : vector<128x128xf32> to vector<128xf32>
    %162 = vector.shape_cast %161 : vector<128xf32> to vector<128x1xf32>
    %cst_45 = arith.constant 1.280000e+02 : f32
    %163 = vector.broadcast %cst_45 : f32 to vector<128x1xf32>
    %164 = arith.divf %162, %163 : vector<128x1xf32>
    %165 = vector.broadcast %157 : vector<128x1xf32> to vector<128x128xf32>
    %166 = arith.subf %153, %165 : vector<128x128xf32>
    %cst_46 = arith.constant 9.99999974E-6 : f32
    %167 = vector.broadcast %cst_46 : f32 to vector<128x1xf32>
    %168 = arith.addf %164, %167 : vector<128x1xf32>
    %169 = math.rsqrt %168 : vector<128x1xf32>
    %170 = vector.broadcast %169 : vector<128x1xf32> to vector<128x128xf32>
    %171 = arith.mulf %166, %170 : vector<128x128xf32>
    %c0_47 = arith.constant 0 : index
    %c0_48 = arith.constant 0 : index
    %172 = vector.load %arg7[%c0_47, %c0_48] : memref<1x128xf32, #tpu.memory_space<vmem>>, vector<1x128xf32>
    %173 = vector.broadcast %172 : vector<1x128xf32> to vector<128x128xf32>
    %174 = arith.mulf %171, %173 : vector<128x128xf32>
    %c0_49 = arith.constant 0 : index
    %c0_50 = arith.constant 0 : index
    %175 = vector.load %arg8[%c0_49, %c0_50] : memref<1x128xf32, #tpu.memory_space<vmem>>, vector<1x128xf32>
    %176 = vector.broadcast %175 : vector<1x128xf32> to vector<128x128xf32>
    %177 = arith.addf %174, %176 : vector<128x128xf32>
    %178 = arith.truncf %177 : vector<128x128xf32> to vector<128x128xbf16>
    %c0_51 = arith.constant 0 : index
    %c0_52 = arith.constant 0 : index
    %179 = vector.load %arg9[%c0_51, %c0_52] : memref<128x128xbf16, #tpu.memory_space<vmem>>, vector<128x128xbf16>
    %cst_53 = arith.constant dense<0.000000e+00> : vector<128x128xf32>
    %180 = tpu.matmul %178, %179, %cst_53 {dimension_numbers = #tpu.dot_dimension_numbers<[1], [0], [0], [1], [0, 0, 1, 1], [], []>} : vector<128x128xbf16>, vector<128x128xbf16>, vector<128x128xf32> -> vector<128x128xf32>
    %c0_54 = arith.constant 0 : index
    %c0_55 = arith.constant 0 : index
    %181 = vector.load %arg10[%c0_54, %c0_55] : memref<1x128xf32, #tpu.memory_space<vmem>>, vector<1x128xf32>
    %182 = vector.broadcast %181 : vector<1x128xf32> to vector<128x128xf32>
    %183 = arith.addf %180, %182 : vector<128x128xf32>
    %cst_56 = arith.constant 5.000000e-01 : f32
    %184 = vector.broadcast %cst_56 : f32 to vector<128x128xf32>
    %185 = arith.mulf %184, %183 : vector<128x128xf32>
    %cst_57 = arith.constant 4.471500e-02 : f32
    %186 = vector.broadcast %cst_57 : f32 to vector<128x128xf32>
    %187 = arith.mulf %186, %183 : vector<128x128xf32>
    %188 = arith.mulf %187, %183 : vector<128x128xf32>
    %189 = arith.mulf %188, %183 : vector<128x128xf32>
    %190 = arith.addf %183, %189 : vector<128x128xf32>
    %cst_58 = arith.constant 0.797884583 : f32
    %191 = vector.broadcast %cst_58 : f32 to vector<128x128xf32>
    %192 = arith.mulf %191, %190 : vector<128x128xf32>
    %193 = math.tanh %192 : vector<128x128xf32>
    %cst_59 = arith.constant 1.000000e+00 : f32
    %194 = vector.broadcast %cst_59 : f32 to vector<128x128xf32>
    %195 = arith.addf %194, %193 : vector<128x128xf32>
    %196 = arith.mulf %185, %195 : vector<128x128xf32>
    %197 = arith.truncf %196 : vector<128x128xf32> to vector<128x128xbf16>
    %c0_60 = arith.constant 0 : index
    %c0_61 = arith.constant 0 : index
    %198 = vector.load %arg11[%c0_60, %c0_61] : memref<128x128xbf16, #tpu.memory_space<vmem>>, vector<128x128xbf16>
    %cst_62 = arith.constant dense<0.000000e+00> : vector<128x128xf32>
    %199 = tpu.matmul %197, %198, %cst_62 {dimension_numbers = #tpu.dot_dimension_numbers<[1], [0], [0], [1], [0, 0, 1, 1], [], []>} : vector<128x128xbf16>, vector<128x128xbf16>, vector<128x128xf32> -> vector<128x128xf32>
    %c0_63 = arith.constant 0 : index
    %c0_64 = arith.constant 0 : index
    %200 = vector.load %arg12[%c0_63, %c0_64] : memref<1x128xf32, #tpu.memory_space<vmem>>, vector<1x128xf32>
    %201 = vector.broadcast %200 : vector<1x128xf32> to vector<128x128xf32>
    %202 = arith.addf %199, %201 : vector<128x128xf32>
    %203 = arith.addf %153, %202 : vector<128x128xf32>
    %204 = tpu.transpose %203, [1, 0] : vector<128x128xf32> -> vector<128x128xf32>
    %c0_65 = arith.constant 0 : index
    %c0_66 = arith.constant 0 : index
    %c0_67 = arith.constant 0 : index
    %205 = vector.load %arg13[%c0_65, %c0_66, %c0_67] : memref<1x128x128xf32, #tpu.memory_space<vmem>>, vector<1x128x128xf32>
    %206 = vector.shape_cast %205 : vector<1x128x128xf32> to vector<128x128xf32>
    %207 = vector.shape_cast %204 : vector<128x128xf32> to vector<1x128x128xf32>
    tpu.vector_store %arg13[%c0_65, %c0_66, %c0_67], %207 {strides = array<i32>} : memref<1x128x128xf32, #tpu.memory_space<vmem>>, vector<1x128x128xf32>,
    return
  }
  func.func @transform_0(%arg0: i32, %arg1: i32) -> (i32, i32, i32) {
    %c0_i32 = arith.constant 0 : i32
    %c0_i32_0 = arith.constant 0 : i32
    %c0_i32_1 = arith.constant 0 : i32
    return %arg0, %c0_i32, %c0_i32_0 : i32, i32, i32
  }
  func.func @transform_1(%arg0: i32, %arg1: i32) -> (i32, i32) {
    %c0_i32 = arith.constant 0 : i32
    %c0_i32_0 = arith.constant 0 : i32
    %c0_i32_1 = arith.constant 0 : i32
    return %c0_i32, %c0_i32_0 : i32, i32
  }
  func.func @transform_2(%arg0: i32, %arg1: i32) -> (i32, i32) {
    %c0_i32 = arith.constant 0 : i32
    %c0_i32_0 = arith.constant 0 : i32
    %c0_i32_1 = arith.constant 0 : i32
    return %c0_i32, %c0_i32_0 : i32, i32
  }
  func.func @transform_3(%arg0: i32, %arg1: i32) -> (i32, i32) {
    %c0_i32 = arith.constant 0 : i32
    %c0_i32_0 = arith.constant 0 : i32
    %c0_i32_1 = arith.constant 0 : i32
    return %c0_i32, %c0_i32_0 : i32, i32
  }
  func.func @transform_4(%arg0: i32, %arg1: i32) -> (i32, i32) {
    %c0_i32 = arith.constant 0 : i32
    %c0_i32_0 = arith.constant 0 : i32
    %c0_i32_1 = arith.constant 0 : i32
    return %c0_i32, %c0_i32_0 : i32, i32
  }
  func.func @transform_5(%arg0: i32, %arg1: i32) -> (i32, i32) {
    %c0_i32 = arith.constant 0 : i32
    %c0_i32_0 = arith.constant 0 : i32
    %c0_i32_1 = arith.constant 0 : i32
    return %c0_i32, %c0_i32_0 : i32, i32
  }
  func.func @transform_6(%arg0: i32, %arg1: i32) -> (i32, i32) {
    %c0_i32 = arith.constant 0 : i32
    %c0_i32_0 = arith.constant 0 : i32
    %c0_i32_1 = arith.constant 0 : i32
    return %c0_i32, %c0_i32_0 : i32, i32
  }
  func.func @transform_7(%arg0: i32, %arg1: i32) -> (i32, i32) {
    %c0_i32 = arith.constant 0 : i32
    %c0_i32_0 = arith.constant 0 : i32
    %c0_i32_1 = arith.constant 0 : i32
    return %c0_i32, %c0_i32_0 : i32, i32
  }
  func.func @transform_8(%arg0: i32, %arg1: i32) -> (i32, i32) {
    %c0_i32 = arith.constant 0 : i32
    %c0_i32_0 = arith.constant 0 : i32
    %c0_i32_1 = arith.constant 0 : i32
    return %c0_i32, %c0_i32_0 : i32, i32
  }
  func.func @transform_9(%arg0: i32, %arg1: i32) -> (i32, i32) {
    %c0_i32 = arith.constant 0 : i32
    %c0_i32_0 = arith.constant 0 : i32
    %c0_i32_1 = arith.constant 0 : i32
    return %c0_i32, %c0_i32_0 : i32, i32
  }
  func.func @transform_10(%arg0: i32, %arg1: i32) -> (i32, i32) {
    %c0_i32 = arith.constant 0 : i32
    %c0_i32_0 = arith.constant 0 : i32
    %c0_i32_1 = arith.constant 0 : i32
    return %c0_i32, %c0_i32_0 : i32, i32
  }
  func.func @transform_11(%arg0: i32, %arg1: i32) -> (i32, i32, i32) {
    %c0_i32 = arith.constant 0 : i32
    %c0_i32_0 = arith.constant 0 : i32
    return %arg0, %c0_i32, %arg1 : i32, i32, i32
  }
}

</mosaic_0001>

<llo_original>
// kernel: attention_block.1
$region0: #{attention_block.1}
  #allocation0 [shape = 'u32[]', space=smem, size = 0x4, offset = 0x4, fixed_abs, tag = 'smem constant byte address 0x4 - core index']
  #allocation1 [shape = 'u32[144,128]{1,0:T(1,128)}', space=vmem, size = 0x12000, scoped, tag = 'internal scratch']
  #allocation2 [shape = 'f32[256,128]{1,0:T(8,128)}', space=vmem, size = 0x20000, scoped, tag = 'scratch operand']
  #allocation3 [shape = 'bf16[256,128]{1,0:T(8,128)(2,1)}', space=vmem, size = 0x10000, scoped, tag = 'scratch operand']
  #allocation4 [shape = 'bf16[256,128]{1,0:T(8,128)(2,1)}', space=vmem, size = 0x10000, scoped, tag = 'scratch operand']
  #allocation5 [shape = 'bf16[256,128]{1,0:T(8,128)(2,1)}', space=vmem, size = 0x10000, scoped, tag = 'scratch operand']
  %s0 = inlined_call_operand.vmem [shape: f32[2,128,256], index: 0, kind: input, shape index: {}]
  %s1 = inlined_call_operand.vmem [shape: bf16[128,384], index: 1, kind: input, shape index: {}]
  %s2 = inlined_call_operand.vmem [shape: f32[1,384], index: 2, kind: input, shape index: {}]
  %s3 = inlined_call_operand.vmem [shape: bf16[128,128], index: 3, kind: input, shape index: {}]
  %s4 = inlined_call_operand.vmem [shape: f32[1,128], index: 4, kind: input, shape index: {}]
  %s5 = inlined_call_operand.vmem [shape: f32[1,128], index: 5, kind: input, shape index: {}]
  %s6 = inlined_call_operand.vmem [shape: f32[1,128], index: 6, kind: input, shape index: {}]
  %s7 = inlined_call_operand.vmem [shape: bf16[128,128], index: 7, kind: input, shape index: {}]
  %s8 = inlined_call_operand.vmem [shape: f32[1,128], index: 8, kind: input, shape index: {}]
  %s9 = inlined_call_operand.vmem [shape: bf16[128,128], index: 9, kind: input, shape index: {}]
  %s10 = inlined_call_operand.vmem [shape: f32[1,128], index: 10, kind: input, shape index: {}]
  %s11 = inlined_call_operand.vmem [shape: f32[2,128,256], index: 11, kind: output, shape index: {}]
  %s12 = sld [smem:[#allocation0]]
  $region115: #{attention_block.1} parent=0
    _
  %s14 = ssub.s32 1, %s12
  %s15 = scalar_select 0, %s14, %s12
  $region1: #{attention_block.1} parent=0
    #allocation6 [shape = 'u8[131072]{0}', space=vmem, size = 0x20000, scoped, tag = 'output window, operand 0']
    loop: start=0, step=1, limit=6
    $region2: #{attention_block.1} parent=1 // loop_pre_header
      _
    $region3: #{attention_block.1} parent=1 // loop_header
      %s17 = sphi 0, %s21
      %p18 = scmp.ge.s32.totalorder %s17, 6
      %s24 = sphi 0, %s36
      %s25 = sphi 0, %s32
      %s26 = sphi 0, %s24
      %s27 = sphi 0, %s25
      %s28 = sphi 0, %s26
      %s29 = sphi 0, %s27
      %s39 = sphi 0, %s41
      %s42 = sphi 0, %s39
      %s43 = sphi 0, %s42
      %s59 = sphi 0, %s43
      %s63 = sphi 0, %s63
      %s65 = sphi 0, %s63
      %s66 = sphi 0, %s65
      %s80 = sphi 0, %s66
      %s84 = sphi 0, %s84
      %s86 = sphi 0, %s84
      %s87 = sphi 0, %s86
      %s101 = sphi 0, %s87
      %s105 = sphi 0, %s105
      %s107 = sphi 0, %s105
      %s108 = sphi 0, %s107
      %s122 = sphi 0, %s108
      %s126 = sphi 0, %s126
      %s128 = sphi 0, %s126
      %s129 = sphi 0, %s128
      %s143 = sphi 0, %s129
      %s147 = sphi 0, %s147
      %s149 = sphi 0, %s147
      %s150 = sphi 0, %s149
      %s164 = sphi 0, %s150
      %s168 = sphi 0, %s168
      %s170 = sphi 0, %s168
      %s171 = sphi 0, %s170
      %s185 = sphi 0, %s171
      %s189 = sphi 0, %s189
      %s191 = sphi 0, %s189
      %s192 = sphi 0, %s191
      %s206 = sphi 0, %s192
      %s210 = sphi 0, %s210
      %s212 = sphi 0, %s210
      %s213 = sphi 0, %s212
      %s227 = sphi 0, %s213
      %s231 = sphi 0, %s231
      %s233 = sphi 0, %s231
      %s234 = sphi 0, %s233
      %s248 = sphi 0, %s234
      %s252 = sphi 0, %s252
      %s254 = sphi 0, %s252
      %s255 = sphi 0, %s254
      %s269 = sphi 0, %s255
      %s277 = sphi 0, %s279
      %s280 = sphi 0, %s277
      %s281 = sphi 0, %s280
      %s297 = sphi 0, %s281
    $region4: #{attention_block.1} parent=1 // loop_header_branch
      %20 = sbr.rel (%p18) target = $region8
    $region5: #{attention_block.1} parent=1 // loop_body
      %s22 = ssub.s32 %s17, 1
      %s23 = ssub.s32 %s17, 2
      %s30 = sadd.s32 1, %s25
      %p31 = scmp.ge.s32.totalorder %s30, 2
      %s32 = scalar_select %p31, 0, %s30
      %s33 = sadd.s32 1, %s24
      %s34 = scalar_select %p31, %s33, %s24
      %p35 = scmp.ge.s32.totalorder %s34, 2
      %s36 = scalar_select %p35, 0, %s34
      %s37 = ssub.s32 %s24, %s36
      %p38 = scmp.eq.s32.totalorder %s37, 0
      %s40 = sadd.s32 %s39, 1
      %s41 = scalar_select %p38, %s39, %s40
      %p44 = pneg %p38
      %p45 = scmp.eq.s32.totalorder %s17, 3
      %p46 = por %p44, %p45
      %p47 = scmp.ne.s32.totalorder %s39, %s42
      %p48 = scmp.eq.s32.totalorder %s17, 0
      %p49 = por %p47, %p48
      %p50 = scmp.ne.s32.totalorder %s39, %s42
      %p51 = scmp.eq.s32.totalorder %s22, 3
      %p52 = por %p50, %p51
      %p53 = scmp.ne.s32.totalorder %s42, %s43
      %p54 = scmp.eq.s32.totalorder %s22, 0
      %p55 = por %p53, %p54
      %p56 = scmp.ne.s32.totalorder %s42, %s43
      %p57 = scmp.eq.s32.totalorder %s23, 3
      %p58 = por %p56, %p57
      %p60 = scmp.ne.s32.totalorder %s43, %s59
      %p61 = scmp.eq.s32.totalorder %s23, 0
      %p62 = por %p60, %p61
      %s64 = sadd.s32 %s63, 1
      %p67 = scmp.eq.s32.totalorder %s17, 3
      %p68 = scmp.ne.s32.totalorder %s63, %s65
      %p69 = scmp.eq.s32.totalorder %s17, 0
      %p70 = por %p68, %p69
      %p71 = scmp.ne.s32.totalorder %s63, %s65
      %p72 = scmp.eq.s32.totalorder %s22, 3
      %p73 = por %p71, %p72
      %p74 = scmp.ne.s32.totalorder %s65, %s66
      %p75 = scmp.eq.s32.totalorder %s22, 0
      %p76 = por %p74, %p75
      %p77 = scmp.ne.s32.totalorder %s65, %s66
      %p78 = scmp.eq.s32.totalorder %s23, 3
      %p79 = por %p77, %p78
      %p81 = scmp.ne.s32.totalorder %s66, %s80
      %p82 = scmp.eq.s32.totalorder %s23, 0
      %p83 = por %p81, %p82
      %s85 = sadd.s32 %s84, 1
      %p88 = scmp.eq.s32.totalorder %s17, 3
      %p89 = scmp.ne.s32.totalorder %s84, %s86
      %p90 = scmp.eq.s32.totalorder %s17, 0
      %p91 = por %p89, %p90
      %p92 = scmp.ne.s32.totalorder %s84, %s86
      %p93 = scmp.eq.s32.totalorder %s22, 3
      %p94 = por %p92, %p93
      %p95 = scmp.ne.s32.totalorder %s86, %s87
      %p96 = scmp.eq.s32.totalorder %s22, 0
      %p97 = por %p95, %p96
      %p98 = scmp.ne.s32.totalorder %s86, %s87
      %p99 = scmp.eq.s32.totalorder %s23, 3
      %p100 = por %p98, %p99
      %p102 = scmp.ne.s32.totalorder %s87, %s101
      %p103 = scmp.eq.s32.totalorder %s23, 0
      %p104 = por %p102, %p103
      %s106 = sadd.s32 %s105, 1
      %p109 = scmp.eq.s32.totalorder %s17, 3
      %p110 = scmp.ne.s32.totalorder %s105, %s107
      %p111 = scmp.eq.s32.totalorder %s17, 0
      %p112 = por %p110, %p111
      %p113 = scmp.ne.s32.totalorder %s105, %s107
      %p114 = scmp.eq.s32.totalorder %s22, 3
      %p115 = por %p113, %p114
      %p116 = scmp.ne.s32.totalorder %s107, %s108
      %p117 = scmp.eq.s32.totalorder %s22, 0
      %p118 = por %p116, %p117
      %p119 = scmp.ne.s32.totalorder %s107, %s108
      %p120 = scmp.eq.s32.totalorder %s23, 3
      %p121 = por %p119, %p120
      %p123 = scmp.ne.s32.totalorder %s108, %s122
      %p124 = scmp.eq.s32.totalorder %s23, 0
      %p125 = por %p123, %p124
      %s127 = sadd.s32 %s126, 1
      %p130 = scmp.eq.s32.totalorder %s17, 3
      %p131 = scmp.ne.s32.totalorder %s126, %s128
      %p132 = scmp.eq.s32.totalorder %s17, 0
      %p133 = por %p131, %p132
      %p134 = scmp.ne.s32.totalorder %s126, %s128
      %p135 = scmp.eq.s32.totalorder %s22, 3
      %p136 = por %p134, %p135
      %p137 = scmp.ne.s32.totalorder %s128, %s129
      %p138 = scmp.eq.s32.totalorder %s22, 0
      %p139 = por %p137, %p138
      %p140 = scmp.ne.s32.totalorder %s128, %s129
      %p141 = scmp.eq.s32.totalorder %s23, 3
      %p142 = por %p140, %p141
      %p144 = scmp.ne.s32.totalorder %s129, %s143
      %p145 = scmp.eq.s32.totalorder %s23, 0
      %p146 = por %p144, %p145
      %s148 = sadd.s32 %s147, 1
      %p151 = scmp.eq.s32.totalorder %s17, 3
      %p152 = scmp.ne.s32.totalorder %s147, %s149
      %p153 = scmp.eq.s32.totalorder %s17, 0
      %p154 = por %p152, %p153
      %p155 = scmp.ne.s32.totalorder %s147, %s149
      %p156 = scmp.eq.s32.totalorder %s22, 3
      %p157 = por %p155, %p156
      %p158 = scmp.ne.s32.totalorder %s149, %s150
      %p159 = scmp.eq.s32.totalorder %s22, 0
      %p160 = por %p158, %p159
      %p161 = scmp.ne.s32.totalorder %s149, %s150
      %p162 = scmp.eq.s32.totalorder %s23, 3
      %p163 = por %p161, %p162
      %p165 = scmp.ne.s32.totalorder %s150, %s164
      %p166 = scmp.eq.s32.totalorder %s23, 0
      %p167 = por %p165, %p166
      %s169 = sadd.s32 %s168, 1
      %p172 = scmp.eq.s32.totalorder %s17, 3
      %p173 = scmp.ne.s32.totalorder %s168, %s170
      %p174 = scmp.eq.s32.totalorder %s17, 0
      %p175 = por %p173, %p174
      %p176 = scmp.ne.s32.totalorder %s168, %s170
      %p177 = scmp.eq.s32.totalorder %s22, 3
      %p178 = por %p176, %p177
      %p179 = scmp.ne.s32.totalorder %s170, %s171
      %p180 = scmp.eq.s32.totalorder %s22, 0
      %p181 = por %p179, %p180
      %p182 = scmp.ne.s32.totalorder %s170, %s171
      %p183 = scmp.eq.s32.totalorder %s23, 3
      %p184 = por %p182, %p183
      %p186 = scmp.ne.s32.totalorder %s171, %s185
      %p187 = scmp.eq.s32.totalorder %s23, 0
      %p188 = por %p186, %p187
      %s190 = sadd.s32 %s189, 1
      %p193 = scmp.eq.s32.totalorder %s17, 3
      %p194 = scmp.ne.s32.totalorder %s189, %s191
      %p195 = scmp.eq.s32.totalorder %s17, 0
      %p196 = por %p194, %p195
      %p197 = scmp.ne.s32.totalorder %s189, %s191
      %p198 = scmp.eq.s32.totalorder %s22, 3
      %p199 = por %p197, %p198
      %p200 = scmp.ne.s32.totalorder %s191, %s192
      %p201 = scmp.eq.s32.totalorder %s22, 0
      %p202 = por %p200, %p201
      %p203 = scmp.ne.s32.totalorder %s191, %s192
      %p204 = scmp.eq.s32.totalorder %s23, 3
      %p205 = por %p203, %p204
      %p207 = scmp.ne.s32.totalorder %s192, %s206
      %p208 = scmp.eq.s32.totalorder %s23, 0
      %p209 = por %p207, %p208
      %s211 = sadd.s32 %s210, 1
      %p214 = scmp.eq.s32.totalorder %s17, 3
      %p215 = scmp.ne.s32.totalorder %s210, %s212
      %p216 = scmp.eq.s32.totalorder %s17, 0
      %p217 = por %p215, %p216
      %p218 = scmp.ne.s32.totalorder %s210, %s212
      %p219 = scmp.eq.s32.totalorder %s22, 3
      %p220 = por %p218, %p219
      %p221 = scmp.ne.s32.totalorder %s212, %s213
      %p222 = scmp.eq.s32.totalorder %s22, 0
      %p223 = por %p221, %p222
      %p224 = scmp.ne.s32.totalorder %s212, %s213
      %p225 = scmp.eq.s32.totalorder %s23, 3
      %p226 = por %p224, %p225
      %p228 = scmp.ne.s32.totalorder %s213, %s227
      %p229 = scmp.eq.s32.totalorder %s23, 0
      %p230 = por %p228, %p229
      %s232 = sadd.s32 %s231, 1
      %p235 = scmp.eq.s32.totalorder %s17, 3
      %p236 = scmp.ne.s32.totalorder %s231, %s233
      %p237 = scmp.eq.s32.totalorder %s17, 0
      %p238 = por %p236, %p237
      %p239 = scmp.ne.s32.totalorder %s231, %s233
      %p240 = scmp.eq.s32.totalorder %s22, 3
      %p241 = por %p239, %p240
      %p242 = scmp.ne.s32.totalorder %s233, %s234
      %p243 = scmp.eq.s32.totalorder %s22, 0
      %p244 = por %p242, %p243
      %p245 = scmp.ne.s32.totalorder %s233, %s234
      %p246 = scmp.eq.s32.totalorder %s23, 3
      %p247 = por %p245, %p246
      %p249 = scmp.ne.s32.totalorder %s234, %s248
      %p250 = scmp.eq.s32.totalorder %s23, 0
      %p251 = por %p249, %p250
      %s253 = sadd.s32 %s252, 1
      %p256 = scmp.eq.s32.totalorder %s17, 3
      %p257 = scmp.ne.s32.totalorder %s252, %s254
      %p258 = scmp.eq.s32.totalorder %s17, 0
      %p259 = por %p257, %p258
      %p260 = scmp.ne.s32.totalorder %s252, %s254
      %p261 = scmp.eq.s32.totalorder %s22, 3
      %p262 = por %p260, %p261
      %p263 = scmp.ne.s32.totalorder %s254, %s255
      %p264 = scmp.eq.s32.totalorder %s22, 0
      %p265 = por %p263, %p264
      %p266 = scmp.ne.s32.totalorder %s254, %s255
      %p267 = scmp.eq.s32.totalorder %s23, 3
      %p268 = por %p266, %p267
      %p270 = scmp.ne.s32.totalorder %s255, %s269
      %p271 = scmp.eq.s32.totalorder %s23, 0
      %p272 = por %p270, %p271
      %s273 = ssub.s32 %s24, %s36
      %s274 = ssub.s32 %s25, %s32
      %s275 = sor.u32 %s273, %s274
      %p276 = scmp.eq.s32.totalorder %s275, 0
      %s278 = sadd.s32 %s277, 1
      %s279 = scalar_select %p276, %s277, %s278
      %p282 = pneg %p276
      %p283 = scmp.eq.s32.totalorder %s17, 3
      %p284 = por %p282, %p283
      %p285 = scmp.ne.s32.totalorder %s277, %s280
      %p286 = scmp.eq.s32.totalorder %s17, 0
      %p287 = por %p285, %p286
      %p288 = scmp.ne.s32.totalorder %s277, %s280
      %p289 = scmp.eq.s32.totalorder %s22, 3
      %p290 = por %p288, %p289
      %p291 = scmp.ne.s32.totalorder %s280, %s281
      %p292 = scmp.eq.s32.totalorder %s22, 0
      %p293 = por %p291, %p292
      %p294 = scmp.ne.s32.totalorder %s280, %s281
      %p295 = scmp.eq.s32.totalorder %s23, 3
      %p296 = por %p294, %p295
      %p298 = scmp.ne.s32.totalorder %s281, %s297
      %p299 = scmp.eq.s32.totalorder %s23, 0
      %p300 = por %p298, %p299
      %p301 = scmp.le.s32.totalorder 1, %s17
      %p302 = scmp.lt.s32.totalorder %s17, 5
      %p303 = pnand %p301, %p302
      %p304 = pneg %p303
      // Predicated region
      $region9: #{attention_block.1} parent=5 // pred_check
        _
      $region10: #{attention_block.1} parent=5 // pred_check_branch
        %306 = sbr.rel (%p303) target = $region12
      $region11: #{attention_block.1} parent=5 // pred_region
        %s307 = ssub.s32 %s17, 1
        // Predicated region
        $region13: #{attention_block.1} parent=11 // pred_check
          %p308 = pneg %p76
        $region14: #{attention_block.1} parent=11 // pred_check_branch
          %310 = sbr.rel (%p308) target = $region16
        $region15: #{attention_block.1} parent=11 // pred_region
          _
        $region16: #{attention_block.1} parent=11 // pred_fallthru
          _
        // Predicated region
        $region17: #{attention_block.1} parent=11 // pred_check
          %p311 = pneg %p97
        $region18: #{attention_block.1} parent=11 // pred_check_branch
          %313 = sbr.rel (%p311) target = $region20
        $region19: #{attention_block.1} parent=11 // pred_region
          _
        $region20: #{attention_block.1} parent=11 // pred_fallthru
          _
        // Predicated region
        $region21: #{attention_block.1} parent=11 // pred_check
          %p314 = pneg %p118
        $region22: #{attention_block.1} parent=11 // pred_check_branch
          %316 = sbr.rel (%p314) target = $region24
        $region23: #{attention_block.1} parent=11 // pred_region
          _
        $region24: #{attention_block.1} parent=11 // pred_fallthru
          _
        // Predicated region
        $region25: #{attention_block.1} parent=11 // pred_check
          %p317 = pneg %p139
        $region26: #{attention_block.1} parent=11 // pred_check_branch
          %319 = sbr.rel (%p317) target = $region28
        $region27: #{attention_block.1} parent=11 // pred_region
          _
        $region28: #{attention_block.1} parent=11 // pred_fallthru
          _
        // Predicated region
        $region29: #{attention_block.1} parent=11 // pred_check
          %p320 = pneg %p160
        $region30: #{attention_block.1} parent=11 // pred_check_branch
          %322 = sbr.rel (%p320) target = $region32
        $region31: #{attention_block.1} parent=11 // pred_region
          _
        $region32: #{attention_block.1} parent=11 // pred_fallthru
          _
        // Predicated region
        $region33: #{attention_block.1} parent=11 // pred_check
          %p323 = pneg %p181
        $region34: #{attention_block.1} parent=11 // pred_check_branch
          %325 = sbr.rel (%p323) target = $region36
        $region35: #{attention_block.1} parent=11 // pred_region
          _
        $region36: #{attention_block.1} parent=11 // pred_fallthru
          _
        // Predicated region
        $region37: #{attention_block.1} parent=11 // pred_check
          %p326 = pneg %p202
        $region38: #{attention_block.1} parent=11 // pred_check_branch
          %328 = sbr.rel (%p326) target = $region40
        $region39: #{attention_block.1} parent=11 // pred_region
          _
        $region40: #{attention_block.1} parent=11 // pred_fallthru
          _
        // Predicated region
        $region41: #{attention_block.1} parent=11 // pred_check
          %p329 = pneg %p223
        $region42: #{attention_block.1} parent=11 // pred_check_branch
          %331 = sbr.rel (%p329) target = $region44
        $region43: #{attention_block.1} parent=11 // pred_region
          _
        $region44: #{attention_block.1} parent=11 // pred_fallthru
          _
        // Predicated region
        $region45: #{attention_block.1} parent=11 // pred_check
          %p332 = pneg %p244
        $region46: #{attention_block.1} parent=11 // pred_check_branch
          %334 = sbr.rel (%p332) target = $region48
        $region47: #{attention_block.1} parent=11 // pred_region
          _
        $region48: #{attention_block.1} parent=11 // pred_fallthru
          _
        // Predicated region
        $region49: #{attention_block.1} parent=11 // pred_check
          %p335 = pneg %p265
        $region50: #{attention_block.1} parent=11 // pred_check_branch
          %337 = sbr.rel (%p335) target = $region52
        $region51: #{attention_block.1} parent=11 // pred_region
          _
        $region52: #{attention_block.1} parent=11 // pred_fallthru
          _
      $region12: #{attention_block.1} parent=5 // pred_fallthru
        _
      %p338 = scmp.lt.s32.totalorder %s17, 4
      // Predicated region
      $region53: #{attention_block.1} parent=5 // pred_check
        %p339 = pneg %p338
      $region54: #{attention_block.1} parent=5 // pred_check_branch
        %341 = sbr.rel (%p339) target = $region56
      $region55: #{attention_block.1} parent=5 // pred_region
        // Predicated region
        $region57: #{attention_block.1} parent=55 // pred_check
          %p342 = pneg %p49
        $region58: #{attention_block.1} parent=55 // pred_check_branch
          %344 = sbr.rel (%p342) target = $region60
        $region59: #{attention_block.1} parent=55 // pred_region
          %p345 = scmp.lt.s32.totalorder %s24, 1
          %s346 = scalar_select %p345, %s24, 1
          %s347 = smul.addr %s346, 32
          %s348 = smul.addr %s347, 8
          %s349 = scalar_lea.vmem %s0, %s348
        $region60: #{attention_block.1} parent=55 // pred_fallthru
          _
      $region56: #{attention_block.1} parent=5 // pred_fallthru
        _
      %p350 = scmp.le.s32.totalorder 1, %s17
      %p351 = scmp.lt.s32.totalorder %s17, 5
      %p352 = pnand %p350, %p351
      %p353 = pneg %p352
      // Predicated region
      $region61: #{attention_block.1} parent=5 // pred_check
        _
      $region62: #{attention_block.1} parent=5 // pred_check_branch
        %355 = sbr.rel (%p352) target = $region64
      $region63: #{attention_block.1} parent=5 // pred_region
        %s356 = ssub.s32 %s17, 1
        %p357 = scmp.lt.s32.totalorder %s26, 1
        %s358 = scalar_select %p357, %s26, 1
        %s359 = smul.addr %s358, 32
        %s360 = smul.addr %s359, 8
        %s361 = scalar_lea.vmem %s0, %s360
        %p362 = pneg %p55
        %p363 = pneg %p52
        %p364 = pneg %p76
        %p365 = pneg %p73
        %p366 = pneg %p97
        %p367 = pneg %p94
        %p368 = pneg %p118
        %p369 = pneg %p115
        %p370 = pneg %p139
        %p371 = pneg %p136
        %p372 = pneg %p160
        %p373 = pneg %p157
        %p374 = pneg %p181
        %p375 = pneg %p178
        %p376 = pneg %p202
        %p377 = pneg %p199
        %p378 = pneg %p223
        %p379 = pneg %p220
        %p380 = pneg %p244
        %p381 = pneg %p241
        %p382 = pneg %p265
        %p383 = pneg %p262
        %p384 = pneg %p293
        %p385 = pneg %p290
        %s386 = sand.u32 %s280, 1
        %s387 = sand.u32 %s280, 1
        %s388 = smul.addr %s387, 128
        %s389 = scalar_lea.vmem [#allocation6], %s388
        %p390 = scmp.lt.s32.totalorder %s26, 1
        %s391 = scalar_select %p390, %s26, 1
        %s392 = smul.addr %s391, 32
        %s393 = smul.addr %s392, 8
        %s394 = scalar_lea.vmem %s0, %s393
        %p396 = scmp.eq.s32.totalorder %s27, 0
        // Predicated region
        $region65: #{attention_block.1} parent=63 // pred_check
          %p397 = pneg %p396
        $region66: #{attention_block.1} parent=63 // pred_check_branch
          %399 = sbr.rel (%p397) target = $region68
        $region67: #{attention_block.1} parent=63 // pred_region
          %v400 = vld [vmem:[%s394] sm:$0xff]
          %v401 = vld [vmem:[%s394 + $0x8] sm:$0xff]
          %v402 = vld [vmem:[%s394 + $0x10] sm:$0xff]
          %v403 = vld [vmem:[%s394 + $0x18] sm:$0xff]
          %v404 = vld [vmem:[%s394 + $0x20] sm:$0xff]
          %v405 = vld [vmem:[%s394 + $0x28] sm:$0xff]
          %v406 = vld [vmem:[%s394 + $0x30] sm:$0xff]
          %v407 = vld [vmem:[%s394 + $0x38] sm:$0xff]
          %v408 = vld [vmem:[%s394 + $0x40] sm:$0xff]
          %v409 = vld [vmem:[%s394 + $0x48] sm:$0xff]
          %v410 = vld [vmem:[%s394 + $0x50] sm:$0xff]
          %v411 = vld [vmem:[%s394 + $0x58] sm:$0xff]
          %v412 = vld [vmem:[%s394 + $0x60] sm:$0xff]
          %v413 = vld [vmem:[%s394 + $0x68] sm:$0xff]
          %v414 = vld [vmem:[%s394 + $0x70] sm:$0xff]
          %v415 = vld [vmem:[%s394 + $0x78] sm:$0xff]
          %v416 = vld [vmem:[%s394 + $0x80] sm:$0xff]
          %v417 = vld [vmem:[%s394 + $0x88] sm:$0xff]
          %v418 = vld [vmem:[%s394 + $0x90] sm:$0xff]
          %v419 = vld [vmem:[%s394 + $0x98] sm:$0xff]
          %v420 = vld [vmem:[%s394 + $0xa0] sm:$0xff]
          %v421 = vld [vmem:[%s394 + $0xa8] sm:$0xff]
          %v422 = vld [vmem:[%s394 + $0xb0] sm:$0xff]
          %v423 = vld [vmem:[%s394 + $0xb8] sm:$0xff]
          %v424 = vld [vmem:[%s394 + $0xc0] sm:$0xff]
          %v425 = vld [vmem:[%s394 + $0xc8] sm:$0xff]
          %v426 = vld [vmem:[%s394 + $0xd0] sm:$0xff]
          %v427 = vld [vmem:[%s394 + $0xd8] sm:$0xff]
          %v428 = vld [vmem:[%s394 + $0xe0] sm:$0xff]
          %v429 = vld [vmem:[%s394 + $0xe8] sm:$0xff]
          %v430 = vld [vmem:[%s394 + $0xf0] sm:$0xff]
          %v431 = vld [vmem:[%s394 + $0xf8] sm:$0xff]
          %432 = vxpose.xlu0.b32.start [1/16] %v400, 128
          %433 = vxpose.xlu0.b32.cont [2/16] %v402, 128
          %434 = vxpose.xlu0.b32.cont [3/16] %v404, 128
          %435 = vxpose.xlu0.b32.cont [4/16] %v406, 128
          %436 = vxpose.xlu0.b32.cont [5/16] %v408, 128
          %437 = vxpose.xlu0.b32.cont [6/16] %v410, 128
          %438 = vxpose.xlu0.b32.cont [7/16] %v412, 128
          %439 = vxpose.xlu0.b32.cont [8/16] %v414, 128
          %440 = vxpose.xlu0.b32.cont [9/16] %v416, 128
          %441 = vxpose.xlu0.b32.cont [10/16] %v418, 128
          %442 = vxpose.xlu0.b32.cont [11/16] %v420, 128
          %443 = vxpose.xlu0.b32.cont [12/16] %v422, 128
          %444 = vxpose.xlu0.b32.cont [13/16] %v424, 128
          %445 = vxpose.xlu0.b32.cont [14/16] %v426, 128
          %446 = vxpose.xlu0.b32.cont [15/16] %v428, 128
          %447 = vxpose.xlu0.b32.end [16/16] %v430, 128
          %v448 = vpop.trf.xlu0
          %v449 = vpop.trf.xlu0
          %v450 = vpop.trf.xlu0
          %v451 = vpop.trf.xlu0
          %v452 = vpop.trf.xlu0
          %v453 = vpop.trf.xlu0
          %v454 = vpop.trf.xlu0
          %v455 = vpop.trf.xlu0
          %v456 = vpop.trf.xlu0
          %v457 = vpop.trf.xlu0
          %v458 = vpop.trf.xlu0
          %v459 = vpop.trf.xlu0
          %v460 = vpop.trf.xlu0
          %v461 = vpop.trf.xlu0
          %v462 = vpop.trf.xlu0
          %v463 = vpop.trf.xlu0
          %464 = vxpose.xlu0.b32.start [1/16] %v401, 128
          %465 = vxpose.xlu0.b32.cont [2/16] %v403, 128
          %466 = vxpose.xlu0.b32.cont [3/16] %v405, 128
          %467 = vxpose.xlu0.b32.cont [4/16] %v407, 128
          %468 = vxpose.xlu0.b32.cont [5/16] %v409, 128
          %469 = vxpose.xlu0.b32.cont [6/16] %v411, 128
          %470 = vxpose.xlu0.b32.cont [7/16] %v413, 128
          %471 = vxpose.xlu0.b32.cont [8/16] %v415, 128
          %472 = vxpose.xlu0.b32.cont [9/16] %v417, 128
          %473 = vxpose.xlu0.b32.cont [10/16] %v419, 128
          %474 = vxpose.xlu0.b32.cont [11/16] %v421, 128
          %475 = vxpose.xlu0.b32.cont [12/16] %v423, 128
          %476 = vxpose.xlu0.b32.cont [13/16] %v425, 128
          %477 = vxpose.xlu0.b32.cont [14/16] %v427, 128
          %478 = vxpose.xlu0.b32.cont [15/16] %v429, 128
          %479 = vxpose.xlu0.b32.end [16/16] %v431, 128
          %v480 = vpop.trf.xlu0
          %v481 = vpop.trf.xlu0
          %v482 = vpop.trf.xlu0
          %v483 = vpop.trf.xlu0
          %v484 = vpop.trf.xlu0
          %v485 = vpop.trf.xlu0
          %v486 = vpop.trf.xlu0
          %v487 = vpop.trf.xlu0
          %v488 = vpop.trf.xlu0
          %v489 = vpop.trf.xlu0
          %v490 = vpop.trf.xlu0
          %v491 = vpop.trf.xlu0
          %v492 = vpop.trf.xlu0
          %v493 = vpop.trf.xlu0
          %v494 = vpop.trf.xlu0
          %v495 = vpop.trf.xlu0
          %496 = vst [vmem:[#allocation2] sm:$0xff] %v448
          %497 = vst [vmem:[#allocation2 + $0x8] sm:$0xff] %v449
          %498 = vst [vmem:[#allocation2 + $0x10] sm:$0xff] %v450
          %499 = vst [vmem:[#allocation2 + $0x18] sm:$0xff] %v451
          %500 = vst [vmem:[#allocation2 + $0x20] sm:$0xff] %v452
          %501 = vst [vmem:[#allocation2 + $0x28] sm:$0xff] %v453
          %502 = vst [vmem:[#allocation2 + $0x30] sm:$0xff] %v454
          %503 = vst [vmem:[#allocation2 + $0x38] sm:$0xff] %v455
          %504 = vst [vmem:[#allocation2 + $0x40] sm:$0xff] %v456
          %505 = vst [vmem:[#allocation2 + $0x48] sm:$0xff] %v457
          %506 = vst [vmem:[#allocation2 + $0x50] sm:$0xff] %v458
          %507 = vst [vmem:[#allocation2 + $0x58] sm:$0xff] %v459
          %508 = vst [vmem:[#allocation2 + $0x60] sm:$0xff] %v460
          %509 = vst [vmem:[#allocation2 + $0x68] sm:$0xff] %v461
          %510 = vst [vmem:[#allocation2 + $0x70] sm:$0xff] %v462
          %511 = vst [vmem:[#allocation2 + $0x78] sm:$0xff] %v463
          %512 = vst [vmem:[#allocation2 + $0x80] sm:$0xff] %v480
          %513 = vst [vmem:[#allocation2 + $0x88] sm:$0xff] %v481
          %514 = vst [vmem:[#allocation2 + $0x90] sm:$0xff] %v482
          %515 = vst [vmem:[#allocation2 + $0x98] sm:$0xff] %v483
          %516 = vst [vmem:[#allocation2 + $0xa0] sm:$0xff] %v484
          %517 = vst [vmem:[#allocation2 + $0xa8] sm:$0xff] %v485
          %518 = vst [vmem:[#allocation2 + $0xb0] sm:$0xff] %v486
          %519 = vst [vmem:[#allocation2 + $0xb8] sm:$0xff] %v487
          %520 = vst [vmem:[#allocation2 + $0xc0] sm:$0xff] %v488
          %521 = vst [vmem:[#allocation2 + $0xc8] sm:$0xff] %v489
          %522 = vst [vmem:[#allocation2 + $0xd0] sm:$0xff] %v490
          %523 = vst [vmem:[#allocation2 + $0xd8] sm:$0xff] %v491
          %524 = vst [vmem:[#allocation2 + $0xe0] sm:$0xff] %v492
          %525 = vst [vmem:[#allocation2 + $0xe8] sm:$0xff] %v493
          %526 = vst [vmem:[#allocation2 + $0xf0] sm:$0xff] %v494
          %527 = vst [vmem:[#allocation2 + $0xf8] sm:$0xff] %v495
          %v528 = vpack.c.bf16 %v449, %v448
          %v529 = vpack.c.bf16 %v451, %v450
          %v530 = vpack.c.bf16 %v453, %v452
          %v531 = vpack.c.bf16 %v455, %v454
          %v532 = vpack.c.bf16 %v457, %v456
          %v533 = vpack.c.bf16 %v459, %v458
          %v534 = vpack.c.bf16 %v461, %v460
          %v535 = vpack.c.bf16 %v463, %v462
          %v536 = vpack.c.bf16 %v481, %v480
          %v537 = vpack.c.bf16 %v483, %v482
          %v538 = vpack.c.bf16 %v485, %v484
          %v539 = vpack.c.bf16 %v487, %v486
          %v540 = vpack.c.bf16 %v489, %v488
          %v541 = vpack.c.bf16 %v491, %v490
          %v542 = vpack.c.bf16 %v493, %v492
          %v543 = vpack.c.bf16 %v495, %v494
          %v544 = vld [vmem:[%s1] sm:$0xff]
          %v545 = vld [vmem:[%s1 + $0x8] sm:$0xf]
          %v546 = vld [vmem:[%s1 + $0xc] sm:$0xff]
          %v547 = vld [vmem:[%s1 + $0x14] sm:$0xf]
          %v548 = vld [vmem:[%s1 + $0x18] sm:$0xff]
          %v549 = vld [vmem:[%s1 + $0x20] sm:$0xf]
          %v550 = vld [vmem:[%s1 + $0x24] sm:$0xff]
          %v551 = vld [vmem:[%s1 + $0x2c] sm:$0xf]
          %v552 = vld [vmem:[%s1 + $0x30] sm:$0xff]
          %v553 = vld [vmem:[%s1 + $0x38] sm:$0xf]
          %v554 = vld [vmem:[%s1 + $0x3c] sm:$0xff]
          %v555 = vld [vmem:[%s1 + $0x44] sm:$0xf]
          %v556 = vld [vmem:[%s1 + $0x48] sm:$0xff]
          %v557 = vld [vmem:[%s1 + $0x50] sm:$0xf]
          %v558 = vld [vmem:[%s1 + $0x54] sm:$0xff]
          %v559 = vld [vmem:[%s1 + $0x5c] sm:$0xf]
          %v560 = vld [vmem:[%s1 + $0x60] sm:$0xff]
          %v561 = vld [vmem:[%s1 + $0x68] sm:$0xf]
          %v562 = vld [vmem:[%s1 + $0x6c] sm:$0xff]
          %v563 = vld [vmem:[%s1 + $0x74] sm:$0xf]
          %v564 = vld [vmem:[%s1 + $0x78] sm:$0xff]
          %v565 = vld [vmem:[%s1 + $0x80] sm:$0xf]
          %v566 = vld [vmem:[%s1 + $0x84] sm:$0xff]
          %v567 = vld [vmem:[%s1 + $0x8c] sm:$0xf]
          %v568 = vld [vmem:[%s1 + $0x90] sm:$0xff]
          %v569 = vld [vmem:[%s1 + $0x98] sm:$0xf]
          %v570 = vld [vmem:[%s1 + $0x9c] sm:$0xff]
          %v571 = vld [vmem:[%s1 + $0xa4] sm:$0xf]
          %v572 = vld [vmem:[%s1 + $0xa8] sm:$0xff]
          %v573 = vld [vmem:[%s1 + $0xb0] sm:$0xf]
          %v574 = vld [vmem:[%s1 + $0xb4] sm:$0xff]
          %v575 = vld [vmem:[%s1 + $0xbc] sm:$0xf]
          %v576 = vld [vmem:[%s2] sm:$0x7]
          %v578 = vlaneseq
          %v579 = vshrl.u32 %v578, 7
          %v580 = vsub.s32 0, %v579
          %v581 = vrot.slane %v576, %v580
          %v582 = vlaneseq
          %v583 = vshrl.u32 %v582, 7
          %v584 = vsub.s32 1, %v583
          %v585 = vrot.slane %v576, %v584
          %v586 = vlaneseq
          %v587 = vshrl.u32 %v586, 7
          %v588 = vsub.s32 2, %v587
          %v589 = vrot.slane %v576, %v588
          %v625 = vunpack.c.l.b16 %v544
          %v626 = vunpack.c.h.b16 %v544
          %v627 = vunpack.c.l.b16 %v545
          %v628 = vunpack.c.l.b16 %v546
          %v629 = vunpack.c.h.b16 %v546
          %v630 = vunpack.c.l.b16 %v547
          %v631 = vunpack.c.l.b16 %v548
          %v632 = vunpack.c.h.b16 %v548
          %v633 = vunpack.c.l.b16 %v549
          %v634 = vunpack.c.l.b16 %v550
          %v635 = vunpack.c.h.b16 %v550
          %v636 = vunpack.c.l.b16 %v551
          %v637 = vunpack.c.l.b16 %v552
          %v638 = vunpack.c.h.b16 %v552
          %v639 = vunpack.c.l.b16 %v553
          %v640 = vunpack.c.l.b16 %v554
          %v641 = vunpack.c.h.b16 %v554
          %v642 = vunpack.c.l.b16 %v555
          %v643 = vunpack.c.l.b16 %v556
          %v644 = vunpack.c.h.b16 %v556
          %v645 = vunpack.c.l.b16 %v557
          %v646 = vunpack.c.l.b16 %v558
          %v647 = vunpack.c.h.b16 %v558
          %v648 = vunpack.c.l.b16 %v559
          %v649 = vunpack.c.l.b16 %v560
          %v650 = vunpack.c.h.b16 %v560
          %v651 = vunpack.c.l.b16 %v561
          %v652 = vunpack.c.l.b16 %v562
          %v653 = vunpack.c.h.b16 %v562
          %v654 = vunpack.c.l.b16 %v563
          %v655 = vunpack.c.l.b16 %v564
          %v656 = vunpack.c.h.b16 %v564
          %v657 = vunpack.c.l.b16 %v565
          %v658 = vunpack.c.l.b16 %v566
          %v659 = vunpack.c.h.b16 %v566
          %v660 = vunpack.c.l.b16 %v567
          %v661 = vunpack.c.l.b16 %v568
          %v662 = vunpack.c.h.b16 %v568
          %v663 = vunpack.c.l.b16 %v569
          %v664 = vunpack.c.l.b16 %v570
          %v665 = vunpack.c.h.b16 %v570
          %v666 = vunpack.c.l.b16 %v571
          %v667 = vunpack.c.l.b16 %v572
          %v668 = vunpack.c.h.b16 %v572
          %v669 = vunpack.c.l.b16 %v573
          %v670 = vunpack.c.l.b16 %v574
          %v671 = vunpack.c.h.b16 %v574
          %v672 = vunpack.c.l.b16 %v575
          %v673 = vpack.c.b16 %v628, %v625
          %v674 = vpack.c.b16 %v629, %v626
          %v675 = vpack.c.b16 %v630, %v627
          %v676 = vpack.c.b16 %v634, %v631
          %v677 = vpack.c.b16 %v635, %v632
          %v678 = vpack.c.b16 %v636, %v633
          %v679 = vpack.c.b16 %v640, %v637
          %v680 = vpack.c.b16 %v641, %v638
          %v681 = vpack.c.b16 %v642, %v639
          %v682 = vpack.c.b16 %v646, %v643
          %v683 = vpack.c.b16 %v647, %v644
          %v684 = vpack.c.b16 %v648, %v645
          %v685 = vpack.c.b16 %v652, %v649
          %v686 = vpack.c.b16 %v653, %v650
          %v687 = vpack.c.b16 %v654, %v651
          %v688 = vpack.c.b16 %v658, %v655
          %v689 = vpack.c.b16 %v659, %v656
          %v690 = vpack.c.b16 %v660, %v657
          %v691 = vpack.c.b16 %v664, %v661
          %v692 = vpack.c.b16 %v665, %v662
          %v693 = vpack.c.b16 %v666, %v663
          %v694 = vpack.c.b16 %v670, %v667
          %v695 = vpack.c.b16 %v671, %v668
          %v696 = vpack.c.b16 %v672, %v669
          %721 = vmatprep.subr.bf16.mxu0 %v695
          %722 = vmatpush1.bf16.msra.mxu0 %v694
          %723 = vmatprep.subr.bf16.mxu0 %v692
          %724 = vmatpush1.bf16.msra.mxu0 %v691
          %725 = vmatprep.subr.bf16.mxu0 %v689
          %726 = vmatpush1.bf16.msra.mxu0 %v688
          %727 = vmatprep.subr.bf16.mxu0 %v686
          %728 = vmatpush1.bf16.msra.mxu0 %v685
          %729 = vmatprep.subr.bf16.mxu0 %v683
          %730 = vmatpush1.bf16.msra.mxu0 %v682
          %731 = vmatprep.subr.bf16.mxu0 %v680
          %732 = vmatpush1.bf16.msra.mxu0 %v679
          %733 = vmatprep.subr.bf16.mxu0 %v677
          %734 = vmatpush1.bf16.msra.mxu0 %v676
          %735 = vmatprep.subr.bf16.mxu0 %v674
          %736 = vmatpush1.bf16.msra.mxu0 %v673
          %737 = vmatprep.subr.bf16.mxu0 0
          %738 = vmatpush2.bf16.msra.mxu0 0
          %739 = vmatprep.subr.bf16.mxu0 0
          %740 = vmatpush2.bf16.msra.mxu0 0
          %741 = vmatprep.subr.bf16.mxu0 0
          %742 = vmatpush2.bf16.msra.mxu0 0
          %743 = vmatprep.subr.bf16.mxu0 0
          %744 = vmatpush2.bf16.msra.mxu0 0
          %745 = vmatprep.subr.bf16.mxu0 0
          %746 = vmatpush2.bf16.msra.mxu0 0
          %747 = vmatprep.subr.bf16.mxu0 0
          %748 = vmatpush2.bf16.msra.mxu0 0
          %749 = vmatprep.subr.bf16.mxu0 0
          %750 = vmatpush2.bf16.msra.mxu0 0
          %751 = vmatprep.subr.bf16.mxu0 0
          %752 = vmatpush2.bf16.msra.mxu0 0
          %753 = vmatprep.mubr.bf16.mxu0 0
          %754 = vmatmul.mubr.bf16.gmra.mxu0 %v528
          %v755 = vpop.f32.mrf.mxu0
          %v756 = vadd.f32 %v581, %v755
          %v757 = vpop.f32.mrf.mxu0
          %v758 = vadd.f32 %v585, %v757
          %v759 = vpop.f32.mrf.mxu0
          %v760 = vadd.f32 %v581, %v759
          %v761 = vpop.f32.mrf.mxu0
          %v762 = vadd.f32 %v585, %v761
          %763 = vmatprep.mubr.bf16.mxu0 0
          %764 = vmatmul.mubr.bf16.gmra.mxu0 %v529
          %v765 = vpop.f32.mrf.mxu0
          %v766 = vadd.f32 %v581, %v765
          %v767 = vpop.f32.mrf.mxu0
          %v768 = vadd.f32 %v585, %v767
          %v769 = vpop.f32.mrf.mxu0
          %v770 = vadd.f32 %v581, %v769
          %v771 = vpop.f32.mrf.mxu0
          %v772 = vadd.f32 %v585, %v771
          %773 = vmatprep.mubr.bf16.mxu0 0
          %774 = vmatmul.mubr.bf16.gmra.mxu0 %v530
          %v775 = vpop.f32.mrf.mxu0
          %v776 = vadd.f32 %v581, %v775
          %v777 = vpop.f32.mrf.mxu0
          %v778 = vadd.f32 %v585, %v777
          %v779 = vpop.f32.mrf.mxu0
          %v780 = vadd.f32 %v581, %v779
          %v781 = vpop.f32.mrf.mxu0
          %v782 = vadd.f32 %v585, %v781
          %783 = vmatprep.mubr.bf16.mxu0 0
          %784 = vmatmul.mubr.bf16.gmra.mxu0 %v531
          %v785 = vpop.f32.mrf.mxu0
          %v786 = vadd.f32 %v581, %v785
          %v787 = vpop.f32.mrf.mxu0
          %v788 = vadd.f32 %v585, %v787
          %v789 = vpop.f32.mrf.mxu0
          %v790 = vadd.f32 %v581, %v789
          %v791 = vpop.f32.mrf.mxu0
          %v792 = vadd.f32 %v585, %v791
          %793 = vmatprep.mubr.bf16.mxu0 0
          %794 = vmatmul.mubr.bf16.gmra.mxu0 %v532
          %v795 = vpop.f32.mrf.mxu0
          %v796 = vadd.f32 %v581, %v795
          %v797 = vpop.f32.mrf.mxu0
          %v798 = vadd.f32 %v585, %v797
          %v799 = vpop.f32.mrf.mxu0
          %v800 = vadd.f32 %v581, %v799
          %v801 = vpop.f32.mrf.mxu0
          %v802 = vadd.f32 %v585, %v801
          %803 = vmatprep.mubr.bf16.mxu0 0
          %804 = vmatmul.mubr.bf16.gmra.mxu0 %v533
          %v805 = vpop.f32.mrf.mxu0
          %v806 = vadd.f32 %v581, %v805
          %v807 = vpop.f32.mrf.mxu0
          %v808 = vadd.f32 %v585, %v807
          %v809 = vpop.f32.mrf.mxu0
          %v810 = vadd.f32 %v581, %v809
          %v811 = vpop.f32.mrf.mxu0
          %v812 = vadd.f32 %v585, %v811
          %813 = vmatprep.mubr.bf16.mxu0 0
          %814 = vmatmul.mubr.bf16.gmra.mxu0 %v534
          %v815 = vpop.f32.mrf.mxu0
          %v816 = vadd.f32 %v581, %v815
          %v817 = vpop.f32.mrf.mxu0
          %v818 = vadd.f32 %v585, %v817
          %v819 = vpop.f32.mrf.mxu0
          %v820 = vadd.f32 %v581, %v819
          %v821 = vpop.f32.mrf.mxu0
          %v822 = vadd.f32 %v585, %v821
          %823 = vmatprep.mubr.bf16.mxu0 0
          %824 = vmatmul.mubr.bf16.gmra.mxu0 %v535
          %v825 = vpop.f32.mrf.mxu0
          %v826 = vadd.f32 %v581, %v825
          %v827 = vpop.f32.mrf.mxu0
          %v828 = vadd.f32 %v585, %v827
          %v829 = vpop.f32.mrf.mxu0
          %v830 = vadd.f32 %v581, %v829
          %v831 = vpop.f32.mrf.mxu0
          %v832 = vadd.f32 %v585, %v831
          %833 = vmatprep.mubr.bf16.mxu0 0
          %834 = vmatmul.mubr.bf16.gmra.mxu0 %v536
          %v835 = vpop.f32.mrf.mxu0
          %v836 = vadd.f32 %v581, %v835
          %v837 = vpop.f32.mrf.mxu0
          %v838 = vadd.f32 %v585, %v837
          %v839 = vpop.f32.mrf.mxu0
          %v840 = vadd.f32 %v581, %v839
          %v841 = vpop.f32.mrf.mxu0
          %v842 = vadd.f32 %v585, %v841
          %843 = vmatprep.mubr.bf16.mxu0 0
          %844 = vmatmul.mubr.bf16.gmra.mxu0 %v537
          %v845 = vpop.f32.mrf.mxu0
          %v846 = vadd.f32 %v581, %v845
          %v847 = vpop.f32.mrf.mxu0
          %v848 = vadd.f32 %v585, %v847
          %v849 = vpop.f32.mrf.mxu0
          %v850 = vadd.f32 %v581, %v849
          %v851 = vpop.f32.mrf.mxu0
          %v852 = vadd.f32 %v585, %v851
          %853 = vmatprep.mubr.bf16.mxu0 0
          %854 = vmatmul.mubr.bf16.gmra.mxu0 %v538
          %v855 = vpop.f32.mrf.mxu0
          %v856 = vadd.f32 %v581, %v855
          %v857 = vpop.f32.mrf.mxu0
          %v858 = vadd.f32 %v585, %v857
          %v859 = vpop.f32.mrf.mxu0
          %v860 = vadd.f32 %v581, %v859
          %v861 = vpop.f32.mrf.mxu0
          %v862 = vadd.f32 %v585, %v861
          %863 = vmatprep.mubr.bf16.mxu0 0
          %864 = vmatmul.mubr.bf16.gmra.mxu0 %v539
          %v865 = vpop.f32.mrf.mxu0
          %v866 = vadd.f32 %v581, %v865
          %v867 = vpop.f32.mrf.mxu0
          %v868 = vadd.f32 %v585, %v867
          %v869 = vpop.f32.mrf.mxu0
          %v870 = vadd.f32 %v581, %v869
          %v871 = vpop.f32.mrf.mxu0
          %v872 = vadd.f32 %v585, %v871
          %873 = vmatprep.mubr.bf16.mxu0 0
          %874 = vmatmul.mubr.bf16.gmra.mxu0 %v540
          %v875 = vpop.f32.mrf.mxu0
          %v876 = vadd.f32 %v581, %v875
          %v877 = vpop.f32.mrf.mxu0
          %v878 = vadd.f32 %v585, %v877
          %v879 = vpop.f32.mrf.mxu0
          %v880 = vadd.f32 %v581, %v879
          %v881 = vpop.f32.mrf.mxu0
          %v882 = vadd.f32 %v585, %v881
          %883 = vmatprep.mubr.bf16.mxu0 0
          %884 = vmatmul.mubr.bf16.gmra.mxu0 %v541
          %v885 = vpop.f32.mrf.mxu0
          %v886 = vadd.f32 %v581, %v885
          %v887 = vpop.f32.mrf.mxu0
          %v888 = vadd.f32 %v585, %v887
          %v889 = vpop.f32.mrf.mxu0
          %v890 = vadd.f32 %v581, %v889
          %v891 = vpop.f32.mrf.mxu0
          %v892 = vadd.f32 %v585, %v891
          %893 = vmatprep.mubr.bf16.mxu0 0
          %894 = vmatmul.mubr.bf16.gmra.mxu0 %v542
          %v895 = vpop.f32.mrf.mxu0
          %v896 = vadd.f32 %v581, %v895
          %v897 = vpop.f32.mrf.mxu0
          %v898 = vadd.f32 %v585, %v897
          %v899 = vpop.f32.mrf.mxu0
          %v900 = vadd.f32 %v581, %v899
          %v901 = vpop.f32.mrf.mxu0
          %v902 = vadd.f32 %v585, %v901
          %903 = vmatprep.mubr.bf16.mxu0 0
          %904 = vmatmul.mubr.bf16.gmra.mxu0 %v543
          %v905 = vpop.f32.mrf.mxu0
          %v906 = vadd.f32 %v581, %v905
          %v907 = vpop.f32.mrf.mxu0
          %v908 = vadd.f32 %v585, %v907
          %v909 = vpop.f32.mrf.mxu0
          %v910 = vadd.f32 %v581, %v909
          %v911 = vpop.f32.mrf.mxu0
          %v912 = vadd.f32 %v585, %v911
          %913 = vdwg.mxu0
          %914 = vmatprep.subr.bf16.mxu0 0
          %915 = vmatpush1.bf16.msra.mxu0 %v696
          %916 = vmatprep.subr.bf16.mxu0 0
          %917 = vmatpush1.bf16.msra.mxu0 %v693
          %918 = vmatprep.subr.bf16.mxu0 0
          %919 = vmatpush1.bf16.msra.mxu0 %v690
          %920 = vmatprep.subr.bf16.mxu0 0
          %921 = vmatpush1.bf16.msra.mxu0 %v687
          %922 = vmatprep.subr.bf16.mxu0 0
          %923 = vmatpush1.bf16.msra.mxu0 %v684
          %924 = vmatprep.subr.bf16.mxu0 0
          %925 = vmatpush1.bf16.msra.mxu0 %v681
          %926 = vmatprep.subr.bf16.mxu0 0
          %927 = vmatpush1.bf16.msra.mxu0 %v678
          %928 = vmatprep.subr.bf16.mxu0 0
          %929 = vmatpush1.bf16.msra.mxu0 %v675
          %930 = vmatprep.subr.bf16.mxu0 0
          %931 = vmatpush2.bf16.msra.mxu0 0
          %932 = vmatprep.subr.bf16.mxu0 0
          %933 = vmatpush2.bf16.msra.mxu0 0
          %934 = vmatprep.subr.bf16.mxu0 0
          %935 = vmatpush2.bf16.msra.mxu0 0
          %936 = vmatprep.subr.bf16.mxu0 0
          %937 = vmatpush2.bf16.msra.mxu0 0
          %938 = vmatprep.subr.bf16.mxu0 0
          %939 = vmatpush2.bf16.msra.mxu0 0
          %940 = vmatprep.subr.bf16.mxu0 0
          %941 = vmatpush2.bf16.msra.mxu0 0
          %942 = vmatprep.subr.bf16.mxu0 0
          %943 = vmatpush2.bf16.msra.mxu0 0
          %944 = vmatprep.subr.bf16.mxu0 0
          %945 = vmatpush2.bf16.msra.mxu0 0
          %946 = vmatprep.mubr.bf16.mxu0 0
          %947 = vmatmul.mubr.bf16.gmra.mxu0 %v528
          %v948 = vpop.f32.mrf.mxu0
          %v949 = vadd.f32 %v589, %v948
          %v950 = vpop.f32.mrf.mxu0
          %v951 = vpop.f32.mrf.mxu0
          %v952 = vadd.f32 %v589, %v951
          %v953 = vpop.f32.mrf.mxu0
          %954 = vmatprep.mubr.bf16.mxu0 0
          %955 = vmatmul.mubr.bf16.gmra.mxu0 %v529
          %v956 = vpop.f32.mrf.mxu0
          %v957 = vadd.f32 %v589, %v956
          %v958 = vpop.f32.mrf.mxu0
          %v959 = vpop.f32.mrf.mxu0
          %v960 = vadd.f32 %v589, %v959
          %v961 = vpop.f32.mrf.mxu0
          %962 = vmatprep.mubr.bf16.mxu0 0
          %963 = vmatmul.mubr.bf16.gmra.mxu0 %v530
          %v964 = vpop.f32.mrf.mxu0
          %v965 = vadd.f32 %v589, %v964
          %v966 = vpop.f32.mrf.mxu0
          %v967 = vpop.f32.mrf.mxu0
          %v968 = vadd.f32 %v589, %v967
          %v969 = vpop.f32.mrf.mxu0
          %970 = vmatprep.mubr.bf16.mxu0 0
          %971 = vmatmul.mubr.bf16.gmra.mxu0 %v531
          %v972 = vpop.f32.mrf.mxu0
          %v973 = vadd.f32 %v589, %v972
          %v974 = vpop.f32.mrf.mxu0
          %v975 = vpop.f32.mrf.mxu0
          %v976 = vadd.f32 %v589, %v975
          %v977 = vpop.f32.mrf.mxu0
          %978 = vmatprep.mubr.bf16.mxu0 0
          %979 = vmatmul.mubr.bf16.gmra.mxu0 %v532
          %v980 = vpop.f32.mrf.mxu0
          %v981 = vadd.f32 %v589, %v980
          %v982 = vpop.f32.mrf.mxu0
          %v983 = vpop.f32.mrf.mxu0
          %v984 = vadd.f32 %v589, %v983
          %v985 = vpop.f32.mrf.mxu0
          %986 = vmatprep.mubr.bf16.mxu0 0
          %987 = vmatmul.mubr.bf16.gmra.mxu0 %v533
          %v988 = vpop.f32.mrf.mxu0
          %v989 = vadd.f32 %v589, %v988
          %v990 = vpop.f32.mrf.mxu0
          %v991 = vpop.f32.mrf.mxu0
          %v992 = vadd.f32 %v589, %v991
          %v993 = vpop.f32.mrf.mxu0
          %994 = vmatprep.mubr.bf16.mxu0 0
          %995 = vmatmul.mubr.bf16.gmra.mxu0 %v534
          %v996 = vpop.f32.mrf.mxu0
          %v997 = vadd.f32 %v589, %v996
          %v998 = vpop.f32.mrf.mxu0
          %v999 = vpop.f32.mrf.mxu0
          %v1000 = vadd.f32 %v589, %v999
          %v1001 = vpop.f32.mrf.mxu0
          %1002 = vmatprep.mubr.bf16.mxu0 0
          %1003 = vmatmul.mubr.bf16.gmra.mxu0 %v535
          %v1004 = vpop.f32.mrf.mxu0
          %v1005 = vadd.f32 %v589, %v1004
          %v1006 = vpop.f32.mrf.mxu0
          %v1007 = vpop.f32.mrf.mxu0
          %v1008 = vadd.f32 %v589, %v1007
          %v1009 = vpop.f32.mrf.mxu0
          %1010 = vmatprep.mubr.bf16.mxu0 0
          %1011 = vmatmul.mubr.bf16.gmra.mxu0 %v536
          %v1012 = vpop.f32.mrf.mxu0
          %v1013 = vadd.f32 %v589, %v1012
          %v1014 = vpop.f32.mrf.mxu0
          %v1015 = vpop.f32.mrf.mxu0
          %v1016 = vadd.f32 %v589, %v1015
          %v1017 = vpop.f32.mrf.mxu0
          %1018 = vmatprep.mubr.bf16.mxu0 0
          %1019 = vmatmul.mubr.bf16.gmra.mxu0 %v537
          %v1020 = vpop.f32.mrf.mxu0
          %v1021 = vadd.f32 %v589, %v1020
          %v1022 = vpop.f32.mrf.mxu0
          %v1023 = vpop.f32.mrf.mxu0
          %v1024 = vadd.f32 %v589, %v1023
          %v1025 = vpop.f32.mrf.mxu0
          %1026 = vmatprep.mubr.bf16.mxu0 0
          %1027 = vmatmul.mubr.bf16.gmra.mxu0 %v538
          %v1028 = vpop.f32.mrf.mxu0
          %v1029 = vadd.f32 %v589, %v1028
          %v1030 = vpop.f32.mrf.mxu0
          %v1031 = vpop.f32.mrf.mxu0
          %v1032 = vadd.f32 %v589, %v1031
          %v1033 = vpop.f32.mrf.mxu0
          %1034 = vmatprep.mubr.bf16.mxu0 0
          %1035 = vmatmul.mubr.bf16.gmra.mxu0 %v539
          %v1036 = vpop.f32.mrf.mxu0
          %v1037 = vadd.f32 %v589, %v1036
          %v1038 = vpop.f32.mrf.mxu0
          %v1039 = vpop.f32.mrf.mxu0
          %v1040 = vadd.f32 %v589, %v1039
          %v1041 = vpop.f32.mrf.mxu0
          %1042 = vmatprep.mubr.bf16.mxu0 0
          %1043 = vmatmul.mubr.bf16.gmra.mxu0 %v540
          %v1044 = vpop.f32.mrf.mxu0
          %v1045 = vadd.f32 %v589, %v1044
          %v1046 = vpop.f32.mrf.mxu0
          %v1047 = vpop.f32.mrf.mxu0
          %v1048 = vadd.f32 %v589, %v1047
          %v1049 = vpop.f32.mrf.mxu0
          %1050 = vmatprep.mubr.bf16.mxu0 0
          %1051 = vmatmul.mubr.bf16.gmra.mxu0 %v541
          %v1052 = vpop.f32.mrf.mxu0
          %v1053 = vadd.f32 %v589, %v1052
          %v1054 = vpop.f32.mrf.mxu0
          %v1055 = vpop.f32.mrf.mxu0
          %v1056 = vadd.f32 %v589, %v1055
          %v1057 = vpop.f32.mrf.mxu0
          %1058 = vmatprep.mubr.bf16.mxu0 0
          %1059 = vmatmul.mubr.bf16.gmra.mxu0 %v542
          %v1060 = vpop.f32.mrf.mxu0
          %v1061 = vadd.f32 %v589, %v1060
          %v1062 = vpop.f32.mrf.mxu0
          %v1063 = vpop.f32.mrf.mxu0
          %v1064 = vadd.f32 %v589, %v1063
          %v1065 = vpop.f32.mrf.mxu0
          %1066 = vmatprep.mubr.bf16.mxu0 0
          %1067 = vmatmul.mubr.bf16.gmra.mxu0 %v543
          %v1068 = vpop.f32.mrf.mxu0
          %v1069 = vadd.f32 %v589, %v1068
          %v1070 = vpop.f32.mrf.mxu0
          %v1071 = vpop.f32.mrf.mxu0
          %v1072 = vadd.f32 %v589, %v1071
          %v1073 = vpop.f32.mrf.mxu0
          %1074 = vdwg.mxu0
          %v1075 = vpack.c.bf16 %v760, %v756
          %v1076 = vpack.c.bf16 %v770, %v766
          %v1077 = vpack.c.bf16 %v780, %v776
          %v1078 = vpack.c.bf16 %v790, %v786
          %v1079 = vpack.c.bf16 %v800, %v796
          %v1080 = vpack.c.bf16 %v810, %v806
          %v1081 = vpack.c.bf16 %v820, %v816
          %v1082 = vpack.c.bf16 %v830, %v826
          %v1083 = vpack.c.bf16 %v840, %v836
          %v1084 = vpack.c.bf16 %v850, %v846
          %v1085 = vpack.c.bf16 %v860, %v856
          %v1086 = vpack.c.bf16 %v870, %v866
          %v1087 = vpack.c.bf16 %v880, %v876
          %v1088 = vpack.c.bf16 %v890, %v886
          %v1089 = vpack.c.bf16 %v900, %v896
          %v1090 = vpack.c.bf16 %v910, %v906
          %v1107 = vunpack.c.l.b16 %v1075
          %v1108 = vunpack.c.h.b16 %v1075
          %v1109 = vunpack.c.l.b16 %v1076
          %v1110 = vunpack.c.h.b16 %v1076
          %v1111 = vunpack.c.l.b16 %v1077
          %v1112 = vunpack.c.h.b16 %v1077
          %v1113 = vunpack.c.l.b16 %v1078
          %v1114 = vunpack.c.h.b16 %v1078
          %v1115 = vunpack.c.l.b16 %v1079
          %v1116 = vunpack.c.h.b16 %v1079
          %v1117 = vunpack.c.l.b16 %v1080
          %v1118 = vunpack.c.h.b16 %v1080
          %v1119 = vunpack.c.l.b16 %v1081
          %v1120 = vunpack.c.h.b16 %v1081
          %v1121 = vunpack.c.l.b16 %v1082
          %v1122 = vunpack.c.h.b16 %v1082
          %v1123 = vunpack.c.l.b16 %v1083
          %v1124 = vunpack.c.h.b16 %v1083
          %v1125 = vunpack.c.l.b16 %v1084
          %v1126 = vunpack.c.h.b16 %v1084
          %v1127 = vunpack.c.l.b16 %v1085
          %v1128 = vunpack.c.h.b16 %v1085
          %v1129 = vunpack.c.l.b16 %v1086
          %v1130 = vunpack.c.h.b16 %v1086
          %v1131 = vunpack.c.l.b16 %v1087
          %v1132 = vunpack.c.h.b16 %v1087
          %v1133 = vunpack.c.l.b16 %v1088
          %v1134 = vunpack.c.h.b16 %v1088
          %v1135 = vunpack.c.l.b16 %v1089
          %v1136 = vunpack.c.h.b16 %v1089
          %v1137 = vunpack.c.l.b16 %v1090
          %v1138 = vunpack.c.h.b16 %v1090
          %v1139 = vpack.c.b16 %v1107, %v1107
          %v1140 = vpack.c.b16 %v1108, %v1108
          %v1141 = vpack.c.b16 %v1109, %v1109
          %v1142 = vpack.c.b16 %v1110, %v1110
          %v1143 = vpack.c.b16 %v1111, %v1111
          %v1144 = vpack.c.b16 %v1112, %v1112
          %v1145 = vpack.c.b16 %v1113, %v1113
          %v1146 = vpack.c.b16 %v1114, %v1114
          %v1147 = vpack.c.b16 %v1115, %v1115
          %v1148 = vpack.c.b16 %v1116, %v1116
          %v1149 = vpack.c.b16 %v1117, %v1117
          %v1150 = vpack.c.b16 %v1118, %v1118
          %v1151 = vpack.c.b16 %v1119, %v1119
          %v1152 = vpack.c.b16 %v1120, %v1120
          %v1153 = vpack.c.b16 %v1121, %v1121
          %v1154 = vpack.c.b16 %v1122, %v1122
          %v1155 = vpack.c.b16 %v1123, %v1123
          %v1156 = vpack.c.b16 %v1124, %v1124
          %v1157 = vpack.c.b16 %v1125, %v1125
          %v1158 = vpack.c.b16 %v1126, %v1126
          %v1159 = vpack.c.b16 %v1127, %v1127
          %v1160 = vpack.c.b16 %v1128, %v1128
          %v1161 = vpack.c.b16 %v1129, %v1129
          %v1162 = vpack.c.b16 %v1130, %v1130
          %v1163 = vpack.c.b16 %v1131, %v1131
          %v1164 = vpack.c.b16 %v1132, %v1132
          %v1165 = vpack.c.b16 %v1133, %v1133
          %v1166 = vpack.c.b16 %v1134, %v1134
          %v1167 = vpack.c.b16 %v1135, %v1135
          %v1168 = vpack.c.b16 %v1136, %v1136
          %v1169 = vpack.c.b16 %v1137, %v1137
          %v1170 = vpack.c.b16 %v1138, %v1138
          %1203 = vst [vmem:[#allocation3] sm:$0xf] %v1139
          %1204 = vst [vmem:[#allocation3 + $0x4] sm:$0xf] %v1140
          %1205 = vst [vmem:[#allocation3 + $0x8] sm:$0xf] %v1141
          %1206 = vst [vmem:[#allocation3 + $0xc] sm:$0xf] %v1142
          %1207 = vst [vmem:[#allocation3 + $0x10] sm:$0xf] %v1143
          %1208 = vst [vmem:[#allocation3 + $0x14] sm:$0xf] %v1144
          %1209 = vst [vmem:[#allocation3 + $0x18] sm:$0xf] %v1145
          %1210 = vst [vmem:[#allocation3 + $0x1c] sm:$0xf] %v1146
          %1211 = vst [vmem:[#allocation3 + $0x20] sm:$0xf] %v1147
          %1212 = vst [vmem:[#allocation3 + $0x24] sm:$0xf] %v1148
          %1213 = vst [vmem:[#allocation3 + $0x28] sm:$0xf] %v1149
          %1214 = vst [vmem:[#allocation3 + $0x2c] sm:$0xf] %v1150
          %1215 = vst [vmem:[#allocation3 + $0x30] sm:$0xf] %v1151
          %1216 = vst [vmem:[#allocation3 + $0x34] sm:$0xf] %v1152
          %1217 = vst [vmem:[#allocation3 + $0x38] sm:$0xf] %v1153
          %1218 = vst [vmem:[#allocation3 + $0x3c] sm:$0xf] %v1154
          %1219 = vst [vmem:[#allocation3 + $0x40] sm:$0xf] %v1155
          %1220 = vst [vmem:[#allocation3 + $0x44] sm:$0xf] %v1156
          %1221 = vst [vmem:[#allocation3 + $0x48] sm:$0xf] %v1157
          %1222 = vst [vmem:[#allocation3 + $0x4c] sm:$0xf] %v1158
          %1223 = vst [vmem:[#allocation3 + $0x50] sm:$0xf] %v1159
          %1224 = vst [vmem:[#allocation3 + $0x54] sm:$0xf] %v1160
          %1225 = vst [vmem:[#allocation3 + $0x58] sm:$0xf] %v1161
          %1226 = vst [vmem:[#allocation3 + $0x5c] sm:$0xf] %v1162
          %1227 = vst [vmem:[#allocation3 + $0x60] sm:$0xf] %v1163
          %1228 = vst [vmem:[#allocation3 + $0x64] sm:$0xf] %v1164
          %1229 = vst [vmem:[#allocation3 + $0x68] sm:$0xf] %v1165
          %1230 = vst [vmem:[#allocation3 + $0x6c] sm:$0xf] %v1166
          %1231 = vst [vmem:[#allocation3 + $0x70] sm:$0xf] %v1167
          %1232 = vst [vmem:[#allocation3 + $0x74] sm:$0xf] %v1168
          %1233 = vst [vmem:[#allocation3 + $0x78] sm:$0xf] %v1169
          %1234 = vst [vmem:[#allocation3 + $0x7c] sm:$0xf] %v1170
          %v1235 = vpack.c.bf16 %v762, %v758
          %v1236 = vpack.c.bf16 %v772, %v768
          %v1237 = vpack.c.bf16 %v782, %v778
          %v1238 = vpack.c.bf16 %v792, %v788
          %v1239 = vpack.c.bf16 %v802, %v798
          %v1240 = vpack.c.bf16 %v812, %v808
          %v1241 = vpack.c.bf16 %v822, %v818
          %v1242 = vpack.c.bf16 %v832, %v828
          %v1243 = vpack.c.bf16 %v842, %v838
          %v1244 = vpack.c.bf16 %v852, %v848
          %v1245 = vpack.c.bf16 %v862, %v858
          %v1246 = vpack.c.bf16 %v872, %v868
          %v1247 = vpack.c.bf16 %v882, %v878
          %v1248 = vpack.c.bf16 %v892, %v888
          %v1249 = vpack.c.bf16 %v902, %v898
          %v1250 = vpack.c.bf16 %v912, %v908
          %v1267 = vunpack.c.l.b16 %v1235
          %v1268 = vunpack.c.h.b16 %v1235
          %v1269 = vunpack.c.l.b16 %v1236
          %v1270 = vunpack.c.h.b16 %v1236
          %v1271 = vunpack.c.l.b16 %v1237
          %v1272 = vunpack.c.h.b16 %v1237
          %v1273 = vunpack.c.l.b16 %v1238
          %v1274 = vunpack.c.h.b16 %v1238
          %v1275 = vunpack.c.l.b16 %v1239
          %v1276 = vunpack.c.h.b16 %v1239
          %v1277 = vunpack.c.l.b16 %v1240
          %v1278 = vunpack.c.h.b16 %v1240
          %v1279 = vunpack.c.l.b16 %v1241
          %v1280 = vunpack.c.h.b16 %v1241
          %v1281 = vunpack.c.l.b16 %v1242
          %v1282 = vunpack.c.h.b16 %v1242
          %v1283 = vunpack.c.l.b16 %v1243
          %v1284 = vunpack.c.h.b16 %v1243
          %v1285 = vunpack.c.l.b16 %v1244
          %v1286 = vunpack.c.h.b16 %v1244
          %v1287 = vunpack.c.l.b16 %v1245
          %v1288 = vunpack.c.h.b16 %v1245
          %v1289 = vunpack.c.l.b16 %v1246
          %v1290 = vunpack.c.h.b16 %v1246
          %v1291 = vunpack.c.l.b16 %v1247
          %v1292 = vunpack.c.h.b16 %v1247
          %v1293 = vunpack.c.l.b16 %v1248
          %v1294 = vunpack.c.h.b16 %v1248
          %v1295 = vunpack.c.l.b16 %v1249
          %v1296 = vunpack.c.h.b16 %v1249
          %v1297 = vunpack.c.l.b16 %v1250
          %v1298 = vunpack.c.h.b16 %v1250
          %v1299 = vpack.c.b16 %v1267, %v1267
          %v1300 = vpack.c.b16 %v1268, %v1268
          %v1301 = vpack.c.b16 %v1269, %v1269
          %v1302 = vpack.c.b16 %v1270, %v1270
          %v1303 = vpack.c.b16 %v1271, %v1271
          %v1304 = vpack.c.b16 %v1272, %v1272
          %v1305 = vpack.c.b16 %v1273, %v1273
          %v1306 = vpack.c.b16 %v1274, %v1274
          %v1307 = vpack.c.b16 %v1275, %v1275
          %v1308 = vpack.c.b16 %v1276, %v1276
          %v1309 = vpack.c.b16 %v1277, %v1277
          %v1310 = vpack.c.b16 %v1278, %v1278
          %v1311 = vpack.c.b16 %v1279, %v1279
          %v1312 = vpack.c.b16 %v1280, %v1280
          %v1313 = vpack.c.b16 %v1281, %v1281
          %v1314 = vpack.c.b16 %v1282, %v1282
          %v1315 = vpack.c.b16 %v1283, %v1283
          %v1316 = vpack.c.b16 %v1284, %v1284
          %v1317 = vpack.c.b16 %v1285, %v1285
          %v1318 = vpack.c.b16 %v1286, %v1286
          %v1319 = vpack.c.b16 %v1287, %v1287
          %v1320 = vpack.c.b16 %v1288, %v1288
          %v1321 = vpack.c.b16 %v1289, %v1289
          %v1322 = vpack.c.b16 %v1290, %v1290
          %v1323 = vpack.c.b16 %v1291, %v1291
          %v1324 = vpack.c.b16 %v1292, %v1292
          %v1325 = vpack.c.b16 %v1293, %v1293
          %v1326 = vpack.c.b16 %v1294, %v1294
          %v1327 = vpack.c.b16 %v1295, %v1295
          %v1328 = vpack.c.b16 %v1296, %v1296
          %v1329 = vpack.c.b16 %v1297, %v1297
          %v1330 = vpack.c.b16 %v1298, %v1298
          %1363 = vst [vmem:[#allocation4] sm:$0xf] %v1299
          %1364 = vst [vmem:[#allocation4 + $0x4] sm:$0xf] %v1300
          %1365 = vst [vmem:[#allocation4 + $0x8] sm:$0xf] %v1301
          %1366 = vst [vmem:[#allocation4 + $0xc] sm:$0xf] %v1302
          %1367 = vst [vmem:[#allocation4 + $0x10] sm:$0xf] %v1303
          %1368 = vst [vmem:[#allocation4 + $0x14] sm:$0xf] %v1304
          %1369 = vst [vmem:[#allocation4 + $0x18] sm:$0xf] %v1305
          %1370 = vst [vmem:[#allocation4 + $0x1c] sm:$0xf] %v1306
          %1371 = vst [vmem:[#allocation4 + $0x20] sm:$0xf] %v1307
          %1372 = vst [vmem:[#allocation4 + $0x24] sm:$0xf] %v1308
          %1373 = vst [vmem:[#allocation4 + $0x28] sm:$0xf] %v1309
          %1374 = vst [vmem:[#allocation4 + $0x2c] sm:$0xf] %v1310
          %1375 = vst [vmem:[#allocation4 + $0x30] sm:$0xf] %v1311
          %1376 = vst [vmem:[#allocation4 + $0x34] sm:$0xf] %v1312
          %1377 = vst [vmem:[#allocation4 + $0x38] sm:$0xf] %v1313
          %1378 = vst [vmem:[#allocation4 + $0x3c] sm:$0xf] %v1314
          %1379 = vst [vmem:[#allocation4 + $0x40] sm:$0xf] %v1315
          %1380 = vst [vmem:[#allocation4 + $0x44] sm:$0xf] %v1316
          %1381 = vst [vmem:[#allocation4 + $0x48] sm:$0xf] %v1317
          %1382 = vst [vmem:[#allocation4 + $0x4c] sm:$0xf] %v1318
          %1383 = vst [vmem:[#allocation4 + $0x50] sm:$0xf] %v1319
          %1384 = vst [vmem:[#allocation4 + $0x54] sm:$0xf] %v1320
          %1385 = vst [vmem:[#allocation4 + $0x58] sm:$0xf] %v1321
          %1386 = vst [vmem:[#allocation4 + $0x5c] sm:$0xf] %v1322
          %1387 = vst [vmem:[#allocation4 + $0x60] sm:$0xf] %v1323
          %1388 = vst [vmem:[#allocation4 + $0x64] sm:$0xf] %v1324
          %1389 = vst [vmem:[#allocation4 + $0x68] sm:$0xf] %v1325
          %1390 = vst [vmem:[#allocation4 + $0x6c] sm:$0xf] %v1326
          %1391 = vst [vmem:[#allocation4 + $0x70] sm:$0xf] %v1327
          %1392 = vst [vmem:[#allocation4 + $0x74] sm:$0xf] %v1328
          %1393 = vst [vmem:[#allocation4 + $0x78] sm:$0xf] %v1329
          %1394 = vst [vmem:[#allocation4 + $0x7c] sm:$0xf] %v1330
          %v1395 = vpack.c.bf16 %v952, %v949
          %v1396 = vpack.c.bf16 %v960, %v957
          %v1397 = vpack.c.bf16 %v968, %v965
          %v1398 = vpack.c.bf16 %v976, %v973
          %v1399 = vpack.c.bf16 %v984, %v981
          %v1400 = vpack.c.bf16 %v992, %v989
          %v1401 = vpack.c.bf16 %v1000, %v997
          %v1402 = vpack.c.bf16 %v1008, %v1005
          %v1403 = vpack.c.bf16 %v1016, %v1013
          %v1404 = vpack.c.bf16 %v1024, %v1021
          %v1405 = vpack.c.bf16 %v1032, %v1029
          %v1406 = vpack.c.bf16 %v1040, %v1037
          %v1407 = vpack.c.bf16 %v1048, %v1045
          %v1408 = vpack.c.bf16 %v1056, %v1053
          %v1409 = vpack.c.bf16 %v1064, %v1061
          %v1410 = vpack.c.bf16 %v1072, %v1069
          %v1427 = vunpack.c.l.b16 %v1395
          %v1428 = vunpack.c.h.b16 %v1395
          %v1429 = vunpack.c.l.b16 %v1396
          %v1430 = vunpack.c.h.b16 %v1396
          %v1431 = vunpack.c.l.b16 %v1397
          %v1432 = vunpack.c.h.b16 %v1397
          %v1433 = vunpack.c.l.b16 %v1398
          %v1434 = vunpack.c.h.b16 %v1398
          %v1435 = vunpack.c.l.b16 %v1399
          %v1436 = vunpack.c.h.b16 %v1399
          %v1437 = vunpack.c.l.b16 %v1400
          %v1438 = vunpack.c.h.b16 %v1400
          %v1439 = vunpack.c.l.b16 %v1401
          %v1440 = vunpack.c.h.b16 %v1401
          %v1441 = vunpack.c.l.b16 %v1402
          %v1442 = vunpack.c.h.b16 %v1402
          %v1443 = vunpack.c.l.b16 %v1403
          %v1444 = vunpack.c.h.b16 %v1403
          %v1445 = vunpack.c.l.b16 %v1404
          %v1446 = vunpack.c.h.b16 %v1404
          %v1447 = vunpack.c.l.b16 %v1405
          %v1448 = vunpack.c.h.b16 %v1405
          %v1449 = vunpack.c.l.b16 %v1406
          %v1450 = vunpack.c.h.b16 %v1406
          %v1451 = vunpack.c.l.b16 %v1407
          %v1452 = vunpack.c.h.b16 %v1407
          %v1453 = vunpack.c.l.b16 %v1408
          %v1454 = vunpack.c.h.b16 %v1408
          %v1455 = vunpack.c.l.b16 %v1409
          %v1456 = vunpack.c.h.b16 %v1409
          %v1457 = vunpack.c.l.b16 %v1410
          %v1458 = vunpack.c.h.b16 %v1410
          %v1459 = vpack.c.b16 %v1427, %v1427
          %v1460 = vpack.c.b16 %v1428, %v1428
          %v1461 = vpack.c.b16 %v1429, %v1429
          %v1462 = vpack.c.b16 %v1430, %v1430
          %v1463 = vpack.c.b16 %v1431, %v1431
          %v1464 = vpack.c.b16 %v1432, %v1432
          %v1465 = vpack.c.b16 %v1433, %v1433
          %v1466 = vpack.c.b16 %v1434, %v1434
          %v1467 = vpack.c.b16 %v1435, %v1435
          %v1468 = vpack.c.b16 %v1436, %v1436
          %v1469 = vpack.c.b16 %v1437, %v1437
          %v1470 = vpack.c.b16 %v1438, %v1438
          %v1471 = vpack.c.b16 %v1439, %v1439
          %v1472 = vpack.c.b16 %v1440, %v1440
          %v1473 = vpack.c.b16 %v1441, %v1441
          %v1474 = vpack.c.b16 %v1442, %v1442
          %v1475 = vpack.c.b16 %v1443, %v1443
          %v1476 = vpack.c.b16 %v1444, %v1444
          %v1477 = vpack.c.b16 %v1445, %v1445
          %v1478 = vpack.c.b16 %v1446, %v1446
          %v1479 = vpack.c.b16 %v1447, %v1447
          %v1480 = vpack.c.b16 %v1448, %v1448
          %v1481 = vpack.c.b16 %v1449, %v1449
          %v1482 = vpack.c.b16 %v1450, %v1450
          %v1483 = vpack.c.b16 %v1451, %v1451
          %v1484 = vpack.c.b16 %v1452, %v1452
          %v1485 = vpack.c.b16 %v1453, %v1453
          %v1486 = vpack.c.b16 %v1454, %v1454
          %v1487 = vpack.c.b16 %v1455, %v1455
          %v1488 = vpack.c.b16 %v1456, %v1456
          %v1489 = vpack.c.b16 %v1457, %v1457
          %v1490 = vpack.c.b16 %v1458, %v1458
          %1523 = vst [vmem:[#allocation5] sm:$0xf] %v1459
          %1524 = vst [vmem:[#allocation5 + $0x4] sm:$0xf] %v1460
          %1525 = vst [vmem:[#allocation5 + $0x8] sm:$0xf] %v1461
          %1526 = vst [vmem:[#allocation5 + $0xc] sm:$0xf] %v1462
          %1527 = vst [vmem:[#allocation5 + $0x10] sm:$0xf] %v1463
          %1528 = vst [vmem:[#allocation5 + $0x14] sm:$0xf] %v1464
          %1529 = vst [vmem:[#allocation5 + $0x18] sm:$0xf] %v1465
          %1530 = vst [vmem:[#allocation5 + $0x1c] sm:$0xf] %v1466
          %1531 = vst [vmem:[#allocation5 + $0x20] sm:$0xf] %v1467
          %1532 = vst [vmem:[#allocation5 + $0x24] sm:$0xf] %v1468
          %1533 = vst [vmem:[#allocation5 + $0x28] sm:$0xf] %v1469
          %1534 = vst [vmem:[#allocation5 + $0x2c] sm:$0xf] %v1470
          %1535 = vst [vmem:[#allocation5 + $0x30] sm:$0xf] %v1471
          %1536 = vst [vmem:[#allocation5 + $0x34] sm:$0xf] %v1472
          %1537 = vst [vmem:[#allocation5 + $0x38] sm:$0xf] %v1473
          %1538 = vst [vmem:[#allocation5 + $0x3c] sm:$0xf] %v1474
          %1539 = vst [vmem:[#allocation5 + $0x40] sm:$0xf] %v1475
          %1540 = vst [vmem:[#allocation5 + $0x44] sm:$0xf] %v1476
          %1541 = vst [vmem:[#allocation5 + $0x48] sm:$0xf] %v1477
          %1542 = vst [vmem:[#allocation5 + $0x4c] sm:$0xf] %v1478
          %1543 = vst [vmem:[#allocation5 + $0x50] sm:$0xf] %v1479
          %1544 = vst [vmem:[#allocation5 + $0x54] sm:$0xf] %v1480
          %1545 = vst [vmem:[#allocation5 + $0x58] sm:$0xf] %v1481
          %1546 = vst [vmem:[#allocation5 + $0x5c] sm:$0xf] %v1482
          %1547 = vst [vmem:[#allocation5 + $0x60] sm:$0xf] %v1483
          %1548 = vst [vmem:[#allocation5 + $0x64] sm:$0xf] %v1484
          %1549 = vst [vmem:[#allocation5 + $0x68] sm:$0xf] %v1485
          %1550 = vst [vmem:[#allocation5 + $0x6c] sm:$0xf] %v1486
          %1551 = vst [vmem:[#allocation5 + $0x70] sm:$0xf] %v1487
          %1552 = vst [vmem:[#allocation5 + $0x74] sm:$0xf] %v1488
          %1553 = vst [vmem:[#allocation5 + $0x78] sm:$0xf] %v1489
          %1554 = vst [vmem:[#allocation5 + $0x7c] sm:$0xf] %v1490
        $region68: #{attention_block.1} parent=63 // pred_fallthru
          _
        %s1555 = smul.u32 %s27, 128
        %s1556 = scalar_lea.vmem [#allocation2], %s1555
        %v1557 = vld [vmem:[%s1556] sm:$0xff]
        %v1558 = vld [vmem:[%s1556 + $0x8] sm:$0xff]
        %v1559 = vld [vmem:[%s1556 + $0x10] sm:$0xff]
        %v1560 = vld [vmem:[%s1556 + $0x18] sm:$0xff]
        %v1561 = vld [vmem:[%s1556 + $0x20] sm:$0xff]
        %v1562 = vld [vmem:[%s1556 + $0x28] sm:$0xff]
        %v1563 = vld [vmem:[%s1556 + $0x30] sm:$0xff]
        %v1564 = vld [vmem:[%s1556 + $0x38] sm:$0xff]
        %v1565 = vld [vmem:[%s1556 + $0x40] sm:$0xff]
        %v1566 = vld [vmem:[%s1556 + $0x48] sm:$0xff]
        %v1567 = vld [vmem:[%s1556 + $0x50] sm:$0xff]
        %v1568 = vld [vmem:[%s1556 + $0x58] sm:$0xff]
        %v1569 = vld [vmem:[%s1556 + $0x60] sm:$0xff]
        %v1570 = vld [vmem:[%s1556 + $0x68] sm:$0xff]
        %v1571 = vld [vmem:[%s1556 + $0x70] sm:$0xff]
        %v1572 = vld [vmem:[%s1556 + $0x78] sm:$0xff]
        %s1573 = sshra.s32 %s1555, 3
        %s1574 = sand.u32 %s1555, 7
        %s1575 = smul.addr %s1573, 4
        %s1576 = scalar_lea.vmem [#allocation3], %s1575
        %v1577 = vld [vmem:[%s1576] sm:$0xf]
        %v1578 = vld [vmem:[%s1576 + $0x4] sm:$0xf]
        %v1579 = vld [vmem:[%s1576 + $0x8] sm:$0xf]
        %v1580 = vld [vmem:[%s1576 + $0xc] sm:$0xf]
        %v1581 = vld [vmem:[%s1576 + $0x10] sm:$0xf]
        %v1582 = vld [vmem:[%s1576 + $0x14] sm:$0xf]
        %v1583 = vld [vmem:[%s1576 + $0x18] sm:$0xf]
        %v1584 = vld [vmem:[%s1576 + $0x1c] sm:$0xf]
        %v1585 = vld [vmem:[%s1576 + $0x20] sm:$0xf]
        %v1586 = vld [vmem:[%s1576 + $0x24] sm:$0xf]
        %v1587 = vld [vmem:[%s1576 + $0x28] sm:$0xf]
        %v1588 = vld [vmem:[%s1576 + $0x2c] sm:$0xf]
        %v1589 = vld [vmem:[%s1576 + $0x30] sm:$0xf]
        %v1590 = vld [vmem:[%s1576 + $0x34] sm:$0xf]
        %v1591 = vld [vmem:[%s1576 + $0x38] sm:$0xf]
        %v1592 = vld [vmem:[%s1576 + $0x3c] sm:$0xf]
        %v1593 = vld [vmem:[#allocation4] sm:$0xf]
        %v1594 = vld [vmem:[#allocation4 + $0x4] sm:$0xf]
        %v1595 = vld [vmem:[#allocation4 + $0x8] sm:$0xf]
        %v1596 = vld [vmem:[#allocation4 + $0xc] sm:$0xf]
        %v1597 = vld [vmem:[#allocation4 + $0x10] sm:$0xf]
        %v1598 = vld [vmem:[#allocation4 + $0x14] sm:$0xf]
        %v1599 = vld [vmem:[#allocation4 + $0x18] sm:$0xf]
        %v1600 = vld [vmem:[#allocation4 + $0x1c] sm:$0xf]
        %v1601 = vld [vmem:[#allocation4 + $0x20] sm:$0xf]
        %v1602 = vld [vmem:[#allocation4 + $0x24] sm:$0xf]
        %v1603 = vld [vmem:[#allocation4 + $0x28] sm:$0xf]
        %v1604 = vld [vmem:[#allocation4 + $0x2c] sm:$0xf]
        %v1605 = vld [vmem:[#allocation4 + $0x30] sm:$0xf]
        %v1606 = vld [vmem:[#allocation4 + $0x34] sm:$0xf]
        %v1607 = vld [vmem:[#allocation4 + $0x38] sm:$0xf]
        %v1608 = vld [vmem:[#allocation4 + $0x3c] sm:$0xf]
        %v1609 = vld [vmem:[#allocation4 + $0x40] sm:$0xf]
        %v1610 = vld [vmem:[#allocation4 + $0x44] sm:$0xf]
        %v1611 = vld [vmem:[#allocation4 + $0x48] sm:$0xf]
        %v1612 = vld [vmem:[#allocation4 + $0x4c] sm:$0xf]
        %v1613 = vld [vmem:[#allocation4 + $0x50] sm:$0xf]
        %v1614 = vld [vmem:[#allocation4 + $0x54] sm:$0xf]
        %v1615 = vld [vmem:[#allocation4 + $0x58] sm:$0xf]
        %v1616 = vld [vmem:[#allocation4 + $0x5c] sm:$0xf]
        %v1617 = vld [vmem:[#allocation4 + $0x60] sm:$0xf]
        %v1618 = vld [vmem:[#allocation4 + $0x64] sm:$0xf]
        %v1619 = vld [vmem:[#allocation4 + $0x68] sm:$0xf]
        %v1620 = vld [vmem:[#allocation4 + $0x6c] sm:$0xf]
        %v1621 = vld [vmem:[#allocation4 + $0x70] sm:$0xf]
        %v1622 = vld [vmem:[#allocation4 + $0x74] sm:$0xf]
        %v1623 = vld [vmem:[#allocation4 + $0x78] sm:$0xf]
        %v1624 = vld [vmem:[#allocation4 + $0x7c] sm:$0xf]
        %v1625 = vld [vmem:[#allocation5] sm:$0xf]
        %v1626 = vld [vmem:[#allocation5 + $0x4] sm:$0xf]
        %v1627 = vld [vmem:[#allocation5 + $0x8] sm:$0xf]
        %v1628 = vld [vmem:[#allocation5 + $0xc] sm:$0xf]
        %v1629 = vld [vmem:[#allocation5 + $0x10] sm:$0xf]
        %v1630 = vld [vmem:[#allocation5 + $0x14] sm:$0xf]
        %v1631 = vld [vmem:[#allocation5 + $0x18] sm:$0xf]
        %v1632 = vld [vmem:[#allocation5 + $0x1c] sm:$0xf]
        %v1633 = vld [vmem:[#allocation5 + $0x20] sm:$0xf]
        %v1634 = vld [vmem:[#allocation5 + $0x24] sm:$0xf]
        %v1635 = vld [vmem:[#allocation5 + $0x28] sm:$0xf]
        %v1636 = vld [vmem:[#allocation5 + $0x2c] sm:$0xf]
        %v1637 = vld [vmem:[#allocation5 + $0x30] sm:$0xf]
        %v1638 = vld [vmem:[#allocation5 + $0x34] sm:$0xf]
        %v1639 = vld [vmem:[#allocation5 + $0x38] sm:$0xf]
        %v1640 = vld [vmem:[#allocation5 + $0x3c] sm:$0xf]
        %v1641 = vld [vmem:[#allocation5 + $0x40] sm:$0xf]
        %v1642 = vld [vmem:[#allocation5 + $0x44] sm:$0xf]
        %v1643 = vld [vmem:[#allocation5 + $0x48] sm:$0xf]
        %v1644 = vld [vmem:[#allocation5 + $0x4c] sm:$0xf]
        %v1645 = vld [vmem:[#allocation5 + $0x50] sm:$0xf]
        %v1646 = vld [vmem:[#allocation5 + $0x54] sm:$0xf]
        %v1647 = vld [vmem:[#allocation5 + $0x58] sm:$0xf]
        %v1648 = vld [vmem:[#allocation5 + $0x5c] sm:$0xf]
        %v1649 = vld [vmem:[#allocation5 + $0x60] sm:$0xf]
        %v1650 = vld [vmem:[#allocation5 + $0x64] sm:$0xf]
        %v1651 = vld [vmem:[#allocation5 + $0x68] sm:$0xf]
        %v1652 = vld [vmem:[#allocation5 + $0x6c] sm:$0xf]
        %v1653 = vld [vmem:[#allocation5 + $0x70] sm:$0xf]
        %v1654 = vld [vmem:[#allocation5 + $0x74] sm:$0xf]
        %v1655 = vld [vmem:[#allocation5 + $0x78] sm:$0xf]
        %v1656 = vld [vmem:[#allocation5 + $0x7c] sm:$0xf]
        %v1673 = vunpack.c.l.b16 %v1577
        %v1674 = vunpack.c.l.b16 %v1578
        %v1675 = vunpack.c.l.b16 %v1579
        %v1676 = vunpack.c.l.b16 %v1580
        %v1677 = vunpack.c.l.b16 %v1581
        %v1678 = vunpack.c.l.b16 %v1582
        %v1679 = vunpack.c.l.b16 %v1583
        %v1680 = vunpack.c.l.b16 %v1584
        %v1681 = vunpack.c.l.b16 %v1585
        %v1682 = vunpack.c.l.b16 %v1586
        %v1683 = vunpack.c.l.b16 %v1587
        %v1684 = vunpack.c.l.b16 %v1588
        %v1685 = vunpack.c.l.b16 %v1589
        %v1686 = vunpack.c.l.b16 %v1590
        %v1687 = vunpack.c.l.b16 %v1591
        %v1688 = vunpack.c.l.b16 %v1592
        %v1689 = vpack.c.b16 %v1674, %v1673
        %v1690 = vpack.c.b16 %v1676, %v1675
        %v1691 = vpack.c.b16 %v1678, %v1677
        %v1692 = vpack.c.b16 %v1680, %v1679
        %v1693 = vpack.c.b16 %v1682, %v1681
        %v1694 = vpack.c.b16 %v1684, %v1683
        %v1695 = vpack.c.b16 %v1686, %v1685
        %v1696 = vpack.c.b16 %v1688, %v1687
        %v1729 = vunpack.c.l.b16 %v1593
        %v1730 = vunpack.c.l.b16 %v1594
        %v1731 = vunpack.c.l.b16 %v1595
        %v1732 = vunpack.c.l.b16 %v1596
        %v1733 = vunpack.c.l.b16 %v1597
        %v1734 = vunpack.c.l.b16 %v1598
        %v1735 = vunpack.c.l.b16 %v1599
        %v1736 = vunpack.c.l.b16 %v1600
        %v1737 = vunpack.c.l.b16 %v1601
        %v1738 = vunpack.c.l.b16 %v1602
        %v1739 = vunpack.c.l.b16 %v1603
        %v1740 = vunpack.c.l.b16 %v1604
        %v1741 = vunpack.c.l.b16 %v1605
        %v1742 = vunpack.c.l.b16 %v1606
        %v1743 = vunpack.c.l.b16 %v1607
        %v1744 = vunpack.c.l.b16 %v1608
        %v1745 = vunpack.c.l.b16 %v1609
        %v1746 = vunpack.c.l.b16 %v1610
        %v1747 = vunpack.c.l.b16 %v1611
        %v1748 = vunpack.c.l.b16 %v1612
        %v1749 = vunpack.c.l.b16 %v1613
        %v1750 = vunpack.c.l.b16 %v1614
        %v1751 = vunpack.c.l.b16 %v1615
        %v1752 = vunpack.c.l.b16 %v1616
        %v1753 = vunpack.c.l.b16 %v1617
        %v1754 = vunpack.c.l.b16 %v1618
        %v1755 = vunpack.c.l.b16 %v1619
        %v1756 = vunpack.c.l.b16 %v1620
        %v1757 = vunpack.c.l.b16 %v1621
        %v1758 = vunpack.c.l.b16 %v1622
        %v1759 = vunpack.c.l.b16 %v1623
        %v1760 = vunpack.c.l.b16 %v1624
        %v1761 = vpack.c.b16 %v1730, %v1729
        %v1762 = vpack.c.b16 %v1732, %v1731
        %v1763 = vpack.c.b16 %v1734, %v1733
        %v1764 = vpack.c.b16 %v1736, %v1735
        %v1765 = vpack.c.b16 %v1738, %v1737
        %v1766 = vpack.c.b16 %v1740, %v1739
        %v1767 = vpack.c.b16 %v1742, %v1741
        %v1768 = vpack.c.b16 %v1744, %v1743
        %v1769 = vpack.c.b16 %v1746, %v1745
        %v1770 = vpack.c.b16 %v1748, %v1747
        %v1771 = vpack.c.b16 %v1750, %v1749
        %v1772 = vpack.c.b16 %v1752, %v1751
        %v1773 = vpack.c.b16 %v1754, %v1753
        %v1774 = vpack.c.b16 %v1756, %v1755
        %v1775 = vpack.c.b16 %v1758, %v1757
        %v1776 = vpack.c.b16 %v1760, %v1759
        %vm1777 = vcmask 130048
        %v1779 = vsel %vm1777, %v1689, 0
        %v1782 = vsel %vm1777, %v1690, 0
        %v1785 = vsel %vm1777, %v1691, 0
        %v1788 = vsel %vm1777, %v1692, 0
        %v1791 = vsel %vm1777, %v1693, 0
        %v1794 = vsel %vm1777, %v1694, 0
        %v1797 = vsel %vm1777, %v1695, 0
        %v1800 = vsel %vm1777, %v1696, 0
        %v1803 = vsel %vm1777, %v1761, 0
        %v1806 = vsel %vm1777, %v1762, 0
        %v1809 = vsel %vm1777, %v1763, 0
        %v1812 = vsel %vm1777, %v1764, 0
        %v1815 = vsel %vm1777, %v1765, 0
        %v1818 = vsel %vm1777, %v1766, 0
        %v1821 = vsel %vm1777, %v1767, 0
        %v1824 = vsel %vm1777, %v1768, 0
        %v1827 = vsel %vm1777, %v1769, 0
        %v1830 = vsel %vm1777, %v1770, 0
        %v1833 = vsel %vm1777, %v1771, 0
        %v1836 = vsel %vm1777, %v1772, 0
        %v1839 = vsel %vm1777, %v1773, 0
        %v1842 = vsel %vm1777, %v1774, 0
        %v1845 = vsel %vm1777, %v1775, 0
        %v1848 = vsel %vm1777, %v1776, 0
        %1850 = vmatprep.subr.bf16.mxu0 0
        %1851 = vmatpush1.bf16.xpose.msra.mxu0 %v1824
        %1852 = vmatprep.subr.bf16.mxu0 0
        %1853 = vmatpush1.bf16.xpose.msra.mxu0 %v1821
        %1854 = vmatprep.subr.bf16.mxu0 0
        %1855 = vmatpush1.bf16.xpose.msra.mxu0 %v1818
        %1856 = vmatprep.subr.bf16.mxu0 0
        %1857 = vmatpush1.bf16.xpose.msra.mxu0 %v1815
        %1858 = vmatprep.subr.bf16.mxu0 0
        %1859 = vmatpush1.bf16.xpose.msra.mxu0 %v1812
        %1860 = vmatprep.subr.bf16.mxu0 0
        %1861 = vmatpush1.bf16.xpose.msra.mxu0 %v1809
        %1862 = vmatprep.subr.bf16.mxu0 0
        %1863 = vmatpush1.bf16.xpose.msra.mxu0 %v1806
        %1864 = vmatprep.subr.bf16.mxu0 0
        %1865 = vmatpush1.bf16.xpose.msra.mxu0 %v1803
        %1866 = vmatprep.subr.bf16.mxu0 0
        %1867 = vmatpush2.bf16.xpose.msra.mxu0 %v1848
        %1868 = vmatprep.subr.bf16.mxu0 0
        %1869 = vmatpush2.bf16.xpose.msra.mxu0 %v1845
        %1870 = vmatprep.subr.bf16.mxu0 0
        %1871 = vmatpush2.bf16.xpose.msra.mxu0 %v1842
        %1872 = vmatprep.subr.bf16.mxu0 0
        %1873 = vmatpush2.bf16.xpose.msra.mxu0 %v1839
        %1874 = vmatprep.subr.bf16.mxu0 0
        %1875 = vmatpush2.bf16.xpose.msra.mxu0 %v1836
        %1876 = vmatprep.subr.bf16.mxu0 0
        %1877 = vmatpush2.bf16.xpose.msra.mxu0 %v1833
        %1878 = vmatprep.subr.bf16.mxu0 0
        %1879 = vmatpush2.bf16.xpose.msra.mxu0 %v1830
        %1880 = vmatprep.subr.bf16.mxu0 0
        %1881 = vmatpush2.bf16.xpose.msra.mxu0 %v1827
        %1882 = vmatprep.mubr.bf16.mxu0 0
        %1883 = vmatmul.mubr.bf16.gmra.mxu0 %v1779
        %v1884 = vpop.f32.mrf.mxu0
        %v1885 = vadd.f32 0.0, %v1884
        %v1886 = vpop.f32.mrf.mxu0
        %v1887 = vadd.f32 0.0, %v1886
        %v1888 = vpop.f32.mrf.mxu0
        %v1889 = vadd.f32 0.0, %v1888
        %v1890 = vpop.f32.mrf.mxu0
        %v1891 = vadd.f32 0.0, %v1890
        %1892 = vmatprep.mubr.bf16.mxu0 0
        %1893 = vmatmul.mubr.bf16.gmra.mxu0 %v1782
        %v1894 = vpop.f32.mrf.mxu0
        %v1895 = vadd.f32 0.0, %v1894
        %v1896 = vpop.f32.mrf.mxu0
        %v1897 = vadd.f32 0.0, %v1896
        %v1898 = vpop.f32.mrf.mxu0
        %v1899 = vadd.f32 0.0, %v1898
        %v1900 = vpop.f32.mrf.mxu0
        %v1901 = vadd.f32 0.0, %v1900
        %1902 = vmatprep.mubr.bf16.mxu0 0
        %1903 = vmatmul.mubr.bf16.gmra.mxu0 %v1785
        %v1904 = vpop.f32.mrf.mxu0
        %v1905 = vadd.f32 0.0, %v1904
        %v1906 = vpop.f32.mrf.mxu0
        %v1907 = vadd.f32 0.0, %v1906
        %v1908 = vpop.f32.mrf.mxu0
        %v1909 = vadd.f32 0.0, %v1908
        %v1910 = vpop.f32.mrf.mxu0
        %v1911 = vadd.f32 0.0, %v1910
        %1912 = vmatprep.mubr.bf16.mxu0 0
        %1913 = vmatmul.mubr.bf16.gmra.mxu0 %v1788
        %v1914 = vpop.f32.mrf.mxu0
        %v1915 = vadd.f32 0.0, %v1914
        %v1916 = vpop.f32.mrf.mxu0
        %v1917 = vadd.f32 0.0, %v1916
        %v1918 = vpop.f32.mrf.mxu0
        %v1919 = vadd.f32 0.0, %v1918
        %v1920 = vpop.f32.mrf.mxu0
        %v1921 = vadd.f32 0.0, %v1920
        %1922 = vmatprep.mubr.bf16.mxu0 0
        %1923 = vmatmul.mubr.bf16.gmra.mxu0 %v1791
        %v1924 = vpop.f32.mrf.mxu0
        %v1925 = vadd.f32 0.0, %v1924
        %v1926 = vpop.f32.mrf.mxu0
        %v1927 = vadd.f32 0.0, %v1926
        %v1928 = vpop.f32.mrf.mxu0
        %v1929 = vadd.f32 0.0, %v1928
        %v1930 = vpop.f32.mrf.mxu0
        %v1931 = vadd.f32 0.0, %v1930
        %1932 = vmatprep.mubr.bf16.mxu0 0
        %1933 = vmatmul.mubr.bf16.gmra.mxu0 %v1794
        %v1934 = vpop.f32.mrf.mxu0
        %v1935 = vadd.f32 0.0, %v1934
        %v1936 = vpop.f32.mrf.mxu0
        %v1937 = vadd.f32 0.0, %v1936
        %v1938 = vpop.f32.mrf.mxu0
        %v1939 = vadd.f32 0.0, %v1938
        %v1940 = vpop.f32.mrf.mxu0
        %v1941 = vadd.f32 0.0, %v1940
        %1942 = vmatprep.mubr.bf16.mxu0 0
        %1943 = vmatmul.mubr.bf16.gmra.mxu0 %v1797
        %v1944 = vpop.f32.mrf.mxu0
        %v1945 = vadd.f32 0.0, %v1944
        %v1946 = vpop.f32.mrf.mxu0
        %v1947 = vadd.f32 0.0, %v1946
        %v1948 = vpop.f32.mrf.mxu0
        %v1949 = vadd.f32 0.0, %v1948
        %v1950 = vpop.f32.mrf.mxu0
        %v1951 = vadd.f32 0.0, %v1950
        %1952 = vmatprep.mubr.bf16.mxu0 0
        %1953 = vmatmul.mubr.bf16.gmra.mxu0 %v1800
        %v1954 = vpop.f32.mrf.mxu0
        %v1955 = vadd.f32 0.0, %v1954
        %v1956 = vpop.f32.mrf.mxu0
        %v1957 = vadd.f32 0.0, %v1956
        %v1958 = vpop.f32.mrf.mxu0
        %v1959 = vadd.f32 0.0, %v1958
        %v1960 = vpop.f32.mrf.mxu0
        %v1961 = vadd.f32 0.0, %v1960
        %1962 = vdwg.mxu0
        %v1963 = vmax.f32 %v1885, %v1887
        %1964 = vmax.xlane.f32.xlu0 %v1963
        %v1965 = vpop.xlane.xlu0 %1964
        %v1966 = vmax.f32 %v1889, %v1891
        %1967 = vmax.xlane.f32.xlu0 %v1966
        %v1968 = vpop.xlane.xlu0 %1967
        %v1969 = vmax.f32 %v1895, %v1897
        %1970 = vmax.xlane.f32.xlu0 %v1969
        %v1971 = vpop.xlane.xlu0 %1970
        %v1972 = vmax.f32 %v1899, %v1901
        %1973 = vmax.xlane.f32.xlu0 %v1972
        %v1974 = vpop.xlane.xlu0 %1973
        %v1975 = vmax.f32 %v1905, %v1907
        %1976 = vmax.xlane.f32.xlu0 %v1975
        %v1977 = vpop.xlane.xlu0 %1976
        %v1978 = vmax.f32 %v1909, %v1911
        %1979 = vmax.xlane.f32.xlu0 %v1978
        %v1980 = vpop.xlane.xlu0 %1979
        %v1981 = vmax.f32 %v1915, %v1917
        %1982 = vmax.xlane.f32.xlu0 %v1981
        %v1983 = vpop.xlane.xlu0 %1982
        %v1984 = vmax.f32 %v1919, %v1921
        %1985 = vmax.xlane.f32.xlu0 %v1984
        %v1986 = vpop.xlane.xlu0 %1985
        %v1987 = vmax.f32 %v1925, %v1927
        %1988 = vmax.xlane.f32.xlu0 %v1987
        %v1989 = vpop.xlane.xlu0 %1988
        %v1990 = vmax.f32 %v1929, %v1931
        %1991 = vmax.xlane.f32.xlu0 %v1990
        %v1992 = vpop.xlane.xlu0 %1991
        %v1993 = vmax.f32 %v1935, %v1937
        %1994 = vmax.xlane.f32.xlu0 %v1993
        %v1995 = vpop.xlane.xlu0 %1994
        %v1996 = vmax.f32 %v1939, %v1941
        %1997 = vmax.xlane.f32.xlu0 %v1996
        %v1998 = vpop.xlane.xlu0 %1997
        %v1999 = vmax.f32 %v1945, %v1947
        %2000 = vmax.xlane.f32.xlu0 %v1999
        %v2001 = vpop.xlane.xlu0 %2000
        %v2002 = vmax.f32 %v1949, %v1951
        %2003 = vmax.xlane.f32.xlu0 %v2002
        %v2004 = vpop.xlane.xlu0 %2003
        %v2005 = vmax.f32 %v1955, %v1957
        %2006 = vmax.xlane.f32.xlu0 %v2005
        %v2007 = vpop.xlane.xlu0 %2006
        %v2008 = vmax.f32 %v1959, %v1961
        %2009 = vmax.xlane.f32.xlu0 %v2008
        %v2010 = vpop.xlane.xlu0 %2009
        %v2011 = vsub.f32 %v1885, %v1965
        %v2012 = vsub.f32 %v1887, %v1965
        %v2013 = vsub.f32 %v1889, %v1968
        %v2014 = vsub.f32 %v1891, %v1968
        %v2015 = vsub.f32 %v1895, %v1971
        %v2016 = vsub.f32 %v1897, %v1971
        %v2017 = vsub.f32 %v1899, %v1974
        %v2018 = vsub.f32 %v1901, %v1974
        %v2019 = vsub.f32 %v1905, %v1977
        %v2020 = vsub.f32 %v1907, %v1977
        %v2021 = vsub.f32 %v1909, %v1980
        %v2022 = vsub.f32 %v1911, %v1980
        %v2023 = vsub.f32 %v1915, %v1983
        %v2024 = vsub.f32 %v1917, %v1983
        %v2025 = vsub.f32 %v1919, %v1986
        %v2026 = vsub.f32 %v1921, %v1986
        %v2027 = vsub.f32 %v1925, %v1989
        %v2028 = vsub.f32 %v1927, %v1989
        %v2029 = vsub.f32 %v1929, %v1992
        %v2030 = vsub.f32 %v1931, %v1992
        %v2031 = vsub.f32 %v1935, %v1995
        %v2032 = vsub.f32 %v1937, %v1995
        %v2033 = vsub.f32 %v1939, %v1998
        %v2034 = vsub.f32 %v1941, %v1998
        %v2035 = vsub.f32 %v1945, %v2001
        %v2036 = vsub.f32 %v1947, %v2001
        %v2037 = vsub.f32 %v1949, %v2004
        %v2038 = vsub.f32 %v1951, %v2004
        %v2039 = vsub.f32 %v1955, %v2007
        %v2040 = vsub.f32 %v1957, %v2007
        %v2041 = vsub.f32 %v1959, %v2010
        %v2042 = vsub.f32 %v1961, %v2010
        %v2043 = vmul.f32 %v2011, 1.442695
        %v2044 = vpow.pop %v2043
        %v2045 = vmul.f32 %v2012, 1.442695
        %v2046 = vpow.pop %v2045
        %v2047 = vmul.f32 %v2013, 1.442695
        %v2048 = vpow.pop %v2047
        %v2049 = vmul.f32 %v2014, 1.442695
        %v2050 = vpow.pop %v2049
        %v2051 = vmul.f32 %v2015, 1.442695
        %v2052 = vpow.pop %v2051
        %v2053 = vmul.f32 %v2016, 1.442695
        %v2054 = vpow.pop %v2053
        %v2055 = vmul.f32 %v2017, 1.442695
        %v2056 = vpow.pop %v2055
        %v2057 = vmul.f32 %v2018, 1.442695
        %v2058 = vpow.pop %v2057
        %v2059 = vmul.f32 %v2019, 1.442695
        %v2060 = vpow.pop %v2059
        %v2061 = vmul.f32 %v2020, 1.442695
        %v2062 = vpow.pop %v2061
        %v2063 = vmul.f32 %v2021, 1.442695
        %v2064 = vpow.pop %v2063
        %v2065 = vmul.f32 %v2022, 1.442695
        %v2066 = vpow.pop %v2065
        %v2067 = vmul.f32 %v2023, 1.442695
        %v2068 = vpow.pop %v2067
        %v2069 = vmul.f32 %v2024, 1.442695
        %v2070 = vpow.pop %v2069
        %v2071 = vmul.f32 %v2025, 1.442695
        %v2072 = vpow.pop %v2071
        %v2073 = vmul.f32 %v2026, 1.442695
        %v2074 = vpow.pop %v2073
        %v2075 = vmul.f32 %v2027, 1.442695
        %v2076 = vpow.pop %v2075
        %v2077 = vmul.f32 %v2028, 1.442695
        %v2078 = vpow.pop %v2077
        %v2079 = vmul.f32 %v2029, 1.442695
        %v2080 = vpow.pop %v2079
        %v2081 = vmul.f32 %v2030, 1.442695
        %v2082 = vpow.pop %v2081
        %v2083 = vmul.f32 %v2031, 1.442695
        %v2084 = vpow.pop %v2083
        %v2085 = vmul.f32 %v2032, 1.442695
        %v2086 = vpow.pop %v2085
        %v2087 = vmul.f32 %v2033, 1.442695
        %v2088 = vpow.pop %v2087
        %v2089 = vmul.f32 %v2034, 1.442695
        %v2090 = vpow.pop %v2089
        %v2091 = vmul.f32 %v2035, 1.442695
        %v2092 = vpow.pop %v2091
        %v2093 = vmul.f32 %v2036, 1.442695
        %v2094 = vpow.pop %v2093
        %v2095 = vmul.f32 %v2037, 1.442695
        %v2096 = vpow.pop %v2095
        %v2097 = vmul.f32 %v2038, 1.442695
        %v2098 = vpow.pop %v2097
        %v2099 = vmul.f32 %v2039, 1.442695
        %v2100 = vpow.pop %v2099
        %v2101 = vmul.f32 %v2040, 1.442695
        %v2102 = vpow.pop %v2101
        %v2103 = vmul.f32 %v2041, 1.442695
        %v2104 = vpow.pop %v2103
        %v2105 = vmul.f32 %v2042, 1.442695
        %v2106 = vpow.pop %v2105
        %v2107 = vadd.f32 %v2044, %v2046
        %2108 = vadd.xlane.f32.xlu0 %v2107
        %v2109 = vpop.xlane.xlu0 %2108
        %v2110 = vadd.f32 %v2048, %v2050
        %2111 = vadd.xlane.f32.xlu0 %v2110
        %v2112 = vpop.xlane.xlu0 %2111
        %v2113 = vadd.f32 %v2052, %v2054
        %2114 = vadd.xlane.f32.xlu0 %v2113
        %v2115 = vpop.xlane.xlu0 %2114
        %v2116 = vadd.f32 %v2056, %v2058
        %2117 = vadd.xlane.f32.xlu0 %v2116
        %v2118 = vpop.xlane.xlu0 %2117
        %v2119 = vadd.f32 %v2060, %v2062
        %2120 = vadd.xlane.f32.xlu0 %v2119
        %v2121 = vpop.xlane.xlu0 %2120
        %v2122 = vadd.f32 %v2064, %v2066
        %2123 = vadd.xlane.f32.xlu0 %v2122
        %v2124 = vpop.xlane.xlu0 %2123
        %v2125 = vadd.f32 %v2068, %v2070
        %2126 = vadd.xlane.f32.xlu0 %v2125
        %v2127 = vpop.xlane.xlu0 %2126
        %v2128 = vadd.f32 %v2072, %v2074
        %2129 = vadd.xlane.f32.xlu0 %v2128
        %v2130 = vpop.xlane.xlu0 %2129
        %v2131 = vadd.f32 %v2076, %v2078
        %2132 = vadd.xlane.f32.xlu0 %v2131
        %v2133 = vpop.xlane.xlu0 %2132
        %v2134 = vadd.f32 %v2080, %v2082
        %2135 = vadd.xlane.f32.xlu0 %v2134
        %v2136 = vpop.xlane.xlu0 %2135
        %v2137 = vadd.f32 %v2084, %v2086
        %2138 = vadd.xlane.f32.xlu0 %v2137
        %v2139 = vpop.xlane.xlu0 %2138
        %v2140 = vadd.f32 %v2088, %v2090
        %2141 = vadd.xlane.f32.xlu0 %v2140
        %v2142 = vpop.xlane.xlu0 %2141
        %v2143 = vadd.f32 %v2092, %v2094
        %2144 = vadd.xlane.f32.xlu0 %v2143
        %v2145 = vpop.xlane.xlu0 %2144
        %v2146 = vadd.f32 %v2096, %v2098
        %2147 = vadd.xlane.f32.xlu0 %v2146
        %v2148 = vpop.xlane.xlu0 %2147
        %v2149 = vadd.f32 %v2100, %v2102
        %2150 = vadd.xlane.f32.xlu0 %v2149
        %v2151 = vpop.xlane.xlu0 %2150
        %v2152 = vadd.f32 %v2104, %v2106
        %2153 = vadd.xlane.f32.xlu0 %v2152
        %v2154 = vpop.xlane.xlu0 %2153
        %v2155 = vpack.c.bf16 %v2048, %v2044
        %v2156 = vpack.c.bf16 %v2050, %v2046
        %v2157 = vpack.c.bf16 %v2056, %v2052
        %v2158 = vpack.c.bf16 %v2058, %v2054
        %v2159 = vpack.c.bf16 %v2064, %v2060
        %v2160 = vpack.c.bf16 %v2066, %v2062
        %v2161 = vpack.c.bf16 %v2072, %v2068
        %v2162 = vpack.c.bf16 %v2074, %v2070
        %v2163 = vpack.c.bf16 %v2080, %v2076
        %v2164 = vpack.c.bf16 %v2082, %v2078
        %v2165 = vpack.c.bf16 %v2088, %v2084
        %v2166 = vpack.c.bf16 %v2090, %v2086
        %v2167 = vpack.c.bf16 %v2096, %v2092
        %v2168 = vpack.c.bf16 %v2098, %v2094
        %v2169 = vpack.c.bf16 %v2104, %v2100
        %v2170 = vpack.c.bf16 %v2106, %v2102
        %v2203 = vunpack.c.l.b16 %v1625
        %v2204 = vunpack.c.l.b16 %v1626
        %v2205 = vunpack.c.l.b16 %v1627
        %v2206 = vunpack.c.l.b16 %v1628
        %v2207 = vunpack.c.l.b16 %v1629
        %v2208 = vunpack.c.l.b16 %v1630
        %v2209 = vunpack.c.l.b16 %v1631
        %v2210 = vunpack.c.l.b16 %v1632
        %v2211 = vunpack.c.l.b16 %v1633
        %v2212 = vunpack.c.l.b16 %v1634
        %v2213 = vunpack.c.l.b16 %v1635
        %v2214 = vunpack.c.l.b16 %v1636
        %v2215 = vunpack.c.l.b16 %v1637
        %v2216 = vunpack.c.l.b16 %v1638
        %v2217 = vunpack.c.l.b16 %v1639
        %v2218 = vunpack.c.l.b16 %v1640
        %v2219 = vunpack.c.l.b16 %v1641
        %v2220 = vunpack.c.l.b16 %v1642
        %v2221 = vunpack.c.l.b16 %v1643
        %v2222 = vunpack.c.l.b16 %v1644
        %v2223 = vunpack.c.l.b16 %v1645
        %v2224 = vunpack.c.l.b16 %v1646
        %v2225 = vunpack.c.l.b16 %v1647
        %v2226 = vunpack.c.l.b16 %v1648
        %v2227 = vunpack.c.l.b16 %v1649
        %v2228 = vunpack.c.l.b16 %v1650
        %v2229 = vunpack.c.l.b16 %v1651
        %v2230 = vunpack.c.l.b16 %v1652
        %v2231 = vunpack.c.l.b16 %v1653
        %v2232 = vunpack.c.l.b16 %v1654
        %v2233 = vunpack.c.l.b16 %v1655
        %v2234 = vunpack.c.l.b16 %v1656
        %v2235 = vpack.c.b16 %v2204, %v2203
        %v2236 = vpack.c.b16 %v2206, %v2205
        %v2237 = vpack.c.b16 %v2208, %v2207
        %v2238 = vpack.c.b16 %v2210, %v2209
        %v2239 = vpack.c.b16 %v2212, %v2211
        %v2240 = vpack.c.b16 %v2214, %v2213
        %v2241 = vpack.c.b16 %v2216, %v2215
        %v2242 = vpack.c.b16 %v2218, %v2217
        %v2243 = vpack.c.b16 %v2220, %v2219
        %v2244 = vpack.c.b16 %v2222, %v2221
        %v2245 = vpack.c.b16 %v2224, %v2223
        %v2246 = vpack.c.b16 %v2226, %v2225
        %v2247 = vpack.c.b16 %v2228, %v2227
        %v2248 = vpack.c.b16 %v2230, %v2229
        %v2249 = vpack.c.b16 %v2232, %v2231
        %v2250 = vpack.c.b16 %v2234, %v2233
        %2267 = vmatprep.subr.bf16.mxu0 0
        %2268 = vmatpush1.bf16.msra.mxu0 %v2242
        %2269 = vmatprep.subr.bf16.mxu0 0
        %2270 = vmatpush1.bf16.msra.mxu0 %v2241
        %2271 = vmatprep.subr.bf16.mxu0 0
        %2272 = vmatpush1.bf16.msra.mxu0 %v2240
        %2273 = vmatprep.subr.bf16.mxu0 0
        %2274 = vmatpush1.bf16.msra.mxu0 %v2239
        %2275 = vmatprep.subr.bf16.mxu0 0
        %2276 = vmatpush1.bf16.msra.mxu0 %v2238
        %2277 = vmatprep.subr.bf16.mxu0 0
        %2278 = vmatpush1.bf16.msra.mxu0 %v2237
        %2279 = vmatprep.subr.bf16.mxu0 0
        %2280 = vmatpush1.bf16.msra.mxu0 %v2236
        %2281 = vmatprep.subr.bf16.mxu0 0
        %2282 = vmatpush1.bf16.msra.mxu0 %v2235
        %2283 = vmatprep.subr.bf16.mxu0 0
        %2284 = vmatpush2.bf16.msra.mxu0 %v2250
        %2285 = vmatprep.subr.bf16.mxu0 0
        %2286 = vmatpush2.bf16.msra.mxu0 %v2249
        %2287 = vmatprep.subr.bf16.mxu0 0
        %2288 = vmatpush2.bf16.msra.mxu0 %v2248
        %2289 = vmatprep.subr.bf16.mxu0 0
        %2290 = vmatpush2.bf16.msra.mxu0 %v2247
        %2291 = vmatprep.subr.bf16.mxu0 0
        %2292 = vmatpush2.bf16.msra.mxu0 %v2246
        %2293 = vmatprep.subr.bf16.mxu0 0
        %2294 = vmatpush2.bf16.msra.mxu0 %v2245
        %2295 = vmatprep.subr.bf16.mxu0 0
        %2296 = vmatpush2.bf16.msra.mxu0 %v2244
        %2297 = vmatprep.subr.bf16.mxu0 0
        %2298 = vmatpush2.bf16.msra.mxu0 %v2243
        %2299 = vmatprep.mubr.bf16.mxu0 %v2156
        %2300 = vmatmul.mubr.bf16.gmra.mxu0 %v2155
        %v2301 = vpop.f32.mrf.mxu0
        %v2302 = vadd.f32 0.0, %v2301
        %v2303 = vpop.f32.mrf.mxu0
        %v2304 = vpop.f32.mrf.mxu0
        %v2305 = vadd.f32 0.0, %v2304
        %v2306 = vpop.f32.mrf.mxu0
        %2307 = vmatprep.mubr.bf16.mxu0 %v2158
        %2308 = vmatmul.mubr.bf16.gmra.mxu0 %v2157
        %v2309 = vpop.f32.mrf.mxu0
        %v2310 = vadd.f32 0.0, %v2309
        %v2311 = vpop.f32.mrf.mxu0
        %v2312 = vpop.f32.mrf.mxu0
        %v2313 = vadd.f32 0.0, %v2312
        %v2314 = vpop.f32.mrf.mxu0
        %2315 = vmatprep.mubr.bf16.mxu0 %v2160
        %2316 = vmatmul.mubr.bf16.gmra.mxu0 %v2159
        %v2317 = vpop.f32.mrf.mxu0
        %v2318 = vadd.f32 0.0, %v2317
        %v2319 = vpop.f32.mrf.mxu0
        %v2320 = vpop.f32.mrf.mxu0
        %v2321 = vadd.f32 0.0, %v2320
        %v2322 = vpop.f32.mrf.mxu0
        %2323 = vmatprep.mubr.bf16.mxu0 %v2162
        %2324 = vmatmul.mubr.bf16.gmra.mxu0 %v2161
        %v2325 = vpop.f32.mrf.mxu0
        %v2326 = vadd.f32 0.0, %v2325
        %v2327 = vpop.f32.mrf.mxu0
        %v2328 = vpop.f32.mrf.mxu0
        %v2329 = vadd.f32 0.0, %v2328
        %v2330 = vpop.f32.mrf.mxu0
        %2331 = vmatprep.mubr.bf16.mxu0 %v2164
        %2332 = vmatmul.mubr.bf16.gmra.mxu0 %v2163
        %v2333 = vpop.f32.mrf.mxu0
        %v2334 = vadd.f32 0.0, %v2333
        %v2335 = vpop.f32.mrf.mxu0
        %v2336 = vpop.f32.mrf.mxu0
        %v2337 = vadd.f32 0.0, %v2336
        %v2338 = vpop.f32.mrf.mxu0
        %2339 = vmatprep.mubr.bf16.mxu0 %v2166
        %2340 = vmatmul.mubr.bf16.gmra.mxu0 %v2165
        %v2341 = vpop.f32.mrf.mxu0
        %v2342 = vadd.f32 0.0, %v2341
        %v2343 = vpop.f32.mrf.mxu0
        %v2344 = vpop.f32.mrf.mxu0
        %v2345 = vadd.f32 0.0, %v2344
        %v2346 = vpop.f32.mrf.mxu0
        %2347 = vmatprep.mubr.bf16.mxu0 %v2168
        %2348 = vmatmul.mubr.bf16.gmra.mxu0 %v2167
        %v2349 = vpop.f32.mrf.mxu0
        %v2350 = vadd.f32 0.0, %v2349
        %v2351 = vpop.f32.mrf.mxu0
        %v2352 = vpop.f32.mrf.mxu0
        %v2353 = vadd.f32 0.0, %v2352
        %v2354 = vpop.f32.mrf.mxu0
        %2355 = vmatprep.mubr.bf16.mxu0 %v2170
        %2356 = vmatmul.mubr.bf16.gmra.mxu0 %v2169
        %v2357 = vpop.f32.mrf.mxu0
        %v2358 = vadd.f32 0.0, %v2357
        %v2359 = vpop.f32.mrf.mxu0
        %v2360 = vpop.f32.mrf.mxu0
        %v2361 = vadd.f32 0.0, %v2360
        %v2362 = vpop.f32.mrf.mxu0
        %2363 = vdwg.mxu0
        %v2364 = vrcp.pop %v2109
        %v2365 = vrcp.pop %v2112
        %v2366 = vrcp.pop %v2115
        %v2367 = vrcp.pop %v2118
        %v2368 = vrcp.pop %v2121
        %v2369 = vrcp.pop %v2124
        %v2370 = vrcp.pop %v2127
        %v2371 = vrcp.pop %v2130
        %v2372 = vrcp.pop %v2133
        %v2373 = vrcp.pop %v2136
        %v2374 = vrcp.pop %v2139
        %v2375 = vrcp.pop %v2142
        %v2376 = vrcp.pop %v2145
        %v2377 = vrcp.pop %v2148
        %v2378 = vrcp.pop %v2151
        %v2379 = vrcp.pop %v2154
        %v2380 = vmul.f32 %v2302, %v2364
        %v2381 = vmul.f32 %v2305, %v2365
        %v2382 = vmul.f32 %v2310, %v2366
        %v2383 = vmul.f32 %v2313, %v2367
        %v2384 = vmul.f32 %v2318, %v2368
        %v2385 = vmul.f32 %v2321, %v2369
        %v2386 = vmul.f32 %v2326, %v2370
        %v2387 = vmul.f32 %v2329, %v2371
        %v2388 = vmul.f32 %v2334, %v2372
        %v2389 = vmul.f32 %v2337, %v2373
        %v2390 = vmul.f32 %v2342, %v2374
        %v2391 = vmul.f32 %v2345, %v2375
        %v2392 = vmul.f32 %v2350, %v2376
        %v2393 = vmul.f32 %v2353, %v2377
        %v2394 = vmul.f32 %v2358, %v2378
        %v2395 = vmul.f32 %v2361, %v2379
        %v2396 = vpack.c.bf16 %v2381, %v2380
        %v2397 = vpack.c.bf16 %v2383, %v2382
        %v2398 = vpack.c.bf16 %v2385, %v2384
        %v2399 = vpack.c.bf16 %v2387, %v2386
        %v2400 = vpack.c.bf16 %v2389, %v2388
        %v2401 = vpack.c.bf16 %v2391, %v2390
        %v2402 = vpack.c.bf16 %v2393, %v2392
        %v2403 = vpack.c.bf16 %v2395, %v2394
        %2404 = vrot.lane.b32.xlu0 %v1689, 112
        %v2405 = vpop.permute.xlu0 %2404
        %2406 = vrot.lane.b32.xlu0 %v1690, 112
        %v2407 = vpop.permute.xlu0 %2406
        %2408 = vrot.lane.b32.xlu0 %v1691, 112
        %v2409 = vpop.permute.xlu0 %2408
        %2410 = vrot.lane.b32.xlu0 %v1692, 112
        %v2411 = vpop.permute.xlu0 %2410
        %2412 = vrot.lane.b32.xlu0 %v1693, 112
        %v2413 = vpop.permute.xlu0 %2412
        %2414 = vrot.lane.b32.xlu0 %v1694, 112
        %v2415 = vpop.permute.xlu0 %2414
        %2416 = vrot.lane.b32.xlu0 %v1695, 112
        %v2417 = vpop.permute.xlu0 %2416
        %2418 = vrot.lane.b32.xlu0 %v1696, 112
        %v2419 = vpop.permute.xlu0 %2418
        %2420 = vrot.lane.b32.xlu0 %v1761, 112
        %v2421 = vpop.permute.xlu0 %2420
        %2422 = vrot.lane.b32.xlu0 %v1762, 112
        %v2423 = vpop.permute.xlu0 %2422
        %2424 = vrot.lane.b32.xlu0 %v1763, 112
        %v2425 = vpop.permute.xlu0 %2424
        %2426 = vrot.lane.b32.xlu0 %v1764, 112
        %v2427 = vpop.permute.xlu0 %2426
        %2428 = vrot.lane.b32.xlu0 %v1765, 112
        %v2429 = vpop.permute.xlu0 %2428
        %2430 = vrot.lane.b32.xlu0 %v1766, 112
        %v2431 = vpop.permute.xlu0 %2430
        %2432 = vrot.lane.b32.xlu0 %v1767, 112
        %v2433 = vpop.permute.xlu0 %2432
        %2434 = vrot.lane.b32.xlu0 %v1768, 112
        %v2435 = vpop.permute.xlu0 %2434
        %2436 = vrot.lane.b32.xlu0 %v1769, 112
        %v2437 = vpop.permute.xlu0 %2436
        %2438 = vrot.lane.b32.xlu0 %v1770, 112
        %v2439 = vpop.permute.xlu0 %2438
        %2440 = vrot.lane.b32.xlu0 %v1771, 112
        %v2441 = vpop.permute.xlu0 %2440
        %2442 = vrot.lane.b32.xlu0 %v1772, 112
        %v2443 = vpop.permute.xlu0 %2442
        %2444 = vrot.lane.b32.xlu0 %v1773, 112
        %v2445 = vpop.permute.xlu0 %2444
        %2446 = vrot.lane.b32.xlu0 %v1774, 112
        %v2447 = vpop.permute.xlu0 %2446
        %2448 = vrot.lane.b32.xlu0 %v1775, 112
        %v2449 = vpop.permute.xlu0 %2448
        %2450 = vrot.lane.b32.xlu0 %v1776, 112
        %v2451 = vpop.permute.xlu0 %2450
        %v2453 = vsel %vm1777, %v2405, 0
        %v2456 = vsel %vm1777, %v2407, 0
        %v2459 = vsel %vm1777, %v2409, 0
        %v2462 = vsel %vm1777, %v2411, 0
        %v2465 = vsel %vm1777, %v2413, 0
        %v2468 = vsel %vm1777, %v2415, 0
        %v2471 = vsel %vm1777, %v2417, 0
        %v2474 = vsel %vm1777, %v2419, 0
        %v2477 = vsel %vm1777, %v2421, 0
        %v2480 = vsel %vm1777, %v2423, 0
        %v2483 = vsel %vm1777, %v2425, 0
        %v2486 = vsel %vm1777, %v2427, 0
        %v2489 = vsel %vm1777, %v2429, 0
        %v2492 = vsel %vm1777, %v2431, 0
        %v2495 = vsel %vm1777, %v2433, 0
        %v2498 = vsel %vm1777, %v2435, 0
        %v2501 = vsel %vm1777, %v2437, 0
        %v2504 = vsel %vm1777, %v2439, 0
        %v2507 = vsel %vm1777, %v2441, 0
        %v2510 = vsel %vm1777, %v2443, 0
        %v2513 = vsel %vm1777, %v2445, 0
        %v2516 = vsel %vm1777, %v2447, 0
        %v2519 = vsel %vm1777, %v2449, 0
        %v2522 = vsel %vm1777, %v2451, 0
        %2524 = vmatprep.subr.bf16.mxu0 0
        %2525 = vmatpush1.bf16.xpose.msra.mxu0 %v2498
        %2526 = vmatprep.subr.bf16.mxu0 0
        %2527 = vmatpush1.bf16.xpose.msra.mxu0 %v2495
        %2528 = vmatprep.subr.bf16.mxu0 0
        %2529 = vmatpush1.bf16.xpose.msra.mxu0 %v2492
        %2530 = vmatprep.subr.bf16.mxu0 0
        %2531 = vmatpush1.bf16.xpose.msra.mxu0 %v2489
        %2532 = vmatprep.subr.bf16.mxu0 0
        %2533 = vmatpush1.bf16.xpose.msra.mxu0 %v2486
        %2534 = vmatprep.subr.bf16.mxu0 0
        %2535 = vmatpush1.bf16.xpose.msra.mxu0 %v2483
        %2536 = vmatprep.subr.bf16.mxu0 0
        %2537 = vmatpush1.bf16.xpose.msra.mxu0 %v2480
        %2538 = vmatprep.subr.bf16.mxu0 0
        %2539 = vmatpush1.bf16.xpose.msra.mxu0 %v2477
        %2540 = vmatprep.subr.bf16.mxu0 0
        %2541 = vmatpush2.bf16.xpose.msra.mxu0 %v2522
        %2542 = vmatprep.subr.bf16.mxu0 0
        %2543 = vmatpush2.bf16.xpose.msra.mxu0 %v2519
        %2544 = vmatprep.subr.bf16.mxu0 0
        %2545 = vmatpush2.bf16.xpose.msra.mxu0 %v2516
        %2546 = vmatprep.subr.bf16.mxu0 0
        %2547 = vmatpush2.bf16.xpose.msra.mxu0 %v2513
        %2548 = vmatprep.subr.bf16.mxu0 0
        %2549 = vmatpush2.bf16.xpose.msra.mxu0 %v2510
        %2550 = vmatprep.subr.bf16.mxu0 0
        %2551 = vmatpush2.bf16.xpose.msra.mxu0 %v2507
        %2552 = vmatprep.subr.bf16.mxu0 0
        %2553 = vmatpush2.bf16.xpose.msra.mxu0 %v2504
        %2554 = vmatprep.subr.bf16.mxu0 0
        %2555 = vmatpush2.bf16.xpose.msra.mxu0 %v2501
        %2556 = vmatprep.mubr.bf16.mxu0 0
        %2557 = vmatmul.mubr.bf16.gmra.mxu0 %v2453
        %v2558 = vpop.f32.mrf.mxu0
        %v2559 = vadd.f32 0.0, %v2558
        %v2560 = vpop.f32.mrf.mxu0
        %v2561 = vadd.f32 0.0, %v2560
        %v2562 = vpop.f32.mrf.mxu0
        %v2563 = vadd.f32 0.0, %v2562
        %v2564 = vpop.f32.mrf.mxu0
        %v2565 = vadd.f32 0.0, %v2564
        %2566 = vmatprep.mubr.bf16.mxu0 0
        %2567 = vmatmul.mubr.bf16.gmra.mxu0 %v2456
        %v2568 = vpop.f32.mrf.mxu0
        %v2569 = vadd.f32 0.0, %v2568
        %v2570 = vpop.f32.mrf.mxu0
        %v2571 = vadd.f32 0.0, %v2570
        %v2572 = vpop.f32.mrf.mxu0
        %v2573 = vadd.f32 0.0, %v2572
        %v2574 = vpop.f32.mrf.mxu0
        %v2575 = vadd.f32 0.0, %v2574
        %2576 = vmatprep.mubr.bf16.mxu0 0
        %2577 = vmatmul.mubr.bf16.gmra.mxu0 %v2459
        %v2578 = vpop.f32.mrf.mxu0
        %v2579 = vadd.f32 0.0, %v2578
        %v2580 = vpop.f32.mrf.mxu0
        %v2581 = vadd.f32 0.0, %v2580
        %v2582 = vpop.f32.mrf.mxu0
        %v2583 = vadd.f32 0.0, %v2582
        %v2584 = vpop.f32.mrf.mxu0
        %v2585 = vadd.f32 0.0, %v2584
        %2586 = vmatprep.mubr.bf16.mxu0 0
        %2587 = vmatmul.mubr.bf16.gmra.mxu0 %v2462
        %v2588 = vpop.f32.mrf.mxu0
        %v2589 = vadd.f32 0.0, %v2588
        %v2590 = vpop.f32.mrf.mxu0
        %v2591 = vadd.f32 0.0, %v2590
        %v2592 = vpop.f32.mrf.mxu0
        %v2593 = vadd.f32 0.0, %v2592
        %v2594 = vpop.f32.mrf.mxu0
        %v2595 = vadd.f32 0.0, %v2594
        %2596 = vmatprep.mubr.bf16.mxu0 0
        %2597 = vmatmul.mubr.bf16.gmra.mxu0 %v2465
        %v2598 = vpop.f32.mrf.mxu0
        %v2599 = vadd.f32 0.0, %v2598
        %v2600 = vpop.f32.mrf.mxu0
        %v2601 = vadd.f32 0.0, %v2600
        %v2602 = vpop.f32.mrf.mxu0
        %v2603 = vadd.f32 0.0, %v2602
        %v2604 = vpop.f32.mrf.mxu0
        %v2605 = vadd.f32 0.0, %v2604
        %2606 = vmatprep.mubr.bf16.mxu0 0
        %2607 = vmatmul.mubr.bf16.gmra.mxu0 %v2468
        %v2608 = vpop.f32.mrf.mxu0
        %v2609 = vadd.f32 0.0, %v2608
        %v2610 = vpop.f32.mrf.mxu0
        %v2611 = vadd.f32 0.0, %v2610
        %v2612 = vpop.f32.mrf.mxu0
        %v2613 = vadd.f32 0.0, %v2612
        %v2614 = vpop.f32.mrf.mxu0
        %v2615 = vadd.f32 0.0, %v2614
        %2616 = vmatprep.mubr.bf16.mxu0 0
        %2617 = vmatmul.mubr.bf16.gmra.mxu0 %v2471
        %v2618 = vpop.f32.mrf.mxu0
        %v2619 = vadd.f32 0.0, %v2618
        %v2620 = vpop.f32.mrf.mxu0
        %v2621 = vadd.f32 0.0, %v2620
        %v2622 = vpop.f32.mrf.mxu0
        %v2623 = vadd.f32 0.0, %v2622
        %v2624 = vpop.f32.mrf.mxu0
        %v2625 = vadd.f32 0.0, %v2624
        %2626 = vmatprep.mubr.bf16.mxu0 0
        %2627 = vmatmul.mubr.bf16.gmra.mxu0 %v2474
        %v2628 = vpop.f32.mrf.mxu0
        %v2629 = vadd.f32 0.0, %v2628
        %v2630 = vpop.f32.mrf.mxu0
        %v2631 = vadd.f32 0.0, %v2630
        %v2632 = vpop.f32.mrf.mxu0
        %v2633 = vadd.f32 0.0, %v2632
        %v2634 = vpop.f32.mrf.mxu0
        %v2635 = vadd.f32 0.0, %v2634
        %2636 = vdwg.mxu0
        %v2637 = vmax.f32 %v2559, %v2561
        %2638 = vmax.xlane.f32.xlu0 %v2637
        %v2639 = vpop.xlane.xlu0 %2638
        %v2640 = vmax.f32 %v2563, %v2565
        %2641 = vmax.xlane.f32.xlu0 %v2640
        %v2642 = vpop.xlane.xlu0 %2641
        %v2643 = vmax.f32 %v2569, %v2571
        %2644 = vmax.xlane.f32.xlu0 %v2643
        %v2645 = vpop.xlane.xlu0 %2644
        %v2646 = vmax.f32 %v2573, %v2575
        %2647 = vmax.xlane.f32.xlu0 %v2646
        %v2648 = vpop.xlane.xlu0 %2647
        %v2649 = vmax.f32 %v2579, %v2581
        %2650 = vmax.xlane.f32.xlu0 %v2649
        %v2651 = vpop.xlane.xlu0 %2650
        %v2652 = vmax.f32 %v2583, %v2585
        %2653 = vmax.xlane.f32.xlu0 %v2652
        %v2654 = vpop.xlane.xlu0 %2653
        %v2655 = vmax.f32 %v2589, %v2591
        %2656 = vmax.xlane.f32.xlu0 %v2655
        %v2657 = vpop.xlane.xlu0 %2656
        %v2658 = vmax.f32 %v2593, %v2595
        %2659 = vmax.xlane.f32.xlu0 %v2658
        %v2660 = vpop.xlane.xlu0 %2659
        %v2661 = vmax.f32 %v2599, %v2601
        %2662 = vmax.xlane.f32.xlu0 %v2661
        %v2663 = vpop.xlane.xlu0 %2662
        %v2664 = vmax.f32 %v2603, %v2605
        %2665 = vmax.xlane.f32.xlu0 %v2664
        %v2666 = vpop.xlane.xlu0 %2665
        %v2667 = vmax.f32 %v2609, %v2611
        %2668 = vmax.xlane.f32.xlu0 %v2667
        %v2669 = vpop.xlane.xlu0 %2668
        %v2670 = vmax.f32 %v2613, %v2615
        %2671 = vmax.xlane.f32.xlu0 %v2670
        %v2672 = vpop.xlane.xlu0 %2671
        %v2673 = vmax.f32 %v2619, %v2621
        %2674 = vmax.xlane.f32.xlu0 %v2673
        %v2675 = vpop.xlane.xlu0 %2674
        %v2676 = vmax.f32 %v2623, %v2625
        %2677 = vmax.xlane.f32.xlu0 %v2676
        %v2678 = vpop.xlane.xlu0 %2677
        %v2679 = vmax.f32 %v2629, %v2631
        %2680 = vmax.xlane.f32.xlu0 %v2679
        %v2681 = vpop.xlane.xlu0 %2680
        %v2682 = vmax.f32 %v2633, %v2635
        %2683 = vmax.xlane.f32.xlu0 %v2682
        %v2684 = vpop.xlane.xlu0 %2683
        %v2685 = vsub.f32 %v2559, %v2639
        %v2686 = vsub.f32 %v2561, %v2639
        %v2687 = vsub.f32 %v2563, %v2642
        %v2688 = vsub.f32 %v2565, %v2642
        %v2689 = vsub.f32 %v2569, %v2645
        %v2690 = vsub.f32 %v2571, %v2645
        %v2691 = vsub.f32 %v2573, %v2648
        %v2692 = vsub.f32 %v2575, %v2648
        %v2693 = vsub.f32 %v2579, %v2651
        %v2694 = vsub.f32 %v2581, %v2651
        %v2695 = vsub.f32 %v2583, %v2654
        %v2696 = vsub.f32 %v2585, %v2654
        %v2697 = vsub.f32 %v2589, %v2657
        %v2698 = vsub.f32 %v2591, %v2657
        %v2699 = vsub.f32 %v2593, %v2660
        %v2700 = vsub.f32 %v2595, %v2660
        %v2701 = vsub.f32 %v2599, %v2663
        %v2702 = vsub.f32 %v2601, %v2663
        %v2703 = vsub.f32 %v2603, %v2666
        %v2704 = vsub.f32 %v2605, %v2666
        %v2705 = vsub.f32 %v2609, %v2669
        %v2706 = vsub.f32 %v2611, %v2669
        %v2707 = vsub.f32 %v2613, %v2672
        %v2708 = vsub.f32 %v2615, %v2672
        %v2709 = vsub.f32 %v2619, %v2675
        %v2710 = vsub.f32 %v2621, %v2675
        %v2711 = vsub.f32 %v2623, %v2678
        %v2712 = vsub.f32 %v2625, %v2678
        %v2713 = vsub.f32 %v2629, %v2681
        %v2714 = vsub.f32 %v2631, %v2681
        %v2715 = vsub.f32 %v2633, %v2684
        %v2716 = vsub.f32 %v2635, %v2684
        %v2717 = vmul.f32 %v2685, 1.442695
        %v2718 = vpow.pop %v2717
        %v2719 = vmul.f32 %v2686, 1.442695
        %v2720 = vpow.pop %v2719
        %v2721 = vmul.f32 %v2687, 1.442695
        %v2722 = vpow.pop %v2721
        %v2723 = vmul.f32 %v2688, 1.442695
        %v2724 = vpow.pop %v2723
        %v2725 = vmul.f32 %v2689, 1.442695
        %v2726 = vpow.pop %v2725
        %v2727 = vmul.f32 %v2690, 1.442695
        %v2728 = vpow.pop %v2727
        %v2729 = vmul.f32 %v2691, 1.442695
        %v2730 = vpow.pop %v2729
        %v2731 = vmul.f32 %v2692, 1.442695
        %v2732 = vpow.pop %v2731
        %v2733 = vmul.f32 %v2693, 1.442695
        %v2734 = vpow.pop %v2733
        %v2735 = vmul.f32 %v2694, 1.442695
        %v2736 = vpow.pop %v2735
        %v2737 = vmul.f32 %v2695, 1.442695
        %v2738 = vpow.pop %v2737
        %v2739 = vmul.f32 %v2696, 1.442695
        %v2740 = vpow.pop %v2739
        %v2741 = vmul.f32 %v2697, 1.442695
        %v2742 = vpow.pop %v2741
        %v2743 = vmul.f32 %v2698, 1.442695
        %v2744 = vpow.pop %v2743
        %v2745 = vmul.f32 %v2699, 1.442695
        %v2746 = vpow.pop %v2745
        %v2747 = vmul.f32 %v2700, 1.442695
        %v2748 = vpow.pop %v2747
        %v2749 = vmul.f32 %v2701, 1.442695
        %v2750 = vpow.pop %v2749
        %v2751 = vmul.f32 %v2702, 1.442695
        %v2752 = vpow.pop %v2751
        %v2753 = vmul.f32 %v2703, 1.442695
        %v2754 = vpow.pop %v2753
        %v2755 = vmul.f32 %v2704, 1.442695
        %v2756 = vpow.pop %v2755
        %v2757 = vmul.f32 %v2705, 1.442695
        %v2758 = vpow.pop %v2757
        %v2759 = vmul.f32 %v2706, 1.442695
        %v2760 = vpow.pop %v2759
        %v2761 = vmul.f32 %v2707, 1.442695
        %v2762 = vpow.pop %v2761
        %v2763 = vmul.f32 %v2708, 1.442695
        %v2764 = vpow.pop %v2763
        %v2765 = vmul.f32 %v2709, 1.442695
        %v2766 = vpow.pop %v2765
        %v2767 = vmul.f32 %v2710, 1.442695
        %v2768 = vpow.pop %v2767
        %v2769 = vmul.f32 %v2711, 1.442695
        %v2770 = vpow.pop %v2769
        %v2771 = vmul.f32 %v2712, 1.442695
        %v2772 = vpow.pop %v2771
        %v2773 = vmul.f32 %v2713, 1.442695
        %v2774 = vpow.pop %v2773
        %v2775 = vmul.f32 %v2714, 1.442695
        %v2776 = vpow.pop %v2775
        %v2777 = vmul.f32 %v2715, 1.442695
        %v2778 = vpow.pop %v2777
        %v2779 = vmul.f32 %v2716, 1.442695
        %v2780 = vpow.pop %v2779
        %v2781 = vadd.f32 %v2718, %v2720
        %2782 = vadd.xlane.f32.xlu0 %v2781
        %v2783 = vpop.xlane.xlu0 %2782
        %v2784 = vadd.f32 %v2722, %v2724
        %2785 = vadd.xlane.f32.xlu0 %v2784
        %v2786 = vpop.xlane.xlu0 %2785
        %v2787 = vadd.f32 %v2726, %v2728
        %2788 = vadd.xlane.f32.xlu0 %v2787
        %v2789 = vpop.xlane.xlu0 %2788
        %v2790 = vadd.f32 %v2730, %v2732
        %2791 = vadd.xlane.f32.xlu0 %v2790
        %v2792 = vpop.xlane.xlu0 %2791
        %v2793 = vadd.f32 %v2734, %v2736
        %2794 = vadd.xlane.f32.xlu0 %v2793
        %v2795 = vpop.xlane.xlu0 %2794
        %v2796 = vadd.f32 %v2738, %v2740
        %2797 = vadd.xlane.f32.xlu0 %v2796
        %v2798 = vpop.xlane.xlu0 %2797
        %v2799 = vadd.f32 %v2742, %v2744
        %2800 = vadd.xlane.f32.xlu0 %v2799
        %v2801 = vpop.xlane.xlu0 %2800
        %v2802 = vadd.f32 %v2746, %v2748
        %2803 = vadd.xlane.f32.xlu0 %v2802
        %v2804 = vpop.xlane.xlu0 %2803
        %v2805 = vadd.f32 %v2750, %v2752
        %2806 = vadd.xlane.f32.xlu0 %v2805
        %v2807 = vpop.xlane.xlu0 %2806
        %v2808 = vadd.f32 %v2754, %v2756
        %2809 = vadd.xlane.f32.xlu0 %v2808
        %v2810 = vpop.xlane.xlu0 %2809
        %v2811 = vadd.f32 %v2758, %v2760
        %2812 = vadd.xlane.f32.xlu0 %v2811
        %v2813 = vpop.xlane.xlu0 %2812
        %v2814 = vadd.f32 %v2762, %v2764
        %2815 = vadd.xlane.f32.xlu0 %v2814
        %v2816 = vpop.xlane.xlu0 %2815
        %v2817 = vadd.f32 %v2766, %v2768
        %2818 = vadd.xlane.f32.xlu0 %v2817
        %v2819 = vpop.xlane.xlu0 %2818
        %v2820 = vadd.f32 %v2770, %v2772
        %2821 = vadd.xlane.f32.xlu0 %v2820
        %v2822 = vpop.xlane.xlu0 %2821
        %v2823 = vadd.f32 %v2774, %v2776
        %2824 = vadd.xlane.f32.xlu0 %v2823
        %v2825 = vpop.xlane.xlu0 %2824
        %v2826 = vadd.f32 %v2778, %v2780
        %2827 = vadd.xlane.f32.xlu0 %v2826
        %v2828 = vpop.xlane.xlu0 %2827
        %v2829 = vpack.c.bf16 %v2722, %v2718
        %v2830 = vpack.c.bf16 %v2724, %v2720
        %v2831 = vpack.c.bf16 %v2730, %v2726
        %v2832 = vpack.c.bf16 %v2732, %v2728
        %v2833 = vpack.c.bf16 %v2738, %v2734
        %v2834 = vpack.c.bf16 %v2740, %v2736
        %v2835 = vpack.c.bf16 %v2746, %v2742
        %v2836 = vpack.c.bf16 %v2748, %v2744
        %v2837 = vpack.c.bf16 %v2754, %v2750
        %v2838 = vpack.c.bf16 %v2756, %v2752
        %v2839 = vpack.c.bf16 %v2762, %v2758
        %v2840 = vpack.c.bf16 %v2764, %v2760
        %v2841 = vpack.c.bf16 %v2770, %v2766
        %v2842 = vpack.c.bf16 %v2772, %v2768
        %v2843 = vpack.c.bf16 %v2778, %v2774
        %v2844 = vpack.c.bf16 %v2780, %v2776
        %2845 = vrot.lane.b32.xlu0 %v2235, 112
        %v2846 = vpop.permute.xlu0 %2845
        %2847 = vrot.lane.b32.xlu0 %v2236, 112
        %v2848 = vpop.permute.xlu0 %2847
        %2849 = vrot.lane.b32.xlu0 %v2237, 112
        %v2850 = vpop.permute.xlu0 %2849
        %2851 = vrot.lane.b32.xlu0 %v2238, 112
        %v2852 = vpop.permute.xlu0 %2851
        %2853 = vrot.lane.b32.xlu0 %v2239, 112
        %v2854 = vpop.permute.xlu0 %2853
        %2855 = vrot.lane.b32.xlu0 %v2240, 112
        %v2856 = vpop.permute.xlu0 %2855
        %2857 = vrot.lane.b32.xlu0 %v2241, 112
        %v2858 = vpop.permute.xlu0 %2857
        %2859 = vrot.lane.b32.xlu0 %v2242, 112
        %v2860 = vpop.permute.xlu0 %2859
        %2861 = vrot.lane.b32.xlu0 %v2243, 112
        %v2862 = vpop.permute.xlu0 %2861
        %2863 = vrot.lane.b32.xlu0 %v2244, 112
        %v2864 = vpop.permute.xlu0 %2863
        %2865 = vrot.lane.b32.xlu0 %v2245, 112
        %v2866 = vpop.permute.xlu0 %2865
        %2867 = vrot.lane.b32.xlu0 %v2246, 112
        %v2868 = vpop.permute.xlu0 %2867
        %2869 = vrot.lane.b32.xlu0 %v2247, 112
        %v2870 = vpop.permute.xlu0 %2869
        %2871 = vrot.lane.b32.xlu0 %v2248, 112
        %v2872 = vpop.permute.xlu0 %2871
        %2873 = vrot.lane.b32.xlu0 %v2249, 112
        %v2874 = vpop.permute.xlu0 %2873
        %2875 = vrot.lane.b32.xlu0 %v2250, 112
        %v2876 = vpop.permute.xlu0 %2875
        %2893 = vmatprep.subr.bf16.mxu0 0
        %2894 = vmatpush1.bf16.msra.mxu0 %v2860
        %2895 = vmatprep.subr.bf16.mxu0 0
        %2896 = vmatpush1.bf16.msra.mxu0 %v2858
        %2897 = vmatprep.subr.bf16.mxu0 0
        %2898 = vmatpush1.bf16.msra.mxu0 %v2856
        %2899 = vmatprep.subr.bf16.mxu0 0
        %2900 = vmatpush1.bf16.msra.mxu0 %v2854
        %2901 = vmatprep.subr.bf16.mxu0 0
        %2902 = vmatpush1.bf16.msra.mxu0 %v2852
        %2903 = vmatprep.subr.bf16.mxu0 0
        %2904 = vmatpush1.bf16.msra.mxu0 %v2850
        %2905 = vmatprep.subr.bf16.mxu0 0
        %2906 = vmatpush1.bf16.msra.mxu0 %v2848
        %2907 = vmatprep.subr.bf16.mxu0 0
        %2908 = vmatpush1.bf16.msra.mxu0 %v2846
        %2909 = vmatprep.subr.bf16.mxu0 0
        %2910 = vmatpush2.bf16.msra.mxu0 %v2876
        %2911 = vmatprep.subr.bf16.mxu0 0
        %2912 = vmatpush2.bf16.msra.mxu0 %v2874
        %2913 = vmatprep.subr.bf16.mxu0 0
        %2914 = vmatpush2.bf16.msra.mxu0 %v2872
        %2915 = vmatprep.subr.bf16.mxu0 0
        %2916 = vmatpush2.bf16.msra.mxu0 %v2870
        %2917 = vmatprep.subr.bf16.mxu0 0
        %2918 = vmatpush2.bf16.msra.mxu0 %v2868
        %2919 = vmatprep.subr.bf16.mxu0 0
        %2920 = vmatpush2.bf16.msra.mxu0 %v2866
        %2921 = vmatprep.subr.bf16.mxu0 0
        %2922 = vmatpush2.bf16.msra.mxu0 %v2864
        %2923 = vmatprep.subr.bf16.mxu0 0
        %2924 = vmatpush2.bf16.msra.mxu0 %v2862
        %2925 = vmatprep.mubr.bf16.mxu0 %v2830
        %2926 = vmatmul.mubr.bf16.gmra.mxu0 %v2829
        %v2927 = vpop.f32.mrf.mxu0
        %v2928 = vadd.f32 0.0, %v2927
        %v2929 = vpop.f32.mrf.mxu0
        %v2930 = vpop.f32.mrf.mxu0
        %v2931 = vadd.f32 0.0, %v2930
        %v2932 = vpop.f32.mrf.mxu0
        %2933 = vmatprep.mubr.bf16.mxu0 %v2832
        %2934 = vmatmul.mubr.bf16.gmra.mxu0 %v2831
        %v2935 = vpop.f32.mrf.mxu0
        %v2936 = vadd.f32 0.0, %v2935
        %v2937 = vpop.f32.mrf.mxu0
        %v2938 = vpop.f32.mrf.mxu0
        %v2939 = vadd.f32 0.0, %v2938
        %v2940 = vpop.f32.mrf.mxu0
        %2941 = vmatprep.mubr.bf16.mxu0 %v2834
        %2942 = vmatmul.mubr.bf16.gmra.mxu0 %v2833
        %v2943 = vpop.f32.mrf.mxu0
        %v2944 = vadd.f32 0.0, %v2943
        %v2945 = vpop.f32.mrf.mxu0
        %v2946 = vpop.f32.mrf.mxu0
        %v2947 = vadd.f32 0.0, %v2946
        %v2948 = vpop.f32.mrf.mxu0
        %2949 = vmatprep.mubr.bf16.mxu0 %v2836
        %2950 = vmatmul.mubr.bf16.gmra.mxu0 %v2835
        %v2951 = vpop.f32.mrf.mxu0
        %v2952 = vadd.f32 0.0, %v2951
        %v2953 = vpop.f32.mrf.mxu0
        %v2954 = vpop.f32.mrf.mxu0
        %v2955 = vadd.f32 0.0, %v2954
        %v2956 = vpop.f32.mrf.mxu0
        %2957 = vmatprep.mubr.bf16.mxu0 %v2838
        %2958 = vmatmul.mubr.bf16.gmra.mxu0 %v2837
        %v2959 = vpop.f32.mrf.mxu0
        %v2960 = vadd.f32 0.0, %v2959
        %v2961 = vpop.f32.mrf.mxu0
        %v2962 = vpop.f32.mrf.mxu0
        %v2963 = vadd.f32 0.0, %v2962
        %v2964 = vpop.f32.mrf.mxu0
        %2965 = vmatprep.mubr.bf16.mxu0 %v2840
        %2966 = vmatmul.mubr.bf16.gmra.mxu0 %v2839
        %v2967 = vpop.f32.mrf.mxu0
        %v2968 = vadd.f32 0.0, %v2967
        %v2969 = vpop.f32.mrf.mxu0
        %v2970 = vpop.f32.mrf.mxu0
        %v2971 = vadd.f32 0.0, %v2970
        %v2972 = vpop.f32.mrf.mxu0
        %2973 = vmatprep.mubr.bf16.mxu0 %v2842
        %2974 = vmatmul.mubr.bf16.gmra.mxu0 %v2841
        %v2975 = vpop.f32.mrf.mxu0
        %v2976 = vadd.f32 0.0, %v2975
        %v2977 = vpop.f32.mrf.mxu0
        %v2978 = vpop.f32.mrf.mxu0
        %v2979 = vadd.f32 0.0, %v2978
        %v2980 = vpop.f32.mrf.mxu0
        %2981 = vmatprep.mubr.bf16.mxu0 %v2844
        %2982 = vmatmul.mubr.bf16.gmra.mxu0 %v2843
        %v2983 = vpop.f32.mrf.mxu0
        %v2984 = vadd.f32 0.0, %v2983
        %v2985 = vpop.f32.mrf.mxu0
        %v2986 = vpop.f32.mrf.mxu0
        %v2987 = vadd.f32 0.0, %v2986
        %v2988 = vpop.f32.mrf.mxu0
        %2989 = vdwg.mxu0
        %v2990 = vrcp.pop %v2783
        %v2991 = vrcp.pop %v2786
        %v2992 = vrcp.pop %v2789
        %v2993 = vrcp.pop %v2792
        %v2994 = vrcp.pop %v2795
        %v2995 = vrcp.pop %v2798
        %v2996 = vrcp.pop %v2801
        %v2997 = vrcp.pop %v2804
        %v2998 = vrcp.pop %v2807
        %v2999 = vrcp.pop %v2810
        %v3000 = vrcp.pop %v2813
        %v3001 = vrcp.pop %v2816
        %v3002 = vrcp.pop %v2819
        %v3003 = vrcp.pop %v2822
        %v3004 = vrcp.pop %v2825
        %v3005 = vrcp.pop %v2828
        %v3006 = vmul.f32 %v2928, %v2990
        %v3007 = vmul.f32 %v2931, %v2991
        %v3008 = vmul.f32 %v2936, %v2992
        %v3009 = vmul.f32 %v2939, %v2993
        %v3010 = vmul.f32 %v2944, %v2994
        %v3011 = vmul.f32 %v2947, %v2995
        %v3012 = vmul.f32 %v2952, %v2996
        %v3013 = vmul.f32 %v2955, %v2997
        %v3014 = vmul.f32 %v2960, %v2998
        %v3015 = vmul.f32 %v2963, %v2999
        %v3016 = vmul.f32 %v2968, %v3000
        %v3017 = vmul.f32 %v2971, %v3001
        %v3018 = vmul.f32 %v2976, %v3002
        %v3019 = vmul.f32 %v2979, %v3003
        %v3020 = vmul.f32 %v2984, %v3004
        %v3021 = vmul.f32 %v2987, %v3005
        %v3022 = vpack.c.bf16 %v3007, %v3006
        %v3023 = vpack.c.bf16 %v3009, %v3008
        %v3024 = vpack.c.bf16 %v3011, %v3010
        %v3025 = vpack.c.bf16 %v3013, %v3012
        %v3026 = vpack.c.bf16 %v3015, %v3014
        %v3027 = vpack.c.bf16 %v3017, %v3016
        %v3028 = vpack.c.bf16 %v3019, %v3018
        %v3029 = vpack.c.bf16 %v3021, %v3020
        %3030 = vrot.lane.b32.xlu0 %v1689, 96
        %v3031 = vpop.permute.xlu0 %3030
        %3032 = vrot.lane.b32.xlu0 %v1690, 96
        %v3033 = vpop.permute.xlu0 %3032
        %3034 = vrot.lane.b32.xlu0 %v1691, 96
        %v3035 = vpop.permute.xlu0 %3034
        %3036 = vrot.lane.b32.xlu0 %v1692, 96
        %v3037 = vpop.permute.xlu0 %3036
        %3038 = vrot.lane.b32.xlu0 %v1693, 96
        %v3039 = vpop.permute.xlu0 %3038
        %3040 = vrot.lane.b32.xlu0 %v1694, 96
        %v3041 = vpop.permute.xlu0 %3040
        %3042 = vrot.lane.b32.xlu0 %v1695, 96
        %v3043 = vpop.permute.xlu0 %3042
        %3044 = vrot.lane.b32.xlu0 %v1696, 96
        %v3045 = vpop.permute.xlu0 %3044
        %3046 = vrot.lane.b32.xlu0 %v1761, 96
        %v3047 = vpop.permute.xlu0 %3046
        %3048 = vrot.lane.b32.xlu0 %v1762, 96
        %v3049 = vpop.permute.xlu0 %3048
        %3050 = vrot.lane.b32.xlu0 %v1763, 96
        %v3051 = vpop.permute.xlu0 %3050
        %3052 = vrot.lane.b32.xlu0 %v1764, 96
        %v3053 = vpop.permute.xlu0 %3052
        %3054 = vrot.lane.b32.xlu0 %v1765, 96
        %v3055 = vpop.permute.xlu0 %3054
        %3056 = vrot.lane.b32.xlu0 %v1766, 96
        %v3057 = vpop.permute.xlu0 %3056
        %3058 = vrot.lane.b32.xlu0 %v1767, 96
        %v3059 = vpop.permute.xlu0 %3058
        %3060 = vrot.lane.b32.xlu0 %v1768, 96
        %v3061 = vpop.permute.xlu0 %3060
        %3062 = vrot.lane.b32.xlu0 %v1769, 96
        %v3063 = vpop.permute.xlu0 %3062
        %3064 = vrot.lane.b32.xlu0 %v1770, 96
        %v3065 = vpop.permute.xlu0 %3064
        %3066 = vrot.lane.b32.xlu0 %v1771, 96
        %v3067 = vpop.permute.xlu0 %3066
        %3068 = vrot.lane.b32.xlu0 %v1772, 96
        %v3069 = vpop.permute.xlu0 %3068
        %3070 = vrot.lane.b32.xlu0 %v1773, 96
        %v3071 = vpop.permute.xlu0 %3070
        %3072 = vrot.lane.b32.xlu0 %v1774, 96
        %v3073 = vpop.permute.xlu0 %3072
        %3074 = vrot.lane.b32.xlu0 %v1775, 96
        %v3075 = vpop.permute.xlu0 %3074
        %3076 = vrot.lane.b32.xlu0 %v1776, 96
        %v3077 = vpop.permute.xlu0 %3076
        %v3079 = vsel %vm1777, %v3031, 0
        %v3082 = vsel %vm1777, %v3033, 0
        %v3085 = vsel %vm1777, %v3035, 0
        %v3088 = vsel %vm1777, %v3037, 0
        %v3091 = vsel %vm1777, %v3039, 0
        %v3094 = vsel %vm1777, %v3041, 0
        %v3097 = vsel %vm1777, %v3043, 0
        %v3100 = vsel %vm1777, %v3045, 0
        %v3103 = vsel %vm1777, %v3047, 0
        %v3106 = vsel %vm1777, %v3049, 0
        %v3109 = vsel %vm1777, %v3051, 0
        %v3112 = vsel %vm1777, %v3053, 0
        %v3115 = vsel %vm1777, %v3055, 0
        %v3118 = vsel %vm1777, %v3057, 0
        %v3121 = vsel %vm1777, %v3059, 0
        %v3124 = vsel %vm1777, %v3061, 0
        %v3127 = vsel %vm1777, %v3063, 0
        %v3130 = vsel %vm1777, %v3065, 0
        %v3133 = vsel %vm1777, %v3067, 0
        %v3136 = vsel %vm1777, %v3069, 0
        %v3139 = vsel %vm1777, %v3071, 0
        %v3142 = vsel %vm1777, %v3073, 0
        %v3145 = vsel %vm1777, %v3075, 0
        %v3148 = vsel %vm1777, %v3077, 0
        %3150 = vmatprep.subr.bf16.mxu0 0
        %3151 = vmatpush1.bf16.xpose.msra.mxu0 %v3124
        %3152 = vmatprep.subr.bf16.mxu0 0
        %3153 = vmatpush1.bf16.xpose.msra.mxu0 %v3121
        %3154 = vmatprep.subr.bf16.mxu0 0
        %3155 = vmatpush1.bf16.xpose.msra.mxu0 %v3118
        %3156 = vmatprep.subr.bf16.mxu0 0
        %3157 = vmatpush1.bf16.xpose.msra.mxu0 %v3115
        %3158 = vmatprep.subr.bf16.mxu0 0
        %3159 = vmatpush1.bf16.xpose.msra.mxu0 %v3112
        %3160 = vmatprep.subr.bf16.mxu0 0
        %3161 = vmatpush1.bf16.xpose.msra.mxu0 %v3109
        %3162 = vmatprep.subr.bf16.mxu0 0
        %3163 = vmatpush1.bf16.xpose.msra.mxu0 %v3106
        %3164 = vmatprep.subr.bf16.mxu0 0
        %3165 = vmatpush1.bf16.xpose.msra.mxu0 %v3103
        %3166 = vmatprep.subr.bf16.mxu0 0
        %3167 = vmatpush2.bf16.xpose.msra.mxu0 %v3148
        %3168 = vmatprep.subr.bf16.mxu0 0
        %3169 = vmatpush2.bf16.xpose.msra.mxu0 %v3145
        %3170 = vmatprep.subr.bf16.mxu0 0
        %3171 = vmatpush2.bf16.xpose.msra.mxu0 %v3142
        %3172 = vmatprep.subr.bf16.mxu0 0
        %3173 = vmatpush2.bf16.xpose.msra.mxu0 %v3139
        %3174 = vmatprep.subr.bf16.mxu0 0
        %3175 = vmatpush2.bf16.xpose.msra.mxu0 %v3136
        %3176 = vmatprep.subr.bf16.mxu0 0
        %3177 = vmatpush2.bf16.xpose.msra.mxu0 %v3133
        %3178 = vmatprep.subr.bf16.mxu0 0
        %3179 = vmatpush2.bf16.xpose.msra.mxu0 %v3130
        %3180 = vmatprep.subr.bf16.mxu0 0
        %3181 = vmatpush2.bf16.xpose.msra.mxu0 %v3127
        %3182 = vmatprep.mubr.bf16.mxu0 0
        %3183 = vmatmul.mubr.bf16.gmra.mxu0 %v3079
        %v3184 = vpop.f32.mrf.mxu0
        %v3185 = vadd.f32 0.0, %v3184
        %v3186 = vpop.f32.mrf.mxu0
        %v3187 = vadd.f32 0.0, %v3186
        %v3188 = vpop.f32.mrf.mxu0
        %v3189 = vadd.f32 0.0, %v3188
        %v3190 = vpop.f32.mrf.mxu0
        %v3191 = vadd.f32 0.0, %v3190
        %3192 = vmatprep.mubr.bf16.mxu0 0
        %3193 = vmatmul.mubr.bf16.gmra.mxu0 %v3082
        %v3194 = vpop.f32.mrf.mxu0
        %v3195 = vadd.f32 0.0, %v3194
        %v3196 = vpop.f32.mrf.mxu0
        %v3197 = vadd.f32 0.0, %v3196
        %v3198 = vpop.f32.mrf.mxu0
        %v3199 = vadd.f32 0.0, %v3198
        %v3200 = vpop.f32.mrf.mxu0
        %v3201 = vadd.f32 0.0, %v3200
        %3202 = vmatprep.mubr.bf16.mxu0 0
        %3203 = vmatmul.mubr.bf16.gmra.mxu0 %v3085
        %v3204 = vpop.f32.mrf.mxu0
        %v3205 = vadd.f32 0.0, %v3204
        %v3206 = vpop.f32.mrf.mxu0
        %v3207 = vadd.f32 0.0, %v3206
        %v3208 = vpop.f32.mrf.mxu0
        %v3209 = vadd.f32 0.0, %v3208
        %v3210 = vpop.f32.mrf.mxu0
        %v3211 = vadd.f32 0.0, %v3210
        %3212 = vmatprep.mubr.bf16.mxu0 0
        %3213 = vmatmul.mubr.bf16.gmra.mxu0 %v3088
        %v3214 = vpop.f32.mrf.mxu0
        %v3215 = vadd.f32 0.0, %v3214
        %v3216 = vpop.f32.mrf.mxu0
        %v3217 = vadd.f32 0.0, %v3216
        %v3218 = vpop.f32.mrf.mxu0
        %v3219 = vadd.f32 0.0, %v3218
        %v3220 = vpop.f32.mrf.mxu0
        %v3221 = vadd.f32 0.0, %v3220
        %3222 = vmatprep.mubr.bf16.mxu0 0
        %3223 = vmatmul.mubr.bf16.gmra.mxu0 %v3091
        %v3224 = vpop.f32.mrf.mxu0
        %v3225 = vadd.f32 0.0, %v3224
        %v3226 = vpop.f32.mrf.mxu0
        %v3227 = vadd.f32 0.0, %v3226
        %v3228 = vpop.f32.mrf.mxu0
        %v3229 = vadd.f32 0.0, %v3228
        %v3230 = vpop.f32.mrf.mxu0
        %v3231 = vadd.f32 0.0, %v3230
        %3232 = vmatprep.mubr.bf16.mxu0 0
        %3233 = vmatmul.mubr.bf16.gmra.mxu0 %v3094
        %v3234 = vpop.f32.mrf.mxu0
        %v3235 = vadd.f32 0.0, %v3234
        %v3236 = vpop.f32.mrf.mxu0
        %v3237 = vadd.f32 0.0, %v3236
        %v3238 = vpop.f32.mrf.mxu0
        %v3239 = vadd.f32 0.0, %v3238
        %v3240 = vpop.f32.mrf.mxu0
        %v3241 = vadd.f32 0.0, %v3240
        %3242 = vmatprep.mubr.bf16.mxu0 0
        %3243 = vmatmul.mubr.bf16.gmra.mxu0 %v3097
        %v3244 = vpop.f32.mrf.mxu0
        %v3245 = vadd.f32 0.0, %v3244
        %v3246 = vpop.f32.mrf.mxu0
        %v3247 = vadd.f32 0.0, %v3246
        %v3248 = vpop.f32.mrf.mxu0
        %v3249 = vadd.f32 0.0, %v3248
        %v3250 = vpop.f32.mrf.mxu0
        %v3251 = vadd.f32 0.0, %v3250
        %3252 = vmatprep.mubr.bf16.mxu0 0
        %3253 = vmatmul.mubr.bf16.gmra.mxu0 %v3100
        %v3254 = vpop.f32.mrf.mxu0
        %v3255 = vadd.f32 0.0, %v3254
        %v3256 = vpop.f32.mrf.mxu0
        %v3257 = vadd.f32 0.0, %v3256
        %v3258 = vpop.f32.mrf.mxu0
        %v3259 = vadd.f32 0.0, %v3258
        %v3260 = vpop.f32.mrf.mxu0
        %v3261 = vadd.f32 0.0, %v3260
        %3262 = vdwg.mxu0
        %v3263 = vmax.f32 %v3185, %v3187
        %3264 = vmax.xlane.f32.xlu0 %v3263
        %v3265 = vpop.xlane.xlu0 %3264
        %v3266 = vmax.f32 %v3189, %v3191
        %3267 = vmax.xlane.f32.xlu0 %v3266
        %v3268 = vpop.xlane.xlu0 %3267
        %v3269 = vmax.f32 %v3195, %v3197
        %3270 = vmax.xlane.f32.xlu0 %v3269
        %v3271 = vpop.xlane.xlu0 %3270
        %v3272 = vmax.f32 %v3199, %v3201
        %3273 = vmax.xlane.f32.xlu0 %v3272
        %v3274 = vpop.xlane.xlu0 %3273
        %v3275 = vmax.f32 %v3205, %v3207
        %3276 = vmax.xlane.f32.xlu0 %v3275
        %v3277 = vpop.xlane.xlu0 %3276
        %v3278 = vmax.f32 %v3209, %v3211
        %3279 = vmax.xlane.f32.xlu0 %v3278
        %v3280 = vpop.xlane.xlu0 %3279
        %v3281 = vmax.f32 %v3215, %v3217
        %3282 = vmax.xlane.f32.xlu0 %v3281
        %v3283 = vpop.xlane.xlu0 %3282
        %v3284 = vmax.f32 %v3219, %v3221
        %3285 = vmax.xlane.f32.xlu0 %v3284
        %v3286 = vpop.xlane.xlu0 %3285
        %v3287 = vmax.f32 %v3225, %v3227
        %3288 = vmax.xlane.f32.xlu0 %v3287
        %v3289 = vpop.xlane.xlu0 %3288
        %v3290 = vmax.f32 %v3229, %v3231
        %3291 = vmax.xlane.f32.xlu0 %v3290
        %v3292 = vpop.xlane.xlu0 %3291
        %v3293 = vmax.f32 %v3235, %v3237
        %3294 = vmax.xlane.f32.xlu0 %v3293
        %v3295 = vpop.xlane.xlu0 %3294
        %v3296 = vmax.f32 %v3239, %v3241
        %3297 = vmax.xlane.f32.xlu0 %v3296
        %v3298 = vpop.xlane.xlu0 %3297
        %v3299 = vmax.f32 %v3245, %v3247
        %3300 = vmax.xlane.f32.xlu0 %v3299
        %v3301 = vpop.xlane.xlu0 %3300
        %v3302 = vmax.f32 %v3249, %v3251
        %3303 = vmax.xlane.f32.xlu0 %v3302
        %v3304 = vpop.xlane.xlu0 %3303
        %v3305 = vmax.f32 %v3255, %v3257
        %3306 = vmax.xlane.f32.xlu0 %v3305
        %v3307 = vpop.xlane.xlu0 %3306
        %v3308 = vmax.f32 %v3259, %v3261
        %3309 = vmax.xlane.f32.xlu0 %v3308
        %v3310 = vpop.xlane.xlu0 %3309
        %v3311 = vsub.f32 %v3185, %v3265
        %v3312 = vsub.f32 %v3187, %v3265
        %v3313 = vsub.f32 %v3189, %v3268
        %v3314 = vsub.f32 %v3191, %v3268
        %v3315 = vsub.f32 %v3195, %v3271
        %v3316 = vsub.f32 %v3197, %v3271
        %v3317 = vsub.f32 %v3199, %v3274
        %v3318 = vsub.f32 %v3201, %v3274
        %v3319 = vsub.f32 %v3205, %v3277
        %v3320 = vsub.f32 %v3207, %v3277
        %v3321 = vsub.f32 %v3209, %v3280
        %v3322 = vsub.f32 %v3211, %v3280
        %v3323 = vsub.f32 %v3215, %v3283
        %v3324 = vsub.f32 %v3217, %v3283
        %v3325 = vsub.f32 %v3219, %v3286
        %v3326 = vsub.f32 %v3221, %v3286
        %v3327 = vsub.f32 %v3225, %v3289
        %v3328 = vsub.f32 %v3227, %v3289
        %v3329 = vsub.f32 %v3229, %v3292
        %v3330 = vsub.f32 %v3231, %v3292
        %v3331 = vsub.f32 %v3235, %v3295
        %v3332 = vsub.f32 %v3237, %v3295
        %v3333 = vsub.f32 %v3239, %v3298
        %v3334 = vsub.f32 %v3241, %v3298
        %v3335 = vsub.f32 %v3245, %v3301
        %v3336 = vsub.f32 %v3247, %v3301
        %v3337 = vsub.f32 %v3249, %v3304
        %v3338 = vsub.f32 %v3251, %v3304
        %v3339 = vsub.f32 %v3255, %v3307
        %v3340 = vsub.f32 %v3257, %v3307
        %v3341 = vsub.f32 %v3259, %v3310
        %v3342 = vsub.f32 %v3261, %v3310
        %v3343 = vmul.f32 %v3311, 1.442695
        %v3344 = vpow.pop %v3343
        %v3345 = vmul.f32 %v3312, 1.442695
        %v3346 = vpow.pop %v3345
        %v3347 = vmul.f32 %v3313, 1.442695
        %v3348 = vpow.pop %v3347
        %v3349 = vmul.f32 %v3314, 1.442695
        %v3350 = vpow.pop %v3349
        %v3351 = vmul.f32 %v3315, 1.442695
        %v3352 = vpow.pop %v3351
        %v3353 = vmul.f32 %v3316, 1.442695
        %v3354 = vpow.pop %v3353
        %v3355 = vmul.f32 %v3317, 1.442695
        %v3356 = vpow.pop %v3355
        %v3357 = vmul.f32 %v3318, 1.442695
        %v3358 = vpow.pop %v3357
        %v3359 = vmul.f32 %v3319, 1.442695
        %v3360 = vpow.pop %v3359
        %v3361 = vmul.f32 %v3320, 1.442695
        %v3362 = vpow.pop %v3361
        %v3363 = vmul.f32 %v3321, 1.442695
        %v3364 = vpow.pop %v3363
        %v3365 = vmul.f32 %v3322, 1.442695
        %v3366 = vpow.pop %v3365
        %v3367 = vmul.f32 %v3323, 1.442695
        %v3368 = vpow.pop %v3367
        %v3369 = vmul.f32 %v3324, 1.442695
        %v3370 = vpow.pop %v3369
        %v3371 = vmul.f32 %v3325, 1.442695
        %v3372 = vpow.pop %v3371
        %v3373 = vmul.f32 %v3326, 1.442695
        %v3374 = vpow.pop %v3373
        %v3375 = vmul.f32 %v3327, 1.442695
        %v3376 = vpow.pop %v3375
        %v3377 = vmul.f32 %v3328, 1.442695
        %v3378 = vpow.pop %v3377
        %v3379 = vmul.f32 %v3329, 1.442695
        %v3380 = vpow.pop %v3379
        %v3381 = vmul.f32 %v3330, 1.442695
        %v3382 = vpow.pop %v3381
        %v3383 = vmul.f32 %v3331, 1.442695
        %v3384 = vpow.pop %v3383
        %v3385 = vmul.f32 %v3332, 1.442695
        %v3386 = vpow.pop %v3385
        %v3387 = vmul.f32 %v3333, 1.442695
        %v3388 = vpow.pop %v3387
        %v3389 = vmul.f32 %v3334, 1.442695
        %v3390 = vpow.pop %v3389
        %v3391 = vmul.f32 %v3335, 1.442695
        %v3392 = vpow.pop %v3391
        %v3393 = vmul.f32 %v3336, 1.442695
        %v3394 = vpow.pop %v3393
        %v3395 = vmul.f32 %v3337, 1.442695
        %v3396 = vpow.pop %v3395
        %v3397 = vmul.f32 %v3338, 1.442695
        %v3398 = vpow.pop %v3397
        %v3399 = vmul.f32 %v3339, 1.442695
        %v3400 = vpow.pop %v3399
        %v3401 = vmul.f32 %v3340, 1.442695
        %v3402 = vpow.pop %v3401
        %v3403 = vmul.f32 %v3341, 1.442695
        %v3404 = vpow.pop %v3403
        %v3405 = vmul.f32 %v3342, 1.442695
        %v3406 = vpow.pop %v3405
        %v3407 = vadd.f32 %v3344, %v3346
        %3408 = vadd.xlane.f32.xlu0 %v3407
        %v3409 = vpop.xlane.xlu0 %3408
        %v3410 = vadd.f32 %v3348, %v3350
        %3411 = vadd.xlane.f32.xlu0 %v3410
        %v3412 = vpop.xlane.xlu0 %3411
        %v3413 = vadd.f32 %v3352, %v3354
        %3414 = vadd.xlane.f32.xlu0 %v3413
        %v3415 = vpop.xlane.xlu0 %3414
        %v3416 = vadd.f32 %v3356, %v3358
        %3417 = vadd.xlane.f32.xlu0 %v3416
        %v3418 = vpop.xlane.xlu0 %3417
        %v3419 = vadd.f32 %v3360, %v3362
        %3420 = vadd.xlane.f32.xlu0 %v3419
        %v3421 = vpop.xlane.xlu0 %3420
        %v3422 = vadd.f32 %v3364, %v3366
        %3423 = vadd.xlane.f32.xlu0 %v3422
        %v3424 = vpop.xlane.xlu0 %3423
        %v3425 = vadd.f32 %v3368, %v3370
        %3426 = vadd.xlane.f32.xlu0 %v3425
        %v3427 = vpop.xlane.xlu0 %3426
        %v3428 = vadd.f32 %v3372, %v3374
        %3429 = vadd.xlane.f32.xlu0 %v3428
        %v3430 = vpop.xlane.xlu0 %3429
        %v3431 = vadd.f32 %v3376, %v3378
        %3432 = vadd.xlane.f32.xlu0 %v3431
        %v3433 = vpop.xlane.xlu0 %3432
        %v3434 = vadd.f32 %v3380, %v3382
        %3435 = vadd.xlane.f32.xlu0 %v3434
        %v3436 = vpop.xlane.xlu0 %3435
        %v3437 = vadd.f32 %v3384, %v3386
        %3438 = vadd.xlane.f32.xlu0 %v3437
        %v3439 = vpop.xlane.xlu0 %3438
        %v3440 = vadd.f32 %v3388, %v3390
        %3441 = vadd.xlane.f32.xlu0 %v3440
        %v3442 = vpop.xlane.xlu0 %3441
        %v3443 = vadd.f32 %v3392, %v3394
        %3444 = vadd.xlane.f32.xlu0 %v3443
        %v3445 = vpop.xlane.xlu0 %3444
        %v3446 = vadd.f32 %v3396, %v3398
        %3447 = vadd.xlane.f32.xlu0 %v3446
        %v3448 = vpop.xlane.xlu0 %3447
        %v3449 = vadd.f32 %v3400, %v3402
        %3450 = vadd.xlane.f32.xlu0 %v3449
        %v3451 = vpop.xlane.xlu0 %3450
        %v3452 = vadd.f32 %v3404, %v3406
        %3453 = vadd.xlane.f32.xlu0 %v3452
        %v3454 = vpop.xlane.xlu0 %3453
        %v3455 = vpack.c.bf16 %v3348, %v3344
        %v3456 = vpack.c.bf16 %v3350, %v3346
        %v3457 = vpack.c.bf16 %v3356, %v3352
        %v3458 = vpack.c.bf16 %v3358, %v3354
        %v3459 = vpack.c.bf16 %v3364, %v3360
        %v3460 = vpack.c.bf16 %v3366, %v3362
        %v3461 = vpack.c.bf16 %v3372, %v3368
        %v3462 = vpack.c.bf16 %v3374, %v3370
        %v3463 = vpack.c.bf16 %v3380, %v3376
        %v3464 = vpack.c.bf16 %v3382, %v3378
        %v3465 = vpack.c.bf16 %v3388, %v3384
        %v3466 = vpack.c.bf16 %v3390, %v3386
        %v3467 = vpack.c.bf16 %v3396, %v3392
        %v3468 = vpack.c.bf16 %v3398, %v3394
        %v3469 = vpack.c.bf16 %v3404, %v3400
        %v3470 = vpack.c.bf16 %v3406, %v3402
        %3471 = vrot.lane.b32.xlu0 %v2235, 96
        %v3472 = vpop.permute.xlu0 %3471
        %3473 = vrot.lane.b32.xlu0 %v2236, 96
        %v3474 = vpop.permute.xlu0 %3473
        %3475 = vrot.lane.b32.xlu0 %v2237, 96
        %v3476 = vpop.permute.xlu0 %3475
        %3477 = vrot.lane.b32.xlu0 %v2238, 96
        %v3478 = vpop.permute.xlu0 %3477
        %3479 = vrot.lane.b32.xlu0 %v2239, 96
        %v3480 = vpop.permute.xlu0 %3479
        %3481 = vrot.lane.b32.xlu0 %v2240, 96
        %v3482 = vpop.permute.xlu0 %3481
        %3483 = vrot.lane.b32.xlu0 %v2241, 96
        %v3484 = vpop.permute.xlu0 %3483
        %3485 = vrot.lane.b32.xlu0 %v2242, 96
        %v3486 = vpop.permute.xlu0 %3485
        %3487 = vrot.lane.b32.xlu0 %v2243, 96
        %v3488 = vpop.permute.xlu0 %3487
        %3489 = vrot.lane.b32.xlu0 %v2244, 96
        %v3490 = vpop.permute.xlu0 %3489
        %3491 = vrot.lane.b32.xlu0 %v2245, 96
        %v3492 = vpop.permute.xlu0 %3491
        %3493 = vrot.lane.b32.xlu0 %v2246, 96
        %v3494 = vpop.permute.xlu0 %3493
        %3495 = vrot.lane.b32.xlu0 %v2247, 96
        %v3496 = vpop.permute.xlu0 %3495
        %3497 = vrot.lane.b32.xlu0 %v2248, 96
        %v3498 = vpop.permute.xlu0 %3497
        %3499 = vrot.lane.b32.xlu0 %v2249, 96
        %v3500 = vpop.permute.xlu0 %3499
        %3501 = vrot.lane.b32.xlu0 %v2250, 96
        %v3502 = vpop.permute.xlu0 %3501
        %3519 = vmatprep.subr.bf16.mxu0 0
        %3520 = vmatpush1.bf16.msra.mxu0 %v3486
        %3521 = vmatprep.subr.bf16.mxu0 0
        %3522 = vmatpush1.bf16.msra.mxu0 %v3484
        %3523 = vmatprep.subr.bf16.mxu0 0
        %3524 = vmatpush1.bf16.msra.mxu0 %v3482
        %3525 = vmatprep.subr.bf16.mxu0 0
        %3526 = vmatpush1.bf16.msra.mxu0 %v3480
        %3527 = vmatprep.subr.bf16.mxu0 0
        %3528 = vmatpush1.bf16.msra.mxu0 %v3478
        %3529 = vmatprep.subr.bf16.mxu0 0
        %3530 = vmatpush1.bf16.msra.mxu0 %v3476
        %3531 = vmatprep.subr.bf16.mxu0 0
        %3532 = vmatpush1.bf16.msra.mxu0 %v3474
        %3533 = vmatprep.subr.bf16.mxu0 0
        %3534 = vmatpush1.bf16.msra.mxu0 %v3472
        %3535 = vmatprep.subr.bf16.mxu0 0
        %3536 = vmatpush2.bf16.msra.mxu0 %v3502
        %3537 = vmatprep.subr.bf16.mxu0 0
        %3538 = vmatpush2.bf16.msra.mxu0 %v3500
        %3539 = vmatprep.subr.bf16.mxu0 0
        %3540 = vmatpush2.bf16.msra.mxu0 %v3498
        %3541 = vmatprep.subr.bf16.mxu0 0
        %3542 = vmatpush2.bf16.msra.mxu0 %v3496
        %3543 = vmatprep.subr.bf16.mxu0 0
        %3544 = vmatpush2.bf16.msra.mxu0 %v3494
        %3545 = vmatprep.subr.bf16.mxu0 0
        %3546 = vmatpush2.bf16.msra.mxu0 %v3492
        %3547 = vmatprep.subr.bf16.mxu0 0
        %3548 = vmatpush2.bf16.msra.mxu0 %v3490
        %3549 = vmatprep.subr.bf16.mxu0 0
        %3550 = vmatpush2.bf16.msra.mxu0 %v3488
        %3551 = vmatprep.mubr.bf16.mxu0 %v3456
        %3552 = vmatmul.mubr.bf16.gmra.mxu0 %v3455
        %v3553 = vpop.f32.mrf.mxu0
        %v3554 = vadd.f32 0.0, %v3553
        %v3555 = vpop.f32.mrf.mxu0
        %v3556 = vpop.f32.mrf.mxu0
        %v3557 = vadd.f32 0.0, %v3556
        %v3558 = vpop.f32.mrf.mxu0
        %3559 = vmatprep.mubr.bf16.mxu0 %v3458
        %3560 = vmatmul.mubr.bf16.gmra.mxu0 %v3457
        %v3561 = vpop.f32.mrf.mxu0
        %v3562 = vadd.f32 0.0, %v3561
        %v3563 = vpop.f32.mrf.mxu0
        %v3564 = vpop.f32.mrf.mxu0
        %v3565 = vadd.f32 0.0, %v3564
        %v3566 = vpop.f32.mrf.mxu0
        %3567 = vmatprep.mubr.bf16.mxu0 %v3460
        %3568 = vmatmul.mubr.bf16.gmra.mxu0 %v3459
        %v3569 = vpop.f32.mrf.mxu0
        %v3570 = vadd.f32 0.0, %v3569
        %v3571 = vpop.f32.mrf.mxu0
        %v3572 = vpop.f32.mrf.mxu0
        %v3573 = vadd.f32 0.0, %v3572
        %v3574 = vpop.f32.mrf.mxu0
        %3575 = vmatprep.mubr.bf16.mxu0 %v3462
        %3576 = vmatmul.mubr.bf16.gmra.mxu0 %v3461
        %v3577 = vpop.f32.mrf.mxu0
        %v3578 = vadd.f32 0.0, %v3577
        %v3579 = vpop.f32.mrf.mxu0
        %v3580 = vpop.f32.mrf.mxu0
        %v3581 = vadd.f32 0.0, %v3580
        %v3582 = vpop.f32.mrf.mxu0
        %3583 = vmatprep.mubr.bf16.mxu0 %v3464
        %3584 = vmatmul.mubr.bf16.gmra.mxu0 %v3463
        %v3585 = vpop.f32.mrf.mxu0
        %v3586 = vadd.f32 0.0, %v3585
        %v3587 = vpop.f32.mrf.mxu0
        %v3588 = vpop.f32.mrf.mxu0
        %v3589 = vadd.f32 0.0, %v3588
        %v3590 = vpop.f32.mrf.mxu0
        %3591 = vmatprep.mubr.bf16.mxu0 %v3466
        %3592 = vmatmul.mubr.bf16.gmra.mxu0 %v3465
        %v3593 = vpop.f32.mrf.mxu0
        %v3594 = vadd.f32 0.0, %v3593
        %v3595 = vpop.f32.mrf.mxu0
        %v3596 = vpop.f32.mrf.mxu0
        %v3597 = vadd.f32 0.0, %v3596
        %v3598 = vpop.f32.mrf.mxu0
        %3599 = vmatprep.mubr.bf16.mxu0 %v3468
        %3600 = vmatmul.mubr.bf16.gmra.mxu0 %v3467
        %v3601 = vpop.f32.mrf.mxu0
        %v3602 = vadd.f32 0.0, %v3601
        %v3603 = vpop.f32.mrf.mxu0
        %v3604 = vpop.f32.mrf.mxu0
        %v3605 = vadd.f32 0.0, %v3604
        %v3606 = vpop.f32.mrf.mxu0
        %3607 = vmatprep.mubr.bf16.mxu0 %v3470
        %3608 = vmatmul.mubr.bf16.gmra.mxu0 %v3469
        %v3609 = vpop.f32.mrf.mxu0
        %v3610 = vadd.f32 0.0, %v3609
        %v3611 = vpop.f32.mrf.mxu0
        %v3612 = vpop.f32.mrf.mxu0
        %v3613 = vadd.f32 0.0, %v3612
        %v3614 = vpop.f32.mrf.mxu0
        %3615 = vdwg.mxu0
        %v3616 = vrcp.pop %v3409
        %v3617 = vrcp.pop %v3412
        %v3618 = vrcp.pop %v3415
        %v3619 = vrcp.pop %v3418
        %v3620 = vrcp.pop %v3421
        %v3621 = vrcp.pop %v3424
        %v3622 = vrcp.pop %v3427
        %v3623 = vrcp.pop %v3430
        %v3624 = vrcp.pop %v3433
        %v3625 = vrcp.pop %v3436
        %v3626 = vrcp.pop %v3439
        %v3627 = vrcp.pop %v3442
        %v3628 = vrcp.pop %v3445
        %v3629 = vrcp.pop %v3448
        %v3630 = vrcp.pop %v3451
        %v3631 = vrcp.pop %v3454
        %v3632 = vmul.f32 %v3554, %v3616
        %v3633 = vmul.f32 %v3557, %v3617
        %v3634 = vmul.f32 %v3562, %v3618
        %v3635 = vmul.f32 %v3565, %v3619
        %v3636 = vmul.f32 %v3570, %v3620
        %v3637 = vmul.f32 %v3573, %v3621
        %v3638 = vmul.f32 %v3578, %v3622
        %v3639 = vmul.f32 %v3581, %v3623
        %v3640 = vmul.f32 %v3586, %v3624
        %v3641 = vmul.f32 %v3589, %v3625
        %v3642 = vmul.f32 %v3594, %v3626
        %v3643 = vmul.f32 %v3597, %v3627
        %v3644 = vmul.f32 %v3602, %v3628
        %v3645 = vmul.f32 %v3605, %v3629
        %v3646 = vmul.f32 %v3610, %v3630
        %v3647 = vmul.f32 %v3613, %v3631
        %v3648 = vpack.c.bf16 %v3633, %v3632
        %v3649 = vpack.c.bf16 %v3635, %v3634
        %v3650 = vpack.c.bf16 %v3637, %v3636
        %v3651 = vpack.c.bf16 %v3639, %v3638
        %v3652 = vpack.c.bf16 %v3641, %v3640
        %v3653 = vpack.c.bf16 %v3643, %v3642
        %v3654 = vpack.c.bf16 %v3645, %v3644
        %v3655 = vpack.c.bf16 %v3647, %v3646
        %3656 = vrot.lane.b32.xlu0 %v1689, 80
        %v3657 = vpop.permute.xlu0 %3656
        %3658 = vrot.lane.b32.xlu0 %v1690, 80
        %v3659 = vpop.permute.xlu0 %3658
        %3660 = vrot.lane.b32.xlu0 %v1691, 80
        %v3661 = vpop.permute.xlu0 %3660
        %3662 = vrot.lane.b32.xlu0 %v1692, 80
        %v3663 = vpop.permute.xlu0 %3662
        %3664 = vrot.lane.b32.xlu0 %v1693, 80
        %v3665 = vpop.permute.xlu0 %3664
        %3666 = vrot.lane.b32.xlu0 %v1694, 80
        %v3667 = vpop.permute.xlu0 %3666
        %3668 = vrot.lane.b32.xlu0 %v1695, 80
        %v3669 = vpop.permute.xlu0 %3668
        %3670 = vrot.lane.b32.xlu0 %v1696, 80
        %v3671 = vpop.permute.xlu0 %3670
        %3672 = vrot.lane.b32.xlu0 %v1761, 80
        %v3673 = vpop.permute.xlu0 %3672
        %3674 = vrot.lane.b32.xlu0 %v1762, 80
        %v3675 = vpop.permute.xlu0 %3674
        %3676 = vrot.lane.b32.xlu0 %v1763, 80
        %v3677 = vpop.permute.xlu0 %3676
        %3678 = vrot.lane.b32.xlu0 %v1764, 80
        %v3679 = vpop.permute.xlu0 %3678
        %3680 = vrot.lane.b32.xlu0 %v1765, 80
        %v3681 = vpop.permute.xlu0 %3680
        %3682 = vrot.lane.b32.xlu0 %v1766, 80
        %v3683 = vpop.permute.xlu0 %3682
        %3684 = vrot.lane.b32.xlu0 %v1767, 80
        %v3685 = vpop.permute.xlu0 %3684
        %3686 = vrot.lane.b32.xlu0 %v1768, 80
        %v3687 = vpop.permute.xlu0 %3686
        %3688 = vrot.lane.b32.xlu0 %v1769, 80
        %v3689 = vpop.permute.xlu0 %3688
        %3690 = vrot.lane.b32.xlu0 %v1770, 80
        %v3691 = vpop.permute.xlu0 %3690
        %3692 = vrot.lane.b32.xlu0 %v1771, 80
        %v3693 = vpop.permute.xlu0 %3692
        %3694 = vrot.lane.b32.xlu0 %v1772, 80
        %v3695 = vpop.permute.xlu0 %3694
        %3696 = vrot.lane.b32.xlu0 %v1773, 80
        %v3697 = vpop.permute.xlu0 %3696
        %3698 = vrot.lane.b32.xlu0 %v1774, 80
        %v3699 = vpop.permute.xlu0 %3698
        %3700 = vrot.lane.b32.xlu0 %v1775, 80
        %v3701 = vpop.permute.xlu0 %3700
        %3702 = vrot.lane.b32.xlu0 %v1776, 80
        %v3703 = vpop.permute.xlu0 %3702
        %v3705 = vsel %vm1777, %v3657, 0
        %v3708 = vsel %vm1777, %v3659, 0
        %v3711 = vsel %vm1777, %v3661, 0
        %v3714 = vsel %vm1777, %v3663, 0
        %v3717 = vsel %vm1777, %v3665, 0
        %v3720 = vsel %vm1777, %v3667, 0
        %v3723 = vsel %vm1777, %v3669, 0
        %v3726 = vsel %vm1777, %v3671, 0
        %v3729 = vsel %vm1777, %v3673, 0
        %v3732 = vsel %vm1777, %v3675, 0
        %v3735 = vsel %vm1777, %v3677, 0
        %v3738 = vsel %vm1777, %v3679, 0
        %v3741 = vsel %vm1777, %v3681, 0
        %v3744 = vsel %vm1777, %v3683, 0
        %v3747 = vsel %vm1777, %v3685, 0
        %v3750 = vsel %vm1777, %v3687, 0
        %v3753 = vsel %vm1777, %v3689, 0
        %v3756 = vsel %vm1777, %v3691, 0
        %v3759 = vsel %vm1777, %v3693, 0
        %v3762 = vsel %vm1777, %v3695, 0
        %v3765 = vsel %vm1777, %v3697, 0
        %v3768 = vsel %vm1777, %v3699, 0
        %v3771 = vsel %vm1777, %v3701, 0
        %v3774 = vsel %vm1777, %v3703, 0
        %3776 = vmatprep.subr.bf16.mxu0 0
        %3777 = vmatpush1.bf16.xpose.msra.mxu0 %v3750
        %3778 = vmatprep.subr.bf16.mxu0 0
        %3779 = vmatpush1.bf16.xpose.msra.mxu0 %v3747
        %3780 = vmatprep.subr.bf16.mxu0 0
        %3781 = vmatpush1.bf16.xpose.msra.mxu0 %v3744
        %3782 = vmatprep.subr.bf16.mxu0 0
        %3783 = vmatpush1.bf16.xpose.msra.mxu0 %v3741
        %3784 = vmatprep.subr.bf16.mxu0 0
        %3785 = vmatpush1.bf16.xpose.msra.mxu0 %v3738
        %3786 = vmatprep.subr.bf16.mxu0 0
        %3787 = vmatpush1.bf16.xpose.msra.mxu0 %v3735
        %3788 = vmatprep.subr.bf16.mxu0 0
        %3789 = vmatpush1.bf16.xpose.msra.mxu0 %v3732
        %3790 = vmatprep.subr.bf16.mxu0 0
        %3791 = vmatpush1.bf16.xpose.msra.mxu0 %v3729
        %3792 = vmatprep.subr.bf16.mxu0 0
        %3793 = vmatpush2.bf16.xpose.msra.mxu0 %v3774
        %3794 = vmatprep.subr.bf16.mxu0 0
        %3795 = vmatpush2.bf16.xpose.msra.mxu0 %v3771
        %3796 = vmatprep.subr.bf16.mxu0 0
        %3797 = vmatpush2.bf16.xpose.msra.mxu0 %v3768
        %3798 = vmatprep.subr.bf16.mxu0 0
        %3799 = vmatpush2.bf16.xpose.msra.mxu0 %v3765
        %3800 = vmatprep.subr.bf16.mxu0 0
        %3801 = vmatpush2.bf16.xpose.msra.mxu0 %v3762
        %3802 = vmatprep.subr.bf16.mxu0 0
        %3803 = vmatpush2.bf16.xpose.msra.mxu0 %v3759
        %3804 = vmatprep.subr.bf16.mxu0 0
        %3805 = vmatpush2.bf16.xpose.msra.mxu0 %v3756
        %3806 = vmatprep.subr.bf16.mxu0 0
        %3807 = vmatpush2.bf16.xpose.msra.mxu0 %v3753
        %3808 = vmatprep.mubr.bf16.mxu0 0
        %3809 = vmatmul.mubr.bf16.gmra.mxu0 %v3705
        %v3810 = vpop.f32.mrf.mxu0
        %v3811 = vadd.f32 0.0, %v3810
        %v3812 = vpop.f32.mrf.mxu0
        %v3813 = vadd.f32 0.0, %v3812
        %v3814 = vpop.f32.mrf.mxu0
        %v3815 = vadd.f32 0.0, %v3814
        %v3816 = vpop.f32.mrf.mxu0
        %v3817 = vadd.f32 0.0, %v3816
        %3818 = vmatprep.mubr.bf16.mxu0 0
        %3819 = vmatmul.mubr.bf16.gmra.mxu0 %v3708
        %v3820 = vpop.f32.mrf.mxu0
        %v3821 = vadd.f32 0.0, %v3820
        %v3822 = vpop.f32.mrf.mxu0
        %v3823 = vadd.f32 0.0, %v3822
        %v3824 = vpop.f32.mrf.mxu0
        %v3825 = vadd.f32 0.0, %v3824
        %v3826 = vpop.f32.mrf.mxu0
        %v3827 = vadd.f32 0.0, %v3826
        %3828 = vmatprep.mubr.bf16.mxu0 0
        %3829 = vmatmul.mubr.bf16.gmra.mxu0 %v3711
        %v3830 = vpop.f32.mrf.mxu0
        %v3831 = vadd.f32 0.0, %v3830
        %v3832 = vpop.f32.mrf.mxu0
        %v3833 = vadd.f32 0.0, %v3832
        %v3834 = vpop.f32.mrf.mxu0
        %v3835 = vadd.f32 0.0, %v3834
        %v3836 = vpop.f32.mrf.mxu0
        %v3837 = vadd.f32 0.0, %v3836
        %3838 = vmatprep.mubr.bf16.mxu0 0
        %3839 = vmatmul.mubr.bf16.gmra.mxu0 %v3714
        %v3840 = vpop.f32.mrf.mxu0
        %v3841 = vadd.f32 0.0, %v3840
        %v3842 = vpop.f32.mrf.mxu0
        %v3843 = vadd.f32 0.0, %v3842
        %v3844 = vpop.f32.mrf.mxu0
        %v3845 = vadd.f32 0.0, %v3844
        %v3846 = vpop.f32.mrf.mxu0
        %v3847 = vadd.f32 0.0, %v3846
        %3848 = vmatprep.mubr.bf16.mxu0 0
        %3849 = vmatmul.mubr.bf16.gmra.mxu0 %v3717
        %v3850 = vpop.f32.mrf.mxu0
        %v3851 = vadd.f32 0.0, %v3850
        %v3852 = vpop.f32.mrf.mxu0
        %v3853 = vadd.f32 0.0, %v3852
        %v3854 = vpop.f32.mrf.mxu0
        %v3855 = vadd.f32 0.0, %v3854
        %v3856 = vpop.f32.mrf.mxu0
        %v3857 = vadd.f32 0.0, %v3856
        %3858 = vmatprep.mubr.bf16.mxu0 0
        %3859 = vmatmul.mubr.bf16.gmra.mxu0 %v3720
        %v3860 = vpop.f32.mrf.mxu0
        %v3861 = vadd.f32 0.0, %v3860
        %v3862 = vpop.f32.mrf.mxu0
        %v3863 = vadd.f32 0.0, %v3862
        %v3864 = vpop.f32.mrf.mxu0
        %v3865 = vadd.f32 0.0, %v3864
        %v3866 = vpop.f32.mrf.mxu0
        %v3867 = vadd.f32 0.0, %v3866
        %3868 = vmatprep.mubr.bf16.mxu0 0
        %3869 = vmatmul.mubr.bf16.gmra.mxu0 %v3723
        %v3870 = vpop.f32.mrf.mxu0
        %v3871 = vadd.f32 0.0, %v3870
        %v3872 = vpop.f32.mrf.mxu0
        %v3873 = vadd.f32 0.0, %v3872
        %v3874 = vpop.f32.mrf.mxu0
        %v3875 = vadd.f32 0.0, %v3874
        %v3876 = vpop.f32.mrf.mxu0
        %v3877 = vadd.f32 0.0, %v3876
        %3878 = vmatprep.mubr.bf16.mxu0 0
        %3879 = vmatmul.mubr.bf16.gmra.mxu0 %v3726
        %v3880 = vpop.f32.mrf.mxu0
        %v3881 = vadd.f32 0.0, %v3880
        %v3882 = vpop.f32.mrf.mxu0
        %v3883 = vadd.f32 0.0, %v3882
        %v3884 = vpop.f32.mrf.mxu0
        %v3885 = vadd.f32 0.0, %v3884
        %v3886 = vpop.f32.mrf.mxu0
        %v3887 = vadd.f32 0.0, %v3886
        %3888 = vdwg.mxu0
        %v3889 = vmax.f32 %v3811, %v3813
        %3890 = vmax.xlane.f32.xlu0 %v3889
        %v3891 = vpop.xlane.xlu0 %3890
        %v3892 = vmax.f32 %v3815, %v3817
        %3893 = vmax.xlane.f32.xlu0 %v3892
        %v3894 = vpop.xlane.xlu0 %3893
        %v3895 = vmax.f32 %v3821, %v3823
        %3896 = vmax.xlane.f32.xlu0 %v3895
        %v3897 = vpop.xlane.xlu0 %3896
        %v3898 = vmax.f32 %v3825, %v3827
        %3899 = vmax.xlane.f32.xlu0 %v3898
        %v3900 = vpop.xlane.xlu0 %3899
        %v3901 = vmax.f32 %v3831, %v3833
        %3902 = vmax.xlane.f32.xlu0 %v3901
        %v3903 = vpop.xlane.xlu0 %3902
        %v3904 = vmax.f32 %v3835, %v3837
        %3905 = vmax.xlane.f32.xlu0 %v3904
        %v3906 = vpop.xlane.xlu0 %3905
        %v3907 = vmax.f32 %v3841, %v3843
        %3908 = vmax.xlane.f32.xlu0 %v3907
        %v3909 = vpop.xlane.xlu0 %3908
        %v3910 = vmax.f32 %v3845, %v3847
        %3911 = vmax.xlane.f32.xlu0 %v3910
        %v3912 = vpop.xlane.xlu0 %3911
        %v3913 = vmax.f32 %v3851, %v3853
        %3914 = vmax.xlane.f32.xlu0 %v3913
        %v3915 = vpop.xlane.xlu0 %3914
        %v3916 = vmax.f32 %v3855, %v3857
        %3917 = vmax.xlane.f32.xlu0 %v3916
        %v3918 = vpop.xlane.xlu0 %3917
        %v3919 = vmax.f32 %v3861, %v3863
        %3920 = vmax.xlane.f32.xlu0 %v3919
        %v3921 = vpop.xlane.xlu0 %3920
        %v3922 = vmax.f32 %v3865, %v3867
        %3923 = vmax.xlane.f32.xlu0 %v3922
        %v3924 = vpop.xlane.xlu0 %3923
        %v3925 = vmax.f32 %v3871, %v3873
        %3926 = vmax.xlane.f32.xlu0 %v3925
        %v3927 = vpop.xlane.xlu0 %3926
        %v3928 = vmax.f32 %v3875, %v3877
        %3929 = vmax.xlane.f32.xlu0 %v3928
        %v3930 = vpop.xlane.xlu0 %3929
        %v3931 = vmax.f32 %v3881, %v3883
        %3932 = vmax.xlane.f32.xlu0 %v3931
        %v3933 = vpop.xlane.xlu0 %3932
        %v3934 = vmax.f32 %v3885, %v3887
        %3935 = vmax.xlane.f32.xlu0 %v3934
        %v3936 = vpop.xlane.xlu0 %3935
        %v3937 = vsub.f32 %v3811, %v3891
        %v3938 = vsub.f32 %v3813, %v3891
        %v3939 = vsub.f32 %v3815, %v3894
        %v3940 = vsub.f32 %v3817, %v3894
        %v3941 = vsub.f32 %v3821, %v3897
        %v3942 = vsub.f32 %v3823, %v3897
        %v3943 = vsub.f32 %v3825, %v3900
        %v3944 = vsub.f32 %v3827, %v3900
        %v3945 = vsub.f32 %v3831, %v3903
        %v3946 = vsub.f32 %v3833, %v3903
        %v3947 = vsub.f32 %v3835, %v3906
        %v3948 = vsub.f32 %v3837, %v3906
        %v3949 = vsub.f32 %v3841, %v3909
        %v3950 = vsub.f32 %v3843, %v3909
        %v3951 = vsub.f32 %v3845, %v3912
        %v3952 = vsub.f32 %v3847, %v3912
        %v3953 = vsub.f32 %v3851, %v3915
        %v3954 = vsub.f32 %v3853, %v3915
        %v3955 = vsub.f32 %v3855, %v3918
        %v3956 = vsub.f32 %v3857, %v3918
        %v3957 = vsub.f32 %v3861, %v3921
        %v3958 = vsub.f32 %v3863, %v3921
        %v3959 = vsub.f32 %v3865, %v3924
        %v3960 = vsub.f32 %v3867, %v3924
        %v3961 = vsub.f32 %v3871, %v3927
        %v3962 = vsub.f32 %v3873, %v3927
        %v3963 = vsub.f32 %v3875, %v3930
        %v3964 = vsub.f32 %v3877, %v3930
        %v3965 = vsub.f32 %v3881, %v3933
        %v3966 = vsub.f32 %v3883, %v3933
        %v3967 = vsub.f32 %v3885, %v3936
        %v3968 = vsub.f32 %v3887, %v3936
        %v3969 = vmul.f32 %v3937, 1.442695
        %v3970 = vpow.pop %v3969
        %v3971 = vmul.f32 %v3938, 1.442695
        %v3972 = vpow.pop %v3971
        %v3973 = vmul.f32 %v3939, 1.442695
        %v3974 = vpow.pop %v3973
        %v3975 = vmul.f32 %v3940, 1.442695
        %v3976 = vpow.pop %v3975
        %v3977 = vmul.f32 %v3941, 1.442695
        %v3978 = vpow.pop %v3977
        %v3979 = vmul.f32 %v3942, 1.442695
        %v3980 = vpow.pop %v3979
        %v3981 = vmul.f32 %v3943, 1.442695
        %v3982 = vpow.pop %v3981
        %v3983 = vmul.f32 %v3944, 1.442695
        %v3984 = vpow.pop %v3983
        %v3985 = vmul.f32 %v3945, 1.442695
        %v3986 = vpow.pop %v3985
        %v3987 = vmul.f32 %v3946, 1.442695
        %v3988 = vpow.pop %v3987
        %v3989 = vmul.f32 %v3947, 1.442695
        %v3990 = vpow.pop %v3989
        %v3991 = vmul.f32 %v3948, 1.442695
        %v3992 = vpow.pop %v3991
        %v3993 = vmul.f32 %v3949, 1.442695
        %v3994 = vpow.pop %v3993
        %v3995 = vmul.f32 %v3950, 1.442695
        %v3996 = vpow.pop %v3995
        %v3997 = vmul.f32 %v3951, 1.442695
        %v3998 = vpow.pop %v3997
        %v3999 = vmul.f32 %v3952, 1.442695
        %v4000 = vpow.pop %v3999
        %v4001 = vmul.f32 %v3953, 1.442695
        %v4002 = vpow.pop %v4001
        %v4003 = vmul.f32 %v3954, 1.442695
        %v4004 = vpow.pop %v4003
        %v4005 = vmul.f32 %v3955, 1.442695
        %v4006 = vpow.pop %v4005
        %v4007 = vmul.f32 %v3956, 1.442695
        %v4008 = vpow.pop %v4007
        %v4009 = vmul.f32 %v3957, 1.442695
        %v4010 = vpow.pop %v4009
        %v4011 = vmul.f32 %v3958, 1.442695
        %v4012 = vpow.pop %v4011
        %v4013 = vmul.f32 %v3959, 1.442695
        %v4014 = vpow.pop %v4013
        %v4015 = vmul.f32 %v3960, 1.442695
        %v4016 = vpow.pop %v4015
        %v4017 = vmul.f32 %v3961, 1.442695
        %v4018 = vpow.pop %v4017
        %v4019 = vmul.f32 %v3962, 1.442695
        %v4020 = vpow.pop %v4019
        %v4021 = vmul.f32 %v3963, 1.442695
        %v4022 = vpow.pop %v4021
        %v4023 = vmul.f32 %v3964, 1.442695
        %v4024 = vpow.pop %v4023
        %v4025 = vmul.f32 %v3965, 1.442695
        %v4026 = vpow.pop %v4025
        %v4027 = vmul.f32 %v3966, 1.442695
        %v4028 = vpow.pop %v4027
        %v4029 = vmul.f32 %v3967, 1.442695
        %v4030 = vpow.pop %v4029
        %v4031 = vmul.f32 %v3968, 1.442695
        %v4032 = vpow.pop %v4031
        %v4033 = vadd.f32 %v3970, %v3972
        %4034 = vadd.xlane.f32.xlu0 %v4033
        %v4035 = vpop.xlane.xlu0 %4034
        %v4036 = vadd.f32 %v3974, %v3976
        %4037 = vadd.xlane.f32.xlu0 %v4036
        %v4038 = vpop.xlane.xlu0 %4037
        %v4039 = vadd.f32 %v3978, %v3980
        %4040 = vadd.xlane.f32.xlu0 %v4039
        %v4041 = vpop.xlane.xlu0 %4040
        %v4042 = vadd.f32 %v3982, %v3984
        %4043 = vadd.xlane.f32.xlu0 %v4042
        %v4044 = vpop.xlane.xlu0 %4043
        %v4045 = vadd.f32 %v3986, %v3988
        %4046 = vadd.xlane.f32.xlu0 %v4045
        %v4047 = vpop.xlane.xlu0 %4046
        %v4048 = vadd.f32 %v3990, %v3992
        %4049 = vadd.xlane.f32.xlu0 %v4048
        %v4050 = vpop.xlane.xlu0 %4049
        %v4051 = vadd.f32 %v3994, %v3996
        %4052 = vadd.xlane.f32.xlu0 %v4051
        %v4053 = vpop.xlane.xlu0 %4052
        %v4054 = vadd.f32 %v3998, %v4000
        %4055 = vadd.xlane.f32.xlu0 %v4054
        %v4056 = vpop.xlane.xlu0 %4055
        %v4057 = vadd.f32 %v4002, %v4004
        %4058 = vadd.xlane.f32.xlu0 %v4057
        %v4059 = vpop.xlane.xlu0 %4058
        %v4060 = vadd.f32 %v4006, %v4008
        %4061 = vadd.xlane.f32.xlu0 %v4060
        %v4062 = vpop.xlane.xlu0 %4061
        %v4063 = vadd.f32 %v4010, %v4012
        %4064 = vadd.xlane.f32.xlu0 %v4063
        %v4065 = vpop.xlane.xlu0 %4064
        %v4066 = vadd.f32 %v4014, %v4016
        %4067 = vadd.xlane.f32.xlu0 %v4066
        %v4068 = vpop.xlane.xlu0 %4067
        %v4069 = vadd.f32 %v4018, %v4020
        %4070 = vadd.xlane.f32.xlu0 %v4069
        %v4071 = vpop.xlane.xlu0 %4070
        %v4072 = vadd.f32 %v4022, %v4024
        %4073 = vadd.xlane.f32.xlu0 %v4072
        %v4074 = vpop.xlane.xlu0 %4073
        %v4075 = vadd.f32 %v4026, %v4028
        %4076 = vadd.xlane.f32.xlu0 %v4075
        %v4077 = vpop.xlane.xlu0 %4076
        %v4078 = vadd.f32 %v4030, %v4032
        %4079 = vadd.xlane.f32.xlu0 %v4078
        %v4080 = vpop.xlane.xlu0 %4079
        %v4081 = vpack.c.bf16 %v3974, %v3970
        %v4082 = vpack.c.bf16 %v3976, %v3972
        %v4083 = vpack.c.bf16 %v3982, %v3978
        %v4084 = vpack.c.bf16 %v3984, %v3980
        %v4085 = vpack.c.bf16 %v3990, %v3986
        %v4086 = vpack.c.bf16 %v3992, %v3988
        %v4087 = vpack.c.bf16 %v3998, %v3994
        %v4088 = vpack.c.bf16 %v4000, %v3996
        %v4089 = vpack.c.bf16 %v4006, %v4002
        %v4090 = vpack.c.bf16 %v4008, %v4004
        %v4091 = vpack.c.bf16 %v4014, %v4010
        %v4092 = vpack.c.bf16 %v4016, %v4012
        %v4093 = vpack.c.bf16 %v4022, %v4018
        %v4094 = vpack.c.bf16 %v4024, %v4020
        %v4095 = vpack.c.bf16 %v4030, %v4026
        %v4096 = vpack.c.bf16 %v4032, %v4028
        %4097 = vrot.lane.b32.xlu0 %v2235, 80
        %v4098 = vpop.permute.xlu0 %4097
        %4099 = vrot.lane.b32.xlu0 %v2236, 80
        %v4100 = vpop.permute.xlu0 %4099
        %4101 = vrot.lane.b32.xlu0 %v2237, 80
        %v4102 = vpop.permute.xlu0 %4101
        %4103 = vrot.lane.b32.xlu0 %v2238, 80
        %v4104 = vpop.permute.xlu0 %4103
        %4105 = vrot.lane.b32.xlu0 %v2239, 80
        %v4106 = vpop.permute.xlu0 %4105
        %4107 = vrot.lane.b32.xlu0 %v2240, 80
        %v4108 = vpop.permute.xlu0 %4107
        %4109 = vrot.lane.b32.xlu0 %v2241, 80
        %v4110 = vpop.permute.xlu0 %4109
        %4111 = vrot.lane.b32.xlu0 %v2242, 80
        %v4112 = vpop.permute.xlu0 %4111
        %4113 = vrot.lane.b32.xlu0 %v2243, 80
        %v4114 = vpop.permute.xlu0 %4113
        %4115 = vrot.lane.b32.xlu0 %v2244, 80
        %v4116 = vpop.permute.xlu0 %4115
        %4117 = vrot.lane.b32.xlu0 %v2245, 80
        %v4118 = vpop.permute.xlu0 %4117
        %4119 = vrot.lane.b32.xlu0 %v2246, 80
        %v4120 = vpop.permute.xlu0 %4119
        %4121 = vrot.lane.b32.xlu0 %v2247, 80
        %v4122 = vpop.permute.xlu0 %4121
        %4123 = vrot.lane.b32.xlu0 %v2248, 80
        %v4124 = vpop.permute.xlu0 %4123
        %4125 = vrot.lane.b32.xlu0 %v2249, 80
        %v4126 = vpop.permute.xlu0 %4125
        %4127 = vrot.lane.b32.xlu0 %v2250, 80
        %v4128 = vpop.permute.xlu0 %4127
        %4145 = vmatprep.subr.bf16.mxu0 0
        %4146 = vmatpush1.bf16.msra.mxu0 %v4112
        %4147 = vmatprep.subr.bf16.mxu0 0
        %4148 = vmatpush1.bf16.msra.mxu0 %v4110
        %4149 = vmatprep.subr.bf16.mxu0 0
        %4150 = vmatpush1.bf16.msra.mxu0 %v4108
        %4151 = vmatprep.subr.bf16.mxu0 0
        %4152 = vmatpush1.bf16.msra.mxu0 %v4106
        %4153 = vmatprep.subr.bf16.mxu0 0
        %4154 = vmatpush1.bf16.msra.mxu0 %v4104
        %4155 = vmatprep.subr.bf16.mxu0 0
        %4156 = vmatpush1.bf16.msra.mxu0 %v4102
        %4157 = vmatprep.subr.bf16.mxu0 0
        %4158 = vmatpush1.bf16.msra.mxu0 %v4100
        %4159 = vmatprep.subr.bf16.mxu0 0
        %4160 = vmatpush1.bf16.msra.mxu0 %v4098
        %4161 = vmatprep.subr.bf16.mxu0 0
        %4162 = vmatpush2.bf16.msra.mxu0 %v4128
        %4163 = vmatprep.subr.bf16.mxu0 0
        %4164 = vmatpush2.bf16.msra.mxu0 %v4126
        %4165 = vmatprep.subr.bf16.mxu0 0
        %4166 = vmatpush2.bf16.msra.mxu0 %v4124
        %4167 = vmatprep.subr.bf16.mxu0 0
        %4168 = vmatpush2.bf16.msra.mxu0 %v4122
        %4169 = vmatprep.subr.bf16.mxu0 0
        %4170 = vmatpush2.bf16.msra.mxu0 %v4120
        %4171 = vmatprep.subr.bf16.mxu0 0
        %4172 = vmatpush2.bf16.msra.mxu0 %v4118
        %4173 = vmatprep.subr.bf16.mxu0 0
        %4174 = vmatpush2.bf16.msra.mxu0 %v4116
        %4175 = vmatprep.subr.bf16.mxu0 0
        %4176 = vmatpush2.bf16.msra.mxu0 %v4114
        %4177 = vmatprep.mubr.bf16.mxu0 %v4082
        %4178 = vmatmul.mubr.bf16.gmra.mxu0 %v4081
        %v4179 = vpop.f32.mrf.mxu0
        %v4180 = vadd.f32 0.0, %v4179
        %v4181 = vpop.f32.mrf.mxu0
        %v4182 = vpop.f32.mrf.mxu0
        %v4183 = vadd.f32 0.0, %v4182
        %v4184 = vpop.f32.mrf.mxu0
        %4185 = vmatprep.mubr.bf16.mxu0 %v4084
        %4186 = vmatmul.mubr.bf16.gmra.mxu0 %v4083
        %v4187 = vpop.f32.mrf.mxu0
        %v4188 = vadd.f32 0.0, %v4187
        %v4189 = vpop.f32.mrf.mxu0
        %v4190 = vpop.f32.mrf.mxu0
        %v4191 = vadd.f32 0.0, %v4190
        %v4192 = vpop.f32.mrf.mxu0
        %4193 = vmatprep.mubr.bf16.mxu0 %v4086
        %4194 = vmatmul.mubr.bf16.gmra.mxu0 %v4085
        %v4195 = vpop.f32.mrf.mxu0
        %v4196 = vadd.f32 0.0, %v4195
        %v4197 = vpop.f32.mrf.mxu0
        %v4198 = vpop.f32.mrf.mxu0
        %v4199 = vadd.f32 0.0, %v4198
        %v4200 = vpop.f32.mrf.mxu0
        %4201 = vmatprep.mubr.bf16.mxu0 %v4088
        %4202 = vmatmul.mubr.bf16.gmra.mxu0 %v4087
        %v4203 = vpop.f32.mrf.mxu0
        %v4204 = vadd.f32 0.0, %v4203
        %v4205 = vpop.f32.mrf.mxu0
        %v4206 = vpop.f32.mrf.mxu0
        %v4207 = vadd.f32 0.0, %v4206
        %v4208 = vpop.f32.mrf.mxu0
        %4209 = vmatprep.mubr.bf16.mxu0 %v4090
        %4210 = vmatmul.mubr.bf16.gmra.mxu0 %v4089
        %v4211 = vpop.f32.mrf.mxu0
        %v4212 = vadd.f32 0.0, %v4211
        %v4213 = vpop.f32.mrf.mxu0
        %v4214 = vpop.f32.mrf.mxu0
        %v4215 = vadd.f32 0.0, %v4214
        %v4216 = vpop.f32.mrf.mxu0
        %4217 = vmatprep.mubr.bf16.mxu0 %v4092
        %4218 = vmatmul.mubr.bf16.gmra.mxu0 %v4091
        %v4219 = vpop.f32.mrf.mxu0
        %v4220 = vadd.f32 0.0, %v4219
        %v4221 = vpop.f32.mrf.mxu0
        %v4222 = vpop.f32.mrf.mxu0
        %v4223 = vadd.f32 0.0, %v4222
        %v4224 = vpop.f32.mrf.mxu0
        %4225 = vmatprep.mubr.bf16.mxu0 %v4094
        %4226 = vmatmul.mubr.bf16.gmra.mxu0 %v4093
        %v4227 = vpop.f32.mrf.mxu0
        %v4228 = vadd.f32 0.0, %v4227
        %v4229 = vpop.f32.mrf.mxu0
        %v4230 = vpop.f32.mrf.mxu0
        %v4231 = vadd.f32 0.0, %v4230
        %v4232 = vpop.f32.mrf.mxu0
        %4233 = vmatprep.mubr.bf16.mxu0 %v4096
        %4234 = vmatmul.mubr.bf16.gmra.mxu0 %v4095
        %v4235 = vpop.f32.mrf.mxu0
        %v4236 = vadd.f32 0.0, %v4235
        %v4237 = vpop.f32.mrf.mxu0
        %v4238 = vpop.f32.mrf.mxu0
        %v4239 = vadd.f32 0.0, %v4238
        %v4240 = vpop.f32.mrf.mxu0
        %4241 = vdwg.mxu0
        %v4242 = vrcp.pop %v4035
        %v4243 = vrcp.pop %v4038
        %v4244 = vrcp.pop %v4041
        %v4245 = vrcp.pop %v4044
        %v4246 = vrcp.pop %v4047
        %v4247 = vrcp.pop %v4050
        %v4248 = vrcp.pop %v4053
        %v4249 = vrcp.pop %v4056
        %v4250 = vrcp.pop %v4059
        %v4251 = vrcp.pop %v4062
        %v4252 = vrcp.pop %v4065
        %v4253 = vrcp.pop %v4068
        %v4254 = vrcp.pop %v4071
        %v4255 = vrcp.pop %v4074
        %v4256 = vrcp.pop %v4077
        %v4257 = vrcp.pop %v4080
        %v4258 = vmul.f32 %v4180, %v4242
        %v4259 = vmul.f32 %v4183, %v4243
        %v4260 = vmul.f32 %v4188, %v4244
        %v4261 = vmul.f32 %v4191, %v4245
        %v4262 = vmul.f32 %v4196, %v4246
        %v4263 = vmul.f32 %v4199, %v4247
        %v4264 = vmul.f32 %v4204, %v4248
        %v4265 = vmul.f32 %v4207, %v4249
        %v4266 = vmul.f32 %v4212, %v4250
        %v4267 = vmul.f32 %v4215, %v4251
        %v4268 = vmul.f32 %v4220, %v4252
        %v4269 = vmul.f32 %v4223, %v4253
        %v4270 = vmul.f32 %v4228, %v4254
        %v4271 = vmul.f32 %v4231, %v4255
        %v4272 = vmul.f32 %v4236, %v4256
        %v4273 = vmul.f32 %v4239, %v4257
        %v4274 = vpack.c.bf16 %v4259, %v4258
        %v4275 = vpack.c.bf16 %v4261, %v4260
        %v4276 = vpack.c.bf16 %v4263, %v4262
        %v4277 = vpack.c.bf16 %v4265, %v4264
        %v4278 = vpack.c.bf16 %v4267, %v4266
        %v4279 = vpack.c.bf16 %v4269, %v4268
        %v4280 = vpack.c.bf16 %v4271, %v4270
        %v4281 = vpack.c.bf16 %v4273, %v4272
        %4282 = vrot.lane.b32.xlu0 %v1689, 64
        %v4283 = vpop.permute.xlu0 %4282
        %4284 = vrot.lane.b32.xlu0 %v1690, 64
        %v4285 = vpop.permute.xlu0 %4284
        %4286 = vrot.lane.b32.xlu0 %v1691, 64
        %v4287 = vpop.permute.xlu0 %4286
        %4288 = vrot.lane.b32.xlu0 %v1692, 64
        %v4289 = vpop.permute.xlu0 %4288
        %4290 = vrot.lane.b32.xlu0 %v1693, 64
        %v4291 = vpop.permute.xlu0 %4290
        %4292 = vrot.lane.b32.xlu0 %v1694, 64
        %v4293 = vpop.permute.xlu0 %4292
        %4294 = vrot.lane.b32.xlu0 %v1695, 64
        %v4295 = vpop.permute.xlu0 %4294
        %4296 = vrot.lane.b32.xlu0 %v1696, 64
        %v4297 = vpop.permute.xlu0 %4296
        %4298 = vrot.lane.b32.xlu0 %v1761, 64
        %v4299 = vpop.permute.xlu0 %4298
        %4300 = vrot.lane.b32.xlu0 %v1762, 64
        %v4301 = vpop.permute.xlu0 %4300
        %4302 = vrot.lane.b32.xlu0 %v1763, 64
        %v4303 = vpop.permute.xlu0 %4302
        %4304 = vrot.lane.b32.xlu0 %v1764, 64
        %v4305 = vpop.permute.xlu0 %4304
        %4306 = vrot.lane.b32.xlu0 %v1765, 64
        %v4307 = vpop.permute.xlu0 %4306
        %4308 = vrot.lane.b32.xlu0 %v1766, 64
        %v4309 = vpop.permute.xlu0 %4308
        %4310 = vrot.lane.b32.xlu0 %v1767, 64
        %v4311 = vpop.permute.xlu0 %4310
        %4312 = vrot.lane.b32.xlu0 %v1768, 64
        %v4313 = vpop.permute.xlu0 %4312
        %4314 = vrot.lane.b32.xlu0 %v1769, 64
        %v4315 = vpop.permute.xlu0 %4314
        %4316 = vrot.lane.b32.xlu0 %v1770, 64
        %v4317 = vpop.permute.xlu0 %4316
        %4318 = vrot.lane.b32.xlu0 %v1771, 64
        %v4319 = vpop.permute.xlu0 %4318
        %4320 = vrot.lane.b32.xlu0 %v1772, 64
        %v4321 = vpop.permute.xlu0 %4320
        %4322 = vrot.lane.b32.xlu0 %v1773, 64
        %v4323 = vpop.permute.xlu0 %4322
        %4324 = vrot.lane.b32.xlu0 %v1774, 64
        %v4325 = vpop.permute.xlu0 %4324
        %4326 = vrot.lane.b32.xlu0 %v1775, 64
        %v4327 = vpop.permute.xlu0 %4326
        %4328 = vrot.lane.b32.xlu0 %v1776, 64
        %v4329 = vpop.permute.xlu0 %4328
        %v4331 = vsel %vm1777, %v4283, 0
        %v4334 = vsel %vm1777, %v4285, 0
        %v4337 = vsel %vm1777, %v4287, 0
        %v4340 = vsel %vm1777, %v4289, 0
        %v4343 = vsel %vm1777, %v4291, 0
        %v4346 = vsel %vm1777, %v4293, 0
        %v4349 = vsel %vm1777, %v4295, 0
        %v4352 = vsel %vm1777, %v4297, 0
        %v4355 = vsel %vm1777, %v4299, 0
        %v4358 = vsel %vm1777, %v4301, 0
        %v4361 = vsel %vm1777, %v4303, 0
        %v4364 = vsel %vm1777, %v4305, 0
        %v4367 = vsel %vm1777, %v4307, 0
        %v4370 = vsel %vm1777, %v4309, 0
        %v4373 = vsel %vm1777, %v4311, 0
        %v4376 = vsel %vm1777, %v4313, 0
        %v4379 = vsel %vm1777, %v4315, 0
        %v4382 = vsel %vm1777, %v4317, 0
        %v4385 = vsel %vm1777, %v4319, 0
        %v4388 = vsel %vm1777, %v4321, 0
        %v4391 = vsel %vm1777, %v4323, 0
        %v4394 = vsel %vm1777, %v4325, 0
        %v4397 = vsel %vm1777, %v4327, 0
        %v4400 = vsel %vm1777, %v4329, 0
        %4402 = vmatprep.subr.bf16.mxu0 0
        %4403 = vmatpush1.bf16.xpose.msra.mxu0 %v4376
        %4404 = vmatprep.subr.bf16.mxu0 0
        %4405 = vmatpush1.bf16.xpose.msra.mxu0 %v4373
        %4406 = vmatprep.subr.bf16.mxu0 0
        %4407 = vmatpush1.bf16.xpose.msra.mxu0 %v4370
        %4408 = vmatprep.subr.bf16.mxu0 0
        %4409 = vmatpush1.bf16.xpose.msra.mxu0 %v4367
        %4410 = vmatprep.subr.bf16.mxu0 0
        %4411 = vmatpush1.bf16.xpose.msra.mxu0 %v4364
        %4412 = vmatprep.subr.bf16.mxu0 0
        %4413 = vmatpush1.bf16.xpose.msra.mxu0 %v4361
        %4414 = vmatprep.subr.bf16.mxu0 0
        %4415 = vmatpush1.bf16.xpose.msra.mxu0 %v4358
        %4416 = vmatprep.subr.bf16.mxu0 0
        %4417 = vmatpush1.bf16.xpose.msra.mxu0 %v4355
        %4418 = vmatprep.subr.bf16.mxu0 0
        %4419 = vmatpush2.bf16.xpose.msra.mxu0 %v4400
        %4420 = vmatprep.subr.bf16.mxu0 0
        %4421 = vmatpush2.bf16.xpose.msra.mxu0 %v4397
        %4422 = vmatprep.subr.bf16.mxu0 0
        %4423 = vmatpush2.bf16.xpose.msra.mxu0 %v4394
        %4424 = vmatprep.subr.bf16.mxu0 0
        %4425 = vmatpush2.bf16.xpose.msra.mxu0 %v4391
        %4426 = vmatprep.subr.bf16.mxu0 0
        %4427 = vmatpush2.bf16.xpose.msra.mxu0 %v4388
        %4428 = vmatprep.subr.bf16.mxu0 0
        %4429 = vmatpush2.bf16.xpose.msra.mxu0 %v4385
        %4430 = vmatprep.subr.bf16.mxu0 0
        %4431 = vmatpush2.bf16.xpose.msra.mxu0 %v4382
        %4432 = vmatprep.subr.bf16.mxu0 0
        %4433 = vmatpush2.bf16.xpose.msra.mxu0 %v4379
        %4434 = vmatprep.mubr.bf16.mxu0 0
        %4435 = vmatmul.mubr.bf16.gmra.mxu0 %v4331
        %v4436 = vpop.f32.mrf.mxu0
        %v4437 = vadd.f32 0.0, %v4436
        %v4438 = vpop.f32.mrf.mxu0
        %v4439 = vadd.f32 0.0, %v4438
        %v4440 = vpop.f32.mrf.mxu0
        %v4441 = vadd.f32 0.0, %v4440
        %v4442 = vpop.f32.mrf.mxu0
        %v4443 = vadd.f32 0.0, %v4442
        %4444 = vmatprep.mubr.bf16.mxu0 0
        %4445 = vmatmul.mubr.bf16.gmra.mxu0 %v4334
        %v4446 = vpop.f32.mrf.mxu0
        %v4447 = vadd.f32 0.0, %v4446
        %v4448 = vpop.f32.mrf.mxu0
        %v4449 = vadd.f32 0.0, %v4448
        %v4450 = vpop.f32.mrf.mxu0
        %v4451 = vadd.f32 0.0, %v4450
        %v4452 = vpop.f32.mrf.mxu0
        %v4453 = vadd.f32 0.0, %v4452
        %4454 = vmatprep.mubr.bf16.mxu0 0
        %4455 = vmatmul.mubr.bf16.gmra.mxu0 %v4337
        %v4456 = vpop.f32.mrf.mxu0
        %v4457 = vadd.f32 0.0, %v4456
        %v4458 = vpop.f32.mrf.mxu0
        %v4459 = vadd.f32 0.0, %v4458
        %v4460 = vpop.f32.mrf.mxu0
        %v4461 = vadd.f32 0.0, %v4460
        %v4462 = vpop.f32.mrf.mxu0
        %v4463 = vadd.f32 0.0, %v4462
        %4464 = vmatprep.mubr.bf16.mxu0 0
        %4465 = vmatmul.mubr.bf16.gmra.mxu0 %v4340
        %v4466 = vpop.f32.mrf.mxu0
        %v4467 = vadd.f32 0.0, %v4466
        %v4468 = vpop.f32.mrf.mxu0
        %v4469 = vadd.f32 0.0, %v4468
        %v4470 = vpop.f32.mrf.mxu0
        %v4471 = vadd.f32 0.0, %v4470
        %v4472 = vpop.f32.mrf.mxu0
        %v4473 = vadd.f32 0.0, %v4472
        %4474 = vmatprep.mubr.bf16.mxu0 0
        %4475 = vmatmul.mubr.bf16.gmra.mxu0 %v4343
        %v4476 = vpop.f32.mrf.mxu0
        %v4477 = vadd.f32 0.0, %v4476
        %v4478 = vpop.f32.mrf.mxu0
        %v4479 = vadd.f32 0.0, %v4478
        %v4480 = vpop.f32.mrf.mxu0
        %v4481 = vadd.f32 0.0, %v4480
        %v4482 = vpop.f32.mrf.mxu0
        %v4483 = vadd.f32 0.0, %v4482
        %4484 = vmatprep.mubr.bf16.mxu0 0
        %4485 = vmatmul.mubr.bf16.gmra.mxu0 %v4346
        %v4486 = vpop.f32.mrf.mxu0
        %v4487 = vadd.f32 0.0, %v4486
        %v4488 = vpop.f32.mrf.mxu0
        %v4489 = vadd.f32 0.0, %v4488
        %v4490 = vpop.f32.mrf.mxu0
        %v4491 = vadd.f32 0.0, %v4490
        %v4492 = vpop.f32.mrf.mxu0
        %v4493 = vadd.f32 0.0, %v4492
        %4494 = vmatprep.mubr.bf16.mxu0 0
        %4495 = vmatmul.mubr.bf16.gmra.mxu0 %v4349
        %v4496 = vpop.f32.mrf.mxu0
        %v4497 = vadd.f32 0.0, %v4496
        %v4498 = vpop.f32.mrf.mxu0
        %v4499 = vadd.f32 0.0, %v4498
        %v4500 = vpop.f32.mrf.mxu0
        %v4501 = vadd.f32 0.0, %v4500
        %v4502 = vpop.f32.mrf.mxu0
        %v4503 = vadd.f32 0.0, %v4502
        %4504 = vmatprep.mubr.bf16.mxu0 0
        %4505 = vmatmul.mubr.bf16.gmra.mxu0 %v4352
        %v4506 = vpop.f32.mrf.mxu0
        %v4507 = vadd.f32 0.0, %v4506
        %v4508 = vpop.f32.mrf.mxu0
        %v4509 = vadd.f32 0.0, %v4508
        %v4510 = vpop.f32.mrf.mxu0
        %v4511 = vadd.f32 0.0, %v4510
        %v4512 = vpop.f32.mrf.mxu0
        %v4513 = vadd.f32 0.0, %v4512
        %4514 = vdwg.mxu0
        %v4515 = vmax.f32 %v4437, %v4439
        %4516 = vmax.xlane.f32.xlu0 %v4515
        %v4517 = vpop.xlane.xlu0 %4516
        %v4518 = vmax.f32 %v4441, %v4443
        %4519 = vmax.xlane.f32.xlu0 %v4518
        %v4520 = vpop.xlane.xlu0 %4519
        %v4521 = vmax.f32 %v4447, %v4449
        %4522 = vmax.xlane.f32.xlu0 %v4521
        %v4523 = vpop.xlane.xlu0 %4522
        %v4524 = vmax.f32 %v4451, %v4453
        %4525 = vmax.xlane.f32.xlu0 %v4524
        %v4526 = vpop.xlane.xlu0 %4525
        %v4527 = vmax.f32 %v4457, %v4459
        %4528 = vmax.xlane.f32.xlu0 %v4527
        %v4529 = vpop.xlane.xlu0 %4528
        %v4530 = vmax.f32 %v4461, %v4463
        %4531 = vmax.xlane.f32.xlu0 %v4530
        %v4532 = vpop.xlane.xlu0 %4531
        %v4533 = vmax.f32 %v4467, %v4469
        %4534 = vmax.xlane.f32.xlu0 %v4533
        %v4535 = vpop.xlane.xlu0 %4534
        %v4536 = vmax.f32 %v4471, %v4473
        %4537 = vmax.xlane.f32.xlu0 %v4536
        %v4538 = vpop.xlane.xlu0 %4537
        %v4539 = vmax.f32 %v4477, %v4479
        %4540 = vmax.xlane.f32.xlu0 %v4539
        %v4541 = vpop.xlane.xlu0 %4540
        %v4542 = vmax.f32 %v4481, %v4483
        %4543 = vmax.xlane.f32.xlu0 %v4542
        %v4544 = vpop.xlane.xlu0 %4543
        %v4545 = vmax.f32 %v4487, %v4489
        %4546 = vmax.xlane.f32.xlu0 %v4545
        %v4547 = vpop.xlane.xlu0 %4546
        %v4548 = vmax.f32 %v4491, %v4493
        %4549 = vmax.xlane.f32.xlu0 %v4548
        %v4550 = vpop.xlane.xlu0 %4549
        %v4551 = vmax.f32 %v4497, %v4499
        %4552 = vmax.xlane.f32.xlu0 %v4551
        %v4553 = vpop.xlane.xlu0 %4552
        %v4554 = vmax.f32 %v4501, %v4503
        %4555 = vmax.xlane.f32.xlu0 %v4554
        %v4556 = vpop.xlane.xlu0 %4555
        %v4557 = vmax.f32 %v4507, %v4509
        %4558 = vmax.xlane.f32.xlu0 %v4557
        %v4559 = vpop.xlane.xlu0 %4558
        %v4560 = vmax.f32 %v4511, %v4513
        %4561 = vmax.xlane.f32.xlu0 %v4560
        %v4562 = vpop.xlane.xlu0 %4561
        %v4563 = vsub.f32 %v4437, %v4517
        %v4564 = vsub.f32 %v4439, %v4517
        %v4565 = vsub.f32 %v4441, %v4520
        %v4566 = vsub.f32 %v4443, %v4520
        %v4567 = vsub.f32 %v4447, %v4523
        %v4568 = vsub.f32 %v4449, %v4523
        %v4569 = vsub.f32 %v4451, %v4526
        %v4570 = vsub.f32 %v4453, %v4526
        %v4571 = vsub.f32 %v4457, %v4529
        %v4572 = vsub.f32 %v4459, %v4529
        %v4573 = vsub.f32 %v4461, %v4532
        %v4574 = vsub.f32 %v4463, %v4532
        %v4575 = vsub.f32 %v4467, %v4535
        %v4576 = vsub.f32 %v4469, %v4535
        %v4577 = vsub.f32 %v4471, %v4538
        %v4578 = vsub.f32 %v4473, %v4538
        %v4579 = vsub.f32 %v4477, %v4541
        %v4580 = vsub.f32 %v4479, %v4541
        %v4581 = vsub.f32 %v4481, %v4544
        %v4582 = vsub.f32 %v4483, %v4544
        %v4583 = vsub.f32 %v4487, %v4547
        %v4584 = vsub.f32 %v4489, %v4547
        %v4585 = vsub.f32 %v4491, %v4550
        %v4586 = vsub.f32 %v4493, %v4550
        %v4587 = vsub.f32 %v4497, %v4553
        %v4588 = vsub.f32 %v4499, %v4553
        %v4589 = vsub.f32 %v4501, %v4556
        %v4590 = vsub.f32 %v4503, %v4556
        %v4591 = vsub.f32 %v4507, %v4559
        %v4592 = vsub.f32 %v4509, %v4559
        %v4593 = vsub.f32 %v4511, %v4562
        %v4594 = vsub.f32 %v4513, %v4562
        %v4595 = vmul.f32 %v4563, 1.442695
        %v4596 = vpow.pop %v4595
        %v4597 = vmul.f32 %v4564, 1.442695
        %v4598 = vpow.pop %v4597
        %v4599 = vmul.f32 %v4565, 1.442695
        %v4600 = vpow.pop %v4599
        %v4601 = vmul.f32 %v4566, 1.442695
        %v4602 = vpow.pop %v4601
        %v4603 = vmul.f32 %v4567, 1.442695
        %v4604 = vpow.pop %v4603
        %v4605 = vmul.f32 %v4568, 1.442695
        %v4606 = vpow.pop %v4605
        %v4607 = vmul.f32 %v4569, 1.442695
        %v4608 = vpow.pop %v4607
        %v4609 = vmul.f32 %v4570, 1.442695
        %v4610 = vpow.pop %v4609
        %v4611 = vmul.f32 %v4571, 1.442695
        %v4612 = vpow.pop %v4611
        %v4613 = vmul.f32 %v4572, 1.442695
        %v4614 = vpow.pop %v4613
        %v4615 = vmul.f32 %v4573, 1.442695
        %v4616 = vpow.pop %v4615
        %v4617 = vmul.f32 %v4574, 1.442695
        %v4618 = vpow.pop %v4617
        %v4619 = vmul.f32 %v4575, 1.442695
        %v4620 = vpow.pop %v4619
        %v4621 = vmul.f32 %v4576, 1.442695
        %v4622 = vpow.pop %v4621
        %v4623 = vmul.f32 %v4577, 1.442695
        %v4624 = vpow.pop %v4623
        %v4625 = vmul.f32 %v4578, 1.442695
        %v4626 = vpow.pop %v4625
        %v4627 = vmul.f32 %v4579, 1.442695
        %v4628 = vpow.pop %v4627
        %v4629 = vmul.f32 %v4580, 1.442695
        %v4630 = vpow.pop %v4629
        %v4631 = vmul.f32 %v4581, 1.442695
        %v4632 = vpow.pop %v4631
        %v4633 = vmul.f32 %v4582, 1.442695
        %v4634 = vpow.pop %v4633
        %v4635 = vmul.f32 %v4583, 1.442695
        %v4636 = vpow.pop %v4635
        %v4637 = vmul.f32 %v4584, 1.442695
        %v4638 = vpow.pop %v4637
        %v4639 = vmul.f32 %v4585, 1.442695
        %v4640 = vpow.pop %v4639
        %v4641 = vmul.f32 %v4586, 1.442695
        %v4642 = vpow.pop %v4641
        %v4643 = vmul.f32 %v4587, 1.442695
        %v4644 = vpow.pop %v4643
        %v4645 = vmul.f32 %v4588, 1.442695
        %v4646 = vpow.pop %v4645
        %v4647 = vmul.f32 %v4589, 1.442695
        %v4648 = vpow.pop %v4647
        %v4649 = vmul.f32 %v4590, 1.442695
        %v4650 = vpow.pop %v4649
        %v4651 = vmul.f32 %v4591, 1.442695
        %v4652 = vpow.pop %v4651
        %v4653 = vmul.f32 %v4592, 1.442695
        %v4654 = vpow.pop %v4653
        %v4655 = vmul.f32 %v4593, 1.442695
        %v4656 = vpow.pop %v4655
        %v4657 = vmul.f32 %v4594, 1.442695
        %v4658 = vpow.pop %v4657
        %v4659 = vadd.f32 %v4596, %v4598
        %4660 = vadd.xlane.f32.xlu0 %v4659
        %v4661 = vpop.xlane.xlu0 %4660
        %v4662 = vadd.f32 %v4600, %v4602
        %4663 = vadd.xlane.f32.xlu0 %v4662
        %v4664 = vpop.xlane.xlu0 %4663
        %v4665 = vadd.f32 %v4604, %v4606
        %4666 = vadd.xlane.f32.xlu0 %v4665
        %v4667 = vpop.xlane.xlu0 %4666
        %v4668 = vadd.f32 %v4608, %v4610
        %4669 = vadd.xlane.f32.xlu0 %v4668
        %v4670 = vpop.xlane.xlu0 %4669
        %v4671 = vadd.f32 %v4612, %v4614
        %4672 = vadd.xlane.f32.xlu0 %v4671
        %v4673 = vpop.xlane.xlu0 %4672
        %v4674 = vadd.f32 %v4616, %v4618
        %4675 = vadd.xlane.f32.xlu0 %v4674
        %v4676 = vpop.xlane.xlu0 %4675
        %v4677 = vadd.f32 %v4620, %v4622
        %4678 = vadd.xlane.f32.xlu0 %v4677
        %v4679 = vpop.xlane.xlu0 %4678
        %v4680 = vadd.f32 %v4624, %v4626
        %4681 = vadd.xlane.f32.xlu0 %v4680
        %v4682 = vpop.xlane.xlu0 %4681
        %v4683 = vadd.f32 %v4628, %v4630
        %4684 = vadd.xlane.f32.xlu0 %v4683
        %v4685 = vpop.xlane.xlu0 %4684
        %v4686 = vadd.f32 %v4632, %v4634
        %4687 = vadd.xlane.f32.xlu0 %v4686
        %v4688 = vpop.xlane.xlu0 %4687
        %v4689 = vadd.f32 %v4636, %v4638
        %4690 = vadd.xlane.f32.xlu0 %v4689
        %v4691 = vpop.xlane.xlu0 %4690
        %v4692 = vadd.f32 %v4640, %v4642
        %4693 = vadd.xlane.f32.xlu0 %v4692
        %v4694 = vpop.xlane.xlu0 %4693
        %v4695 = vadd.f32 %v4644, %v4646
        %4696 = vadd.xlane.f32.xlu0 %v4695
        %v4697 = vpop.xlane.xlu0 %4696
        %v4698 = vadd.f32 %v4648, %v4650
        %4699 = vadd.xlane.f32.xlu0 %v4698
        %v4700 = vpop.xlane.xlu0 %4699
        %v4701 = vadd.f32 %v4652, %v4654
        %4702 = vadd.xlane.f32.xlu0 %v4701
        %v4703 = vpop.xlane.xlu0 %4702
        %v4704 = vadd.f32 %v4656, %v4658
        %4705 = vadd.xlane.f32.xlu0 %v4704
        %v4706 = vpop.xlane.xlu0 %4705
        %v4707 = vpack.c.bf16 %v4600, %v4596
        %v4708 = vpack.c.bf16 %v4602, %v4598
        %v4709 = vpack.c.bf16 %v4608, %v4604
        %v4710 = vpack.c.bf16 %v4610, %v4606
        %v4711 = vpack.c.bf16 %v4616, %v4612
        %v4712 = vpack.c.bf16 %v4618, %v4614
        %v4713 = vpack.c.bf16 %v4624, %v4620
        %v4714 = vpack.c.bf16 %v4626, %v4622
        %v4715 = vpack.c.bf16 %v4632, %v4628
        %v4716 = vpack.c.bf16 %v4634, %v4630
        %v4717 = vpack.c.bf16 %v4640, %v4636
        %v4718 = vpack.c.bf16 %v4642, %v4638
        %v4719 = vpack.c.bf16 %v4648, %v4644
        %v4720 = vpack.c.bf16 %v4650, %v4646
        %v4721 = vpack.c.bf16 %v4656, %v4652
        %v4722 = vpack.c.bf16 %v4658, %v4654
        %4723 = vrot.lane.b32.xlu0 %v2235, 64
        %v4724 = vpop.permute.xlu0 %4723
        %4725 = vrot.lane.b32.xlu0 %v2236, 64
        %v4726 = vpop.permute.xlu0 %4725
        %4727 = vrot.lane.b32.xlu0 %v2237, 64
        %v4728 = vpop.permute.xlu0 %4727
        %4729 = vrot.lane.b32.xlu0 %v2238, 64
        %v4730 = vpop.permute.xlu0 %4729
        %4731 = vrot.lane.b32.xlu0 %v2239, 64
        %v4732 = vpop.permute.xlu0 %4731
        %4733 = vrot.lane.b32.xlu0 %v2240, 64
        %v4734 = vpop.permute.xlu0 %4733
        %4735 = vrot.lane.b32.xlu0 %v2241, 64
        %v4736 = vpop.permute.xlu0 %4735
        %4737 = vrot.lane.b32.xlu0 %v2242, 64
        %v4738 = vpop.permute.xlu0 %4737
        %4739 = vrot.lane.b32.xlu0 %v2243, 64
        %v4740 = vpop.permute.xlu0 %4739
        %4741 = vrot.lane.b32.xlu0 %v2244, 64
        %v4742 = vpop.permute.xlu0 %4741
        %4743 = vrot.lane.b32.xlu0 %v2245, 64
        %v4744 = vpop.permute.xlu0 %4743
        %4745 = vrot.lane.b32.xlu0 %v2246, 64
        %v4746 = vpop.permute.xlu0 %4745
        %4747 = vrot.lane.b32.xlu0 %v2247, 64
        %v4748 = vpop.permute.xlu0 %4747
        %4749 = vrot.lane.b32.xlu0 %v2248, 64
        %v4750 = vpop.permute.xlu0 %4749
        %4751 = vrot.lane.b32.xlu0 %v2249, 64
        %v4752 = vpop.permute.xlu0 %4751
        %4753 = vrot.lane.b32.xlu0 %v2250, 64
        %v4754 = vpop.permute.xlu0 %4753
        %4771 = vmatprep.subr.bf16.mxu0 0
        %4772 = vmatpush1.bf16.msra.mxu0 %v4738
        %4773 = vmatprep.subr.bf16.mxu0 0
        %4774 = vmatpush1.bf16.msra.mxu0 %v4736
        %4775 = vmatprep.subr.bf16.mxu0 0
        %4776 = vmatpush1.bf16.msra.mxu0 %v4734
        %4777 = vmatprep.subr.bf16.mxu0 0
        %4778 = vmatpush1.bf16.msra.mxu0 %v4732
        %4779 = vmatprep.subr.bf16.mxu0 0
        %4780 = vmatpush1.bf16.msra.mxu0 %v4730
        %4781 = vmatprep.subr.bf16.mxu0 0
        %4782 = vmatpush1.bf16.msra.mxu0 %v4728
        %4783 = vmatprep.subr.bf16.mxu0 0
        %4784 = vmatpush1.bf16.msra.mxu0 %v4726
        %4785 = vmatprep.subr.bf16.mxu0 0
        %4786 = vmatpush1.bf16.msra.mxu0 %v4724
        %4787 = vmatprep.subr.bf16.mxu0 0
        %4788 = vmatpush2.bf16.msra.mxu0 %v4754
        %4789 = vmatprep.subr.bf16.mxu0 0
        %4790 = vmatpush2.bf16.msra.mxu0 %v4752
        %4791 = vmatprep.subr.bf16.mxu0 0
        %4792 = vmatpush2.bf16.msra.mxu0 %v4750
        %4793 = vmatprep.subr.bf16.mxu0 0
        %4794 = vmatpush2.bf16.msra.mxu0 %v4748
        %4795 = vmatprep.subr.bf16.mxu0 0
        %4796 = vmatpush2.bf16.msra.mxu0 %v4746
        %4797 = vmatprep.subr.bf16.mxu0 0
        %4798 = vmatpush2.bf16.msra.mxu0 %v4744
        %4799 = vmatprep.subr.bf16.mxu0 0
        %4800 = vmatpush2.bf16.msra.mxu0 %v4742
        %4801 = vmatprep.subr.bf16.mxu0 0
        %4802 = vmatpush2.bf16.msra.mxu0 %v4740
        %4803 = vmatprep.mubr.bf16.mxu0 %v4708
        %4804 = vmatmul.mubr.bf16.gmra.mxu0 %v4707
        %v4805 = vpop.f32.mrf.mxu0
        %v4806 = vadd.f32 0.0, %v4805
        %v4807 = vpop.f32.mrf.mxu0
        %v4808 = vpop.f32.mrf.mxu0
        %v4809 = vadd.f32 0.0, %v4808
        %v4810 = vpop.f32.mrf.mxu0
        %4811 = vmatprep.mubr.bf16.mxu0 %v4710
        %4812 = vmatmul.mubr.bf16.gmra.mxu0 %v4709
        %v4813 = vpop.f32.mrf.mxu0
        %v4814 = vadd.f32 0.0, %v4813
        %v4815 = vpop.f32.mrf.mxu0
        %v4816 = vpop.f32.mrf.mxu0
        %v4817 = vadd.f32 0.0, %v4816
        %v4818 = vpop.f32.mrf.mxu0
        %4819 = vmatprep.mubr.bf16.mxu0 %v4712
        %4820 = vmatmul.mubr.bf16.gmra.mxu0 %v4711
        %v4821 = vpop.f32.mrf.mxu0
        %v4822 = vadd.f32 0.0, %v4821
        %v4823 = vpop.f32.mrf.mxu0
        %v4824 = vpop.f32.mrf.mxu0
        %v4825 = vadd.f32 0.0, %v4824
        %v4826 = vpop.f32.mrf.mxu0
        %4827 = vmatprep.mubr.bf16.mxu0 %v4714
        %4828 = vmatmul.mubr.bf16.gmra.mxu0 %v4713
        %v4829 = vpop.f32.mrf.mxu0
        %v4830 = vadd.f32 0.0, %v4829
        %v4831 = vpop.f32.mrf.mxu0
        %v4832 = vpop.f32.mrf.mxu0
        %v4833 = vadd.f32 0.0, %v4832
        %v4834 = vpop.f32.mrf.mxu0
        %4835 = vmatprep.mubr.bf16.mxu0 %v4716
        %4836 = vmatmul.mubr.bf16.gmra.mxu0 %v4715
        %v4837 = vpop.f32.mrf.mxu0
        %v4838 = vadd.f32 0.0, %v4837
        %v4839 = vpop.f32.mrf.mxu0
        %v4840 = vpop.f32.mrf.mxu0
        %v4841 = vadd.f32 0.0, %v4840
        %v4842 = vpop.f32.mrf.mxu0
        %4843 = vmatprep.mubr.bf16.mxu0 %v4718
        %4844 = vmatmul.mubr.bf16.gmra.mxu0 %v4717
        %v4845 = vpop.f32.mrf.mxu0
        %v4846 = vadd.f32 0.0, %v4845
        %v4847 = vpop.f32.mrf.mxu0
        %v4848 = vpop.f32.mrf.mxu0
        %v4849 = vadd.f32 0.0, %v4848
        %v4850 = vpop.f32.mrf.mxu0
        %4851 = vmatprep.mubr.bf16.mxu0 %v4720
        %4852 = vmatmul.mubr.bf16.gmra.mxu0 %v4719
        %v4853 = vpop.f32.mrf.mxu0
        %v4854 = vadd.f32 0.0, %v4853
        %v4855 = vpop.f32.mrf.mxu0
        %v4856 = vpop.f32.mrf.mxu0
        %v4857 = vadd.f32 0.0, %v4856
        %v4858 = vpop.f32.mrf.mxu0
        %4859 = vmatprep.mubr.bf16.mxu0 %v4722
        %4860 = vmatmul.mubr.bf16.gmra.mxu0 %v4721
        %v4861 = vpop.f32.mrf.mxu0
        %v4862 = vadd.f32 0.0, %v4861
        %v4863 = vpop.f32.mrf.mxu0
        %v4864 = vpop.f32.mrf.mxu0
        %v4865 = vadd.f32 0.0, %v4864
        %v4866 = vpop.f32.mrf.mxu0
        %4867 = vdwg.mxu0
        %v4868 = vrcp.pop %v4661
        %v4869 = vrcp.pop %v4664
        %v4870 = vrcp.pop %v4667
        %v4871 = vrcp.pop %v4670
        %v4872 = vrcp.pop %v4673
        %v4873 = vrcp.pop %v4676
        %v4874 = vrcp.pop %v4679
        %v4875 = vrcp.pop %v4682
        %v4876 = vrcp.pop %v4685
        %v4877 = vrcp.pop %v4688
        %v4878 = vrcp.pop %v4691
        %v4879 = vrcp.pop %v4694
        %v4880 = vrcp.pop %v4697
        %v4881 = vrcp.pop %v4700
        %v4882 = vrcp.pop %v4703
        %v4883 = vrcp.pop %v4706
        %v4884 = vmul.f32 %v4806, %v4868
        %v4885 = vmul.f32 %v4809, %v4869
        %v4886 = vmul.f32 %v4814, %v4870
        %v4887 = vmul.f32 %v4817, %v4871
        %v4888 = vmul.f32 %v4822, %v4872
        %v4889 = vmul.f32 %v4825, %v4873
        %v4890 = vmul.f32 %v4830, %v4874
        %v4891 = vmul.f32 %v4833, %v4875
        %v4892 = vmul.f32 %v4838, %v4876
        %v4893 = vmul.f32 %v4841, %v4877
        %v4894 = vmul.f32 %v4846, %v4878
        %v4895 = vmul.f32 %v4849, %v4879
        %v4896 = vmul.f32 %v4854, %v4880
        %v4897 = vmul.f32 %v4857, %v4881
        %v4898 = vmul.f32 %v4862, %v4882
        %v4899 = vmul.f32 %v4865, %v4883
        %v4900 = vpack.c.bf16 %v4885, %v4884
        %v4901 = vpack.c.bf16 %v4887, %v4886
        %v4902 = vpack.c.bf16 %v4889, %v4888
        %v4903 = vpack.c.bf16 %v4891, %v4890
        %v4904 = vpack.c.bf16 %v4893, %v4892
        %v4905 = vpack.c.bf16 %v4895, %v4894
        %v4906 = vpack.c.bf16 %v4897, %v4896
        %v4907 = vpack.c.bf16 %v4899, %v4898
        %4908 = vrot.lane.b32.xlu0 %v1689, 48
        %v4909 = vpop.permute.xlu0 %4908
        %4910 = vrot.lane.b32.xlu0 %v1690, 48
        %v4911 = vpop.permute.xlu0 %4910
        %4912 = vrot.lane.b32.xlu0 %v1691, 48
        %v4913 = vpop.permute.xlu0 %4912
        %4914 = vrot.lane.b32.xlu0 %v1692, 48
        %v4915 = vpop.permute.xlu0 %4914
        %4916 = vrot.lane.b32.xlu0 %v1693, 48
        %v4917 = vpop.permute.xlu0 %4916
        %4918 = vrot.lane.b32.xlu0 %v1694, 48
        %v4919 = vpop.permute.xlu0 %4918
        %4920 = vrot.lane.b32.xlu0 %v1695, 48
        %v4921 = vpop.permute.xlu0 %4920
        %4922 = vrot.lane.b32.xlu0 %v1696, 48
        %v4923 = vpop.permute.xlu0 %4922
        %4924 = vrot.lane.b32.xlu0 %v1761, 48
        %v4925 = vpop.permute.xlu0 %4924
        %4926 = vrot.lane.b32.xlu0 %v1762, 48
        %v4927 = vpop.permute.xlu0 %4926
        %4928 = vrot.lane.b32.xlu0 %v1763, 48
        %v4929 = vpop.permute.xlu0 %4928
        %4930 = vrot.lane.b32.xlu0 %v1764, 48
        %v4931 = vpop.permute.xlu0 %4930
        %4932 = vrot.lane.b32.xlu0 %v1765, 48
        %v4933 = vpop.permute.xlu0 %4932
        %4934 = vrot.lane.b32.xlu0 %v1766, 48
        %v4935 = vpop.permute.xlu0 %4934
        %4936 = vrot.lane.b32.xlu0 %v1767, 48
        %v4937 = vpop.permute.xlu0 %4936
        %4938 = vrot.lane.b32.xlu0 %v1768, 48
        %v4939 = vpop.permute.xlu0 %4938
        %4940 = vrot.lane.b32.xlu0 %v1769, 48
        %v4941 = vpop.permute.xlu0 %4940
        %4942 = vrot.lane.b32.xlu0 %v1770, 48
        %v4943 = vpop.permute.xlu0 %4942
        %4944 = vrot.lane.b32.xlu0 %v1771, 48
        %v4945 = vpop.permute.xlu0 %4944
        %4946 = vrot.lane.b32.xlu0 %v1772, 48
        %v4947 = vpop.permute.xlu0 %4946
        %4948 = vrot.lane.b32.xlu0 %v1773, 48
        %v4949 = vpop.permute.xlu0 %4948
        %4950 = vrot.lane.b32.xlu0 %v1774, 48
        %v4951 = vpop.permute.xlu0 %4950
        %4952 = vrot.lane.b32.xlu0 %v1775, 48
        %v4953 = vpop.permute.xlu0 %4952
        %4954 = vrot.lane.b32.xlu0 %v1776, 48
        %v4955 = vpop.permute.xlu0 %4954
        %v4957 = vsel %vm1777, %v4909, 0
        %v4960 = vsel %vm1777, %v4911, 0
        %v4963 = vsel %vm1777, %v4913, 0
        %v4966 = vsel %vm1777, %v4915, 0
        %v4969 = vsel %vm1777, %v4917, 0
        %v4972 = vsel %vm1777, %v4919, 0
        %v4975 = vsel %vm1777, %v4921, 0
        %v4978 = vsel %vm1777, %v4923, 0
        %v4981 = vsel %vm1777, %v4925, 0
        %v4984 = vsel %vm1777, %v4927, 0
        %v4987 = vsel %vm1777, %v4929, 0
        %v4990 = vsel %vm1777, %v4931, 0
        %v4993 = vsel %vm1777, %v4933, 0
        %v4996 = vsel %vm1777, %v4935, 0
        %v4999 = vsel %vm1777, %v4937, 0
        %v5002 = vsel %vm1777, %v4939, 0
        %v5005 = vsel %vm1777, %v4941, 0
        %v5008 = vsel %vm1777, %v4943, 0
        %v5011 = vsel %vm1777, %v4945, 0
        %v5014 = vsel %vm1777, %v4947, 0
        %v5017 = vsel %vm1777, %v4949, 0
        %v5020 = vsel %vm1777, %v4951, 0
        %v5023 = vsel %vm1777, %v4953, 0
        %v5026 = vsel %vm1777, %v4955, 0
        %5028 = vmatprep.subr.bf16.mxu0 0
        %5029 = vmatpush1.bf16.xpose.msra.mxu0 %v5002
        %5030 = vmatprep.subr.bf16.mxu0 0
        %5031 = vmatpush1.bf16.xpose.msra.mxu0 %v4999
        %5032 = vmatprep.subr.bf16.mxu0 0
        %5033 = vmatpush1.bf16.xpose.msra.mxu0 %v4996
        %5034 = vmatprep.subr.bf16.mxu0 0
        %5035 = vmatpush1.bf16.xpose.msra.mxu0 %v4993
        %5036 = vmatprep.subr.bf16.mxu0 0
        %5037 = vmatpush1.bf16.xpose.msra.mxu0 %v4990
        %5038 = vmatprep.subr.bf16.mxu0 0
        %5039 = vmatpush1.bf16.xpose.msra.mxu0 %v4987
        %5040 = vmatprep.subr.bf16.mxu0 0
        %5041 = vmatpush1.bf16.xpose.msra.mxu0 %v4984
        %5042 = vmatprep.subr.bf16.mxu0 0
        %5043 = vmatpush1.bf16.xpose.msra.mxu0 %v4981
        %5044 = vmatprep.subr.bf16.mxu0 0
        %5045 = vmatpush2.bf16.xpose.msra.mxu0 %v5026
        %5046 = vmatprep.subr.bf16.mxu0 0
        %5047 = vmatpush2.bf16.xpose.msra.mxu0 %v5023
        %5048 = vmatprep.subr.bf16.mxu0 0
        %5049 = vmatpush2.bf16.xpose.msra.mxu0 %v5020
        %5050 = vmatprep.subr.bf16.mxu0 0
        %5051 = vmatpush2.bf16.xpose.msra.mxu0 %v5017
        %5052 = vmatprep.subr.bf16.mxu0 0
        %5053 = vmatpush2.bf16.xpose.msra.mxu0 %v5014
        %5054 = vmatprep.subr.bf16.mxu0 0
        %5055 = vmatpush2.bf16.xpose.msra.mxu0 %v5011
        %5056 = vmatprep.subr.bf16.mxu0 0
        %5057 = vmatpush2.bf16.xpose.msra.mxu0 %v5008
        %5058 = vmatprep.subr.bf16.mxu0 0
        %5059 = vmatpush2.bf16.xpose.msra.mxu0 %v5005
        %5060 = vmatprep.mubr.bf16.mxu0 0
        %5061 = vmatmul.mubr.bf16.gmra.mxu0 %v4957
        %v5062 = vpop.f32.mrf.mxu0
        %v5063 = vadd.f32 0.0, %v5062
        %v5064 = vpop.f32.mrf.mxu0
        %v5065 = vadd.f32 0.0, %v5064
        %v5066 = vpop.f32.mrf.mxu0
        %v5067 = vadd.f32 0.0, %v5066
        %v5068 = vpop.f32.mrf.mxu0
        %v5069 = vadd.f32 0.0, %v5068
        %5070 = vmatprep.mubr.bf16.mxu0 0
        %5071 = vmatmul.mubr.bf16.gmra.mxu0 %v4960
        %v5072 = vpop.f32.mrf.mxu0
        %v5073 = vadd.f32 0.0, %v5072
        %v5074 = vpop.f32.mrf.mxu0
        %v5075 = vadd.f32 0.0, %v5074
        %v5076 = vpop.f32.mrf.mxu0
        %v5077 = vadd.f32 0.0, %v5076
        %v5078 = vpop.f32.mrf.mxu0
        %v5079 = vadd.f32 0.0, %v5078
        %5080 = vmatprep.mubr.bf16.mxu0 0
        %5081 = vmatmul.mubr.bf16.gmra.mxu0 %v4963
        %v5082 = vpop.f32.mrf.mxu0
        %v5083 = vadd.f32 0.0, %v5082
        %v5084 = vpop.f32.mrf.mxu0
        %v5085 = vadd.f32 0.0, %v5084
        %v5086 = vpop.f32.mrf.mxu0
        %v5087 = vadd.f32 0.0, %v5086
        %v5088 = vpop.f32.mrf.mxu0
        %v5089 = vadd.f32 0.0, %v5088
        %5090 = vmatprep.mubr.bf16.mxu0 0
        %5091 = vmatmul.mubr.bf16.gmra.mxu0 %v4966
        %v5092 = vpop.f32.mrf.mxu0
        %v5093 = vadd.f32 0.0, %v5092
        %v5094 = vpop.f32.mrf.mxu0
        %v5095 = vadd.f32 0.0, %v5094
        %v5096 = vpop.f32.mrf.mxu0
        %v5097 = vadd.f32 0.0, %v5096
        %v5098 = vpop.f32.mrf.mxu0
        %v5099 = vadd.f32 0.0, %v5098
        %5100 = vmatprep.mubr.bf16.mxu0 0
        %5101 = vmatmul.mubr.bf16.gmra.mxu0 %v4969
        %v5102 = vpop.f32.mrf.mxu0
        %v5103 = vadd.f32 0.0, %v5102
        %v5104 = vpop.f32.mrf.mxu0
        %v5105 = vadd.f32 0.0, %v5104
        %v5106 = vpop.f32.mrf.mxu0
        %v5107 = vadd.f32 0.0, %v5106
        %v5108 = vpop.f32.mrf.mxu0
        %v5109 = vadd.f32 0.0, %v5108
        %5110 = vmatprep.mubr.bf16.mxu0 0
        %5111 = vmatmul.mubr.bf16.gmra.mxu0 %v4972
        %v5112 = vpop.f32.mrf.mxu0
        %v5113 = vadd.f32 0.0, %v5112
        %v5114 = vpop.f32.mrf.mxu0
        %v5115 = vadd.f32 0.0, %v5114
        %v5116 = vpop.f32.mrf.mxu0
        %v5117 = vadd.f32 0.0, %v5116
        %v5118 = vpop.f32.mrf.mxu0
        %v5119 = vadd.f32 0.0, %v5118
        %5120 = vmatprep.mubr.bf16.mxu0 0
        %5121 = vmatmul.mubr.bf16.gmra.mxu0 %v4975
        %v5122 = vpop.f32.mrf.mxu0
        %v5123 = vadd.f32 0.0, %v5122
        %v5124 = vpop.f32.mrf.mxu0
        %v5125 = vadd.f32 0.0, %v5124
        %v5126 = vpop.f32.mrf.mxu0
        %v5127 = vadd.f32 0.0, %v5126
        %v5128 = vpop.f32.mrf.mxu0
        %v5129 = vadd.f32 0.0, %v5128
        %5130 = vmatprep.mubr.bf16.mxu0 0
        %5131 = vmatmul.mubr.bf16.gmra.mxu0 %v4978
        %v5132 = vpop.f32.mrf.mxu0
        %v5133 = vadd.f32 0.0, %v5132
        %v5134 = vpop.f32.mrf.mxu0
        %v5135 = vadd.f32 0.0, %v5134
        %v5136 = vpop.f32.mrf.mxu0
        %v5137 = vadd.f32 0.0, %v5136
        %v5138 = vpop.f32.mrf.mxu0
        %v5139 = vadd.f32 0.0, %v5138
        %5140 = vdwg.mxu0
        %v5141 = vmax.f32 %v5063, %v5065
        %5142 = vmax.xlane.f32.xlu0 %v5141
        %v5143 = vpop.xlane.xlu0 %5142
        %v5144 = vmax.f32 %v5067, %v5069
        %5145 = vmax.xlane.f32.xlu0 %v5144
        %v5146 = vpop.xlane.xlu0 %5145
        %v5147 = vmax.f32 %v5073, %v5075
        %5148 = vmax.xlane.f32.xlu0 %v5147
        %v5149 = vpop.xlane.xlu0 %5148
        %v5150 = vmax.f32 %v5077, %v5079
        %5151 = vmax.xlane.f32.xlu0 %v5150
        %v5152 = vpop.xlane.xlu0 %5151
        %v5153 = vmax.f32 %v5083, %v5085
        %5154 = vmax.xlane.f32.xlu0 %v5153
        %v5155 = vpop.xlane.xlu0 %5154
        %v5156 = vmax.f32 %v5087, %v5089
        %5157 = vmax.xlane.f32.xlu0 %v5156
        %v5158 = vpop.xlane.xlu0 %5157
        %v5159 = vmax.f32 %v5093, %v5095
        %5160 = vmax.xlane.f32.xlu0 %v5159
        %v5161 = vpop.xlane.xlu0 %5160
        %v5162 = vmax.f32 %v5097, %v5099
        %5163 = vmax.xlane.f32.xlu0 %v5162
        %v5164 = vpop.xlane.xlu0 %5163
        %v5165 = vmax.f32 %v5103, %v5105
        %5166 = vmax.xlane.f32.xlu0 %v5165
        %v5167 = vpop.xlane.xlu0 %5166
        %v5168 = vmax.f32 %v5107, %v5109
        %5169 = vmax.xlane.f32.xlu0 %v5168
        %v5170 = vpop.xlane.xlu0 %5169
        %v5171 = vmax.f32 %v5113, %v5115
        %5172 = vmax.xlane.f32.xlu0 %v5171
        %v5173 = vpop.xlane.xlu0 %5172
        %v5174 = vmax.f32 %v5117, %v5119
        %5175 = vmax.xlane.f32.xlu0 %v5174
        %v5176 = vpop.xlane.xlu0 %5175
        %v5177 = vmax.f32 %v5123, %v5125
        %5178 = vmax.xlane.f32.xlu0 %v5177
        %v5179 = vpop.xlane.xlu0 %5178
        %v5180 = vmax.f32 %v5127, %v5129
        %5181 = vmax.xlane.f32.xlu0 %v5180
        %v5182 = vpop.xlane.xlu0 %5181
        %v5183 = vmax.f32 %v5133, %v5135
        %5184 = vmax.xlane.f32.xlu0 %v5183
        %v5185 = vpop.xlane.xlu0 %5184
        %v5186 = vmax.f32 %v5137, %v5139
        %5187 = vmax.xlane.f32.xlu0 %v5186
        %v5188 = vpop.xlane.xlu0 %5187
        %v5189 = vsub.f32 %v5063, %v5143
        %v5190 = vsub.f32 %v5065, %v5143
        %v5191 = vsub.f32 %v5067, %v5146
        %v5192 = vsub.f32 %v5069, %v5146
        %v5193 = vsub.f32 %v5073, %v5149
        %v5194 = vsub.f32 %v5075, %v5149
        %v5195 = vsub.f32 %v5077, %v5152
        %v5196 = vsub.f32 %v5079, %v5152
        %v5197 = vsub.f32 %v5083, %v5155
        %v5198 = vsub.f32 %v5085, %v5155
        %v5199 = vsub.f32 %v5087, %v5158
        %v5200 = vsub.f32 %v5089, %v5158
        %v5201 = vsub.f32 %v5093, %v5161
        %v5202 = vsub.f32 %v5095, %v5161
        %v5203 = vsub.f32 %v5097, %v5164
        %v5204 = vsub.f32 %v5099, %v5164
        %v5205 = vsub.f32 %v5103, %v5167
        %v5206 = vsub.f32 %v5105, %v5167
        %v5207 = vsub.f32 %v5107, %v5170
        %v5208 = vsub.f32 %v5109, %v5170
        %v5209 = vsub.f32 %v5113, %v5173
        %v5210 = vsub.f32 %v5115, %v5173
        %v5211 = vsub.f32 %v5117, %v5176
        %v5212 = vsub.f32 %v5119, %v5176
        %v5213 = vsub.f32 %v5123, %v5179
        %v5214 = vsub.f32 %v5125, %v5179
        %v5215 = vsub.f32 %v5127, %v5182
        %v5216 = vsub.f32 %v5129, %v5182
        %v5217 = vsub.f32 %v5133, %v5185
        %v5218 = vsub.f32 %v5135, %v5185
        %v5219 = vsub.f32 %v5137, %v5188
        %v5220 = vsub.f32 %v5139, %v5188
        %v5221 = vmul.f32 %v5189, 1.442695
        %v5222 = vpow.pop %v5221
        %v5223 = vmul.f32 %v5190, 1.442695
        %v5224 = vpow.pop %v5223
        %v5225 = vmul.f32 %v5191, 1.442695
        %v5226 = vpow.pop %v5225
        %v5227 = vmul.f32 %v5192, 1.442695
        %v5228 = vpow.pop %v5227
        %v5229 = vmul.f32 %v5193, 1.442695
        %v5230 = vpow.pop %v5229
        %v5231 = vmul.f32 %v5194, 1.442695
        %v5232 = vpow.pop %v5231
        %v5233 = vmul.f32 %v5195, 1.442695
        %v5234 = vpow.pop %v5233
        %v5235 = vmul.f32 %v5196, 1.442695
        %v5236 = vpow.pop %v5235
        %v5237 = vmul.f32 %v5197, 1.442695
        %v5238 = vpow.pop %v5237
        %v5239 = vmul.f32 %v5198, 1.442695
        %v5240 = vpow.pop %v5239
        %v5241 = vmul.f32 %v5199, 1.442695
        %v5242 = vpow.pop %v5241
        %v5243 = vmul.f32 %v5200, 1.442695
        %v5244 = vpow.pop %v5243
        %v5245 = vmul.f32 %v5201, 1.442695
        %v5246 = vpow.pop %v5245
        %v5247 = vmul.f32 %v5202, 1.442695
        %v5248 = vpow.pop %v5247
        %v5249 = vmul.f32 %v5203, 1.442695
        %v5250 = vpow.pop %v5249
        %v5251 = vmul.f32 %v5204, 1.442695
        %v5252 = vpow.pop %v5251
        %v5253 = vmul.f32 %v5205, 1.442695
        %v5254 = vpow.pop %v5253
        %v5255 = vmul.f32 %v5206, 1.442695
        %v5256 = vpow.pop %v5255
        %v5257 = vmul.f32 %v5207, 1.442695
        %v5258 = vpow.pop %v5257
        %v5259 = vmul.f32 %v5208, 1.442695
        %v5260 = vpow.pop %v5259
        %v5261 = vmul.f32 %v5209, 1.442695
        %v5262 = vpow.pop %v5261
        %v5263 = vmul.f32 %v5210, 1.442695
        %v5264 = vpow.pop %v5263
        %v5265 = vmul.f32 %v5211, 1.442695
        %v5266 = vpow.pop %v5265
        %v5267 = vmul.f32 %v5212, 1.442695
        %v5268 = vpow.pop %v5267
        %v5269 = vmul.f32 %v5213, 1.442695
        %v5270 = vpow.pop %v5269
        %v5271 = vmul.f32 %v5214, 1.442695
        %v5272 = vpow.pop %v5271
        %v5273 = vmul.f32 %v5215, 1.442695
        %v5274 = vpow.pop %v5273
        %v5275 = vmul.f32 %v5216, 1.442695
        %v5276 = vpow.pop %v5275
        %v5277 = vmul.f32 %v5217, 1.442695
        %v5278 = vpow.pop %v5277
        %v5279 = vmul.f32 %v5218, 1.442695
        %v5280 = vpow.pop %v5279
        %v5281 = vmul.f32 %v5219, 1.442695
        %v5282 = vpow.pop %v5281
        %v5283 = vmul.f32 %v5220, 1.442695
        %v5284 = vpow.pop %v5283
        %v5285 = vadd.f32 %v5222, %v5224
        %5286 = vadd.xlane.f32.xlu0 %v5285
        %v5287 = vpop.xlane.xlu0 %5286
        %v5288 = vadd.f32 %v5226, %v5228
        %5289 = vadd.xlane.f32.xlu0 %v5288
        %v5290 = vpop.xlane.xlu0 %5289
        %v5291 = vadd.f32 %v5230, %v5232
        %5292 = vadd.xlane.f32.xlu0 %v5291
        %v5293 = vpop.xlane.xlu0 %5292
        %v5294 = vadd.f32 %v5234, %v5236
        %5295 = vadd.xlane.f32.xlu0 %v5294
        %v5296 = vpop.xlane.xlu0 %5295
        %v5297 = vadd.f32 %v5238, %v5240
        %5298 = vadd.xlane.f32.xlu0 %v5297
        %v5299 = vpop.xlane.xlu0 %5298
        %v5300 = vadd.f32 %v5242, %v5244
        %5301 = vadd.xlane.f32.xlu0 %v5300
        %v5302 = vpop.xlane.xlu0 %5301
        %v5303 = vadd.f32 %v5246, %v5248
        %5304 = vadd.xlane.f32.xlu0 %v5303
        %v5305 = vpop.xlane.xlu0 %5304
        %v5306 = vadd.f32 %v5250, %v5252
        %5307 = vadd.xlane.f32.xlu0 %v5306
        %v5308 = vpop.xlane.xlu0 %5307
        %v5309 = vadd.f32 %v5254, %v5256
        %5310 = vadd.xlane.f32.xlu0 %v5309
        %v5311 = vpop.xlane.xlu0 %5310
        %v5312 = vadd.f32 %v5258, %v5260
        %5313 = vadd.xlane.f32.xlu0 %v5312
        %v5314 = vpop.xlane.xlu0 %5313
        %v5315 = vadd.f32 %v5262, %v5264
        %5316 = vadd.xlane.f32.xlu0 %v5315
        %v5317 = vpop.xlane.xlu0 %5316
        %v5318 = vadd.f32 %v5266, %v5268
        %5319 = vadd.xlane.f32.xlu0 %v5318
        %v5320 = vpop.xlane.xlu0 %5319
        %v5321 = vadd.f32 %v5270, %v5272
        %5322 = vadd.xlane.f32.xlu0 %v5321
        %v5323 = vpop.xlane.xlu0 %5322
        %v5324 = vadd.f32 %v5274, %v5276
        %5325 = vadd.xlane.f32.xlu0 %v5324
        %v5326 = vpop.xlane.xlu0 %5325
        %v5327 = vadd.f32 %v5278, %v5280
        %5328 = vadd.xlane.f32.xlu0 %v5327
        %v5329 = vpop.xlane.xlu0 %5328
        %v5330 = vadd.f32 %v5282, %v5284
        %5331 = vadd.xlane.f32.xlu0 %v5330
        %v5332 = vpop.xlane.xlu0 %5331
        %v5333 = vpack.c.bf16 %v5226, %v5222
        %v5334 = vpack.c.bf16 %v5228, %v5224
        %v5335 = vpack.c.bf16 %v5234, %v5230
        %v5336 = vpack.c.bf16 %v5236, %v5232
        %v5337 = vpack.c.bf16 %v5242, %v5238
        %v5338 = vpack.c.bf16 %v5244, %v5240
        %v5339 = vpack.c.bf16 %v5250, %v5246
        %v5340 = vpack.c.bf16 %v5252, %v5248
        %v5341 = vpack.c.bf16 %v5258, %v5254
        %v5342 = vpack.c.bf16 %v5260, %v5256
        %v5343 = vpack.c.bf16 %v5266, %v5262
        %v5344 = vpack.c.bf16 %v5268, %v5264
        %v5345 = vpack.c.bf16 %v5274, %v5270
        %v5346 = vpack.c.bf16 %v5276, %v5272
        %v5347 = vpack.c.bf16 %v5282, %v5278
        %v5348 = vpack.c.bf16 %v5284, %v5280
        %5349 = vrot.lane.b32.xlu0 %v2235, 48
        %v5350 = vpop.permute.xlu0 %5349
        %5351 = vrot.lane.b32.xlu0 %v2236, 48
        %v5352 = vpop.permute.xlu0 %5351
        %5353 = vrot.lane.b32.xlu0 %v2237, 48
        %v5354 = vpop.permute.xlu0 %5353
        %5355 = vrot.lane.b32.xlu0 %v2238, 48
        %v5356 = vpop.permute.xlu0 %5355
        %5357 = vrot.lane.b32.xlu0 %v2239, 48
        %v5358 = vpop.permute.xlu0 %5357
        %5359 = vrot.lane.b32.xlu0 %v2240, 48
        %v5360 = vpop.permute.xlu0 %5359
        %5361 = vrot.lane.b32.xlu0 %v2241, 48
        %v5362 = vpop.permute.xlu0 %5361
        %5363 = vrot.lane.b32.xlu0 %v2242, 48
        %v5364 = vpop.permute.xlu0 %5363
        %5365 = vrot.lane.b32.xlu0 %v2243, 48
        %v5366 = vpop.permute.xlu0 %5365
        %5367 = vrot.lane.b32.xlu0 %v2244, 48
        %v5368 = vpop.permute.xlu0 %5367
        %5369 = vrot.lane.b32.xlu0 %v2245, 48
        %v5370 = vpop.permute.xlu0 %5369
        %5371 = vrot.lane.b32.xlu0 %v2246, 48
        %v5372 = vpop.permute.xlu0 %5371
        %5373 = vrot.lane.b32.xlu0 %v2247, 48
        %v5374 = vpop.permute.xlu0 %5373
        %5375 = vrot.lane.b32.xlu0 %v2248, 48
        %v5376 = vpop.permute.xlu0 %5375
        %5377 = vrot.lane.b32.xlu0 %v2249, 48
        %v5378 = vpop.permute.xlu0 %5377
        %5379 = vrot.lane.b32.xlu0 %v2250, 48
        %v5380 = vpop.permute.xlu0 %5379
        %5397 = vmatprep.subr.bf16.mxu0 0
        %5398 = vmatpush1.bf16.msra.mxu0 %v5364
        %5399 = vmatprep.subr.bf16.mxu0 0
        %5400 = vmatpush1.bf16.msra.mxu0 %v5362
        %5401 = vmatprep.subr.bf16.mxu0 0
        %5402 = vmatpush1.bf16.msra.mxu0 %v5360
        %5403 = vmatprep.subr.bf16.mxu0 0
        %5404 = vmatpush1.bf16.msra.mxu0 %v5358
        %5405 = vmatprep.subr.bf16.mxu0 0
        %5406 = vmatpush1.bf16.msra.mxu0 %v5356
        %5407 = vmatprep.subr.bf16.mxu0 0
        %5408 = vmatpush1.bf16.msra.mxu0 %v5354
        %5409 = vmatprep.subr.bf16.mxu0 0
        %5410 = vmatpush1.bf16.msra.mxu0 %v5352
        %5411 = vmatprep.subr.bf16.mxu0 0
        %5412 = vmatpush1.bf16.msra.mxu0 %v5350
        %5413 = vmatprep.subr.bf16.mxu0 0
        %5414 = vmatpush2.bf16.msra.mxu0 %v5380
        %5415 = vmatprep.subr.bf16.mxu0 0
        %5416 = vmatpush2.bf16.msra.mxu0 %v5378
        %5417 = vmatprep.subr.bf16.mxu0 0
        %5418 = vmatpush2.bf16.msra.mxu0 %v5376
        %5419 = vmatprep.subr.bf16.mxu0 0
        %5420 = vmatpush2.bf16.msra.mxu0 %v5374
        %5421 = vmatprep.subr.bf16.mxu0 0
        %5422 = vmatpush2.bf16.msra.mxu0 %v5372
        %5423 = vmatprep.subr.bf16.mxu0 0
        %5424 = vmatpush2.bf16.msra.mxu0 %v5370
        %5425 = vmatprep.subr.bf16.mxu0 0
        %5426 = vmatpush2.bf16.msra.mxu0 %v5368
        %5427 = vmatprep.subr.bf16.mxu0 0
        %5428 = vmatpush2.bf16.msra.mxu0 %v5366
        %5429 = vmatprep.mubr.bf16.mxu0 %v5334
        %5430 = vmatmul.mubr.bf16.gmra.mxu0 %v5333
        %v5431 = vpop.f32.mrf.mxu0
        %v5432 = vadd.f32 0.0, %v5431
        %v5433 = vpop.f32.mrf.mxu0
        %v5434 = vpop.f32.mrf.mxu0
        %v5435 = vadd.f32 0.0, %v5434
        %v5436 = vpop.f32.mrf.mxu0
        %5437 = vmatprep.mubr.bf16.mxu0 %v5336
        %5438 = vmatmul.mubr.bf16.gmra.mxu0 %v5335
        %v5439 = vpop.f32.mrf.mxu0
        %v5440 = vadd.f32 0.0, %v5439
        %v5441 = vpop.f32.mrf.mxu0
        %v5442 = vpop.f32.mrf.mxu0
        %v5443 = vadd.f32 0.0, %v5442
        %v5444 = vpop.f32.mrf.mxu0
        %5445 = vmatprep.mubr.bf16.mxu0 %v5338
        %5446 = vmatmul.mubr.bf16.gmra.mxu0 %v5337
        %v5447 = vpop.f32.mrf.mxu0
        %v5448 = vadd.f32 0.0, %v5447
        %v5449 = vpop.f32.mrf.mxu0
        %v5450 = vpop.f32.mrf.mxu0
        %v5451 = vadd.f32 0.0, %v5450
        %v5452 = vpop.f32.mrf.mxu0
        %5453 = vmatprep.mubr.bf16.mxu0 %v5340
        %5454 = vmatmul.mubr.bf16.gmra.mxu0 %v5339
        %v5455 = vpop.f32.mrf.mxu0
        %v5456 = vadd.f32 0.0, %v5455
        %v5457 = vpop.f32.mrf.mxu0
        %v5458 = vpop.f32.mrf.mxu0
        %v5459 = vadd.f32 0.0, %v5458
        %v5460 = vpop.f32.mrf.mxu0
        %5461 = vmatprep.mubr.bf16.mxu0 %v5342
        %5462 = vmatmul.mubr.bf16.gmra.mxu0 %v5341
        %v5463 = vpop.f32.mrf.mxu0
        %v5464 = vadd.f32 0.0, %v5463
        %v5465 = vpop.f32.mrf.mxu0
        %v5466 = vpop.f32.mrf.mxu0
        %v5467 = vadd.f32 0.0, %v5466
        %v5468 = vpop.f32.mrf.mxu0
        %5469 = vmatprep.mubr.bf16.mxu0 %v5344
        %5470 = vmatmul.mubr.bf16.gmra.mxu0 %v5343
        %v5471 = vpop.f32.mrf.mxu0
        %v5472 = vadd.f32 0.0, %v5471
        %v5473 = vpop.f32.mrf.mxu0
        %v5474 = vpop.f32.mrf.mxu0
        %v5475 = vadd.f32 0.0, %v5474
        %v5476 = vpop.f32.mrf.mxu0
        %5477 = vmatprep.mubr.bf16.mxu0 %v5346
        %5478 = vmatmul.mubr.bf16.gmra.mxu0 %v5345
        %v5479 = vpop.f32.mrf.mxu0
        %v5480 = vadd.f32 0.0, %v5479
        %v5481 = vpop.f32.mrf.mxu0
        %v5482 = vpop.f32.mrf.mxu0
        %v5483 = vadd.f32 0.0, %v5482
        %v5484 = vpop.f32.mrf.mxu0
        %5485 = vmatprep.mubr.bf16.mxu0 %v5348
        %5486 = vmatmul.mubr.bf16.gmra.mxu0 %v5347
        %v5487 = vpop.f32.mrf.mxu0
        %v5488 = vadd.f32 0.0, %v5487
        %v5489 = vpop.f32.mrf.mxu0
        %v5490 = vpop.f32.mrf.mxu0
        %v5491 = vadd.f32 0.0, %v5490
        %v5492 = vpop.f32.mrf.mxu0
        %5493 = vdwg.mxu0
        %v5494 = vrcp.pop %v5287
        %v5495 = vrcp.pop %v5290
        %v5496 = vrcp.pop %v5293
        %v5497 = vrcp.pop %v5296
        %v5498 = vrcp.pop %v5299
        %v5499 = vrcp.pop %v5302
        %v5500 = vrcp.pop %v5305
        %v5501 = vrcp.pop %v5308
        %v5502 = vrcp.pop %v5311
        %v5503 = vrcp.pop %v5314
        %v5504 = vrcp.pop %v5317
        %v5505 = vrcp.pop %v5320
        %v5506 = vrcp.pop %v5323
        %v5507 = vrcp.pop %v5326
        %v5508 = vrcp.pop %v5329
        %v5509 = vrcp.pop %v5332
        %v5510 = vmul.f32 %v5432, %v5494
        %v5511 = vmul.f32 %v5435, %v5495
        %v5512 = vmul.f32 %v5440, %v5496
        %v5513 = vmul.f32 %v5443, %v5497
        %v5514 = vmul.f32 %v5448, %v5498
        %v5515 = vmul.f32 %v5451, %v5499
        %v5516 = vmul.f32 %v5456, %v5500
        %v5517 = vmul.f32 %v5459, %v5501
        %v5518 = vmul.f32 %v5464, %v5502
        %v5519 = vmul.f32 %v5467, %v5503
        %v5520 = vmul.f32 %v5472, %v5504
        %v5521 = vmul.f32 %v5475, %v5505
        %v5522 = vmul.f32 %v5480, %v5506
        %v5523 = vmul.f32 %v5483, %v5507
        %v5524 = vmul.f32 %v5488, %v5508
        %v5525 = vmul.f32 %v5491, %v5509
        %v5526 = vpack.c.bf16 %v5511, %v5510
        %v5527 = vpack.c.bf16 %v5513, %v5512
        %v5528 = vpack.c.bf16 %v5515, %v5514
        %v5529 = vpack.c.bf16 %v5517, %v5516
        %v5530 = vpack.c.bf16 %v5519, %v5518
        %v5531 = vpack.c.bf16 %v5521, %v5520
        %v5532 = vpack.c.bf16 %v5523, %v5522
        %v5533 = vpack.c.bf16 %v5525, %v5524
        %5534 = vrot.lane.b32.xlu0 %v1689, 32
        %v5535 = vpop.permute.xlu0 %5534
        %5536 = vrot.lane.b32.xlu0 %v1690, 32
        %v5537 = vpop.permute.xlu0 %5536
        %5538 = vrot.lane.b32.xlu0 %v1691, 32
        %v5539 = vpop.permute.xlu0 %5538
        %5540 = vrot.lane.b32.xlu0 %v1692, 32
        %v5541 = vpop.permute.xlu0 %5540
        %5542 = vrot.lane.b32.xlu0 %v1693, 32
        %v5543 = vpop.permute.xlu0 %5542
        %5544 = vrot.lane.b32.xlu0 %v1694, 32
        %v5545 = vpop.permute.xlu0 %5544
        %5546 = vrot.lane.b32.xlu0 %v1695, 32
        %v5547 = vpop.permute.xlu0 %5546
        %5548 = vrot.lane.b32.xlu0 %v1696, 32
        %v5549 = vpop.permute.xlu0 %5548
        %5550 = vrot.lane.b32.xlu0 %v1761, 32
        %v5551 = vpop.permute.xlu0 %5550
        %5552 = vrot.lane.b32.xlu0 %v1762, 32
        %v5553 = vpop.permute.xlu0 %5552
        %5554 = vrot.lane.b32.xlu0 %v1763, 32
        %v5555 = vpop.permute.xlu0 %5554
        %5556 = vrot.lane.b32.xlu0 %v1764, 32
        %v5557 = vpop.permute.xlu0 %5556
        %5558 = vrot.lane.b32.xlu0 %v1765, 32
        %v5559 = vpop.permute.xlu0 %5558
        %5560 = vrot.lane.b32.xlu0 %v1766, 32
        %v5561 = vpop.permute.xlu0 %5560
        %5562 = vrot.lane.b32.xlu0 %v1767, 32
        %v5563 = vpop.permute.xlu0 %5562
        %5564 = vrot.lane.b32.xlu0 %v1768, 32
        %v5565 = vpop.permute.xlu0 %5564
        %5566 = vrot.lane.b32.xlu0 %v1769, 32
        %v5567 = vpop.permute.xlu0 %5566
        %5568 = vrot.lane.b32.xlu0 %v1770, 32
        %v5569 = vpop.permute.xlu0 %5568
        %5570 = vrot.lane.b32.xlu0 %v1771, 32
        %v5571 = vpop.permute.xlu0 %5570
        %5572 = vrot.lane.b32.xlu0 %v1772, 32
        %v5573 = vpop.permute.xlu0 %5572
        %5574 = vrot.lane.b32.xlu0 %v1773, 32
        %v5575 = vpop.permute.xlu0 %5574
        %5576 = vrot.lane.b32.xlu0 %v1774, 32
        %v5577 = vpop.permute.xlu0 %5576
        %5578 = vrot.lane.b32.xlu0 %v1775, 32
        %v5579 = vpop.permute.xlu0 %5578
        %5580 = vrot.lane.b32.xlu0 %v1776, 32
        %v5581 = vpop.permute.xlu0 %5580
        %v5583 = vsel %vm1777, %v5535, 0
        %v5586 = vsel %vm1777, %v5537, 0
        %v5589 = vsel %vm1777, %v5539, 0
        %v5592 = vsel %vm1777, %v5541, 0
        %v5595 = vsel %vm1777, %v5543, 0
        %v5598 = vsel %vm1777, %v5545, 0
        %v5601 = vsel %vm1777, %v5547, 0
        %v5604 = vsel %vm1777, %v5549, 0
        %v5607 = vsel %vm1777, %v5551, 0
        %v5610 = vsel %vm1777, %v5553, 0
        %v5613 = vsel %vm1777, %v5555, 0
        %v5616 = vsel %vm1777, %v5557, 0
        %v5619 = vsel %vm1777, %v5559, 0
        %v5622 = vsel %vm1777, %v5561, 0
        %v5625 = vsel %vm1777, %v5563, 0
        %v5628 = vsel %vm1777, %v5565, 0
        %v5631 = vsel %vm1777, %v5567, 0
        %v5634 = vsel %vm1777, %v5569, 0
        %v5637 = vsel %vm1777, %v5571, 0
        %v5640 = vsel %vm1777, %v5573, 0
        %v5643 = vsel %vm1777, %v5575, 0
        %v5646 = vsel %vm1777, %v5577, 0
        %v5649 = vsel %vm1777, %v5579, 0
        %v5652 = vsel %vm1777, %v5581, 0
        %5654 = vmatprep.subr.bf16.mxu0 0
        %5655 = vmatpush1.bf16.xpose.msra.mxu0 %v5628
        %5656 = vmatprep.subr.bf16.mxu0 0
        %5657 = vmatpush1.bf16.xpose.msra.mxu0 %v5625
        %5658 = vmatprep.subr.bf16.mxu0 0
        %5659 = vmatpush1.bf16.xpose.msra.mxu0 %v5622
        %5660 = vmatprep.subr.bf16.mxu0 0
        %5661 = vmatpush1.bf16.xpose.msra.mxu0 %v5619
        %5662 = vmatprep.subr.bf16.mxu0 0
        %5663 = vmatpush1.bf16.xpose.msra.mxu0 %v5616
        %5664 = vmatprep.subr.bf16.mxu0 0
        %5665 = vmatpush1.bf16.xpose.msra.mxu0 %v5613
        %5666 = vmatprep.subr.bf16.mxu0 0
        %5667 = vmatpush1.bf16.xpose.msra.mxu0 %v5610
        %5668 = vmatprep.subr.bf16.mxu0 0
        %5669 = vmatpush1.bf16.xpose.msra.mxu0 %v5607
        %5670 = vmatprep.subr.bf16.mxu0 0
        %5671 = vmatpush2.bf16.xpose.msra.mxu0 %v5652
        %5672 = vmatprep.subr.bf16.mxu0 0
        %5673 = vmatpush2.bf16.xpose.msra.mxu0 %v5649
        %5674 = vmatprep.subr.bf16.mxu0 0
        %5675 = vmatpush2.bf16.xpose.msra.mxu0 %v5646
        %5676 = vmatprep.subr.bf16.mxu0 0
        %5677 = vmatpush2.bf16.xpose.msra.mxu0 %v5643
        %5678 = vmatprep.subr.bf16.mxu0 0
        %5679 = vmatpush2.bf16.xpose.msra.mxu0 %v5640
        %5680 = vmatprep.subr.bf16.mxu0 0
        %5681 = vmatpush2.bf16.xpose.msra.mxu0 %v5637
        %5682 = vmatprep.subr.bf16.mxu0 0
        %5683 = vmatpush2.bf16.xpose.msra.mxu0 %v5634
        %5684 = vmatprep.subr.bf16.mxu0 0
        %5685 = vmatpush2.bf16.xpose.msra.mxu0 %v5631
        %5686 = vmatprep.mubr.bf16.mxu0 0
        %5687 = vmatmul.mubr.bf16.gmra.mxu0 %v5583
        %v5688 = vpop.f32.mrf.mxu0
        %v5689 = vadd.f32 0.0, %v5688
        %v5690 = vpop.f32.mrf.mxu0
        %v5691 = vadd.f32 0.0, %v5690
        %v5692 = vpop.f32.mrf.mxu0
        %v5693 = vadd.f32 0.0, %v5692
        %v5694 = vpop.f32.mrf.mxu0
        %v5695 = vadd.f32 0.0, %v5694
        %5696 = vmatprep.mubr.bf16.mxu0 0
        %5697 = vmatmul.mubr.bf16.gmra.mxu0 %v5586
        %v5698 = vpop.f32.mrf.mxu0
        %v5699 = vadd.f32 0.0, %v5698
        %v5700 = vpop.f32.mrf.mxu0
        %v5701 = vadd.f32 0.0, %v5700
        %v5702 = vpop.f32.mrf.mxu0
        %v5703 = vadd.f32 0.0, %v5702
        %v5704 = vpop.f32.mrf.mxu0
        %v5705 = vadd.f32 0.0, %v5704
        %5706 = vmatprep.mubr.bf16.mxu0 0
        %5707 = vmatmul.mubr.bf16.gmra.mxu0 %v5589
        %v5708 = vpop.f32.mrf.mxu0
        %v5709 = vadd.f32 0.0, %v5708
        %v5710 = vpop.f32.mrf.mxu0
        %v5711 = vadd.f32 0.0, %v5710
        %v5712 = vpop.f32.mrf.mxu0
        %v5713 = vadd.f32 0.0, %v5712
        %v5714 = vpop.f32.mrf.mxu0
        %v5715 = vadd.f32 0.0, %v5714
        %5716 = vmatprep.mubr.bf16.mxu0 0
        %5717 = vmatmul.mubr.bf16.gmra.mxu0 %v5592
        %v5718 = vpop.f32.mrf.mxu0
        %v5719 = vadd.f32 0.0, %v5718
        %v5720 = vpop.f32.mrf.mxu0
        %v5721 = vadd.f32 0.0, %v5720
        %v5722 = vpop.f32.mrf.mxu0
        %v5723 = vadd.f32 0.0, %v5722
        %v5724 = vpop.f32.mrf.mxu0
        %v5725 = vadd.f32 0.0, %v5724
        %5726 = vmatprep.mubr.bf16.mxu0 0
        %5727 = vmatmul.mubr.bf16.gmra.mxu0 %v5595
        %v5728 = vpop.f32.mrf.mxu0
        %v5729 = vadd.f32 0.0, %v5728
        %v5730 = vpop.f32.mrf.mxu0
        %v5731 = vadd.f32 0.0, %v5730
        %v5732 = vpop.f32.mrf.mxu0
        %v5733 = vadd.f32 0.0, %v5732
        %v5734 = vpop.f32.mrf.mxu0
        %v5735 = vadd.f32 0.0, %v5734
        %5736 = vmatprep.mubr.bf16.mxu0 0
        %5737 = vmatmul.mubr.bf16.gmra.mxu0 %v5598
        %v5738 = vpop.f32.mrf.mxu0
        %v5739 = vadd.f32 0.0, %v5738
        %v5740 = vpop.f32.mrf.mxu0
        %v5741 = vadd.f32 0.0, %v5740
        %v5742 = vpop.f32.mrf.mxu0
        %v5743 = vadd.f32 0.0, %v5742
        %v5744 = vpop.f32.mrf.mxu0
        %v5745 = vadd.f32 0.0, %v5744
        %5746 = vmatprep.mubr.bf16.mxu0 0
        %5747 = vmatmul.mubr.bf16.gmra.mxu0 %v5601
        %v5748 = vpop.f32.mrf.mxu0
        %v5749 = vadd.f32 0.0, %v5748
        %v5750 = vpop.f32.mrf.mxu0
        %v5751 = vadd.f32 0.0, %v5750
        %v5752 = vpop.f32.mrf.mxu0
        %v5753 = vadd.f32 0.0, %v5752
        %v5754 = vpop.f32.mrf.mxu0
        %v5755 = vadd.f32 0.0, %v5754
        %5756 = vmatprep.mubr.bf16.mxu0 0
        %5757 = vmatmul.mubr.bf16.gmra.mxu0 %v5604
        %v5758 = vpop.f32.mrf.mxu0
        %v5759 = vadd.f32 0.0, %v5758
        %v5760 = vpop.f32.mrf.mxu0
        %v5761 = vadd.f32 0.0, %v5760
        %v5762 = vpop.f32.mrf.mxu0
        %v5763 = vadd.f32 0.0, %v5762
        %v5764 = vpop.f32.mrf.mxu0
        %v5765 = vadd.f32 0.0, %v5764
        %5766 = vdwg.mxu0
        %v5767 = vmax.f32 %v5689, %v5691
        %5768 = vmax.xlane.f32.xlu0 %v5767
        %v5769 = vpop.xlane.xlu0 %5768
        %v5770 = vmax.f32 %v5693, %v5695
        %5771 = vmax.xlane.f32.xlu0 %v5770
        %v5772 = vpop.xlane.xlu0 %5771
        %v5773 = vmax.f32 %v5699, %v5701
        %5774 = vmax.xlane.f32.xlu0 %v5773
        %v5775 = vpop.xlane.xlu0 %5774
        %v5776 = vmax.f32 %v5703, %v5705
        %5777 = vmax.xlane.f32.xlu0 %v5776
        %v5778 = vpop.xlane.xlu0 %5777
        %v5779 = vmax.f32 %v5709, %v5711
        %5780 = vmax.xlane.f32.xlu0 %v5779
        %v5781 = vpop.xlane.xlu0 %5780
        %v5782 = vmax.f32 %v5713, %v5715
        %5783 = vmax.xlane.f32.xlu0 %v5782
        %v5784 = vpop.xlane.xlu0 %5783
        %v5785 = vmax.f32 %v5719, %v5721
        %5786 = vmax.xlane.f32.xlu0 %v5785
        %v5787 = vpop.xlane.xlu0 %5786
        %v5788 = vmax.f32 %v5723, %v5725
        %5789 = vmax.xlane.f32.xlu0 %v5788
        %v5790 = vpop.xlane.xlu0 %5789
        %v5791 = vmax.f32 %v5729, %v5731
        %5792 = vmax.xlane.f32.xlu0 %v5791
        %v5793 = vpop.xlane.xlu0 %5792
        %v5794 = vmax.f32 %v5733, %v5735
        %5795 = vmax.xlane.f32.xlu0 %v5794
        %v5796 = vpop.xlane.xlu0 %5795
        %v5797 = vmax.f32 %v5739, %v5741
        %5798 = vmax.xlane.f32.xlu0 %v5797
        %v5799 = vpop.xlane.xlu0 %5798
        %v5800 = vmax.f32 %v5743, %v5745
        %5801 = vmax.xlane.f32.xlu0 %v5800
        %v5802 = vpop.xlane.xlu0 %5801
        %v5803 = vmax.f32 %v5749, %v5751
        %5804 = vmax.xlane.f32.xlu0 %v5803
        %v5805 = vpop.xlane.xlu0 %5804
        %v5806 = vmax.f32 %v5753, %v5755
        %5807 = vmax.xlane.f32.xlu0 %v5806
        %v5808 = vpop.xlane.xlu0 %5807
        %v5809 = vmax.f32 %v5759, %v5761
        %5810 = vmax.xlane.f32.xlu0 %v5809
        %v5811 = vpop.xlane.xlu0 %5810
        %v5812 = vmax.f32 %v5763, %v5765
        %5813 = vmax.xlane.f32.xlu0 %v5812
        %v5814 = vpop.xlane.xlu0 %5813
        %v5815 = vsub.f32 %v5689, %v5769
        %v5816 = vsub.f32 %v5691, %v5769
        %v5817 = vsub.f32 %v5693, %v5772
        %v5818 = vsub.f32 %v5695, %v5772
        %v5819 = vsub.f32 %v5699, %v5775
        %v5820 = vsub.f32 %v5701, %v5775
        %v5821 = vsub.f32 %v5703, %v5778
        %v5822 = vsub.f32 %v5705, %v5778
        %v5823 = vsub.f32 %v5709, %v5781
        %v5824 = vsub.f32 %v5711, %v5781
        %v5825 = vsub.f32 %v5713, %v5784
        %v5826 = vsub.f32 %v5715, %v5784
        %v5827 = vsub.f32 %v5719, %v5787
        %v5828 = vsub.f32 %v5721, %v5787
        %v5829 = vsub.f32 %v5723, %v5790
        %v5830 = vsub.f32 %v5725, %v5790
        %v5831 = vsub.f32 %v5729, %v5793
        %v5832 = vsub.f32 %v5731, %v5793
        %v5833 = vsub.f32 %v5733, %v5796
        %v5834 = vsub.f32 %v5735, %v5796
        %v5835 = vsub.f32 %v5739, %v5799
        %v5836 = vsub.f32 %v5741, %v5799
        %v5837 = vsub.f32 %v5743, %v5802
        %v5838 = vsub.f32 %v5745, %v5802
        %v5839 = vsub.f32 %v5749, %v5805
        %v5840 = vsub.f32 %v5751, %v5805
        %v5841 = vsub.f32 %v5753, %v5808
        %v5842 = vsub.f32 %v5755, %v5808
        %v5843 = vsub.f32 %v5759, %v5811
        %v5844 = vsub.f32 %v5761, %v5811
        %v5845 = vsub.f32 %v5763, %v5814
        %v5846 = vsub.f32 %v5765, %v5814
        %v5847 = vmul.f32 %v5815, 1.442695
        %v5848 = vpow.pop %v5847
        %v5849 = vmul.f32 %v5816, 1.442695
        %v5850 = vpow.pop %v5849
        %v5851 = vmul.f32 %v5817, 1.442695
        %v5852 = vpow.pop %v5851
        %v5853 = vmul.f32 %v5818, 1.442695
        %v5854 = vpow.pop %v5853
        %v5855 = vmul.f32 %v5819, 1.442695
        %v5856 = vpow.pop %v5855
        %v5857 = vmul.f32 %v5820, 1.442695
        %v5858 = vpow.pop %v5857
        %v5859 = vmul.f32 %v5821, 1.442695
        %v5860 = vpow.pop %v5859
        %v5861 = vmul.f32 %v5822, 1.442695
        %v5862 = vpow.pop %v5861
        %v5863 = vmul.f32 %v5823, 1.442695
        %v5864 = vpow.pop %v5863
        %v5865 = vmul.f32 %v5824, 1.442695
        %v5866 = vpow.pop %v5865
        %v5867 = vmul.f32 %v5825, 1.442695
        %v5868 = vpow.pop %v5867
        %v5869 = vmul.f32 %v5826, 1.442695
        %v5870 = vpow.pop %v5869
        %v5871 = vmul.f32 %v5827, 1.442695
        %v5872 = vpow.pop %v5871
        %v5873 = vmul.f32 %v5828, 1.442695
        %v5874 = vpow.pop %v5873
        %v5875 = vmul.f32 %v5829, 1.442695
        %v5876 = vpow.pop %v5875
        %v5877 = vmul.f32 %v5830, 1.442695
        %v5878 = vpow.pop %v5877
        %v5879 = vmul.f32 %v5831, 1.442695
        %v5880 = vpow.pop %v5879
        %v5881 = vmul.f32 %v5832, 1.442695
        %v5882 = vpow.pop %v5881
        %v5883 = vmul.f32 %v5833, 1.442695
        %v5884 = vpow.pop %v5883
        %v5885 = vmul.f32 %v5834, 1.442695
        %v5886 = vpow.pop %v5885
        %v5887 = vmul.f32 %v5835, 1.442695
        %v5888 = vpow.pop %v5887
        %v5889 = vmul.f32 %v5836, 1.442695
        %v5890 = vpow.pop %v5889
        %v5891 = vmul.f32 %v5837, 1.442695
        %v5892 = vpow.pop %v5891
        %v5893 = vmul.f32 %v5838, 1.442695
        %v5894 = vpow.pop %v5893
        %v5895 = vmul.f32 %v5839, 1.442695
        %v5896 = vpow.pop %v5895
        %v5897 = vmul.f32 %v5840, 1.442695
        %v5898 = vpow.pop %v5897
        %v5899 = vmul.f32 %v5841, 1.442695
        %v5900 = vpow.pop %v5899
        %v5901 = vmul.f32 %v5842, 1.442695
        %v5902 = vpow.pop %v5901
        %v5903 = vmul.f32 %v5843, 1.442695
        %v5904 = vpow.pop %v5903
        %v5905 = vmul.f32 %v5844, 1.442695
        %v5906 = vpow.pop %v5905
        %v5907 = vmul.f32 %v5845, 1.442695
        %v5908 = vpow.pop %v5907
        %v5909 = vmul.f32 %v5846, 1.442695
        %v5910 = vpow.pop %v5909
        %v5911 = vadd.f32 %v5848, %v5850
        %5912 = vadd.xlane.f32.xlu0 %v5911
        %v5913 = vpop.xlane.xlu0 %5912
        %v5914 = vadd.f32 %v5852, %v5854
        %5915 = vadd.xlane.f32.xlu0 %v5914
        %v5916 = vpop.xlane.xlu0 %5915
        %v5917 = vadd.f32 %v5856, %v5858
        %5918 = vadd.xlane.f32.xlu0 %v5917
        %v5919 = vpop.xlane.xlu0 %5918
        %v5920 = vadd.f32 %v5860, %v5862
        %5921 = vadd.xlane.f32.xlu0 %v5920
        %v5922 = vpop.xlane.xlu0 %5921
        %v5923 = vadd.f32 %v5864, %v5866
        %5924 = vadd.xlane.f32.xlu0 %v5923
        %v5925 = vpop.xlane.xlu0 %5924
        %v5926 = vadd.f32 %v5868, %v5870
        %5927 = vadd.xlane.f32.xlu0 %v5926
        %v5928 = vpop.xlane.xlu0 %5927
        %v5929 = vadd.f32 %v5872, %v5874
        %5930 = vadd.xlane.f32.xlu0 %v5929
        %v5931 = vpop.xlane.xlu0 %5930
        %v5932 = vadd.f32 %v5876, %v5878
        %5933 = vadd.xlane.f32.xlu0 %v5932
        %v5934 = vpop.xlane.xlu0 %5933
        %v5935 = vadd.f32 %v5880, %v5882
        %5936 = vadd.xlane.f32.xlu0 %v5935
        %v5937 = vpop.xlane.xlu0 %5936
        %v5938 = vadd.f32 %v5884, %v5886
        %5939 = vadd.xlane.f32.xlu0 %v5938
        %v5940 = vpop.xlane.xlu0 %5939
        %v5941 = vadd.f32 %v5888, %v5890
        %5942 = vadd.xlane.f32.xlu0 %v5941
        %v5943 = vpop.xlane.xlu0 %5942
        %v5944 = vadd.f32 %v5892, %v5894
        %5945 = vadd.xlane.f32.xlu0 %v5944
        %v5946 = vpop.xlane.xlu0 %5945
        %v5947 = vadd.f32 %v5896, %v5898
        %5948 = vadd.xlane.f32.xlu0 %v5947
        %v5949 = vpop.xlane.xlu0 %5948
        %v5950 = vadd.f32 %v5900, %v5902
        %5951 = vadd.xlane.f32.xlu0 %v5950
        %v5952 = vpop.xlane.xlu0 %5951
        %v5953 = vadd.f32 %v5904, %v5906
        %5954 = vadd.xlane.f32.xlu0 %v5953
        %v5955 = vpop.xlane.xlu0 %5954
        %v5956 = vadd.f32 %v5908, %v5910
        %5957 = vadd.xlane.f32.xlu0 %v5956
        %v5958 = vpop.xlane.xlu0 %5957
        %v5959 = vpack.c.bf16 %v5852, %v5848
        %v5960 = vpack.c.bf16 %v5854, %v5850
        %v5961 = vpack.c.bf16 %v5860, %v5856
        %v5962 = vpack.c.bf16 %v5862, %v5858
        %v5963 = vpack.c.bf16 %v5868, %v5864
        %v5964 = vpack.c.bf16 %v5870, %v5866
        %v5965 = vpack.c.bf16 %v5876, %v5872
        %v5966 = vpack.c.bf16 %v5878, %v5874
        %v5967 = vpack.c.bf16 %v5884, %v5880
        %v5968 = vpack.c.bf16 %v5886, %v5882
        %v5969 = vpack.c.bf16 %v5892, %v5888
        %v5970 = vpack.c.bf16 %v5894, %v5890
        %v5971 = vpack.c.bf16 %v5900, %v5896
        %v5972 = vpack.c.bf16 %v5902, %v5898
        %v5973 = vpack.c.bf16 %v5908, %v5904
        %v5974 = vpack.c.bf16 %v5910, %v5906
        %5975 = vrot.lane.b32.xlu0 %v2235, 32
        %v5976 = vpop.permute.xlu0 %5975
        %5977 = vrot.lane.b32.xlu0 %v2236, 32
        %v5978 = vpop.permute.xlu0 %5977
        %5979 = vrot.lane.b32.xlu0 %v2237, 32
        %v5980 = vpop.permute.xlu0 %5979
        %5981 = vrot.lane.b32.xlu0 %v2238, 32
        %v5982 = vpop.permute.xlu0 %5981
        %5983 = vrot.lane.b32.xlu0 %v2239, 32
        %v5984 = vpop.permute.xlu0 %5983
        %5985 = vrot.lane.b32.xlu0 %v2240, 32
        %v5986 = vpop.permute.xlu0 %5985
        %5987 = vrot.lane.b32.xlu0 %v2241, 32
        %v5988 = vpop.permute.xlu0 %5987
        %5989 = vrot.lane.b32.xlu0 %v2242, 32
        %v5990 = vpop.permute.xlu0 %5989
        %5991 = vrot.lane.b32.xlu0 %v2243, 32
        %v5992 = vpop.permute.xlu0 %5991
        %5993 = vrot.lane.b32.xlu0 %v2244, 32
        %v5994 = vpop.permute.xlu0 %5993
        %5995 = vrot.lane.b32.xlu0 %v2245, 32
        %v5996 = vpop.permute.xlu0 %5995
        %5997 = vrot.lane.b32.xlu0 %v2246, 32
        %v5998 = vpop.permute.xlu0 %5997
        %5999 = vrot.lane.b32.xlu0 %v2247, 32
        %v6000 = vpop.permute.xlu0 %5999
        %6001 = vrot.lane.b32.xlu0 %v2248, 32
        %v6002 = vpop.permute.xlu0 %6001
        %6003 = vrot.lane.b32.xlu0 %v2249, 32
        %v6004 = vpop.permute.xlu0 %6003
        %6005 = vrot.lane.b32.xlu0 %v2250, 32
        %v6006 = vpop.permute.xlu0 %6005
        %6023 = vmatprep.subr.bf16.mxu0 0
        %6024 = vmatpush1.bf16.msra.mxu0 %v5990
        %6025 = vmatprep.subr.bf16.mxu0 0
        %6026 = vmatpush1.bf16.msra.mxu0 %v5988
        %6027 = vmatprep.subr.bf16.mxu0 0
        %6028 = vmatpush1.bf16.msra.mxu0 %v5986
        %6029 = vmatprep.subr.bf16.mxu0 0
        %6030 = vmatpush1.bf16.msra.mxu0 %v5984
        %6031 = vmatprep.subr.bf16.mxu0 0
        %6032 = vmatpush1.bf16.msra.mxu0 %v5982
        %6033 = vmatprep.subr.bf16.mxu0 0
        %6034 = vmatpush1.bf16.msra.mxu0 %v5980
        %6035 = vmatprep.subr.bf16.mxu0 0
        %6036 = vmatpush1.bf16.msra.mxu0 %v5978
        %6037 = vmatprep.subr.bf16.mxu0 0
        %6038 = vmatpush1.bf16.msra.mxu0 %v5976
        %6039 = vmatprep.subr.bf16.mxu0 0
        %6040 = vmatpush2.bf16.msra.mxu0 %v6006
        %6041 = vmatprep.subr.bf16.mxu0 0
        %6042 = vmatpush2.bf16.msra.mxu0 %v6004
        %6043 = vmatprep.subr.bf16.mxu0 0
        %6044 = vmatpush2.bf16.msra.mxu0 %v6002
        %6045 = vmatprep.subr.bf16.mxu0 0
        %6046 = vmatpush2.bf16.msra.mxu0 %v6000
        %6047 = vmatprep.subr.bf16.mxu0 0
        %6048 = vmatpush2.bf16.msra.mxu0 %v5998
        %6049 = vmatprep.subr.bf16.mxu0 0
        %6050 = vmatpush2.bf16.msra.mxu0 %v5996
        %6051 = vmatprep.subr.bf16.mxu0 0
        %6052 = vmatpush2.bf16.msra.mxu0 %v5994
        %6053 = vmatprep.subr.bf16.mxu0 0
        %6054 = vmatpush2.bf16.msra.mxu0 %v5992
        %6055 = vmatprep.mubr.bf16.mxu0 %v5960
        %6056 = vmatmul.mubr.bf16.gmra.mxu0 %v5959
        %v6057 = vpop.f32.mrf.mxu0
        %v6058 = vadd.f32 0.0, %v6057
        %v6059 = vpop.f32.mrf.mxu0
        %v6060 = vpop.f32.mrf.mxu0
        %v6061 = vadd.f32 0.0, %v6060
        %v6062 = vpop.f32.mrf.mxu0
        %6063 = vmatprep.mubr.bf16.mxu0 %v5962
        %6064 = vmatmul.mubr.bf16.gmra.mxu0 %v5961
        %v6065 = vpop.f32.mrf.mxu0
        %v6066 = vadd.f32 0.0, %v6065
        %v6067 = vpop.f32.mrf.mxu0
        %v6068 = vpop.f32.mrf.mxu0
        %v6069 = vadd.f32 0.0, %v6068
        %v6070 = vpop.f32.mrf.mxu0
        %6071 = vmatprep.mubr.bf16.mxu0 %v5964
        %6072 = vmatmul.mubr.bf16.gmra.mxu0 %v5963
        %v6073 = vpop.f32.mrf.mxu0
        %v6074 = vadd.f32 0.0, %v6073
        %v6075 = vpop.f32.mrf.mxu0
        %v6076 = vpop.f32.mrf.mxu0
        %v6077 = vadd.f32 0.0, %v6076
        %v6078 = vpop.f32.mrf.mxu0
        %6079 = vmatprep.mubr.bf16.mxu0 %v5966
        %6080 = vmatmul.mubr.bf16.gmra.mxu0 %v5965
        %v6081 = vpop.f32.mrf.mxu0
        %v6082 = vadd.f32 0.0, %v6081
        %v6083 = vpop.f32.mrf.mxu0
        %v6084 = vpop.f32.mrf.mxu0
        %v6085 = vadd.f32 0.0, %v6084
        %v6086 = vpop.f32.mrf.mxu0
        %6087 = vmatprep.mubr.bf16.mxu0 %v5968
        %6088 = vmatmul.mubr.bf16.gmra.mxu0 %v5967
        %v6089 = vpop.f32.mrf.mxu0
        %v6090 = vadd.f32 0.0, %v6089
        %v6091 = vpop.f32.mrf.mxu0
        %v6092 = vpop.f32.mrf.mxu0
        %v6093 = vadd.f32 0.0, %v6092
        %v6094 = vpop.f32.mrf.mxu0
        %6095 = vmatprep.mubr.bf16.mxu0 %v5970
        %6096 = vmatmul.mubr.bf16.gmra.mxu0 %v5969
        %v6097 = vpop.f32.mrf.mxu0
        %v6098 = vadd.f32 0.0, %v6097
        %v6099 = vpop.f32.mrf.mxu0
        %v6100 = vpop.f32.mrf.mxu0
        %v6101 = vadd.f32 0.0, %v6100
        %v6102 = vpop.f32.mrf.mxu0
        %6103 = vmatprep.mubr.bf16.mxu0 %v5972
        %6104 = vmatmul.mubr.bf16.gmra.mxu0 %v5971
        %v6105 = vpop.f32.mrf.mxu0
        %v6106 = vadd.f32 0.0, %v6105
        %v6107 = vpop.f32.mrf.mxu0
        %v6108 = vpop.f32.mrf.mxu0
        %v6109 = vadd.f32 0.0, %v6108
        %v6110 = vpop.f32.mrf.mxu0
        %6111 = vmatprep.mubr.bf16.mxu0 %v5974
        %6112 = vmatmul.mubr.bf16.gmra.mxu0 %v5973
        %v6113 = vpop.f32.mrf.mxu0
        %v6114 = vadd.f32 0.0, %v6113
        %v6115 = vpop.f32.mrf.mxu0
        %v6116 = vpop.f32.mrf.mxu0
        %v6117 = vadd.f32 0.0, %v6116
        %v6118 = vpop.f32.mrf.mxu0
        %6119 = vdwg.mxu0
        %v6120 = vrcp.pop %v5913
        %v6121 = vrcp.pop %v5916
        %v6122 = vrcp.pop %v5919
        %v6123 = vrcp.pop %v5922
        %v6124 = vrcp.pop %v5925
        %v6125 = vrcp.pop %v5928
        %v6126 = vrcp.pop %v5931
        %v6127 = vrcp.pop %v5934
        %v6128 = vrcp.pop %v5937
        %v6129 = vrcp.pop %v5940
        %v6130 = vrcp.pop %v5943
        %v6131 = vrcp.pop %v5946
        %v6132 = vrcp.pop %v5949
        %v6133 = vrcp.pop %v5952
        %v6134 = vrcp.pop %v5955
        %v6135 = vrcp.pop %v5958
        %v6136 = vmul.f32 %v6058, %v6120
        %v6137 = vmul.f32 %v6061, %v6121
        %v6138 = vmul.f32 %v6066, %v6122
        %v6139 = vmul.f32 %v6069, %v6123
        %v6140 = vmul.f32 %v6074, %v6124
        %v6141 = vmul.f32 %v6077, %v6125
        %v6142 = vmul.f32 %v6082, %v6126
        %v6143 = vmul.f32 %v6085, %v6127
        %v6144 = vmul.f32 %v6090, %v6128
        %v6145 = vmul.f32 %v6093, %v6129
        %v6146 = vmul.f32 %v6098, %v6130
        %v6147 = vmul.f32 %v6101, %v6131
        %v6148 = vmul.f32 %v6106, %v6132
        %v6149 = vmul.f32 %v6109, %v6133
        %v6150 = vmul.f32 %v6114, %v6134
        %v6151 = vmul.f32 %v6117, %v6135
        %v6152 = vpack.c.bf16 %v6137, %v6136
        %v6153 = vpack.c.bf16 %v6139, %v6138
        %v6154 = vpack.c.bf16 %v6141, %v6140
        %v6155 = vpack.c.bf16 %v6143, %v6142
        %v6156 = vpack.c.bf16 %v6145, %v6144
        %v6157 = vpack.c.bf16 %v6147, %v6146
        %v6158 = vpack.c.bf16 %v6149, %v6148
        %v6159 = vpack.c.bf16 %v6151, %v6150
        %6160 = vrot.lane.b32.xlu0 %v1689, 16
        %v6161 = vpop.permute.xlu0 %6160
        %6162 = vrot.lane.b32.xlu0 %v1690, 16
        %v6163 = vpop.permute.xlu0 %6162
        %6164 = vrot.lane.b32.xlu0 %v1691, 16
        %v6165 = vpop.permute.xlu0 %6164
        %6166 = vrot.lane.b32.xlu0 %v1692, 16
        %v6167 = vpop.permute.xlu0 %6166
        %6168 = vrot.lane.b32.xlu0 %v1693, 16
        %v6169 = vpop.permute.xlu0 %6168
        %6170 = vrot.lane.b32.xlu0 %v1694, 16
        %v6171 = vpop.permute.xlu0 %6170
        %6172 = vrot.lane.b32.xlu0 %v1695, 16
        %v6173 = vpop.permute.xlu0 %6172
        %6174 = vrot.lane.b32.xlu0 %v1696, 16
        %v6175 = vpop.permute.xlu0 %6174
        %6176 = vrot.lane.b32.xlu0 %v1761, 16
        %v6177 = vpop.permute.xlu0 %6176
        %6178 = vrot.lane.b32.xlu0 %v1762, 16
        %v6179 = vpop.permute.xlu0 %6178
        %6180 = vrot.lane.b32.xlu0 %v1763, 16
        %v6181 = vpop.permute.xlu0 %6180
        %6182 = vrot.lane.b32.xlu0 %v1764, 16
        %v6183 = vpop.permute.xlu0 %6182
        %6184 = vrot.lane.b32.xlu0 %v1765, 16
        %v6185 = vpop.permute.xlu0 %6184
        %6186 = vrot.lane.b32.xlu0 %v1766, 16
        %v6187 = vpop.permute.xlu0 %6186
        %6188 = vrot.lane.b32.xlu0 %v1767, 16
        %v6189 = vpop.permute.xlu0 %6188
        %6190 = vrot.lane.b32.xlu0 %v1768, 16
        %v6191 = vpop.permute.xlu0 %6190
        %6192 = vrot.lane.b32.xlu0 %v1769, 16
        %v6193 = vpop.permute.xlu0 %6192
        %6194 = vrot.lane.b32.xlu0 %v1770, 16
        %v6195 = vpop.permute.xlu0 %6194
        %6196 = vrot.lane.b32.xlu0 %v1771, 16
        %v6197 = vpop.permute.xlu0 %6196
        %6198 = vrot.lane.b32.xlu0 %v1772, 16
        %v6199 = vpop.permute.xlu0 %6198
        %6200 = vrot.lane.b32.xlu0 %v1773, 16
        %v6201 = vpop.permute.xlu0 %6200
        %6202 = vrot.lane.b32.xlu0 %v1774, 16
        %v6203 = vpop.permute.xlu0 %6202
        %6204 = vrot.lane.b32.xlu0 %v1775, 16
        %v6205 = vpop.permute.xlu0 %6204
        %6206 = vrot.lane.b32.xlu0 %v1776, 16
        %v6207 = vpop.permute.xlu0 %6206
        %v6209 = vsel %vm1777, %v6161, 0
        %v6212 = vsel %vm1777, %v6163, 0
        %v6215 = vsel %vm1777, %v6165, 0
        %v6218 = vsel %vm1777, %v6167, 0
        %v6221 = vsel %vm1777, %v6169, 0
        %v6224 = vsel %vm1777, %v6171, 0
        %v6227 = vsel %vm1777, %v6173, 0
        %v6230 = vsel %vm1777, %v6175, 0
        %v6233 = vsel %vm1777, %v6177, 0
        %v6236 = vsel %vm1777, %v6179, 0
        %v6239 = vsel %vm1777, %v6181, 0
        %v6242 = vsel %vm1777, %v6183, 0
        %v6245 = vsel %vm1777, %v6185, 0
        %v6248 = vsel %vm1777, %v6187, 0
        %v6251 = vsel %vm1777, %v6189, 0
        %v6254 = vsel %vm1777, %v6191, 0
        %v6257 = vsel %vm1777, %v6193, 0
        %v6260 = vsel %vm1777, %v6195, 0
        %v6263 = vsel %vm1777, %v6197, 0
        %v6266 = vsel %vm1777, %v6199, 0
        %v6269 = vsel %vm1777, %v6201, 0
        %v6272 = vsel %vm1777, %v6203, 0
        %v6275 = vsel %vm1777, %v6205, 0
        %v6278 = vsel %vm1777, %v6207, 0
        %6280 = vmatprep.subr.bf16.mxu0 0
        %6281 = vmatpush1.bf16.xpose.msra.mxu0 %v6254
        %6282 = vmatprep.subr.bf16.mxu0 0
        %6283 = vmatpush1.bf16.xpose.msra.mxu0 %v6251
        %6284 = vmatprep.subr.bf16.mxu0 0
        %6285 = vmatpush1.bf16.xpose.msra.mxu0 %v6248
        %6286 = vmatprep.subr.bf16.mxu0 0
        %6287 = vmatpush1.bf16.xpose.msra.mxu0 %v6245
        %6288 = vmatprep.subr.bf16.mxu0 0
        %6289 = vmatpush1.bf16.xpose.msra.mxu0 %v6242
        %6290 = vmatprep.subr.bf16.mxu0 0
        %6291 = vmatpush1.bf16.xpose.msra.mxu0 %v6239
        %6292 = vmatprep.subr.bf16.mxu0 0
        %6293 = vmatpush1.bf16.xpose.msra.mxu0 %v6236
        %6294 = vmatprep.subr.bf16.mxu0 0
        %6295 = vmatpush1.bf16.xpose.msra.mxu0 %v6233
        %6296 = vmatprep.subr.bf16.mxu0 0
        %6297 = vmatpush2.bf16.xpose.msra.mxu0 %v6278
        %6298 = vmatprep.subr.bf16.mxu0 0
        %6299 = vmatpush2.bf16.xpose.msra.mxu0 %v6275
        %6300 = vmatprep.subr.bf16.mxu0 0
        %6301 = vmatpush2.bf16.xpose.msra.mxu0 %v6272
        %6302 = vmatprep.subr.bf16.mxu0 0
        %6303 = vmatpush2.bf16.xpose.msra.mxu0 %v6269
        %6304 = vmatprep.subr.bf16.mxu0 0
        %6305 = vmatpush2.bf16.xpose.msra.mxu0 %v6266
        %6306 = vmatprep.subr.bf16.mxu0 0
        %6307 = vmatpush2.bf16.xpose.msra.mxu0 %v6263
        %6308 = vmatprep.subr.bf16.mxu0 0
        %6309 = vmatpush2.bf16.xpose.msra.mxu0 %v6260
        %6310 = vmatprep.subr.bf16.mxu0 0
        %6311 = vmatpush2.bf16.xpose.msra.mxu0 %v6257
        %6312 = vmatprep.mubr.bf16.mxu0 0
        %6313 = vmatmul.mubr.bf16.gmra.mxu0 %v6209
        %v6314 = vpop.f32.mrf.mxu0
        %v6315 = vadd.f32 0.0, %v6314
        %v6316 = vpop.f32.mrf.mxu0
        %v6317 = vadd.f32 0.0, %v6316
        %v6318 = vpop.f32.mrf.mxu0
        %v6319 = vadd.f32 0.0, %v6318
        %v6320 = vpop.f32.mrf.mxu0
        %v6321 = vadd.f32 0.0, %v6320
        %6322 = vmatprep.mubr.bf16.mxu0 0
        %6323 = vmatmul.mubr.bf16.gmra.mxu0 %v6212
        %v6324 = vpop.f32.mrf.mxu0
        %v6325 = vadd.f32 0.0, %v6324
        %v6326 = vpop.f32.mrf.mxu0
        %v6327 = vadd.f32 0.0, %v6326
        %v6328 = vpop.f32.mrf.mxu0
        %v6329 = vadd.f32 0.0, %v6328
        %v6330 = vpop.f32.mrf.mxu0
        %v6331 = vadd.f32 0.0, %v6330
        %6332 = vmatprep.mubr.bf16.mxu0 0
        %6333 = vmatmul.mubr.bf16.gmra.mxu0 %v6215
        %v6334 = vpop.f32.mrf.mxu0
        %v6335 = vadd.f32 0.0, %v6334
        %v6336 = vpop.f32.mrf.mxu0
        %v6337 = vadd.f32 0.0, %v6336
        %v6338 = vpop.f32.mrf.mxu0
        %v6339 = vadd.f32 0.0, %v6338
        %v6340 = vpop.f32.mrf.mxu0
        %v6341 = vadd.f32 0.0, %v6340
        %6342 = vmatprep.mubr.bf16.mxu0 0
        %6343 = vmatmul.mubr.bf16.gmra.mxu0 %v6218
        %v6344 = vpop.f32.mrf.mxu0
        %v6345 = vadd.f32 0.0, %v6344
        %v6346 = vpop.f32.mrf.mxu0
        %v6347 = vadd.f32 0.0, %v6346
        %v6348 = vpop.f32.mrf.mxu0
        %v6349 = vadd.f32 0.0, %v6348
        %v6350 = vpop.f32.mrf.mxu0
        %v6351 = vadd.f32 0.0, %v6350
        %6352 = vmatprep.mubr.bf16.mxu0 0
        %6353 = vmatmul.mubr.bf16.gmra.mxu0 %v6221
        %v6354 = vpop.f32.mrf.mxu0
        %v6355 = vadd.f32 0.0, %v6354
        %v6356 = vpop.f32.mrf.mxu0
        %v6357 = vadd.f32 0.0, %v6356
        %v6358 = vpop.f32.mrf.mxu0
        %v6359 = vadd.f32 0.0, %v6358
        %v6360 = vpop.f32.mrf.mxu0
        %v6361 = vadd.f32 0.0, %v6360
        %6362 = vmatprep.mubr.bf16.mxu0 0
        %6363 = vmatmul.mubr.bf16.gmra.mxu0 %v6224
        %v6364 = vpop.f32.mrf.mxu0
        %v6365 = vadd.f32 0.0, %v6364
        %v6366 = vpop.f32.mrf.mxu0
        %v6367 = vadd.f32 0.0, %v6366
        %v6368 = vpop.f32.mrf.mxu0
        %v6369 = vadd.f32 0.0, %v6368
        %v6370 = vpop.f32.mrf.mxu0
        %v6371 = vadd.f32 0.0, %v6370
        %6372 = vmatprep.mubr.bf16.mxu0 0
        %6373 = vmatmul.mubr.bf16.gmra.mxu0 %v6227
        %v6374 = vpop.f32.mrf.mxu0
        %v6375 = vadd.f32 0.0, %v6374
        %v6376 = vpop.f32.mrf.mxu0
        %v6377 = vadd.f32 0.0, %v6376
        %v6378 = vpop.f32.mrf.mxu0
        %v6379 = vadd.f32 0.0, %v6378
        %v6380 = vpop.f32.mrf.mxu0
        %v6381 = vadd.f32 0.0, %v6380
        %6382 = vmatprep.mubr.bf16.mxu0 0
        %6383 = vmatmul.mubr.bf16.gmra.mxu0 %v6230
        %v6384 = vpop.f32.mrf.mxu0
        %v6385 = vadd.f32 0.0, %v6384
        %v6386 = vpop.f32.mrf.mxu0
        %v6387 = vadd.f32 0.0, %v6386
        %v6388 = vpop.f32.mrf.mxu0
        %v6389 = vadd.f32 0.0, %v6388
        %v6390 = vpop.f32.mrf.mxu0
        %v6391 = vadd.f32 0.0, %v6390
        %6392 = vdwg.mxu0
        %v6393 = vmax.f32 %v6315, %v6317
        %6394 = vmax.xlane.f32.xlu0 %v6393
        %v6395 = vpop.xlane.xlu0 %6394
        %v6396 = vmax.f32 %v6319, %v6321
        %6397 = vmax.xlane.f32.xlu0 %v6396
        %v6398 = vpop.xlane.xlu0 %6397
        %v6399 = vmax.f32 %v6325, %v6327
        %6400 = vmax.xlane.f32.xlu0 %v6399
        %v6401 = vpop.xlane.xlu0 %6400
        %v6402 = vmax.f32 %v6329, %v6331
        %6403 = vmax.xlane.f32.xlu0 %v6402
        %v6404 = vpop.xlane.xlu0 %6403
        %v6405 = vmax.f32 %v6335, %v6337
        %6406 = vmax.xlane.f32.xlu0 %v6405
        %v6407 = vpop.xlane.xlu0 %6406
        %v6408 = vmax.f32 %v6339, %v6341
        %6409 = vmax.xlane.f32.xlu0 %v6408
        %v6410 = vpop.xlane.xlu0 %6409
        %v6411 = vmax.f32 %v6345, %v6347
        %6412 = vmax.xlane.f32.xlu0 %v6411
        %v6413 = vpop.xlane.xlu0 %6412
        %v6414 = vmax.f32 %v6349, %v6351
        %6415 = vmax.xlane.f32.xlu0 %v6414
        %v6416 = vpop.xlane.xlu0 %6415
        %v6417 = vmax.f32 %v6355, %v6357
        %6418 = vmax.xlane.f32.xlu0 %v6417
        %v6419 = vpop.xlane.xlu0 %6418
        %v6420 = vmax.f32 %v6359, %v6361
        %6421 = vmax.xlane.f32.xlu0 %v6420
        %v6422 = vpop.xlane.xlu0 %6421
        %v6423 = vmax.f32 %v6365, %v6367
        %6424 = vmax.xlane.f32.xlu0 %v6423
        %v6425 = vpop.xlane.xlu0 %6424
        %v6426 = vmax.f32 %v6369, %v6371
        %6427 = vmax.xlane.f32.xlu0 %v6426
        %v6428 = vpop.xlane.xlu0 %6427
        %v6429 = vmax.f32 %v6375, %v6377
        %6430 = vmax.xlane.f32.xlu0 %v6429
        %v6431 = vpop.xlane.xlu0 %6430
        %v6432 = vmax.f32 %v6379, %v6381
        %6433 = vmax.xlane.f32.xlu0 %v6432
        %v6434 = vpop.xlane.xlu0 %6433
        %v6435 = vmax.f32 %v6385, %v6387
        %6436 = vmax.xlane.f32.xlu0 %v6435
        %v6437 = vpop.xlane.xlu0 %6436
        %v6438 = vmax.f32 %v6389, %v6391
        %6439 = vmax.xlane.f32.xlu0 %v6438
        %v6440 = vpop.xlane.xlu0 %6439
        %v6441 = vsub.f32 %v6315, %v6395
        %v6442 = vsub.f32 %v6317, %v6395
        %v6443 = vsub.f32 %v6319, %v6398
        %v6444 = vsub.f32 %v6321, %v6398
        %v6445 = vsub.f32 %v6325, %v6401
        %v6446 = vsub.f32 %v6327, %v6401
        %v6447 = vsub.f32 %v6329, %v6404
        %v6448 = vsub.f32 %v6331, %v6404
        %v6449 = vsub.f32 %v6335, %v6407
        %v6450 = vsub.f32 %v6337, %v6407
        %v6451 = vsub.f32 %v6339, %v6410
        %v6452 = vsub.f32 %v6341, %v6410
        %v6453 = vsub.f32 %v6345, %v6413
        %v6454 = vsub.f32 %v6347, %v6413
        %v6455 = vsub.f32 %v6349, %v6416
        %v6456 = vsub.f32 %v6351, %v6416
        %v6457 = vsub.f32 %v6355, %v6419
        %v6458 = vsub.f32 %v6357, %v6419
        %v6459 = vsub.f32 %v6359, %v6422
        %v6460 = vsub.f32 %v6361, %v6422
        %v6461 = vsub.f32 %v6365, %v6425
        %v6462 = vsub.f32 %v6367, %v6425
        %v6463 = vsub.f32 %v6369, %v6428
        %v6464 = vsub.f32 %v6371, %v6428
        %v6465 = vsub.f32 %v6375, %v6431
        %v6466 = vsub.f32 %v6377, %v6431
        %v6467 = vsub.f32 %v6379, %v6434
        %v6468 = vsub.f32 %v6381, %v6434
        %v6469 = vsub.f32 %v6385, %v6437
        %v6470 = vsub.f32 %v6387, %v6437
        %v6471 = vsub.f32 %v6389, %v6440
        %v6472 = vsub.f32 %v6391, %v6440
        %v6473 = vmul.f32 %v6441, 1.442695
        %v6474 = vpow.pop %v6473
        %v6475 = vmul.f32 %v6442, 1.442695
        %v6476 = vpow.pop %v6475
        %v6477 = vmul.f32 %v6443, 1.442695
        %v6478 = vpow.pop %v6477
        %v6479 = vmul.f32 %v6444, 1.442695
        %v6480 = vpow.pop %v6479
        %v6481 = vmul.f32 %v6445, 1.442695
        %v6482 = vpow.pop %v6481
        %v6483 = vmul.f32 %v6446, 1.442695
        %v6484 = vpow.pop %v6483
        %v6485 = vmul.f32 %v6447, 1.442695
        %v6486 = vpow.pop %v6485
        %v6487 = vmul.f32 %v6448, 1.442695
        %v6488 = vpow.pop %v6487
        %v6489 = vmul.f32 %v6449, 1.442695
        %v6490 = vpow.pop %v6489
        %v6491 = vmul.f32 %v6450, 1.442695
        %v6492 = vpow.pop %v6491
        %v6493 = vmul.f32 %v6451, 1.442695
        %v6494 = vpow.pop %v6493
        %v6495 = vmul.f32 %v6452, 1.442695
        %v6496 = vpow.pop %v6495
        %v6497 = vmul.f32 %v6453, 1.442695
        %v6498 = vpow.pop %v6497
        %v6499 = vmul.f32 %v6454, 1.442695
        %v6500 = vpow.pop %v6499
        %v6501 = vmul.f32 %v6455, 1.442695
        %v6502 = vpow.pop %v6501
        %v6503 = vmul.f32 %v6456, 1.442695
        %v6504 = vpow.pop %v6503
        %v6505 = vmul.f32 %v6457, 1.442695
        %v6506 = vpow.pop %v6505
        %v6507 = vmul.f32 %v6458, 1.442695
        %v6508 = vpow.pop %v6507
        %v6509 = vmul.f32 %v6459, 1.442695
        %v6510 = vpow.pop %v6509
        %v6511 = vmul.f32 %v6460, 1.442695
        %v6512 = vpow.pop %v6511
        %v6513 = vmul.f32 %v6461, 1.442695
        %v6514 = vpow.pop %v6513
        %v6515 = vmul.f32 %v6462, 1.442695
        %v6516 = vpow.pop %v6515
        %v6517 = vmul.f32 %v6463, 1.442695
        %v6518 = vpow.pop %v6517
        %v6519 = vmul.f32 %v6464, 1.442695
        %v6520 = vpow.pop %v6519
        %v6521 = vmul.f32 %v6465, 1.442695
        %v6522 = vpow.pop %v6521
        %v6523 = vmul.f32 %v6466, 1.442695
        %v6524 = vpow.pop %v6523
        %v6525 = vmul.f32 %v6467, 1.442695
        %v6526 = vpow.pop %v6525
        %v6527 = vmul.f32 %v6468, 1.442695
        %v6528 = vpow.pop %v6527
        %v6529 = vmul.f32 %v6469, 1.442695
        %v6530 = vpow.pop %v6529
        %v6531 = vmul.f32 %v6470, 1.442695
        %v6532 = vpow.pop %v6531
        %v6533 = vmul.f32 %v6471, 1.442695
        %v6534 = vpow.pop %v6533
        %v6535 = vmul.f32 %v6472, 1.442695
        %v6536 = vpow.pop %v6535
        %v6537 = vadd.f32 %v6474, %v6476
        %6538 = vadd.xlane.f32.xlu0 %v6537
        %v6539 = vpop.xlane.xlu0 %6538
        %v6540 = vadd.f32 %v6478, %v6480
        %6541 = vadd.xlane.f32.xlu0 %v6540
        %v6542 = vpop.xlane.xlu0 %6541
        %v6543 = vadd.f32 %v6482, %v6484
        %6544 = vadd.xlane.f32.xlu0 %v6543
        %v6545 = vpop.xlane.xlu0 %6544
        %v6546 = vadd.f32 %v6486, %v6488
        %6547 = vadd.xlane.f32.xlu0 %v6546
        %v6548 = vpop.xlane.xlu0 %6547
        %v6549 = vadd.f32 %v6490, %v6492
        %6550 = vadd.xlane.f32.xlu0 %v6549
        %v6551 = vpop.xlane.xlu0 %6550
        %v6552 = vadd.f32 %v6494, %v6496
        %6553 = vadd.xlane.f32.xlu0 %v6552
        %v6554 = vpop.xlane.xlu0 %6553
        %v6555 = vadd.f32 %v6498, %v6500
        %6556 = vadd.xlane.f32.xlu0 %v6555
        %v6557 = vpop.xlane.xlu0 %6556
        %v6558 = vadd.f32 %v6502, %v6504
        %6559 = vadd.xlane.f32.xlu0 %v6558
        %v6560 = vpop.xlane.xlu0 %6559
        %v6561 = vadd.f32 %v6506, %v6508
        %6562 = vadd.xlane.f32.xlu0 %v6561
        %v6563 = vpop.xlane.xlu0 %6562
        %v6564 = vadd.f32 %v6510, %v6512
        %6565 = vadd.xlane.f32.xlu0 %v6564
        %v6566 = vpop.xlane.xlu0 %6565
        %v6567 = vadd.f32 %v6514, %v6516
        %6568 = vadd.xlane.f32.xlu0 %v6567
        %v6569 = vpop.xlane.xlu0 %6568
        %v6570 = vadd.f32 %v6518, %v6520
        %6571 = vadd.xlane.f32.xlu0 %v6570
        %v6572 = vpop.xlane.xlu0 %6571
        %v6573 = vadd.f32 %v6522, %v6524
        %6574 = vadd.xlane.f32.xlu0 %v6573
        %v6575 = vpop.xlane.xlu0 %6574
        %v6576 = vadd.f32 %v6526, %v6528
        %6577 = vadd.xlane.f32.xlu0 %v6576
        %v6578 = vpop.xlane.xlu0 %6577
        %v6579 = vadd.f32 %v6530, %v6532
        %6580 = vadd.xlane.f32.xlu0 %v6579
        %v6581 = vpop.xlane.xlu0 %6580
        %v6582 = vadd.f32 %v6534, %v6536
        %6583 = vadd.xlane.f32.xlu0 %v6582
        %v6584 = vpop.xlane.xlu0 %6583
        %v6585 = vpack.c.bf16 %v6478, %v6474
        %v6586 = vpack.c.bf16 %v6480, %v6476
        %v6587 = vpack.c.bf16 %v6486, %v6482
        %v6588 = vpack.c.bf16 %v6488, %v6484
        %v6589 = vpack.c.bf16 %v6494, %v6490
        %v6590 = vpack.c.bf16 %v6496, %v6492
        %v6591 = vpack.c.bf16 %v6502, %v6498
        %v6592 = vpack.c.bf16 %v6504, %v6500
        %v6593 = vpack.c.bf16 %v6510, %v6506
        %v6594 = vpack.c.bf16 %v6512, %v6508
        %v6595 = vpack.c.bf16 %v6518, %v6514
        %v6596 = vpack.c.bf16 %v6520, %v6516
        %v6597 = vpack.c.bf16 %v6526, %v6522
        %v6598 = vpack.c.bf16 %v6528, %v6524
        %v6599 = vpack.c.bf16 %v6534, %v6530
        %v6600 = vpack.c.bf16 %v6536, %v6532
        %6601 = vrot.lane.b32.xlu0 %v2235, 16
        %v6602 = vpop.permute.xlu0 %6601
        %6603 = vrot.lane.b32.xlu0 %v2236, 16
        %v6604 = vpop.permute.xlu0 %6603
        %6605 = vrot.lane.b32.xlu0 %v2237, 16
        %v6606 = vpop.permute.xlu0 %6605
        %6607 = vrot.lane.b32.xlu0 %v2238, 16
        %v6608 = vpop.permute.xlu0 %6607
        %6609 = vrot.lane.b32.xlu0 %v2239, 16
        %v6610 = vpop.permute.xlu0 %6609
        %6611 = vrot.lane.b32.xlu0 %v2240, 16
        %v6612 = vpop.permute.xlu0 %6611
        %6613 = vrot.lane.b32.xlu0 %v2241, 16
        %v6614 = vpop.permute.xlu0 %6613
        %6615 = vrot.lane.b32.xlu0 %v2242, 16
        %v6616 = vpop.permute.xlu0 %6615
        %6617 = vrot.lane.b32.xlu0 %v2243, 16
        %v6618 = vpop.permute.xlu0 %6617
        %6619 = vrot.lane.b32.xlu0 %v2244, 16
        %v6620 = vpop.permute.xlu0 %6619
        %6621 = vrot.lane.b32.xlu0 %v2245, 16
        %v6622 = vpop.permute.xlu0 %6621
        %6623 = vrot.lane.b32.xlu0 %v2246, 16
        %v6624 = vpop.permute.xlu0 %6623
        %6625 = vrot.lane.b32.xlu0 %v2247, 16
        %v6626 = vpop.permute.xlu0 %6625
        %6627 = vrot.lane.b32.xlu0 %v2248, 16
        %v6628 = vpop.permute.xlu0 %6627
        %6629 = vrot.lane.b32.xlu0 %v2249, 16
        %v6630 = vpop.permute.xlu0 %6629
        %6631 = vrot.lane.b32.xlu0 %v2250, 16
        %v6632 = vpop.permute.xlu0 %6631
        %6649 = vmatprep.subr.bf16.mxu0 0
        %6650 = vmatpush1.bf16.msra.mxu0 %v6616
        %6651 = vmatprep.subr.bf16.mxu0 0
        %6652 = vmatpush1.bf16.msra.mxu0 %v6614
        %6653 = vmatprep.subr.bf16.mxu0 0
        %6654 = vmatpush1.bf16.msra.mxu0 %v6612
        %6655 = vmatprep.subr.bf16.mxu0 0
        %6656 = vmatpush1.bf16.msra.mxu0 %v6610
        %6657 = vmatprep.subr.bf16.mxu0 0
        %6658 = vmatpush1.bf16.msra.mxu0 %v6608
        %6659 = vmatprep.subr.bf16.mxu0 0
        %6660 = vmatpush1.bf16.msra.mxu0 %v6606
        %6661 = vmatprep.subr.bf16.mxu0 0
        %6662 = vmatpush1.bf16.msra.mxu0 %v6604
        %6663 = vmatprep.subr.bf16.mxu0 0
        %6664 = vmatpush1.bf16.msra.mxu0 %v6602
        %6665 = vmatprep.subr.bf16.mxu0 0
        %6666 = vmatpush2.bf16.msra.mxu0 %v6632
        %6667 = vmatprep.subr.bf16.mxu0 0
        %6668 = vmatpush2.bf16.msra.mxu0 %v6630
        %6669 = vmatprep.subr.bf16.mxu0 0
        %6670 = vmatpush2.bf16.msra.mxu0 %v6628
        %6671 = vmatprep.subr.bf16.mxu0 0
        %6672 = vmatpush2.bf16.msra.mxu0 %v6626
        %6673 = vmatprep.subr.bf16.mxu0 0
        %6674 = vmatpush2.bf16.msra.mxu0 %v6624
        %6675 = vmatprep.subr.bf16.mxu0 0
        %6676 = vmatpush2.bf16.msra.mxu0 %v6622
        %6677 = vmatprep.subr.bf16.mxu0 0
        %6678 = vmatpush2.bf16.msra.mxu0 %v6620
        %6679 = vmatprep.subr.bf16.mxu0 0
        %6680 = vmatpush2.bf16.msra.mxu0 %v6618
        %6681 = vmatprep.mubr.bf16.mxu0 %v6586
        %6682 = vmatmul.mubr.bf16.gmra.mxu0 %v6585
        %v6683 = vpop.f32.mrf.mxu0
        %v6684 = vadd.f32 0.0, %v6683
        %v6685 = vpop.f32.mrf.mxu0
        %v6686 = vpop.f32.mrf.mxu0
        %v6687 = vadd.f32 0.0, %v6686
        %v6688 = vpop.f32.mrf.mxu0
        %6689 = vmatprep.mubr.bf16.mxu0 %v6588
        %6690 = vmatmul.mubr.bf16.gmra.mxu0 %v6587
        %v6691 = vpop.f32.mrf.mxu0
        %v6692 = vadd.f32 0.0, %v6691
        %v6693 = vpop.f32.mrf.mxu0
        %v6694 = vpop.f32.mrf.mxu0
        %v6695 = vadd.f32 0.0, %v6694
        %v6696 = vpop.f32.mrf.mxu0
        %6697 = vmatprep.mubr.bf16.mxu0 %v6590
        %6698 = vmatmul.mubr.bf16.gmra.mxu0 %v6589
        %v6699 = vpop.f32.mrf.mxu0
        %v6700 = vadd.f32 0.0, %v6699
        %v6701 = vpop.f32.mrf.mxu0
        %v6702 = vpop.f32.mrf.mxu0
        %v6703 = vadd.f32 0.0, %v6702
        %v6704 = vpop.f32.mrf.mxu0
        %6705 = vmatprep.mubr.bf16.mxu0 %v6592
        %6706 = vmatmul.mubr.bf16.gmra.mxu0 %v6591
        %v6707 = vpop.f32.mrf.mxu0
        %v6708 = vadd.f32 0.0, %v6707
        %v6709 = vpop.f32.mrf.mxu0
        %v6710 = vpop.f32.mrf.mxu0
        %v6711 = vadd.f32 0.0, %v6710
        %v6712 = vpop.f32.mrf.mxu0
        %6713 = vmatprep.mubr.bf16.mxu0 %v6594
        %6714 = vmatmul.mubr.bf16.gmra.mxu0 %v6593
        %v6715 = vpop.f32.mrf.mxu0
        %v6716 = vadd.f32 0.0, %v6715
        %v6717 = vpop.f32.mrf.mxu0
        %v6718 = vpop.f32.mrf.mxu0
        %v6719 = vadd.f32 0.0, %v6718
        %v6720 = vpop.f32.mrf.mxu0
        %6721 = vmatprep.mubr.bf16.mxu0 %v6596
        %6722 = vmatmul.mubr.bf16.gmra.mxu0 %v6595
        %v6723 = vpop.f32.mrf.mxu0
        %v6724 = vadd.f32 0.0, %v6723
        %v6725 = vpop.f32.mrf.mxu0
        %v6726 = vpop.f32.mrf.mxu0
        %v6727 = vadd.f32 0.0, %v6726
        %v6728 = vpop.f32.mrf.mxu0
        %6729 = vmatprep.mubr.bf16.mxu0 %v6598
        %6730 = vmatmul.mubr.bf16.gmra.mxu0 %v6597
        %v6731 = vpop.f32.mrf.mxu0
        %v6732 = vadd.f32 0.0, %v6731
        %v6733 = vpop.f32.mrf.mxu0
        %v6734 = vpop.f32.mrf.mxu0
        %v6735 = vadd.f32 0.0, %v6734
        %v6736 = vpop.f32.mrf.mxu0
        %6737 = vmatprep.mubr.bf16.mxu0 %v6600
        %6738 = vmatmul.mubr.bf16.gmra.mxu0 %v6599
        %v6739 = vpop.f32.mrf.mxu0
        %v6740 = vadd.f32 0.0, %v6739
        %v6741 = vpop.f32.mrf.mxu0
        %v6742 = vpop.f32.mrf.mxu0
        %v6743 = vadd.f32 0.0, %v6742
        %v6744 = vpop.f32.mrf.mxu0
        %6745 = vdwg.mxu0
        %v6746 = vrcp.pop %v6539
        %v6747 = vrcp.pop %v6542
        %v6748 = vrcp.pop %v6545
        %v6749 = vrcp.pop %v6548
        %v6750 = vrcp.pop %v6551
        %v6751 = vrcp.pop %v6554
        %v6752 = vrcp.pop %v6557
        %v6753 = vrcp.pop %v6560
        %v6754 = vrcp.pop %v6563
        %v6755 = vrcp.pop %v6566
        %v6756 = vrcp.pop %v6569
        %v6757 = vrcp.pop %v6572
        %v6758 = vrcp.pop %v6575
        %v6759 = vrcp.pop %v6578
        %v6760 = vrcp.pop %v6581
        %v6761 = vrcp.pop %v6584
        %v6762 = vmul.f32 %v6684, %v6746
        %v6763 = vmul.f32 %v6687, %v6747
        %v6764 = vmul.f32 %v6692, %v6748
        %v6765 = vmul.f32 %v6695, %v6749
        %v6766 = vmul.f32 %v6700, %v6750
        %v6767 = vmul.f32 %v6703, %v6751
        %v6768 = vmul.f32 %v6708, %v6752
        %v6769 = vmul.f32 %v6711, %v6753
        %v6770 = vmul.f32 %v6716, %v6754
        %v6771 = vmul.f32 %v6719, %v6755
        %v6772 = vmul.f32 %v6724, %v6756
        %v6773 = vmul.f32 %v6727, %v6757
        %v6774 = vmul.f32 %v6732, %v6758
        %v6775 = vmul.f32 %v6735, %v6759
        %v6776 = vmul.f32 %v6740, %v6760
        %v6777 = vmul.f32 %v6743, %v6761
        %v6778 = vpack.c.bf16 %v6763, %v6762
        %v6779 = vpack.c.bf16 %v6765, %v6764
        %v6780 = vpack.c.bf16 %v6767, %v6766
        %v6781 = vpack.c.bf16 %v6769, %v6768
        %v6782 = vpack.c.bf16 %v6771, %v6770
        %v6783 = vpack.c.bf16 %v6773, %v6772
        %v6784 = vpack.c.bf16 %v6775, %v6774
        %v6785 = vpack.c.bf16 %v6777, %v6776
        %6794 = vrot.lane.b32.xlu0 %v3022, 16
        %v6795 = vpop.permute.xlu0 %6794
        %6796 = vrot.lane.b32.xlu0 %v3023, 16
        %v6797 = vpop.permute.xlu0 %6796
        %6798 = vrot.lane.b32.xlu0 %v3024, 16
        %v6799 = vpop.permute.xlu0 %6798
        %6800 = vrot.lane.b32.xlu0 %v3025, 16
        %v6801 = vpop.permute.xlu0 %6800
        %6802 = vrot.lane.b32.xlu0 %v3026, 16
        %v6803 = vpop.permute.xlu0 %6802
        %6804 = vrot.lane.b32.xlu0 %v3027, 16
        %v6805 = vpop.permute.xlu0 %6804
        %6806 = vrot.lane.b32.xlu0 %v3028, 16
        %v6807 = vpop.permute.xlu0 %6806
        %6808 = vrot.lane.b32.xlu0 %v3029, 16
        %v6809 = vpop.permute.xlu0 %6808
        %6818 = vrot.lane.b32.xlu0 %v3648, 32
        %v6819 = vpop.permute.xlu0 %6818
        %6820 = vrot.lane.b32.xlu0 %v3649, 32
        %v6821 = vpop.permute.xlu0 %6820
        %6822 = vrot.lane.b32.xlu0 %v3650, 32
        %v6823 = vpop.permute.xlu0 %6822
        %6824 = vrot.lane.b32.xlu0 %v3651, 32
        %v6825 = vpop.permute.xlu0 %6824
        %6826 = vrot.lane.b32.xlu0 %v3652, 32
        %v6827 = vpop.permute.xlu0 %6826
        %6828 = vrot.lane.b32.xlu0 %v3653, 32
        %v6829 = vpop.permute.xlu0 %6828
        %6830 = vrot.lane.b32.xlu0 %v3654, 32
        %v6831 = vpop.permute.xlu0 %6830
        %6832 = vrot.lane.b32.xlu0 %v3655, 32
        %v6833 = vpop.permute.xlu0 %6832
        %6842 = vrot.lane.b32.xlu0 %v4274, 48
        %v6843 = vpop.permute.xlu0 %6842
        %6844 = vrot.lane.b32.xlu0 %v4275, 48
        %v6845 = vpop.permute.xlu0 %6844
        %6846 = vrot.lane.b32.xlu0 %v4276, 48
        %v6847 = vpop.permute.xlu0 %6846
        %6848 = vrot.lane.b32.xlu0 %v4277, 48
        %v6849 = vpop.permute.xlu0 %6848
        %6850 = vrot.lane.b32.xlu0 %v4278, 48
        %v6851 = vpop.permute.xlu0 %6850
        %6852 = vrot.lane.b32.xlu0 %v4279, 48
        %v6853 = vpop.permute.xlu0 %6852
        %6854 = vrot.lane.b32.xlu0 %v4280, 48
        %v6855 = vpop.permute.xlu0 %6854
        %6856 = vrot.lane.b32.xlu0 %v4281, 48
        %v6857 = vpop.permute.xlu0 %6856
        %6866 = vrot.lane.b32.xlu0 %v4900, 64
        %v6867 = vpop.permute.xlu0 %6866
        %6868 = vrot.lane.b32.xlu0 %v4901, 64
        %v6869 = vpop.permute.xlu0 %6868
        %6870 = vrot.lane.b32.xlu0 %v4902, 64
        %v6871 = vpop.permute.xlu0 %6870
        %6872 = vrot.lane.b32.xlu0 %v4903, 64
        %v6873 = vpop.permute.xlu0 %6872
        %6874 = vrot.lane.b32.xlu0 %v4904, 64
        %v6875 = vpop.permute.xlu0 %6874
        %6876 = vrot.lane.b32.xlu0 %v4905, 64
        %v6877 = vpop.permute.xlu0 %6876
        %6878 = vrot.lane.b32.xlu0 %v4906, 64
        %v6879 = vpop.permute.xlu0 %6878
        %6880 = vrot.lane.b32.xlu0 %v4907, 64
        %v6881 = vpop.permute.xlu0 %6880
        %6890 = vrot.lane.b32.xlu0 %v5526, 80
        %v6891 = vpop.permute.xlu0 %6890
        %6892 = vrot.lane.b32.xlu0 %v5527, 80
        %v6893 = vpop.permute.xlu0 %6892
        %6894 = vrot.lane.b32.xlu0 %v5528, 80
        %v6895 = vpop.permute.xlu0 %6894
        %6896 = vrot.lane.b32.xlu0 %v5529, 80
        %v6897 = vpop.permute.xlu0 %6896
        %6898 = vrot.lane.b32.xlu0 %v5530, 80
        %v6899 = vpop.permute.xlu0 %6898
        %6900 = vrot.lane.b32.xlu0 %v5531, 80
        %v6901 = vpop.permute.xlu0 %6900
        %6902 = vrot.lane.b32.xlu0 %v5532, 80
        %v6903 = vpop.permute.xlu0 %6902
        %6904 = vrot.lane.b32.xlu0 %v5533, 80
        %v6905 = vpop.permute.xlu0 %6904
        %6914 = vrot.lane.b32.xlu0 %v6152, 96
        %v6915 = vpop.permute.xlu0 %6914
        %6916 = vrot.lane.b32.xlu0 %v6153, 96
        %v6917 = vpop.permute.xlu0 %6916
        %6918 = vrot.lane.b32.xlu0 %v6154, 96
        %v6919 = vpop.permute.xlu0 %6918
        %6920 = vrot.lane.b32.xlu0 %v6155, 96
        %v6921 = vpop.permute.xlu0 %6920
        %6922 = vrot.lane.b32.xlu0 %v6156, 96
        %v6923 = vpop.permute.xlu0 %6922
        %6924 = vrot.lane.b32.xlu0 %v6157, 96
        %v6925 = vpop.permute.xlu0 %6924
        %6926 = vrot.lane.b32.xlu0 %v6158, 96
        %v6927 = vpop.permute.xlu0 %6926
        %6928 = vrot.lane.b32.xlu0 %v6159, 96
        %v6929 = vpop.permute.xlu0 %6928
        %6938 = vrot.lane.b32.xlu0 %v6778, 112
        %v6939 = vpop.permute.xlu0 %6938
        %6940 = vrot.lane.b32.xlu0 %v6779, 112
        %v6941 = vpop.permute.xlu0 %6940
        %6942 = vrot.lane.b32.xlu0 %v6780, 112
        %v6943 = vpop.permute.xlu0 %6942
        %6944 = vrot.lane.b32.xlu0 %v6781, 112
        %v6945 = vpop.permute.xlu0 %6944
        %6946 = vrot.lane.b32.xlu0 %v6782, 112
        %v6947 = vpop.permute.xlu0 %6946
        %6948 = vrot.lane.b32.xlu0 %v6783, 112
        %v6949 = vpop.permute.xlu0 %6948
        %6950 = vrot.lane.b32.xlu0 %v6784, 112
        %v6951 = vpop.permute.xlu0 %6950
        %6952 = vrot.lane.b32.xlu0 %v6785, 112
        %v6953 = vpop.permute.xlu0 %6952
        %v6956 = vsel %vm1777, %v2396, %v6795
        %v6959 = vsel %vm1777, %v2397, %v6797
        %v6962 = vsel %vm1777, %v2398, %v6799
        %v6965 = vsel %vm1777, %v2399, %v6801
        %v6968 = vsel %vm1777, %v2400, %v6803
        %v6971 = vsel %vm1777, %v2401, %v6805
        %v6974 = vsel %vm1777, %v2402, %v6807
        %v6977 = vsel %vm1777, %v2403, %v6809
        %vm6978 = vcmask 261120
        %v6980 = vsel %vm6978, %v6956, %v6819
        %v6982 = vsel %vm6978, %v6959, %v6821
        %v6984 = vsel %vm6978, %v6962, %v6823
        %v6986 = vsel %vm6978, %v6965, %v6825
        %v6988 = vsel %vm6978, %v6968, %v6827
        %v6990 = vsel %vm6978, %v6971, %v6829
        %v6992 = vsel %vm6978, %v6974, %v6831
        %v6994 = vsel %vm6978, %v6977, %v6833
        %vm6995 = vcmask 392192
        %v6997 = vsel %vm6995, %v6980, %v6843
        %v6999 = vsel %vm6995, %v6982, %v6845
        %v7001 = vsel %vm6995, %v6984, %v6847
        %v7003 = vsel %vm6995, %v6986, %v6849
        %v7005 = vsel %vm6995, %v6988, %v6851
        %v7007 = vsel %vm6995, %v6990, %v6853
        %v7009 = vsel %vm6995, %v6992, %v6855
        %v7011 = vsel %vm6995, %v6994, %v6857
        %vm7012 = vcmask 523264
        %v7014 = vsel %vm7012, %v6997, %v6867
        %v7016 = vsel %vm7012, %v6999, %v6869
        %v7018 = vsel %vm7012, %v7001, %v6871
        %v7020 = vsel %vm7012, %v7003, %v6873
        %v7022 = vsel %vm7012, %v7005, %v6875
        %v7024 = vsel %vm7012, %v7007, %v6877
        %v7026 = vsel %vm7012, %v7009, %v6879
        %v7028 = vsel %vm7012, %v7011, %v6881
        %vm7029 = vcmask 654336
        %v7031 = vsel %vm7029, %v7014, %v6891
        %v7033 = vsel %vm7029, %v7016, %v6893
        %v7035 = vsel %vm7029, %v7018, %v6895
        %v7037 = vsel %vm7029, %v7020, %v6897
        %v7039 = vsel %vm7029, %v7022, %v6899
        %v7041 = vsel %vm7029, %v7024, %v6901
        %v7043 = vsel %vm7029, %v7026, %v6903
        %v7045 = vsel %vm7029, %v7028, %v6905
        %vm7046 = vcmask 785408
        %v7048 = vsel %vm7046, %v7031, %v6915
        %v7050 = vsel %vm7046, %v7033, %v6917
        %v7052 = vsel %vm7046, %v7035, %v6919
        %v7054 = vsel %vm7046, %v7037, %v6921
        %v7056 = vsel %vm7046, %v7039, %v6923
        %v7058 = vsel %vm7046, %v7041, %v6925
        %v7060 = vsel %vm7046, %v7043, %v6927
        %v7062 = vsel %vm7046, %v7045, %v6929
        %vm7063 = vcmask 916480
        %v7065 = vsel %vm7063, %v7048, %v6939
        %v7068 = vsel %vm7063, %v7050, %v6941
        %v7071 = vsel %vm7063, %v7052, %v6943
        %v7074 = vsel %vm7063, %v7054, %v6945
        %v7077 = vsel %vm7063, %v7056, %v6947
        %v7080 = vsel %vm7063, %v7058, %v6949
        %v7083 = vsel %vm7063, %v7060, %v6951
        %v7086 = vsel %vm7063, %v7062, %v6953
        %v7088 = vld [vmem:[%s3] sm:$0xf]
        %v7089 = vld [vmem:[%s3 + $0x4] sm:$0xf]
        %v7090 = vld [vmem:[%s3 + $0x8] sm:$0xf]
        %v7091 = vld [vmem:[%s3 + $0xc] sm:$0xf]
        %v7092 = vld [vmem:[%s3 + $0x10] sm:$0xf]
        %v7093 = vld [vmem:[%s3 + $0x14] sm:$0xf]
        %v7094 = vld [vmem:[%s3 + $0x18] sm:$0xf]
        %v7095 = vld [vmem:[%s3 + $0x1c] sm:$0xf]
        %v7096 = vld [vmem:[%s3 + $0x20] sm:$0xf]
        %v7097 = vld [vmem:[%s3 + $0x24] sm:$0xf]
        %v7098 = vld [vmem:[%s3 + $0x28] sm:$0xf]
        %v7099 = vld [vmem:[%s3 + $0x2c] sm:$0xf]
        %v7100 = vld [vmem:[%s3 + $0x30] sm:$0xf]
        %v7101 = vld [vmem:[%s3 + $0x34] sm:$0xf]
        %v7102 = vld [vmem:[%s3 + $0x38] sm:$0xf]
        %v7103 = vld [vmem:[%s3 + $0x3c] sm:$0xf]
        %v7104 = vld [vmem:[%s4] sm:$0x1]
        %v7106 = vlaneseq
        %v7107 = vshrl.u32 %v7106, 7
        %v7108 = vsub.s32 0, %v7107
        %v7109 = vrot.slane %v7104, %v7108
        %v7127 = vunpack.c.l.b16 %v7088
        %v7128 = vunpack.c.l.b16 %v7089
        %v7129 = vunpack.c.l.b16 %v7090
        %v7130 = vunpack.c.l.b16 %v7091
        %v7131 = vunpack.c.l.b16 %v7092
        %v7132 = vunpack.c.l.b16 %v7093
        %v7133 = vunpack.c.l.b16 %v7094
        %v7134 = vunpack.c.l.b16 %v7095
        %v7135 = vunpack.c.l.b16 %v7096
        %v7136 = vunpack.c.l.b16 %v7097
        %v7137 = vunpack.c.l.b16 %v7098
        %v7138 = vunpack.c.l.b16 %v7099
        %v7139 = vunpack.c.l.b16 %v7100
        %v7140 = vunpack.c.l.b16 %v7101
        %v7141 = vunpack.c.l.b16 %v7102
        %v7142 = vunpack.c.l.b16 %v7103
        %v7143 = vpack.c.b16 %v7128, %v7127
        %v7144 = vpack.c.b16 %v7130, %v7129
        %v7145 = vpack.c.b16 %v7132, %v7131
        %v7146 = vpack.c.b16 %v7134, %v7133
        %v7147 = vpack.c.b16 %v7136, %v7135
        %v7148 = vpack.c.b16 %v7138, %v7137
        %v7149 = vpack.c.b16 %v7140, %v7139
        %v7150 = vpack.c.b16 %v7142, %v7141
        %7159 = vmatprep.subr.bf16.mxu0 0
        %7160 = vmatpush1.bf16.msra.mxu0 %v7150
        %7161 = vmatprep.subr.bf16.mxu0 0
        %7162 = vmatpush1.bf16.msra.mxu0 %v7149
        %7163 = vmatprep.subr.bf16.mxu0 0
        %7164 = vmatpush1.bf16.msra.mxu0 %v7148
        %7165 = vmatprep.subr.bf16.mxu0 0
        %7166 = vmatpush1.bf16.msra.mxu0 %v7147
        %7167 = vmatprep.subr.bf16.mxu0 0
        %7168 = vmatpush1.bf16.msra.mxu0 %v7146
        %7169 = vmatprep.subr.bf16.mxu0 0
        %7170 = vmatpush1.bf16.msra.mxu0 %v7145
        %7171 = vmatprep.subr.bf16.mxu0 0
        %7172 = vmatpush1.bf16.msra.mxu0 %v7144
        %7173 = vmatprep.subr.bf16.mxu0 0
        %7174 = vmatpush1.bf16.msra.mxu0 %v7143
        %7175 = vmatprep.subr.bf16.mxu0 0
        %7176 = vmatpush2.bf16.msra.mxu0 0
        %7177 = vmatprep.subr.bf16.mxu0 0
        %7178 = vmatpush2.bf16.msra.mxu0 0
        %7179 = vmatprep.subr.bf16.mxu0 0
        %7180 = vmatpush2.bf16.msra.mxu0 0
        %7181 = vmatprep.subr.bf16.mxu0 0
        %7182 = vmatpush2.bf16.msra.mxu0 0
        %7183 = vmatprep.subr.bf16.mxu0 0
        %7184 = vmatpush2.bf16.msra.mxu0 0
        %7185 = vmatprep.subr.bf16.mxu0 0
        %7186 = vmatpush2.bf16.msra.mxu0 0
        %7187 = vmatprep.subr.bf16.mxu0 0
        %7188 = vmatpush2.bf16.msra.mxu0 0
        %7189 = vmatprep.subr.bf16.mxu0 0
        %7190 = vmatpush2.bf16.msra.mxu0 0
        %7191 = vmatprep.mubr.bf16.mxu0 0
        %7192 = vmatmul.mubr.bf16.gmra.mxu0 %v7065
        %v7193 = vpop.f32.mrf.mxu0
        %v7194 = vadd.f32 %v7109, %v7193
        %v7195 = vpop.f32.mrf.mxu0
        %v7196 = vpop.f32.mrf.mxu0
        %v7197 = vadd.f32 %v7109, %v7196
        %v7198 = vpop.f32.mrf.mxu0
        %7199 = vmatprep.mubr.bf16.mxu0 0
        %7200 = vmatmul.mubr.bf16.gmra.mxu0 %v7068
        %v7201 = vpop.f32.mrf.mxu0
        %v7202 = vadd.f32 %v7109, %v7201
        %v7203 = vpop.f32.mrf.mxu0
        %v7204 = vpop.f32.mrf.mxu0
        %v7205 = vadd.f32 %v7109, %v7204
        %v7206 = vpop.f32.mrf.mxu0
        %7207 = vmatprep.mubr.bf16.mxu0 0
        %7208 = vmatmul.mubr.bf16.gmra.mxu0 %v7071
        %v7209 = vpop.f32.mrf.mxu0
        %v7210 = vadd.f32 %v7109, %v7209
        %v7211 = vpop.f32.mrf.mxu0
        %v7212 = vpop.f32.mrf.mxu0
        %v7213 = vadd.f32 %v7109, %v7212
        %v7214 = vpop.f32.mrf.mxu0
        %7215 = vmatprep.mubr.bf16.mxu0 0
        %7216 = vmatmul.mubr.bf16.gmra.mxu0 %v7074
        %v7217 = vpop.f32.mrf.mxu0
        %v7218 = vadd.f32 %v7109, %v7217
        %v7219 = vpop.f32.mrf.mxu0
        %v7220 = vpop.f32.mrf.mxu0
        %v7221 = vadd.f32 %v7109, %v7220
        %v7222 = vpop.f32.mrf.mxu0
        %7223 = vmatprep.mubr.bf16.mxu0 0
        %7224 = vmatmul.mubr.bf16.gmra.mxu0 %v7077
        %v7225 = vpop.f32.mrf.mxu0
        %v7226 = vadd.f32 %v7109, %v7225
        %v7227 = vpop.f32.mrf.mxu0
        %v7228 = vpop.f32.mrf.mxu0
        %v7229 = vadd.f32 %v7109, %v7228
        %v7230 = vpop.f32.mrf.mxu0
        %7231 = vmatprep.mubr.bf16.mxu0 0
        %7232 = vmatmul.mubr.bf16.gmra.mxu0 %v7080
        %v7233 = vpop.f32.mrf.mxu0
        %v7234 = vadd.f32 %v7109, %v7233
        %v7235 = vpop.f32.mrf.mxu0
        %v7236 = vpop.f32.mrf.mxu0
        %v7237 = vadd.f32 %v7109, %v7236
        %v7238 = vpop.f32.mrf.mxu0
        %7239 = vmatprep.mubr.bf16.mxu0 0
        %7240 = vmatmul.mubr.bf16.gmra.mxu0 %v7083
        %v7241 = vpop.f32.mrf.mxu0
        %v7242 = vadd.f32 %v7109, %v7241
        %v7243 = vpop.f32.mrf.mxu0
        %v7244 = vpop.f32.mrf.mxu0
        %v7245 = vadd.f32 %v7109, %v7244
        %v7246 = vpop.f32.mrf.mxu0
        %7247 = vmatprep.mubr.bf16.mxu0 0
        %7248 = vmatmul.mubr.bf16.gmra.mxu0 %v7086
        %v7249 = vpop.f32.mrf.mxu0
        %v7250 = vadd.f32 %v7109, %v7249
        %v7251 = vpop.f32.mrf.mxu0
        %v7252 = vpop.f32.mrf.mxu0
        %v7253 = vadd.f32 %v7109, %v7252
        %v7254 = vpop.f32.mrf.mxu0
        %7255 = vdwg.mxu0
        %v7256 = vadd.f32 %v1557, %v7194
        %v7257 = vadd.f32 %v1558, %v7197
        %v7258 = vadd.f32 %v1559, %v7202
        %v7259 = vadd.f32 %v1560, %v7205
        %v7260 = vadd.f32 %v1561, %v7210
        %v7261 = vadd.f32 %v1562, %v7213
        %v7262 = vadd.f32 %v1563, %v7218
        %v7263 = vadd.f32 %v1564, %v7221
        %v7264 = vadd.f32 %v1565, %v7226
        %v7265 = vadd.f32 %v1566, %v7229
        %v7266 = vadd.f32 %v1567, %v7234
        %v7267 = vadd.f32 %v1568, %v7237
        %v7268 = vadd.f32 %v1569, %v7242
        %v7269 = vadd.f32 %v1570, %v7245
        %v7270 = vadd.f32 %v1571, %v7250
        %v7271 = vadd.f32 %v1572, %v7253
        %7272 = vadd.xlane.f32.xlu0 %v7256
        %v7273 = vpop.xlane.xlu0 %7272
        %7274 = vadd.xlane.f32.xlu0 %v7257
        %v7275 = vpop.xlane.xlu0 %7274
        %7276 = vadd.xlane.f32.xlu0 %v7258
        %v7277 = vpop.xlane.xlu0 %7276
        %7278 = vadd.xlane.f32.xlu0 %v7259
        %v7279 = vpop.xlane.xlu0 %7278
        %7280 = vadd.xlane.f32.xlu0 %v7260
        %v7281 = vpop.xlane.xlu0 %7280
        %7282 = vadd.xlane.f32.xlu0 %v7261
        %v7283 = vpop.xlane.xlu0 %7282
        %7284 = vadd.xlane.f32.xlu0 %v7262
        %v7285 = vpop.xlane.xlu0 %7284
        %7286 = vadd.xlane.f32.xlu0 %v7263
        %v7287 = vpop.xlane.xlu0 %7286
        %7288 = vadd.xlane.f32.xlu0 %v7264
        %v7289 = vpop.xlane.xlu0 %7288
        %7290 = vadd.xlane.f32.xlu0 %v7265
        %v7291 = vpop.xlane.xlu0 %7290
        %7292 = vadd.xlane.f32.xlu0 %v7266
        %v7293 = vpop.xlane.xlu0 %7292
        %7294 = vadd.xlane.f32.xlu0 %v7267
        %v7295 = vpop.xlane.xlu0 %7294
        %7296 = vadd.xlane.f32.xlu0 %v7268
        %v7297 = vpop.xlane.xlu0 %7296
        %7298 = vadd.xlane.f32.xlu0 %v7269
        %v7299 = vpop.xlane.xlu0 %7298
        %7300 = vadd.xlane.f32.xlu0 %v7270
        %v7301 = vpop.xlane.xlu0 %7300
        %7302 = vadd.xlane.f32.xlu0 %v7271
        %v7303 = vpop.xlane.xlu0 %7302
        %v7304 = vrcp.pop 128.0
        %v7305 = vmul.f32 %v7273, %v7304
        %v7306 = vmul.f32 %v7275, %v7304
        %v7307 = vmul.f32 %v7277, %v7304
        %v7308 = vmul.f32 %v7279, %v7304
        %v7309 = vmul.f32 %v7281, %v7304
        %v7310 = vmul.f32 %v7283, %v7304
        %v7311 = vmul.f32 %v7285, %v7304
        %v7312 = vmul.f32 %v7287, %v7304
        %v7313 = vmul.f32 %v7289, %v7304
        %v7314 = vmul.f32 %v7291, %v7304
        %v7315 = vmul.f32 %v7293, %v7304
        %v7316 = vmul.f32 %v7295, %v7304
        %v7317 = vmul.f32 %v7297, %v7304
        %v7318 = vmul.f32 %v7299, %v7304
        %v7319 = vmul.f32 %v7301, %v7304
        %v7320 = vmul.f32 %v7303, %v7304
        %v7321 = vsub.f32 %v7256, %v7305
        %v7322 = vsub.f32 %v7257, %v7306
        %v7323 = vsub.f32 %v7258, %v7307
        %v7324 = vsub.f32 %v7259, %v7308
        %v7325 = vsub.f32 %v7260, %v7309
        %v7326 = vsub.f32 %v7261, %v7310
        %v7327 = vsub.f32 %v7262, %v7311
        %v7328 = vsub.f32 %v7263, %v7312
        %v7329 = vsub.f32 %v7264, %v7313
        %v7330 = vsub.f32 %v7265, %v7314
        %v7331 = vsub.f32 %v7266, %v7315
        %v7332 = vsub.f32 %v7267, %v7316
        %v7333 = vsub.f32 %v7268, %v7317
        %v7334 = vsub.f32 %v7269, %v7318
        %v7335 = vsub.f32 %v7270, %v7319
        %v7336 = vsub.f32 %v7271, %v7320
        %v7337 = vmul.f32 %v7321, %v7321
        %v7338 = vmul.f32 %v7322, %v7322
        %v7339 = vmul.f32 %v7323, %v7323
        %v7340 = vmul.f32 %v7324, %v7324
        %v7341 = vmul.f32 %v7325, %v7325
        %v7342 = vmul.f32 %v7326, %v7326
        %v7343 = vmul.f32 %v7327, %v7327
        %v7344 = vmul.f32 %v7328, %v7328
        %v7345 = vmul.f32 %v7329, %v7329
        %v7346 = vmul.f32 %v7330, %v7330
        %v7347 = vmul.f32 %v7331, %v7331
        %v7348 = vmul.f32 %v7332, %v7332
        %v7349 = vmul.f32 %v7333, %v7333
        %v7350 = vmul.f32 %v7334, %v7334
        %v7351 = vmul.f32 %v7335, %v7335
        %v7352 = vmul.f32 %v7336, %v7336
        %7353 = vadd.xlane.f32.xlu0 %v7337
        %v7354 = vpop.xlane.xlu0 %7353
        %7355 = vadd.xlane.f32.xlu0 %v7338
        %v7356 = vpop.xlane.xlu0 %7355
        %7357 = vadd.xlane.f32.xlu0 %v7339
        %v7358 = vpop.xlane.xlu0 %7357
        %7359 = vadd.xlane.f32.xlu0 %v7340
        %v7360 = vpop.xlane.xlu0 %7359
        %7361 = vadd.xlane.f32.xlu0 %v7341
        %v7362 = vpop.xlane.xlu0 %7361
        %7363 = vadd.xlane.f32.xlu0 %v7342
        %v7364 = vpop.xlane.xlu0 %7363
        %7365 = vadd.xlane.f32.xlu0 %v7343
        %v7366 = vpop.xlane.xlu0 %7365
        %7367 = vadd.xlane.f32.xlu0 %v7344
        %v7368 = vpop.xlane.xlu0 %7367
        %7369 = vadd.xlane.f32.xlu0 %v7345
        %v7370 = vpop.xlane.xlu0 %7369
        %7371 = vadd.xlane.f32.xlu0 %v7346
        %v7372 = vpop.xlane.xlu0 %7371
        %7373 = vadd.xlane.f32.xlu0 %v7347
        %v7374 = vpop.xlane.xlu0 %7373
        %7375 = vadd.xlane.f32.xlu0 %v7348
        %v7376 = vpop.xlane.xlu0 %7375
        %7377 = vadd.xlane.f32.xlu0 %v7349
        %v7378 = vpop.xlane.xlu0 %7377
        %7379 = vadd.xlane.f32.xlu0 %v7350
        %v7380 = vpop.xlane.xlu0 %7379
        %7381 = vadd.xlane.f32.xlu0 %v7351
        %v7382 = vpop.xlane.xlu0 %7381
        %7383 = vadd.xlane.f32.xlu0 %v7352
        %v7384 = vpop.xlane.xlu0 %7383
        %v7385 = vmul.f32 %v7354, %v7304
        %v7386 = vmul.f32 %v7356, %v7304
        %v7387 = vmul.f32 %v7358, %v7304
        %v7388 = vmul.f32 %v7360, %v7304
        %v7389 = vmul.f32 %v7362, %v7304
        %v7390 = vmul.f32 %v7364, %v7304
        %v7391 = vmul.f32 %v7366, %v7304
        %v7392 = vmul.f32 %v7368, %v7304
        %v7393 = vmul.f32 %v7370, %v7304
        %v7394 = vmul.f32 %v7372, %v7304
        %v7395 = vmul.f32 %v7374, %v7304
        %v7396 = vmul.f32 %v7376, %v7304
        %v7397 = vmul.f32 %v7378, %v7304
        %v7398 = vmul.f32 %v7380, %v7304
        %v7399 = vmul.f32 %v7382, %v7304
        %v7400 = vmul.f32 %v7384, %v7304
        %v7401 = vadd.f32 %v7385, 1e-05
        %v7402 = vadd.f32 %v7386, 1e-05
        %v7403 = vadd.f32 %v7387, 1e-05
        %v7404 = vadd.f32 %v7388, 1e-05
        %v7405 = vadd.f32 %v7389, 1e-05
        %v7406 = vadd.f32 %v7390, 1e-05
        %v7407 = vadd.f32 %v7391, 1e-05
        %v7408 = vadd.f32 %v7392, 1e-05
        %v7409 = vadd.f32 %v7393, 1e-05
        %v7410 = vadd.f32 %v7394, 1e-05
        %v7411 = vadd.f32 %v7395, 1e-05
        %v7412 = vadd.f32 %v7396, 1e-05
        %v7413 = vadd.f32 %v7397, 1e-05
        %v7414 = vadd.f32 %v7398, 1e-05
        %v7415 = vadd.f32 %v7399, 1e-05
        %v7416 = vadd.f32 %v7400, 1e-05
        %v7417 = vrsqrt.pop %v7401
        %v7418 = vrsqrt.pop %v7402
        %v7419 = vrsqrt.pop %v7403
        %v7420 = vrsqrt.pop %v7404
        %v7421 = vrsqrt.pop %v7405
        %v7422 = vrsqrt.pop %v7406
        %v7423 = vrsqrt.pop %v7407
        %v7424 = vrsqrt.pop %v7408
        %v7425 = vrsqrt.pop %v7409
        %v7426 = vrsqrt.pop %v7410
        %v7427 = vrsqrt.pop %v7411
        %v7428 = vrsqrt.pop %v7412
        %v7429 = vrsqrt.pop %v7413
        %v7430 = vrsqrt.pop %v7414
        %v7431 = vrsqrt.pop %v7415
        %v7432 = vrsqrt.pop %v7416
        %v7433 = vmul.f32 %v7321, %v7417
        %v7434 = vmul.f32 %v7322, %v7418
        %v7435 = vmul.f32 %v7323, %v7419
        %v7436 = vmul.f32 %v7324, %v7420
        %v7437 = vmul.f32 %v7325, %v7421
        %v7438 = vmul.f32 %v7326, %v7422
        %v7439 = vmul.f32 %v7327, %v7423
        %v7440 = vmul.f32 %v7328, %v7424
        %v7441 = vmul.f32 %v7329, %v7425
        %v7442 = vmul.f32 %v7330, %v7426
        %v7443 = vmul.f32 %v7331, %v7427
        %v7444 = vmul.f32 %v7332, %v7428
        %v7445 = vmul.f32 %v7333, %v7429
        %v7446 = vmul.f32 %v7334, %v7430
        %v7447 = vmul.f32 %v7335, %v7431
        %v7448 = vmul.f32 %v7336, %v7432
        %v7449 = vld [vmem:[%s5] sm:$0x1]
        %v7451 = vlaneseq
        %v7452 = vshrl.u32 %v7451, 7
        %v7453 = vsub.s32 0, %v7452
        %v7454 = vrot.slane %v7449, %v7453
        %v7456 = vmul.f32 %v7433, %v7454
        %v7457 = vmul.f32 %v7434, %v7454
        %v7458 = vmul.f32 %v7435, %v7454
        %v7459 = vmul.f32 %v7436, %v7454
        %v7460 = vmul.f32 %v7437, %v7454
        %v7461 = vmul.f32 %v7438, %v7454
        %v7462 = vmul.f32 %v7439, %v7454
        %v7463 = vmul.f32 %v7440, %v7454
        %v7464 = vmul.f32 %v7441, %v7454
        %v7465 = vmul.f32 %v7442, %v7454
        %v7466 = vmul.f32 %v7443, %v7454
        %v7467 = vmul.f32 %v7444, %v7454
        %v7468 = vmul.f32 %v7445, %v7454
        %v7469 = vmul.f32 %v7446, %v7454
        %v7470 = vmul.f32 %v7447, %v7454
        %v7471 = vmul.f32 %v7448, %v7454
        %v7472 = vld [vmem:[%s6] sm:$0x1]
        %v7474 = vlaneseq
        %v7475 = vshrl.u32 %v7474, 7
        %v7476 = vsub.s32 0, %v7475
        %v7477 = vrot.slane %v7472, %v7476
        %v7479 = vadd.f32 %v7456, %v7477
        %v7480 = vadd.f32 %v7457, %v7477
        %v7481 = vadd.f32 %v7458, %v7477
        %v7482 = vadd.f32 %v7459, %v7477
        %v7483 = vadd.f32 %v7460, %v7477
        %v7484 = vadd.f32 %v7461, %v7477
        %v7485 = vadd.f32 %v7462, %v7477
        %v7486 = vadd.f32 %v7463, %v7477
        %v7487 = vadd.f32 %v7464, %v7477
        %v7488 = vadd.f32 %v7465, %v7477
        %v7489 = vadd.f32 %v7466, %v7477
        %v7490 = vadd.f32 %v7467, %v7477
        %v7491 = vadd.f32 %v7468, %v7477
        %v7492 = vadd.f32 %v7469, %v7477
        %v7493 = vadd.f32 %v7470, %v7477
        %v7494 = vadd.f32 %v7471, %v7477
        %v7495 = vpack.c.bf16 %v7480, %v7479
        %v7496 = vpack.c.bf16 %v7482, %v7481
        %v7497 = vpack.c.bf16 %v7484, %v7483
        %v7498 = vpack.c.bf16 %v7486, %v7485
        %v7499 = vpack.c.bf16 %v7488, %v7487
        %v7500 = vpack.c.bf16 %v7490, %v7489
        %v7501 = vpack.c.bf16 %v7492, %v7491
        %v7502 = vpack.c.bf16 %v7494, %v7493
        %v7503 = vld [vmem:[%s7] sm:$0xf]
        %v7504 = vld [vmem:[%s7 + $0x4] sm:$0xf]
        %v7505 = vld [vmem:[%s7 + $0x8] sm:$0xf]
        %v7506 = vld [vmem:[%s7 + $0xc] sm:$0xf]
        %v7507 = vld [vmem:[%s7 + $0x10] sm:$0xf]
        %v7508 = vld [vmem:[%s7 + $0x14] sm:$0xf]
        %v7509 = vld [vmem:[%s7 + $0x18] sm:$0xf]
        %v7510 = vld [vmem:[%s7 + $0x1c] sm:$0xf]
        %v7511 = vld [vmem:[%s7 + $0x20] sm:$0xf]
        %v7512 = vld [vmem:[%s7 + $0x24] sm:$0xf]
        %v7513 = vld [vmem:[%s7 + $0x28] sm:$0xf]
        %v7514 = vld [vmem:[%s7 + $0x2c] sm:$0xf]
        %v7515 = vld [vmem:[%s7 + $0x30] sm:$0xf]
        %v7516 = vld [vmem:[%s7 + $0x34] sm:$0xf]
        %v7517 = vld [vmem:[%s7 + $0x38] sm:$0xf]
        %v7518 = vld [vmem:[%s7 + $0x3c] sm:$0xf]
        %v7519 = vld [vmem:[%s8] sm:$0x1]
        %v7521 = vlaneseq
        %v7522 = vshrl.u32 %v7521, 7
        %v7523 = vsub.s32 0, %v7522
        %v7524 = vrot.slane %v7519, %v7523
        %v7542 = vunpack.c.l.b16 %v7503
        %v7543 = vunpack.c.l.b16 %v7504
        %v7544 = vunpack.c.l.b16 %v7505
        %v7545 = vunpack.c.l.b16 %v7506
        %v7546 = vunpack.c.l.b16 %v7507
        %v7547 = vunpack.c.l.b16 %v7508
        %v7548 = vunpack.c.l.b16 %v7509
        %v7549 = vunpack.c.l.b16 %v7510
        %v7550 = vunpack.c.l.b16 %v7511
        %v7551 = vunpack.c.l.b16 %v7512
        %v7552 = vunpack.c.l.b16 %v7513
        %v7553 = vunpack.c.l.b16 %v7514
        %v7554 = vunpack.c.l.b16 %v7515
        %v7555 = vunpack.c.l.b16 %v7516
        %v7556 = vunpack.c.l.b16 %v7517
        %v7557 = vunpack.c.l.b16 %v7518
        %v7558 = vpack.c.b16 %v7543, %v7542
        %v7559 = vpack.c.b16 %v7545, %v7544
        %v7560 = vpack.c.b16 %v7547, %v7546
        %v7561 = vpack.c.b16 %v7549, %v7548
        %v7562 = vpack.c.b16 %v7551, %v7550
        %v7563 = vpack.c.b16 %v7553, %v7552
        %v7564 = vpack.c.b16 %v7555, %v7554
        %v7565 = vpack.c.b16 %v7557, %v7556
        %7574 = vmatprep.subr.bf16.mxu0 0
        %7575 = vmatpush1.bf16.msra.mxu0 %v7565
        %7576 = vmatprep.subr.bf16.mxu0 0
        %7577 = vmatpush1.bf16.msra.mxu0 %v7564
        %7578 = vmatprep.subr.bf16.mxu0 0
        %7579 = vmatpush1.bf16.msra.mxu0 %v7563
        %7580 = vmatprep.subr.bf16.mxu0 0
        %7581 = vmatpush1.bf16.msra.mxu0 %v7562
        %7582 = vmatprep.subr.bf16.mxu0 0
        %7583 = vmatpush1.bf16.msra.mxu0 %v7561
        %7584 = vmatprep.subr.bf16.mxu0 0
        %7585 = vmatpush1.bf16.msra.mxu0 %v7560
        %7586 = vmatprep.subr.bf16.mxu0 0
        %7587 = vmatpush1.bf16.msra.mxu0 %v7559
        %7588 = vmatprep.subr.bf16.mxu0 0
        %7589 = vmatpush1.bf16.msra.mxu0 %v7558
        %7590 = vmatprep.subr.bf16.mxu0 0
        %7591 = vmatpush2.bf16.msra.mxu0 0
        %7592 = vmatprep.subr.bf16.mxu0 0
        %7593 = vmatpush2.bf16.msra.mxu0 0
        %7594 = vmatprep.subr.bf16.mxu0 0
        %7595 = vmatpush2.bf16.msra.mxu0 0
        %7596 = vmatprep.subr.bf16.mxu0 0
        %7597 = vmatpush2.bf16.msra.mxu0 0
        %7598 = vmatprep.subr.bf16.mxu0 0
        %7599 = vmatpush2.bf16.msra.mxu0 0
        %7600 = vmatprep.subr.bf16.mxu0 0
        %7601 = vmatpush2.bf16.msra.mxu0 0
        %7602 = vmatprep.subr.bf16.mxu0 0
        %7603 = vmatpush2.bf16.msra.mxu0 0
        %7604 = vmatprep.subr.bf16.mxu0 0
        %7605 = vmatpush2.bf16.msra.mxu0 0
        %7606 = vmatprep.mubr.bf16.mxu0 0
        %7607 = vmatmul.mubr.bf16.gmra.mxu0 %v7495
        %v7608 = vpop.f32.mrf.mxu0
        %v7609 = vadd.f32 %v7524, %v7608
        %v7610 = vpop.f32.mrf.mxu0
        %v7611 = vpop.f32.mrf.mxu0
        %v7612 = vadd.f32 %v7524, %v7611
        %v7613 = vpop.f32.mrf.mxu0
        %7614 = vmatprep.mubr.bf16.mxu0 0
        %7615 = vmatmul.mubr.bf16.gmra.mxu0 %v7496
        %v7616 = vpop.f32.mrf.mxu0
        %v7617 = vadd.f32 %v7524, %v7616
        %v7618 = vpop.f32.mrf.mxu0
        %v7619 = vpop.f32.mrf.mxu0
        %v7620 = vadd.f32 %v7524, %v7619
        %v7621 = vpop.f32.mrf.mxu0
        %7622 = vmatprep.mubr.bf16.mxu0 0
        %7623 = vmatmul.mubr.bf16.gmra.mxu0 %v7497
        %v7624 = vpop.f32.mrf.mxu0
        %v7625 = vadd.f32 %v7524, %v7624
        %v7626 = vpop.f32.mrf.mxu0
        %v7627 = vpop.f32.mrf.mxu0
        %v7628 = vadd.f32 %v7524, %v7627
        %v7629 = vpop.f32.mrf.mxu0
        %7630 = vmatprep.mubr.bf16.mxu0 0
        %7631 = vmatmul.mubr.bf16.gmra.mxu0 %v7498
        %v7632 = vpop.f32.mrf.mxu0
        %v7633 = vadd.f32 %v7524, %v7632
        %v7634 = vpop.f32.mrf.mxu0
        %v7635 = vpop.f32.mrf.mxu0
        %v7636 = vadd.f32 %v7524, %v7635
        %v7637 = vpop.f32.mrf.mxu0
        %7638 = vmatprep.mubr.bf16.mxu0 0
        %7639 = vmatmul.mubr.bf16.gmra.mxu0 %v7499
        %v7640 = vpop.f32.mrf.mxu0
        %v7641 = vadd.f32 %v7524, %v7640
        %v7642 = vpop.f32.mrf.mxu0
        %v7643 = vpop.f32.mrf.mxu0
        %v7644 = vadd.f32 %v7524, %v7643
        %v7645 = vpop.f32.mrf.mxu0
        %7646 = vmatprep.mubr.bf16.mxu0 0
        %7647 = vmatmul.mubr.bf16.gmra.mxu0 %v7500
        %v7648 = vpop.f32.mrf.mxu0
        %v7649 = vadd.f32 %v7524, %v7648
        %v7650 = vpop.f32.mrf.mxu0
        %v7651 = vpop.f32.mrf.mxu0
        %v7652 = vadd.f32 %v7524, %v7651
        %v7653 = vpop.f32.mrf.mxu0
        %7654 = vmatprep.mubr.bf16.mxu0 0
        %7655 = vmatmul.mubr.bf16.gmra.mxu0 %v7501
        %v7656 = vpop.f32.mrf.mxu0
        %v7657 = vadd.f32 %v7524, %v7656
        %v7658 = vpop.f32.mrf.mxu0
        %v7659 = vpop.f32.mrf.mxu0
        %v7660 = vadd.f32 %v7524, %v7659
        %v7661 = vpop.f32.mrf.mxu0
        %7662 = vmatprep.mubr.bf16.mxu0 0
        %7663 = vmatmul.mubr.bf16.gmra.mxu0 %v7502
        %v7664 = vpop.f32.mrf.mxu0
        %v7665 = vadd.f32 %v7524, %v7664
        %v7666 = vpop.f32.mrf.mxu0
        %v7667 = vpop.f32.mrf.mxu0
        %v7668 = vadd.f32 %v7524, %v7667
        %v7669 = vpop.f32.mrf.mxu0
        %7670 = vdwg.mxu0
        %v7671 = vmul.f32 %v7609, 0.5
        %v7672 = vmul.f32 %v7612, 0.5
        %v7673 = vmul.f32 %v7617, 0.5
        %v7674 = vmul.f32 %v7620, 0.5
        %v7675 = vmul.f32 %v7625, 0.5
        %v7676 = vmul.f32 %v7628, 0.5
        %v7677 = vmul.f32 %v7633, 0.5
        %v7678 = vmul.f32 %v7636, 0.5
        %v7679 = vmul.f32 %v7641, 0.5
        %v7680 = vmul.f32 %v7644, 0.5
        %v7681 = vmul.f32 %v7649, 0.5
        %v7682 = vmul.f32 %v7652, 0.5
        %v7683 = vmul.f32 %v7657, 0.5
        %v7684 = vmul.f32 %v7660, 0.5
        %v7685 = vmul.f32 %v7665, 0.5
        %v7686 = vmul.f32 %v7668, 0.5
        %v7687 = vmul.f32 %v7609, 0.044715
        %v7688 = vmul.f32 %v7612, 0.044715
        %v7689 = vmul.f32 %v7617, 0.044715
        %v7690 = vmul.f32 %v7620, 0.044715
        %v7691 = vmul.f32 %v7625, 0.044715
        %v7692 = vmul.f32 %v7628, 0.044715
        %v7693 = vmul.f32 %v7633, 0.044715
        %v7694 = vmul.f32 %v7636, 0.044715
        %v7695 = vmul.f32 %v7641, 0.044715
        %v7696 = vmul.f32 %v7644, 0.044715
        %v7697 = vmul.f32 %v7649, 0.044715
        %v7698 = vmul.f32 %v7652, 0.044715
        %v7699 = vmul.f32 %v7657, 0.044715
        %v7700 = vmul.f32 %v7660, 0.044715
        %v7701 = vmul.f32 %v7665, 0.044715
        %v7702 = vmul.f32 %v7668, 0.044715
        %v7703 = vmul.f32 %v7687, %v7609
        %v7704 = vmul.f32 %v7688, %v7612
        %v7705 = vmul.f32 %v7689, %v7617
        %v7706 = vmul.f32 %v7690, %v7620
        %v7707 = vmul.f32 %v7691, %v7625
        %v7708 = vmul.f32 %v7692, %v7628
        %v7709 = vmul.f32 %v7693, %v7633
        %v7710 = vmul.f32 %v7694, %v7636
        %v7711 = vmul.f32 %v7695, %v7641
        %v7712 = vmul.f32 %v7696, %v7644
        %v7713 = vmul.f32 %v7697, %v7649
        %v7714 = vmul.f32 %v7698, %v7652
        %v7715 = vmul.f32 %v7699, %v7657
        %v7716 = vmul.f32 %v7700, %v7660
        %v7717 = vmul.f32 %v7701, %v7665
        %v7718 = vmul.f32 %v7702, %v7668
        %v7719 = vmul.f32 %v7703, %v7609
        %v7720 = vmul.f32 %v7704, %v7612
        %v7721 = vmul.f32 %v7705, %v7617
        %v7722 = vmul.f32 %v7706, %v7620
        %v7723 = vmul.f32 %v7707, %v7625
        %v7724 = vmul.f32 %v7708, %v7628
        %v7725 = vmul.f32 %v7709, %v7633
        %v7726 = vmul.f32 %v7710, %v7636
        %v7727 = vmul.f32 %v7711, %v7641
        %v7728 = vmul.f32 %v7712, %v7644
        %v7729 = vmul.f32 %v7713, %v7649
        %v7730 = vmul.f32 %v7714, %v7652
        %v7731 = vmul.f32 %v7715, %v7657
        %v7732 = vmul.f32 %v7716, %v7660
        %v7733 = vmul.f32 %v7717, %v7665
        %v7734 = vmul.f32 %v7718, %v7668
        %v7735 = vadd.f32 %v7609, %v7719
        %v7736 = vadd.f32 %v7612, %v7720
        %v7737 = vadd.f32 %v7617, %v7721
        %v7738 = vadd.f32 %v7620, %v7722
        %v7739 = vadd.f32 %v7625, %v7723
        %v7740 = vadd.f32 %v7628, %v7724
        %v7741 = vadd.f32 %v7633, %v7725
        %v7742 = vadd.f32 %v7636, %v7726
        %v7743 = vadd.f32 %v7641, %v7727
        %v7744 = vadd.f32 %v7644, %v7728
        %v7745 = vadd.f32 %v7649, %v7729
        %v7746 = vadd.f32 %v7652, %v7730
        %v7747 = vadd.f32 %v7657, %v7731
        %v7748 = vadd.f32 %v7660, %v7732
        %v7749 = vadd.f32 %v7665, %v7733
        %v7750 = vadd.f32 %v7668, %v7734
        %v7751 = vmul.f32 %v7735, 0.7978846
        %v7752 = vmul.f32 %v7736, 0.7978846
        %v7753 = vmul.f32 %v7737, 0.7978846
        %v7754 = vmul.f32 %v7738, 0.7978846
        %v7755 = vmul.f32 %v7739, 0.7978846
        %v7756 = vmul.f32 %v7740, 0.7978846
        %v7757 = vmul.f32 %v7741, 0.7978846
        %v7758 = vmul.f32 %v7742, 0.7978846
        %v7759 = vmul.f32 %v7743, 0.7978846
        %v7760 = vmul.f32 %v7744, 0.7978846
        %v7761 = vmul.f32 %v7745, 0.7978846
        %v7762 = vmul.f32 %v7746, 0.7978846
        %v7763 = vmul.f32 %v7747, 0.7978846
        %v7764 = vmul.f32 %v7748, 0.7978846
        %v7765 = vmul.f32 %v7749, 0.7978846
        %v7766 = vmul.f32 %v7750, 0.7978846
        %v7767 = vtanh.pop %v7751
        %v7768 = vtanh.pop %v7752
        %v7769 = vtanh.pop %v7753
        %v7770 = vtanh.pop %v7754
        %v7771 = vtanh.pop %v7755
        %v7772 = vtanh.pop %v7756
        %v7773 = vtanh.pop %v7757
        %v7774 = vtanh.pop %v7758
        %v7775 = vtanh.pop %v7759
        %v7776 = vtanh.pop %v7760
        %v7777 = vtanh.pop %v7761
        %v7778 = vtanh.pop %v7762
        %v7779 = vtanh.pop %v7763
        %v7780 = vtanh.pop %v7764
        %v7781 = vtanh.pop %v7765
        %v7782 = vtanh.pop %v7766
        %v7783 = vadd.f32 %v7767, 1.0
        %v7784 = vadd.f32 %v7768, 1.0
        %v7785 = vadd.f32 %v7769, 1.0
        %v7786 = vadd.f32 %v7770, 1.0
        %v7787 = vadd.f32 %v7771, 1.0
        %v7788 = vadd.f32 %v7772, 1.0
        %v7789 = vadd.f32 %v7773, 1.0
        %v7790 = vadd.f32 %v7774, 1.0
        %v7791 = vadd.f32 %v7775, 1.0
        %v7792 = vadd.f32 %v7776, 1.0
        %v7793 = vadd.f32 %v7777, 1.0
        %v7794 = vadd.f32 %v7778, 1.0
        %v7795 = vadd.f32 %v7779, 1.0
        %v7796 = vadd.f32 %v7780, 1.0
        %v7797 = vadd.f32 %v7781, 1.0
        %v7798 = vadd.f32 %v7782, 1.0
        %v7799 = vmul.f32 %v7671, %v7783
        %v7800 = vmul.f32 %v7672, %v7784
        %v7801 = vmul.f32 %v7673, %v7785
        %v7802 = vmul.f32 %v7674, %v7786
        %v7803 = vmul.f32 %v7675, %v7787
        %v7804 = vmul.f32 %v7676, %v7788
        %v7805 = vmul.f32 %v7677, %v7789
        %v7806 = vmul.f32 %v7678, %v7790
        %v7807 = vmul.f32 %v7679, %v7791
        %v7808 = vmul.f32 %v7680, %v7792
        %v7809 = vmul.f32 %v7681, %v7793
        %v7810 = vmul.f32 %v7682, %v7794
        %v7811 = vmul.f32 %v7683, %v7795
        %v7812 = vmul.f32 %v7684, %v7796
        %v7813 = vmul.f32 %v7685, %v7797
        %v7814 = vmul.f32 %v7686, %v7798
        %v7815 = vpack.c.bf16 %v7800, %v7799
        %v7816 = vpack.c.bf16 %v7802, %v7801
        %v7817 = vpack.c.bf16 %v7804, %v7803
        %v7818 = vpack.c.bf16 %v7806, %v7805
        %v7819 = vpack.c.bf16 %v7808, %v7807
        %v7820 = vpack.c.bf16 %v7810, %v7809
        %v7821 = vpack.c.bf16 %v7812, %v7811
        %v7822 = vpack.c.bf16 %v7814, %v7813
        %v7823 = vld [vmem:[%s9] sm:$0xf]
        %v7824 = vld [vmem:[%s9 + $0x4] sm:$0xf]
        %v7825 = vld [vmem:[%s9 + $0x8] sm:$0xf]
        %v7826 = vld [vmem:[%s9 + $0xc] sm:$0xf]
        %v7827 = vld [vmem:[%s9 + $0x10] sm:$0xf]
        %v7828 = vld [vmem:[%s9 + $0x14] sm:$0xf]
        %v7829 = vld [vmem:[%s9 + $0x18] sm:$0xf]
        %v7830 = vld [vmem:[%s9 + $0x1c] sm:$0xf]
        %v7831 = vld [vmem:[%s9 + $0x20] sm:$0xf]
        %v7832 = vld [vmem:[%s9 + $0x24] sm:$0xf]
        %v7833 = vld [vmem:[%s9 + $0x28] sm:$0xf]
        %v7834 = vld [vmem:[%s9 + $0x2c] sm:$0xf]
        %v7835 = vld [vmem:[%s9 + $0x30] sm:$0xf]
        %v7836 = vld [vmem:[%s9 + $0x34] sm:$0xf]
        %v7837 = vld [vmem:[%s9 + $0x38] sm:$0xf]
        %v7838 = vld [vmem:[%s9 + $0x3c] sm:$0xf]
        %v7839 = vld [vmem:[%s10] sm:$0x1]
        %v7841 = vlaneseq
        %v7842 = vshrl.u32 %v7841, 7
        %v7843 = vsub.s32 0, %v7842
        %v7844 = vrot.slane %v7839, %v7843
        %v7862 = vunpack.c.l.b16 %v7823
        %v7863 = vunpack.c.l.b16 %v7824
        %v7864 = vunpack.c.l.b16 %v7825
        %v7865 = vunpack.c.l.b16 %v7826
        %v7866 = vunpack.c.l.b16 %v7827
        %v7867 = vunpack.c.l.b16 %v7828
        %v7868 = vunpack.c.l.b16 %v7829
        %v7869 = vunpack.c.l.b16 %v7830
        %v7870 = vunpack.c.l.b16 %v7831
        %v7871 = vunpack.c.l.b16 %v7832
        %v7872 = vunpack.c.l.b16 %v7833
        %v7873 = vunpack.c.l.b16 %v7834
        %v7874 = vunpack.c.l.b16 %v7835
        %v7875 = vunpack.c.l.b16 %v7836
        %v7876 = vunpack.c.l.b16 %v7837
        %v7877 = vunpack.c.l.b16 %v7838
        %v7878 = vpack.c.b16 %v7863, %v7862
        %v7879 = vpack.c.b16 %v7865, %v7864
        %v7880 = vpack.c.b16 %v7867, %v7866
        %v7881 = vpack.c.b16 %v7869, %v7868
        %v7882 = vpack.c.b16 %v7871, %v7870
        %v7883 = vpack.c.b16 %v7873, %v7872
        %v7884 = vpack.c.b16 %v7875, %v7874
        %v7885 = vpack.c.b16 %v7877, %v7876
        %7894 = vmatprep.subr.bf16.mxu0 0
        %7895 = vmatpush1.bf16.msra.mxu0 %v7885
        %7896 = vmatprep.subr.bf16.mxu0 0
        %7897 = vmatpush1.bf16.msra.mxu0 %v7884
        %7898 = vmatprep.subr.bf16.mxu0 0
        %7899 = vmatpush1.bf16.msra.mxu0 %v7883
        %7900 = vmatprep.subr.bf16.mxu0 0
        %7901 = vmatpush1.bf16.msra.mxu0 %v7882
        %7902 = vmatprep.subr.bf16.mxu0 0
        %7903 = vmatpush1.bf16.msra.mxu0 %v7881
        %7904 = vmatprep.subr.bf16.mxu0 0
        %7905 = vmatpush1.bf16.msra.mxu0 %v7880
        %7906 = vmatprep.subr.bf16.mxu0 0
        %7907 = vmatpush1.bf16.msra.mxu0 %v7879
        %7908 = vmatprep.subr.bf16.mxu0 0
        %7909 = vmatpush1.bf16.msra.mxu0 %v7878
        %7910 = vmatprep.subr.bf16.mxu0 0
        %7911 = vmatpush2.bf16.msra.mxu0 0
        %7912 = vmatprep.subr.bf16.mxu0 0
        %7913 = vmatpush2.bf16.msra.mxu0 0
        %7914 = vmatprep.subr.bf16.mxu0 0
        %7915 = vmatpush2.bf16.msra.mxu0 0
        %7916 = vmatprep.subr.bf16.mxu0 0
        %7917 = vmatpush2.bf16.msra.mxu0 0
        %7918 = vmatprep.subr.bf16.mxu0 0
        %7919 = vmatpush2.bf16.msra.mxu0 0
        %7920 = vmatprep.subr.bf16.mxu0 0
        %7921 = vmatpush2.bf16.msra.mxu0 0
        %7922 = vmatprep.subr.bf16.mxu0 0
        %7923 = vmatpush2.bf16.msra.mxu0 0
        %7924 = vmatprep.subr.bf16.mxu0 0
        %7925 = vmatpush2.bf16.msra.mxu0 0
        %7926 = vmatprep.mubr.bf16.mxu0 0
        %7927 = vmatmul.mubr.bf16.gmra.mxu0 %v7815
        %v7928 = vpop.f32.mrf.mxu0
        %v7929 = vadd.f32 %v7844, %v7928
        %v7930 = vpop.f32.mrf.mxu0
        %v7931 = vpop.f32.mrf.mxu0
        %v7932 = vadd.f32 %v7844, %v7931
        %v7933 = vpop.f32.mrf.mxu0
        %7934 = vmatprep.mubr.bf16.mxu0 0
        %7935 = vmatmul.mubr.bf16.gmra.mxu0 %v7816
        %v7936 = vpop.f32.mrf.mxu0
        %v7937 = vadd.f32 %v7844, %v7936
        %v7938 = vpop.f32.mrf.mxu0
        %v7939 = vpop.f32.mrf.mxu0
        %v7940 = vadd.f32 %v7844, %v7939
        %v7941 = vpop.f32.mrf.mxu0
        %7942 = vmatprep.mubr.bf16.mxu0 0
        %7943 = vmatmul.mubr.bf16.gmra.mxu0 %v7817
        %v7944 = vpop.f32.mrf.mxu0
        %v7945 = vadd.f32 %v7844, %v7944
        %v7946 = vpop.f32.mrf.mxu0
        %v7947 = vpop.f32.mrf.mxu0
        %v7948 = vadd.f32 %v7844, %v7947
        %v7949 = vpop.f32.mrf.mxu0
        %7950 = vmatprep.mubr.bf16.mxu0 0
        %7951 = vmatmul.mubr.bf16.gmra.mxu0 %v7818
        %v7952 = vpop.f32.mrf.mxu0
        %v7953 = vadd.f32 %v7844, %v7952
        %v7954 = vpop.f32.mrf.mxu0
        %v7955 = vpop.f32.mrf.mxu0
        %v7956 = vadd.f32 %v7844, %v7955
        %v7957 = vpop.f32.mrf.mxu0
        %7958 = vmatprep.mubr.bf16.mxu0 0
        %7959 = vmatmul.mubr.bf16.gmra.mxu0 %v7819
        %v7960 = vpop.f32.mrf.mxu0
        %v7961 = vadd.f32 %v7844, %v7960
        %v7962 = vpop.f32.mrf.mxu0
        %v7963 = vpop.f32.mrf.mxu0
        %v7964 = vadd.f32 %v7844, %v7963
        %v7965 = vpop.f32.mrf.mxu0
        %7966 = vmatprep.mubr.bf16.mxu0 0
        %7967 = vmatmul.mubr.bf16.gmra.mxu0 %v7820
        %v7968 = vpop.f32.mrf.mxu0
        %v7969 = vadd.f32 %v7844, %v7968
        %v7970 = vpop.f32.mrf.mxu0
        %v7971 = vpop.f32.mrf.mxu0
        %v7972 = vadd.f32 %v7844, %v7971
        %v7973 = vpop.f32.mrf.mxu0
        %7974 = vmatprep.mubr.bf16.mxu0 0
        %7975 = vmatmul.mubr.bf16.gmra.mxu0 %v7821
        %v7976 = vpop.f32.mrf.mxu0
        %v7977 = vadd.f32 %v7844, %v7976
        %v7978 = vpop.f32.mrf.mxu0
        %v7979 = vpop.f32.mrf.mxu0
        %v7980 = vadd.f32 %v7844, %v7979
        %v7981 = vpop.f32.mrf.mxu0
        %7982 = vmatprep.mubr.bf16.mxu0 0
        %7983 = vmatmul.mubr.bf16.gmra.mxu0 %v7822
        %v7984 = vpop.f32.mrf.mxu0
        %v7985 = vadd.f32 %v7844, %v7984
        %v7986 = vpop.f32.mrf.mxu0
        %v7987 = vpop.f32.mrf.mxu0
        %v7988 = vadd.f32 %v7844, %v7987
        %v7989 = vpop.f32.mrf.mxu0
        %7990 = vdwg.mxu0
        %v7991 = vadd.f32 %v7256, %v7929
        %v7992 = vadd.f32 %v7257, %v7932
        %v7993 = vadd.f32 %v7258, %v7937
        %v7994 = vadd.f32 %v7259, %v7940
        %v7995 = vadd.f32 %v7260, %v7945
        %v7996 = vadd.f32 %v7261, %v7948
        %v7997 = vadd.f32 %v7262, %v7953
        %v7998 = vadd.f32 %v7263, %v7956
        %v7999 = vadd.f32 %v7264, %v7961
        %v8000 = vadd.f32 %v7265, %v7964
        %v8001 = vadd.f32 %v7266, %v7969
        %v8002 = vadd.f32 %v7267, %v7972
        %v8003 = vadd.f32 %v7268, %v7977
        %v8004 = vadd.f32 %v7269, %v7980
        %v8005 = vadd.f32 %v7270, %v7985
        %v8006 = vadd.f32 %v7271, %v7988
        %8007 = vxpose.xlu0.b32.start [1/16] %v7991, 128
        %8008 = vxpose.xlu0.b32.cont [2/16] %v7992, 128
        %8009 = vxpose.xlu0.b32.cont [3/16] %v7993, 128
        %8010 = vxpose.xlu0.b32.cont [4/16] %v7994, 128
        %8011 = vxpose.xlu0.b32.cont [5/16] %v7995, 128
        %8012 = vxpose.xlu0.b32.cont [6/16] %v7996, 128
        %8013 = vxpose.xlu0.b32.cont [7/16] %v7997, 128
        %8014 = vxpose.xlu0.b32.cont [8/16] %v7998, 128
        %8015 = vxpose.xlu0.b32.cont [9/16] %v7999, 128
        %8016 = vxpose.xlu0.b32.cont [10/16] %v8000, 128
        %8017 = vxpose.xlu0.b32.cont [11/16] %v8001, 128
        %8018 = vxpose.xlu0.b32.cont [12/16] %v8002, 128
        %8019 = vxpose.xlu0.b32.cont [13/16] %v8003, 128
        %8020 = vxpose.xlu0.b32.cont [14/16] %v8004, 128
        %8021 = vxpose.xlu0.b32.cont [15/16] %v8005, 128
        %8022 = vxpose.xlu0.b32.end [16/16] %v8006, 128
        %v8023 = vpop.trf.xlu0
        %v8024 = vpop.trf.xlu0
        %v8025 = vpop.trf.xlu0
        %v8026 = vpop.trf.xlu0
        %v8027 = vpop.trf.xlu0
        %v8028 = vpop.trf.xlu0
        %v8029 = vpop.trf.xlu0
        %v8030 = vpop.trf.xlu0
        %v8031 = vpop.trf.xlu0
        %v8032 = vpop.trf.xlu0
        %v8033 = vpop.trf.xlu0
        %v8034 = vpop.trf.xlu0
        %v8035 = vpop.trf.xlu0
        %v8036 = vpop.trf.xlu0
        %v8037 = vpop.trf.xlu0
        %v8038 = vpop.trf.xlu0
        %8039 = vst [vmem:[%s389] sm:$0xff] %v8023
        %8040 = vst [vmem:[%s389 + $0x8] sm:$0xff] %v8024
        %8041 = vst [vmem:[%s389 + $0x10] sm:$0xff] %v8025
        %8042 = vst [vmem:[%s389 + $0x18] sm:$0xff] %v8026
        %8043 = vst [vmem:[%s389 + $0x20] sm:$0xff] %v8027
        %8044 = vst [vmem:[%s389 + $0x28] sm:$0xff] %v8028
        %8045 = vst [vmem:[%s389 + $0x30] sm:$0xff] %v8029
        %8046 = vst [vmem:[%s389 + $0x38] sm:$0xff] %v8030
        %8047 = vst [vmem:[%s389 + $0x40] sm:$0xff] %v8031
        %8048 = vst [vmem:[%s389 + $0x48] sm:$0xff] %v8032
        %8049 = vst [vmem:[%s389 + $0x50] sm:$0xff] %v8033
        %8050 = vst [vmem:[%s389 + $0x58] sm:$0xff] %v8034
        %8051 = vst [vmem:[%s389 + $0x60] sm:$0xff] %v8035
        %8052 = vst [vmem:[%s389 + $0x68] sm:$0xff] %v8036
        %8053 = vst [vmem:[%s389 + $0x70] sm:$0xff] %v8037
        %8054 = vst [vmem:[%s389 + $0x78] sm:$0xff] %v8038
        %s8055 = sand.u32 %s280, 1
        %s8056 = sand.u32 %s280, 1
        %s8057 = smul.addr %s8056, 128
        %s8058 = scalar_lea.vmem [#allocation6], %s8057
        // Predicated region
        $region69: #{attention_block.1} parent=63 // pred_check
          %p8059 = pneg %p290
        $region70: #{attention_block.1} parent=63 // pred_check_branch
          %8061 = sbr.rel (%p8059) target = $region72
        $region71: #{attention_block.1} parent=63 // pred_region
          %s8062 = smul.addr %s26, 32
          %s8063 = sadd.s32 %s27, %s8062
          %s8064 = smul.addr %s8063, 8
          %s8065 = scalar_lea.vmem %s11, %s8064
          // Predicated region
          $region73: #{attention_block.1} parent=71 // pred_check
            _
          $region74: #{attention_block.1} parent=71 // pred_check_branch
            %8067 = sbr.rel (0) target = $region76
          $region75: #{attention_block.1} parent=71 // pred_region
            // Predicated region
            $region77: #{attention_block.1} parent=75 // pred_check
              _
            $region78: #{attention_block.1} parent=75 // pred_check_branch
              %8069 = sbr.rel (0) target = $region80
            $region79: #{attention_block.1} parent=75 // pred_region
              // Predicated region
              $region92: #{attention_block.1} parent=79 // pred_check
                _
              $region93: #{attention_block.1} parent=79 // pred_check_branch
                %8115 = sbr.rel (0) target = $region95
              $region94: #{attention_block.1} parent=79 // pred_region
                loop: start=0, step=1, limit=1
                $region96: #{attention_block.1} parent=94 // loop_pre_header
                  _
                $region97: #{attention_block.1} parent=94 // loop_header
                  %s8117 = sphi 0, %s8121
                  %p8118 = scmp.ge.s32.totalorder %s8117, 1
                  %s8122 = sphi %s8058, %s8058
                  %s8123 = sphi %s8065, %s8065
                $region98: #{attention_block.1} parent=94 // loop_header_branch
                  %8120 = sbr.rel (%p8118) target = $region102
                $region99: #{attention_block.1} parent=94 // loop_body
                  %v8124 = vld [vmem:[%s8122] sm:$0xff]
                  %8125 = vst [vmem:[%s8123] sm:$0xff] %v8124
                  %v8126 = vld [vmem:[%s8122 + $0x8] sm:$0xff]
                  %8127 = vst [vmem:[%s8123 + $0x10] sm:$0xff] %v8126
                  %v8128 = vld [vmem:[%s8122 + $0x10] sm:$0xff]
                  %8129 = vst [vmem:[%s8123 + $0x20] sm:$0xff] %v8128
                  %v8130 = vld [vmem:[%s8122 + $0x18] sm:$0xff]
                  %8131 = vst [vmem:[%s8123 + $0x30] sm:$0xff] %v8130
                  %v8132 = vld [vmem:[%s8122 + $0x20] sm:$0xff]
                  %8133 = vst [vmem:[%s8123 + $0x40] sm:$0xff] %v8132
                  %v8134 = vld [vmem:[%s8122 + $0x28] sm:$0xff]
                  %8135 = vst [vmem:[%s8123 + $0x50] sm:$0xff] %v8134
                  %v8136 = vld [vmem:[%s8122 + $0x30] sm:$0xff]
                  %8137 = vst [vmem:[%s8123 + $0x60] sm:$0xff] %v8136
                  %v8138 = vld [vmem:[%s8122 + $0x38] sm:$0xff]
                  %8139 = vst [vmem:[%s8123 + $0x70] sm:$0xff] %v8138
                  %v8140 = vld [vmem:[%s8122 + $0x40] sm:$0xff]
                  %8141 = vst [vmem:[%s8123 + $0x80] sm:$0xff] %v8140
                  %v8142 = vld [vmem:[%s8122 + $0x48] sm:$0xff]
                  %8143 = vst [vmem:[%s8123 + $0x90] sm:$0xff] %v8142
                  %v8144 = vld [vmem:[%s8122 + $0x50] sm:$0xff]
                  %8145 = vst [vmem:[%s8123 + $0xa0] sm:$0xff] %v8144
                  %v8146 = vld [vmem:[%s8122 + $0x58] sm:$0xff]
                  %8147 = vst [vmem:[%s8123 + $0xb0] sm:$0xff] %v8146
                  %v8148 = vld [vmem:[%s8122 + $0x60] sm:$0xff]
                  %8149 = vst [vmem:[%s8123 + $0xc0] sm:$0xff] %v8148
                  %v8150 = vld [vmem:[%s8122 + $0x68] sm:$0xff]
                  %8151 = vst [vmem:[%s8123 + $0xd0] sm:$0xff] %v8150
                  %v8152 = vld [vmem:[%s8122 + $0x70] sm:$0xff]
                  %8153 = vst [vmem:[%s8123 + $0xe0] sm:$0xff] %v8152
                  %v8154 = vld [vmem:[%s8122 + $0x78] sm:$0xff]
                  %8155 = vst [vmem:[%s8123 + $0xf0] sm:$0xff] %v8154
                $region100: #{attention_block.1} parent=94 // loop_footer
                  %s8121 = sadd.s32 1, %s8117
                $region101: #{attention_block.1} parent=94 // loop_footer_branch
                  %8116 = sbr.rel target = $region97
                $region102: #{attention_block.1} parent=94 // loop_exit
                  _
              $region95: #{attention_block.1} parent=79 // pred_fallthru
                _
              // Predicated region
              $region103: #{attention_block.1} parent=79 // pred_check
                _
              $region104: #{attention_block.1} parent=79 // pred_check_branch
                %8157 = sbr.rel target = $region106
              $region105: #{attention_block.1} parent=79 // pred_region
                _
              $region106: #{attention_block.1} parent=79 // pred_fallthru
                _
            $region80: #{attention_block.1} parent=75 // pred_fallthru
              _
            // Predicated region
            $region81: #{attention_block.1} parent=75 // pred_check
              _
            $region82: #{attention_block.1} parent=75 // pred_check_branch
              %8071 = sbr.rel target = $region84
            $region83: #{attention_block.1} parent=75 // pred_region
              %s8073 = ssub.s32 256, 1
              loop: start=0, step=1, limit=1
              $region85: #{attention_block.1} parent=83 // loop_pre_header
                _
              $region86: #{attention_block.1} parent=83 // loop_header
                %s8075 = sphi 0, %s8079
                %p8076 = scmp.ge.s32.totalorder %s8075, 1
                %s8080 = sphi %s8058, %s8058
                %s8081 = sphi %s8065, %s8065
              $region87: #{attention_block.1} parent=83 // loop_header_branch
                %8078 = sbr.rel (%p8076) target = $region91
              $region88: #{attention_block.1} parent=83 // loop_body
                %v8082 = vld [vmem:[%s8080] sm:%s8073]
                %8083 = vst [vmem:[%s8081] sm:%s8073] %v8082
                %v8084 = vld [vmem:[%s8080 + $0x8] sm:%s8073]
                %8085 = vst [vmem:[%s8081 + $0x10] sm:%s8073] %v8084
                %v8086 = vld [vmem:[%s8080 + $0x10] sm:%s8073]
                %8087 = vst [vmem:[%s8081 + $0x20] sm:%s8073] %v8086
                %v8088 = vld [vmem:[%s8080 + $0x18] sm:%s8073]
                %8089 = vst [vmem:[%s8081 + $0x30] sm:%s8073] %v8088
                %v8090 = vld [vmem:[%s8080 + $0x20] sm:%s8073]
                %8091 = vst [vmem:[%s8081 + $0x40] sm:%s8073] %v8090
                %v8092 = vld [vmem:[%s8080 + $0x28] sm:%s8073]
                %8093 = vst [vmem:[%s8081 + $0x50] sm:%s8073] %v8092
                %v8094 = vld [vmem:[%s8080 + $0x30] sm:%s8073]
                %8095 = vst [vmem:[%s8081 + $0x60] sm:%s8073] %v8094
                %v8096 = vld [vmem:[%s8080 + $0x38] sm:%s8073]
                %8097 = vst [vmem:[%s8081 + $0x70] sm:%s8073] %v8096
                %v8098 = vld [vmem:[%s8080 + $0x40] sm:%s8073]
                %8099 = vst [vmem:[%s8081 + $0x80] sm:%s8073] %v8098
                %v8100 = vld [vmem:[%s8080 + $0x48] sm:%s8073]
                %8101 = vst [vmem:[%s8081 + $0x90] sm:%s8073] %v8100
                %v8102 = vld [vmem:[%s8080 + $0x50] sm:%s8073]
                %8103 = vst [vmem:[%s8081 + $0xa0] sm:%s8073] %v8102
                %v8104 = vld [vmem:[%s8080 + $0x58] sm:%s8073]
                %8105 = vst [vmem:[%s8081 + $0xb0] sm:%s8073] %v8104
                %v8106 = vld [vmem:[%s8080 + $0x60] sm:%s8073]
                %8107 = vst [vmem:[%s8081 + $0xc0] sm:%s8073] %v8106
                %v8108 = vld [vmem:[%s8080 + $0x68] sm:%s8073]
                %8109 = vst [vmem:[%s8081 + $0xd0] sm:%s8073] %v8108
                %v8110 = vld [vmem:[%s8080 + $0x70] sm:%s8073]
                %8111 = vst [vmem:[%s8081 + $0xe0] sm:%s8073] %v8110
                %v8112 = vld [vmem:[%s8080 + $0x78] sm:%s8073]
                %8113 = vst [vmem:[%s8081 + $0xf0] sm:%s8073] %v8112
              $region89: #{attention_block.1} parent=83 // loop_footer
                %s8079 = sadd.s32 1, %s8075
              $region90: #{attention_block.1} parent=83 // loop_footer_branch
                %8074 = sbr.rel target = $region86
              $region91: #{attention_block.1} parent=83 // loop_exit
                _
            $region84: #{attention_block.1} parent=75 // pred_fallthru
              _
          $region76: #{attention_block.1} parent=71 // pred_fallthru
            _
          %8158 = vnop
        $region72: #{attention_block.1} parent=63 // pred_fallthru
          _
      $region64: #{attention_block.1} parent=5 // pred_fallthru
        _
      %p8159 = scmp.le.s32.totalorder 2, %s17
      // Predicated region
      $region107: #{attention_block.1} parent=5 // pred_check
        %p8160 = pneg %p8159
      $region108: #{attention_block.1} parent=5 // pred_check_branch
        %8162 = sbr.rel (%p8160) target = $region110
      $region109: #{attention_block.1} parent=5 // pred_region
        %s8163 = ssub.s32 %s17, 2
        // Predicated region
        $region111: #{attention_block.1} parent=109 // pred_check
          %p8164 = pneg %p296
        $region112: #{attention_block.1} parent=109 // pred_check_branch
          %8166 = sbr.rel (%p8164) target = $region114
        $region113: #{attention_block.1} parent=109 // pred_region
          %s8167 = sand.u32 %s281, 1
          %s8168 = sand.u32 %s281, 1
          %s8169 = smul.addr %s8168, 128
          %s8170 = scalar_lea.vmem [#allocation6], %s8169
        $region114: #{attention_block.1} parent=109 // pred_fallthru
          _
      $region110: #{attention_block.1} parent=5 // pred_fallthru
        _
    $region6: #{attention_block.1} parent=1 // loop_footer
      %s21 = sadd.s32 1, %s17
    $region7: #{attention_block.1} parent=1 // loop_footer_branch
      %16 = sbr.rel target = $region3
    $region8: #{attention_block.1} parent=1 // loop_exit
      _

</llo_original>
